<compile_context>
chip_gen: v5e
topology: v5e:2x2
jax: 0.10.0
libtpu: 0.0.40
codegen_flags: <defaults>
</compile_context>

<pallas_src>
import functools

import jax
import jax.numpy as jnp
from jax import lax
from jax.experimental import pallas as pl
from jax.experimental.pallas import tpu as pltpu


_TM_MATMUL = 256   # M tile for the tiled matmul path (and fused-BN single-block cap)
_TM_BN = 2048      # M tile for the standalone BN pass (large-m fallback only)
_TN = 128          # N (output-channel) tile -> lane-dense stores


# ----------------------------- Pallas kernels ------------------------------

def _matmul_bias_act_kernel(a_ref, b_ref, bias_ref, o_ref, *, apply_lrelu):
    """Y = A @ B + bias (+ optional LeakyReLU 0.2). Grid = (M tiles, N tiles)."""
    y = jnp.dot(a_ref[...], b_ref[...], preferred_element_type=jnp.float32)
    y = y + bias_ref[...]
    if apply_lrelu:
        y = jnp.maximum(y, 0.2 * y)
    o_ref[...] = y.astype(o_ref.dtype)


def _matmul_bn_lrelu_kernel(a_ref, b_ref, gamma_ref, beta_ref, o_ref, *, inv_m, eps):
    """Fused Conv(matmul, bias=False) + BatchNorm2d(batch stats) + LeakyReLU(0.2).

    Used when the whole M dimension fits in one block (grid_m == 1).  Column
    (per-channel) statistics are local to the N tile, so no cross-step
    accumulator is needed and the single grid axis (N tiles) is fully parallel.
    """
    y = jnp.dot(a_ref[...], b_ref[...], preferred_element_type=jnp.float32)
    mean = jnp.sum(y, axis=0, keepdims=True) * inv_m
    yc = y - mean
    var = jnp.sum(yc * yc, axis=0, keepdims=True) * inv_m   # centered -> stable
    yn = yc * (lax.rsqrt(var + eps) * gamma_ref[...]) + beta_ref[...]
    o_ref[...] = jnp.maximum(yn, 0.2 * yn).astype(o_ref.dtype)


def _matmul_stats_kernel(a_ref, b_ref, o_ref, sum_ref, sumsq_ref, *, m_true, tm):
    """Fallback (large M): Y = A @ B plus per-column sum / sum-of-squares
    accumulated over the M grid axis (marked "arbitrary", last in the grid).
    The ragged-row mask is applied only on the last tile, and only when the
    last tile is statically ragged."""
    mi = pl.program_id(1)

    @pl.when(mi == 0)
    def _():
        sum_ref[...] = jnp.zeros_like(sum_ref)
        sumsq_ref[...] = jnp.zeros_like(sumsq_ref)

    y = jnp.dot(a_ref[...], b_ref[...], preferred_element_type=jnp.float32)

    if m_true % tm == 0:
        sum_ref[...] += jnp.sum(y, axis=0, keepdims=True)
        sumsq_ref[...] += jnp.sum(y * y, axis=0, keepdims=True)
    else:
        last = pl.num_programs(1) - 1

        @pl.when(mi != last)
        def _():
            sum_ref[...] += jnp.sum(y, axis=0, keepdims=True)
            sumsq_ref[...] += jnp.sum(y * y, axis=0, keepdims=True)

        @pl.when(mi == last)
        def _():
            row = mi * tm + lax.broadcasted_iota(jnp.int32, y.shape, 0)
            yv = jnp.where(row < m_true, y, 0.0)
            sum_ref[...] += jnp.sum(yv, axis=0, keepdims=True)
            sumsq_ref[...] += jnp.sum(yv * yv, axis=0, keepdims=True)

    o_ref[...] = y.astype(o_ref.dtype)


def _bn_lrelu_kernel(y_ref, sum_ref, sumsq_ref, gamma_ref, beta_ref, o_ref,
                     *, inv_m, eps):
    """Fallback: BatchNorm (training-mode batch stats) + LeakyReLU over Y tiles."""
    x = y_ref[...].astype(jnp.float32)
    mean = sum_ref[...] * inv_m
    var = sumsq_ref[...] * inv_m - mean * mean
    inv = lax.rsqrt(jnp.maximum(var, 0.0) + eps)   # E[x^2]-mean^2 may dip < 0 in f32
    y = (x - mean) * (inv * gamma_ref[...]) + beta_ref[...]
    y = jnp.maximum(y, 0.2 * y)
    o_ref[...] = y.astype(o_ref.dtype)


# ------------------------------- Glue helpers -------------------------------

def _round_up(x, m):
    return (x + m - 1) // m * m


def _im2col(x_nhwc, k, stride, pad):
    """x: [N, H, W, C] (bf16) -> patches [N*OH*OW, k*k*C] ordered (kh, kw, cin)."""
    n, h, w, c = x_nhwc.shape
    xp = jnp.pad(x_nhwc, ((0, 0), (pad, pad), (pad, pad), (0, 0)))
    oh = (h + 2 * pad - k) // stride + 1
    ow = (w + 2 * pad - k) // stride + 1
    cols = []
    for kh in range(k):
        for kw in range(k):
            cols.append(xp[:, kh:kh + stride * oh:stride, kw:kw + stride * ow:stride, :])
    patches = jnp.concatenate(cols, axis=-1)               # [N, OH, OW, k*k*C]
    return patches.reshape(n * oh * ow, k * k * c), oh, ow


def _bn_lrelu_pallas(y, col_sum, col_sumsq, gamma_p, beta_p, m, out_dtype):
    """Tiled BatchNorm(normalize) + LeakyReLU over the [m, Np] matmul output."""
    np_ = y.shape[1]
    tm = m if m <= _TM_BN else _TM_BN
    grid_m = pl.cdiv(m, tm)
    return pl.pallas_call(
        functools.partial(_bn_lrelu_kernel, inv_m=1.0 / float(m), eps=1e-5),
        out_shape=jax.ShapeDtypeStruct((m, np_), out_dtype),
        grid_spec=pltpu.PrefetchScalarGridSpec(
            num_scalar_prefetch=0,
            grid=(grid_m,),
            in_specs=[
                pl.BlockSpec((tm, np_), lambda i: (i, 0)),
                pl.BlockSpec((1, np_), lambda i: (0, 0)),
                pl.BlockSpec((1, np_), lambda i: (0, 0)),
                pl.BlockSpec((1, np_), lambda i: (0, 0)),
                pl.BlockSpec((1, np_), lambda i: (0, 0)),
            ],
            out_specs=pl.BlockSpec((tm, np_), lambda i: (i, 0)),
        ),
        compiler_params=pltpu.CompilerParams(dimension_semantics=("parallel",)),
    )(y, col_sum, col_sumsq, gamma_p, beta_p)


def _conv2d_pallas(x_nhwc, w_oihw, bias, gamma, beta, stride, pad, *,
                   use_bn, apply_lrelu, out_dtype):
    """One Conv2d layer (optionally + BatchNorm + LeakyReLU, fused).

    Returns (out[m, Np] in out_dtype, m, oh, ow, cout, Np).  `x_nhwc` may carry
    zero-padded channels; the weight's Cin is zero-padded to match.
    """
    cout, cin_w, kh, kw = w_oihw.shape
    cin = x_nhwc.shape[-1]                       # carried (possibly padded) channels

    # Weight: pad Cin to carried count, reorder to im2col (kh,kw,cin) column order.
    w_p = w_oihw if cin == cin_w else jnp.pad(
        w_oihw, ((0, 0), (0, cin - cin_w), (0, 0), (0, 0)))
    b_mat = jnp.transpose(w_p, (2, 3, 1, 0)).reshape(kh * kw * cin, cout)

    a, oh, ow = _im2col(x_nhwc, kh, stride, pad)  # [m, K] bf16
    m, kdim = a.shape

    kp = _round_up(kdim, 128)                    # lane-dense K (layer 0: 48 -> 128)
    np_ = _round_up(cout, _TN)
    if kp != kdim:
        a = jnp.pad(a, ((0, 0), (0, kp - kdim)))
    b_bf = jnp.pad(b_mat, ((0, kp - kdim), (0, np_ - cout))).astype(jnp.bfloat16)
    grid_n = np_ // _TN

    if use_bn and m <= _TM_MATMUL:
        # Fully fused matmul + BN + LeakyReLU (single pallas_call, single write of Y).
        gamma_p = jnp.pad(gamma.reshape(1, cout), ((0, 0), (0, np_ - cout)))
        beta_p = jnp.pad(beta.reshape(1, cout), ((0, 0), (0, np_ - cout)))
        out = pl.pallas_call(
            functools.partial(_matmul_bn_lrelu_kernel, inv_m=1.0 / float(m), eps=1e-5),
            out_shape=jax.ShapeDtypeStruct((m, np_), out_dtype),
            grid_spec=pltpu.PrefetchScalarGridSpec(
                num_scalar_prefetch=0,
                grid=(grid_n,),
                in_specs=[
                    pl.BlockSpec((m, kp), lambda j: (0, 0)),
                    pl.BlockSpec((kp, _TN), lambda j: (0, j)),
                    pl.BlockSpec((1, _TN), lambda j: (0, j)),
                    pl.BlockSpec((1, _TN), lambda j: (0, j)),
                ],
                out_specs=pl.BlockSpec((m, _TN), lambda j: (0, j)),
            ),
            compiler_params=pltpu.CompilerParams(dimension_semantics=("parallel",)),
        )(a, b_bf, gamma_p, beta_p)
        return out, m, oh, ow, cout, np_

    if not use_bn:
        tm = m if m <= _TM_MATMUL else _TM_MATMUL
        grid_m = pl.cdiv(m, tm)
        bias_p = jnp.pad(bias.reshape(1, cout), ((0, 0), (0, np_ - cout)))
        out = pl.pallas_call(
            functools.partial(_matmul_bias_act_kernel, apply_lrelu=apply_lrelu),
            out_shape=jax.ShapeDtypeStruct((m, np_), out_dtype),
            grid_spec=pltpu.PrefetchScalarGridSpec(
                num_scalar_prefetch=0,
                grid=(grid_m, grid_n),
                in_specs=[
                    pl.BlockSpec((tm, kp), lambda i, j: (i, 0)),
                    pl.BlockSpec((kp, _TN), lambda i, j: (0, j)),
                    pl.BlockSpec((1, _TN), lambda i, j: (0, j)),
                ],
                out_specs=pl.BlockSpec((tm, _TN), lambda i, j: (i, j)),
            ),
            compiler_params=pltpu.CompilerParams(
                dimension_semantics=("parallel", "parallel")),
        )(a, b_bf, bias_p)
        return out, m, oh, ow, cout, np_

    # Fallback: BN layer whose M does not fit in one block -> streaming stats + BN pass.
    tm = _TM_MATMUL
    grid_m = pl.cdiv(m, tm)
    y, s, s2 = pl.pallas_call(
        functools.partial(_matmul_stats_kernel, m_true=m, tm=tm),
        out_shape=(
            jax.ShapeDtypeStruct((m, np_), jnp.bfloat16),
            jax.ShapeDtypeStruct((1, np_), jnp.float32),
            jax.ShapeDtypeStruct((1, np_), jnp.float32),
        ),
        grid_spec=pltpu.PrefetchScalarGridSpec(
            num_scalar_prefetch=0,
            grid=(grid_n, grid_m),                           # M (stats reduction) last
            in_specs=[
                pl.BlockSpec((tm, kp), lambda j, i: (i, 0)),
                pl.BlockSpec((kp, _TN), lambda j, i: (0, j)),
            ],
            out_specs=(
                pl.BlockSpec((tm, _TN), lambda j, i: (i, j)),
                pl.BlockSpec((1, _TN), lambda j, i: (0, j)),  # VMEM-resident accumulator
                pl.BlockSpec((1, _TN), lambda j, i: (0, j)),
            ),
        ),
        compiler_params=pltpu.CompilerParams(
            dimension_semantics=("parallel", "arbitrary")),
    )(a, b_bf)
    gamma_p = jnp.pad(gamma.reshape(1, cout), ((0, 0), (0, np_ - cout)))
    beta_p = jnp.pad(beta.reshape(1, cout), ((0, 0), (0, np_ - cout)))
    out = _bn_lrelu_pallas(y, s, s2, gamma_p, beta_p, m, out_dtype)
    return out, m, oh, ow, cout, np_


# ------------------------- Discriminator definition -------------------------

def init_discriminator_params(key, input_nc, ndf=64, n_layers=3):
    """Synthetic parameters matching the nn.Module shapes (norm=BatchNorm2d)."""
    cfgs = [(input_nc, ndf, 2, False)]         # (cin, cout, stride, use_bn)
    nf_mult = 1
    for i in range(1, n_layers):
        nf_prev, nf_mult = nf_mult, min(2 ** i, 8)
        cfgs.append((ndf * nf_prev, ndf * nf_mult, 2, True))
    nf_prev, nf_mult = nf_mult, min(2 ** n_layers, 8)
    cfgs.append((ndf * nf_prev, ndf * nf_mult, 1, True))
    cfgs.append((ndf * nf_mult, 1, 1, False))  # final conv: bias, no BN, no activation

    params = []
    n_total = len(cfgs)
    for idx, (cin, cout, stride, use_bn) in enumerate(cfgs):
        key, k1, k2 = jax.random.split(key, 3)
        params.append(dict(
            w=jax.random.normal(k1, (cout, cin, 4, 4), jnp.float32) * 0.02,
            b=(jax.random.normal(k2, (cout,), jnp.float32) * 0.02
               if not use_bn else jnp.zeros((cout,), jnp.float32)),
            gamma=jnp.ones((cout,), jnp.float32),
            beta=jnp.zeros((cout,), jnp.float32),
            stride=stride,
            bn=use_bn,
            lrelu=(idx < n_total - 1),
        ))
    return params


def discriminator_forward(params, x_nchw):
    """PatchGAN discriminator forward. Input NCHW f32, output NCHW (1 channel) f32."""
    x = jnp.transpose(x_nchw, (0, 2, 3, 1)).astype(jnp.bfloat16)  # NHWC, bf16
    n = x.shape[0]
    n_total = len(params)
    for idx, p in enumerate(params):
        last = idx == n_total - 1
        y, m, oh, ow, cout, np_ = _conv2d_pallas(
            x, p["w"], p["b"], p["gamma"], p["beta"], p["stride"], 1,
            use_bn=p["bn"], apply_lrelu=p["lrelu"],
            out_dtype=jnp.float32 if last else jnp.bfloat16)
        # Carry the 128-padded channel dim into the next layer (padded columns are
        # exactly zero; next weight's Cin is zero-padded) -> no per-layer slice/copy.
        x = y.reshape(n, oh, ow, np_)
    cout_last = params[-1]["w"].shape[0]
    return jnp.transpose(x[..., :cout_last], (0, 3, 1, 2))


# ----------------------------------- Main -----------------------------------

if __name__ == "__main__":
    key = jax.random.PRNGKey(0)
    k_param, k_in = jax.random.split(key)

    input_nc, ndf, n_layers = 3, 16, 3
    params = init_discriminator_params(k_param, input_nc=input_nc, ndf=ndf,
                                       n_layers=n_layers)

    # Small but valid spatial size (survives 3 stride-2 convs + two k=4/s=1 convs).
    x = jax.random.normal(k_in, (2, input_nc, 32, 32), jnp.float32)  # NCHW

    fwd = jax.jit(lambda inp: discriminator_forward(params, inp))
    out = fwd(x)
    jax.block_until_ready(out)

    assert out.shape == (2, 1, 2, 2), out.shape
    assert out.dtype == jnp.float32
    assert jnp.all(jnp.isfinite(out))
    print("KERNEL_OK")
</pallas_src>

<mosaic_0001>
module attributes {stable_mosaic.version = 11 : i64} {
  func.func @_matmul_bias_act_kernel(%arg0: i32, %arg1: i32, %arg2: memref<256x128xbf16, #tpu.memory_space<vmem>>, %arg3: memref<128x128xbf16, #tpu.memory_space<vmem>>, %arg4: memref<1x128xf32, #tpu.memory_space<vmem>>, %arg5: memref<256x128xbf16, #tpu.memory_space<vmem>>) attributes {dimension_semantics = [#tpu.dimension_semantics<parallel>, #tpu.dimension_semantics<parallel>], iteration_bounds = array<i64: 2, 1>, scalar_prefetch = 0 : i64, scratch_operands = 0 : i64, tpu.core_type = #tpu.core_type<tc>, window_params = [{transform_indices = @transform_0, window_bounds = array<i64: 256, 128>}, {transform_indices = @transform_1, window_bounds = array<i64: 128, 128>}, {transform_indices = @transform_2, window_bounds = array<i64: 1, 128>}, {transform_indices = @transform_3, window_bounds = array<i64: 256, 128>}]} {
    %c0 = arith.constant 0 : index
    %c0_0 = arith.constant 0 : index
    %0 = vector.load %arg2[%c0, %c0_0] : memref<256x128xbf16, #tpu.memory_space<vmem>>, vector<256x128xbf16>
    %c0_1 = arith.constant 0 : index
    %c0_2 = arith.constant 0 : index
    %1 = vector.load %arg3[%c0_1, %c0_2] : memref<128x128xbf16, #tpu.memory_space<vmem>>, vector<128x128xbf16>
    %cst = arith.constant dense<0.000000e+00> : vector<256x128xf32>
    %2 = tpu.matmul %0, %1, %cst {dimension_numbers = #tpu.dot_dimension_numbers<[1], [0], [0], [1], [0, 0, 1, 1], [], []>} : vector<256x128xbf16>, vector<128x128xbf16>, vector<256x128xf32> -> vector<256x128xf32>
    %c0_3 = arith.constant 0 : index
    %c0_4 = arith.constant 0 : index
    %3 = vector.load %arg4[%c0_3, %c0_4] : memref<1x128xf32, #tpu.memory_space<vmem>>, vector<1x128xf32>
    %4 = vector.broadcast %3 : vector<1x128xf32> to vector<256x128xf32>
    %5 = arith.addf %2, %4 : vector<256x128xf32>
    %cst_5 = arith.constant 2.000000e-01 : f32
    %6 = vector.broadcast %cst_5 : f32 to vector<256x128xf32>
    %7 = arith.mulf %6, %5 : vector<256x128xf32>
    %8 = arith.maximumf %5, %7 : vector<256x128xf32>
    %9 = arith.truncf %8 : vector<256x128xf32> to vector<256x128xbf16>
    %c0_6 = arith.constant 0 : index
    %c0_7 = arith.constant 0 : index
    %10 = vector.load %arg5[%c0_6, %c0_7] : memref<256x128xbf16, #tpu.memory_space<vmem>>, vector<256x128xbf16>
    tpu.vector_store %arg5[%c0_6, %c0_7], %9 {strides = array<i32>} : memref<256x128xbf16, #tpu.memory_space<vmem>>, vector<256x128xbf16>,
    return
  }
  func.func @transform_0(%arg0: i32, %arg1: i32) -> (i32, i32) {
    %c0_i32 = arith.constant 0 : i32
    %c0_i32_0 = arith.constant 0 : i32
    return %arg0, %c0_i32 : i32, i32
  }
  func.func @transform_1(%arg0: i32, %arg1: i32) -> (i32, i32) {
    %c0_i32 = arith.constant 0 : i32
    %c0_i32_0 = arith.constant 0 : i32
    return %c0_i32, %arg1 : i32, i32
  }
  func.func @transform_2(%arg0: i32, %arg1: i32) -> (i32, i32) {
    %c0_i32 = arith.constant 0 : i32
    %c0_i32_0 = arith.constant 0 : i32
    return %c0_i32, %arg1 : i32, i32
  }
  func.func @transform_3(%arg0: i32, %arg1: i32) -> (i32, i32) {
    %c0_i32 = arith.constant 0 : i32
    return %arg0, %arg1 : i32, i32
  }
}

module attributes {stable_mosaic.version = 11 : i64} {
  func.func @_matmul_bn_lrelu_kernel(%arg0: i32, %arg1: memref<128x2048xbf16, #tpu.memory_space<vmem>>, %arg2: memref<2048x128xbf16, #tpu.memory_space<vmem>>, %arg3: memref<1x128xf32, #tpu.memory_space<vmem>>, %arg4: memref<1x128xf32, #tpu.memory_space<vmem>>, %arg5: memref<128x128xbf16, #tpu.memory_space<vmem>>) attributes {dimension_semantics = [#tpu.dimension_semantics<parallel>], iteration_bounds = array<i64: 1>, scalar_prefetch = 0 : i64, scratch_operands = 0 : i64, tpu.core_type = #tpu.core_type<tc>, window_params = [{pipeline_mode = #tpu.pipeline_mode<synchronous>, transform_indices = @transform_0, window_bounds = array<i64: 128, 2048>}, {transform_indices = @transform_1, window_bounds = array<i64: 2048, 128>}, {transform_indices = @transform_2, window_bounds = array<i64: 1, 128>}, {transform_indices = @transform_3, window_bounds = array<i64: 1, 128>}, {transform_indices = @transform_4, window_bounds = array<i64: 128, 128>}]} {
    %c0 = arith.constant 0 : index
    %c0_0 = arith.constant 0 : index
    %0 = vector.load %arg1[%c0, %c0_0] : memref<128x2048xbf16, #tpu.memory_space<vmem>>, vector<128x2048xbf16>
    %c0_1 = arith.constant 0 : index
    %c0_2 = arith.constant 0 : index
    %1 = vector.load %arg2[%c0_1, %c0_2] : memref<2048x128xbf16, #tpu.memory_space<vmem>>, vector<2048x128xbf16>
    %cst = arith.constant dense<0.000000e+00> : vector<128x128xf32>
    %2 = tpu.matmul %0, %1, %cst {dimension_numbers = #tpu.dot_dimension_numbers<[1], [0], [0], [1], [0, 0, 1, 1], [], []>} : vector<128x2048xbf16>, vector<2048x128xbf16>, vector<128x128xf32> -> vector<128x128xf32>
    %cst_3 = arith.constant dense<0.000000e+00> : vector<128xf32>
    %3 = vector.multi_reduction <add>, %2, %cst_3 [0] : vector<128x128xf32> to vector<128xf32>
    %4 = vector.shape_cast %3 : vector<128xf32> to vector<1x128xf32>
    %cst_4 = arith.constant 7.812500e-03 : f32
    %5 = vector.broadcast %cst_4 : f32 to vector<1x128xf32>
    %6 = arith.mulf %4, %5 : vector<1x128xf32>
    %7 = vector.broadcast %6 : vector<1x128xf32> to vector<128x128xf32>
    %8 = arith.subf %2, %7 : vector<128x128xf32>
    %9 = arith.mulf %8, %8 : vector<128x128xf32>
    %cst_5 = arith.constant dense<0.000000e+00> : vector<128xf32>
    %10 = vector.multi_reduction <add>, %9, %cst_5 [0] : vector<128x128xf32> to vector<128xf32>
    %11 = vector.shape_cast %10 : vector<128xf32> to vector<1x128xf32>
    %cst_6 = arith.constant 7.812500e-03 : f32
    %12 = vector.broadcast %cst_6 : f32 to vector<1x128xf32>
    %13 = arith.mulf %11, %12 : vector<1x128xf32>
    %cst_7 = arith.constant 9.99999974E-6 : f32
    %14 = vector.broadcast %cst_7 : f32 to vector<1x128xf32>
    %15 = arith.addf %13, %14 : vector<1x128xf32>
    %16 = math.rsqrt %15 : vector<1x128xf32>
    %c0_8 = arith.constant 0 : index
    %c0_9 = arith.constant 0 : index
    %17 = vector.load %arg3[%c0_8, %c0_9] : memref<1x128xf32, #tpu.memory_space<vmem>>, vector<1x128xf32>
    %18 = arith.mulf %16, %17 : vector<1x128xf32>
    %19 = vector.broadcast %18 : vector<1x128xf32> to vector<128x128xf32>
    %20 = arith.mulf %8, %19 : vector<128x128xf32>
    %c0_10 = arith.constant 0 : index
    %c0_11 = arith.constant 0 : index
    %21 = vector.load %arg4[%c0_10, %c0_11] : memref<1x128xf32, #tpu.memory_space<vmem>>, vector<1x128xf32>
    %22 = vector.broadcast %21 : vector<1x128xf32> to vector<128x128xf32>
    %23 = arith.addf %20, %22 : vector<128x128xf32>
    %cst_12 = arith.constant 2.000000e-01 : f32
    %24 = vector.broadcast %cst_12 : f32 to vector<128x128xf32>
    %25 = arith.mulf %24, %23 : vector<128x128xf32>
    %26 = arith.maximumf %23, %25 : vector<128x128xf32>
    %27 = arith.truncf %26 : vector<128x128xf32> to vector<128x128xbf16>
    %c0_13 = arith.constant 0 : index
    %c0_14 = arith.constant 0 : index
    %28 = vector.load %arg5[%c0_13, %c0_14] : memref<128x128xbf16, #tpu.memory_space<vmem>>, vector<128x128xbf16>
    tpu.vector_store %arg5[%c0_13, %c0_14], %27 {strides = array<i32>} : memref<128x128xbf16, #tpu.memory_space<vmem>>, vector<128x128xbf16>,
    return
  }
  func.func @transform_0(%arg0: i32) -> (i32, i32) {
    %c0_i32 = arith.constant 0 : i32
    %c0_i32_0 = arith.constant 0 : i32
    %c0_i32_1 = arith.constant 0 : i32
    return %c0_i32, %c0_i32_0 : i32, i32
  }
  func.func @transform_1(%arg0: i32) -> (i32, i32) {
    %c0_i32 = arith.constant 0 : i32
    %c0_i32_0 = arith.constant 0 : i32
    return %c0_i32, %arg0 : i32, i32
  }
  func.func @transform_2(%arg0: i32) -> (i32, i32) {
    %c0_i32 = arith.constant 0 : i32
    %c0_i32_0 = arith.constant 0 : i32
    return %c0_i32, %arg0 : i32, i32
  }
  func.func @transform_3(%arg0: i32) -> (i32, i32) {
    %c0_i32 = arith.constant 0 : i32
    %c0_i32_0 = arith.constant 0 : i32
    return %c0_i32, %arg0 : i32, i32
  }
  func.func @transform_4(%arg0: i32) -> (i32, i32) {
    %c0_i32 = arith.constant 0 : i32
    %c0_i32_0 = arith.constant 0 : i32
    return %c0_i32, %arg0 : i32, i32
  }
}

module attributes {stable_mosaic.version = 11 : i64} {
  func.func @_matmul_bn_lrelu_kernel(%arg0: i32, %arg1: memref<32x2048xbf16, #tpu.memory_space<vmem>>, %arg2: memref<2048x128xbf16, #tpu.memory_space<vmem>>, %arg3: memref<1x128xf32, #tpu.memory_space<vmem>>, %arg4: memref<1x128xf32, #tpu.memory_space<vmem>>, %arg5: memref<32x128xbf16, #tpu.memory_space<vmem>>) attributes {dimension_semantics = [#tpu.dimension_semantics<parallel>], iteration_bounds = array<i64: 1>, scalar_prefetch = 0 : i64, scratch_operands = 0 : i64, tpu.core_type = #tpu.core_type<tc>, window_params = [{pipeline_mode = #tpu.pipeline_mode<synchronous>, transform_indices = @transform_0, window_bounds = array<i64: 32, 2048>}, {transform_indices = @transform_1, window_bounds = array<i64: 2048, 128>}, {transform_indices = @transform_2, window_bounds = array<i64: 1, 128>}, {transform_indices = @transform_3, window_bounds = array<i64: 1, 128>}, {transform_indices = @transform_4, window_bounds = array<i64: 32, 128>}]} {
    %c0 = arith.constant 0 : index
    %c0_0 = arith.constant 0 : index
    %0 = vector.load %arg1[%c0, %c0_0] : memref<32x2048xbf16, #tpu.memory_space<vmem>>, vector<32x2048xbf16>
    %c0_1 = arith.constant 0 : index
    %c0_2 = arith.constant 0 : index
    %1 = vector.load %arg2[%c0_1, %c0_2] : memref<2048x128xbf16, #tpu.memory_space<vmem>>, vector<2048x128xbf16>
    %cst = arith.constant dense<0.000000e+00> : vector<32x128xf32>
    %2 = tpu.matmul %0, %1, %cst {dimension_numbers = #tpu.dot_dimension_numbers<[1], [0], [0], [1], [0, 0, 1, 1], [], []>} : vector<32x2048xbf16>, vector<2048x128xbf16>, vector<32x128xf32> -> vector<32x128xf32>
    %cst_3 = arith.constant dense<0.000000e+00> : vector<128xf32>
    %3 = vector.multi_reduction <add>, %2, %cst_3 [0] : vector<32x128xf32> to vector<128xf32>
    %4 = vector.shape_cast %3 : vector<128xf32> to vector<1x128xf32>
    %cst_4 = arith.constant 3.125000e-02 : f32
    %5 = vector.broadcast %cst_4 : f32 to vector<1x128xf32>
    %6 = arith.mulf %4, %5 : vector<1x128xf32>
    %7 = vector.broadcast %6 : vector<1x128xf32> to vector<32x128xf32>
    %8 = arith.subf %2, %7 : vector<32x128xf32>
    %9 = arith.mulf %8, %8 : vector<32x128xf32>
    %cst_5 = arith.constant dense<0.000000e+00> : vector<128xf32>
    %10 = vector.multi_reduction <add>, %9, %cst_5 [0] : vector<32x128xf32> to vector<128xf32>
    %11 = vector.shape_cast %10 : vector<128xf32> to vector<1x128xf32>
    %cst_6 = arith.constant 3.125000e-02 : f32
    %12 = vector.broadcast %cst_6 : f32 to vector<1x128xf32>
    %13 = arith.mulf %11, %12 : vector<1x128xf32>
    %cst_7 = arith.constant 9.99999974E-6 : f32
    %14 = vector.broadcast %cst_7 : f32 to vector<1x128xf32>
    %15 = arith.addf %13, %14 : vector<1x128xf32>
    %16 = math.rsqrt %15 : vector<1x128xf32>
    %c0_8 = arith.constant 0 : index
    %c0_9 = arith.constant 0 : index
    %17 = vector.load %arg3[%c0_8, %c0_9] : memref<1x128xf32, #tpu.memory_space<vmem>>, vector<1x128xf32>
    %18 = arith.mulf %16, %17 : vector<1x128xf32>
    %19 = vector.broadcast %18 : vector<1x128xf32> to vector<32x128xf32>
    %20 = arith.mulf %8, %19 : vector<32x128xf32>
    %c0_10 = arith.constant 0 : index
    %c0_11 = arith.constant 0 : index
    %21 = vector.load %arg4[%c0_10, %c0_11] : memref<1x128xf32, #tpu.memory_space<vmem>>, vector<1x128xf32>
    %22 = vector.broadcast %21 : vector<1x128xf32> to vector<32x128xf32>
    %23 = arith.addf %20, %22 : vector<32x128xf32>
    %cst_12 = arith.constant 2.000000e-01 : f32
    %24 = vector.broadcast %cst_12 : f32 to vector<32x128xf32>
    %25 = arith.mulf %24, %23 : vector<32x128xf32>
    %26 = arith.maximumf %23, %25 : vector<32x128xf32>
    %27 = arith.truncf %26 : vector<32x128xf32> to vector<32x128xbf16>
    %c0_13 = arith.constant 0 : index
    %c0_14 = arith.constant 0 : index
    %28 = vector.load %arg5[%c0_13, %c0_14] : memref<32x128xbf16, #tpu.memory_space<vmem>>, vector<32x128xbf16>
    tpu.vector_store %arg5[%c0_13, %c0_14], %27 {strides = array<i32>} : memref<32x128xbf16, #tpu.memory_space<vmem>>, vector<32x128xbf16>,
    return
  }
  func.func @transform_0(%arg0: i32) -> (i32, i32) {
    %c0_i32 = arith.constant 0 : i32
    %c0_i32_0 = arith.constant 0 : i32
    %c0_i32_1 = arith.constant 0 : i32
    return %c0_i32, %c0_i32_0 : i32, i32
  }
  func.func @transform_1(%arg0: i32) -> (i32, i32) {
    %c0_i32 = arith.constant 0 : i32
    %c0_i32_0 = arith.constant 0 : i32
    return %c0_i32, %arg0 : i32, i32
  }
  func.func @transform_2(%arg0: i32) -> (i32, i32) {
    %c0_i32 = arith.constant 0 : i32
    %c0_i32_0 = arith.constant 0 : i32
    return %c0_i32, %arg0 : i32, i32
  }
  func.func @transform_3(%arg0: i32) -> (i32, i32) {
    %c0_i32 = arith.constant 0 : i32
    %c0_i32_0 = arith.constant 0 : i32
    return %c0_i32, %arg0 : i32, i32
  }
  func.func @transform_4(%arg0: i32) -> (i32, i32) {
    %c0_i32 = arith.constant 0 : i32
    %c0_i32_0 = arith.constant 0 : i32
    return %c0_i32, %arg0 : i32, i32
  }
}

module attributes {stable_mosaic.version = 11 : i64} {
  func.func @_matmul_bn_lrelu_kernel(%arg0: i32, %arg1: memref<18x2048xbf16, #tpu.memory_space<vmem>>, %arg2: memref<2048x128xbf16, #tpu.memory_space<vmem>>, %arg3: memref<1x128xf32, #tpu.memory_space<vmem>>, %arg4: memref<1x128xf32, #tpu.memory_space<vmem>>, %arg5: memref<18x128xbf16, #tpu.memory_space<vmem>>) attributes {dimension_semantics = [#tpu.dimension_semantics<parallel>], iteration_bounds = array<i64: 1>, scalar_prefetch = 0 : i64, scratch_operands = 0 : i64, tpu.core_type = #tpu.core_type<tc>, window_params = [{pipeline_mode = #tpu.pipeline_mode<synchronous>, transform_indices = @transform_0, window_bounds = array<i64: 18, 2048>}, {transform_indices = @transform_1, window_bounds = array<i64: 2048, 128>}, {transform_indices = @transform_2, window_bounds = array<i64: 1, 128>}, {transform_indices = @transform_3, window_bounds = array<i64: 1, 128>}, {transform_indices = @transform_4, window_bounds = array<i64: 18, 128>}]} {
    %c0 = arith.constant 0 : index
    %c0_0 = arith.constant 0 : index
    %0 = vector.load %arg1[%c0, %c0_0] : memref<18x2048xbf16, #tpu.memory_space<vmem>>, vector<18x2048xbf16>
    %c0_1 = arith.constant 0 : index
    %c0_2 = arith.constant 0 : index
    %1 = vector.load %arg2[%c0_1, %c0_2] : memref<2048x128xbf16, #tpu.memory_space<vmem>>, vector<2048x128xbf16>
    %cst = arith.constant dense<0.000000e+00> : vector<18x128xf32>
    %2 = tpu.matmul %0, %1, %cst {dimension_numbers = #tpu.dot_dimension_numbers<[1], [0], [0], [1], [0, 0, 1, 1], [], []>} : vector<18x2048xbf16>, vector<2048x128xbf16>, vector<18x128xf32> -> vector<18x128xf32>
    %cst_3 = arith.constant dense<0.000000e+00> : vector<128xf32>
    %3 = vector.multi_reduction <add>, %2, %cst_3 [0] : vector<18x128xf32> to vector<128xf32>
    %4 = vector.shape_cast %3 : vector<128xf32> to vector<1x128xf32>
    %cst_4 = arith.constant 0.055555556 : f32
    %5 = vector.broadcast %cst_4 : f32 to vector<1x128xf32>
    %6 = arith.mulf %4, %5 : vector<1x128xf32>
    %7 = vector.broadcast %6 : vector<1x128xf32> to vector<18x128xf32>
    %8 = arith.subf %2, %7 : vector<18x128xf32>
    %9 = arith.mulf %8, %8 : vector<18x128xf32>
    %cst_5 = arith.constant dense<0.000000e+00> : vector<128xf32>
    %10 = vector.multi_reduction <add>, %9, %cst_5 [0] : vector<18x128xf32> to vector<128xf32>
    %11 = vector.shape_cast %10 : vector<128xf32> to vector<1x128xf32>
    %cst_6 = arith.constant 0.055555556 : f32
    %12 = vector.broadcast %cst_6 : f32 to vector<1x128xf32>
    %13 = arith.mulf %11, %12 : vector<1x128xf32>
    %cst_7 = arith.constant 9.99999974E-6 : f32
    %14 = vector.broadcast %cst_7 : f32 to vector<1x128xf32>
    %15 = arith.addf %13, %14 : vector<1x128xf32>
    %16 = math.rsqrt %15 : vector<1x128xf32>
    %c0_8 = arith.constant 0 : index
    %c0_9 = arith.constant 0 : index
    %17 = vector.load %arg3[%c0_8, %c0_9] : memref<1x128xf32, #tpu.memory_space<vmem>>, vector<1x128xf32>
    %18 = arith.mulf %16, %17 : vector<1x128xf32>
    %19 = vector.broadcast %18 : vector<1x128xf32> to vector<18x128xf32>
    %20 = arith.mulf %8, %19 : vector<18x128xf32>
    %c0_10 = arith.constant 0 : index
    %c0_11 = arith.constant 0 : index
    %21 = vector.load %arg4[%c0_10, %c0_11] : memref<1x128xf32, #tpu.memory_space<vmem>>, vector<1x128xf32>
    %22 = vector.broadcast %21 : vector<1x128xf32> to vector<18x128xf32>
    %23 = arith.addf %20, %22 : vector<18x128xf32>
    %cst_12 = arith.constant 2.000000e-01 : f32
    %24 = vector.broadcast %cst_12 : f32 to vector<18x128xf32>
    %25 = arith.mulf %24, %23 : vector<18x128xf32>
    %26 = arith.maximumf %23, %25 : vector<18x128xf32>
    %27 = arith.truncf %26 : vector<18x128xf32> to vector<18x128xbf16>
    %c0_13 = arith.constant 0 : index
    %c0_14 = arith.constant 0 : index
    %28 = vector.load %arg5[%c0_13, %c0_14] : memref<18x128xbf16, #tpu.memory_space<vmem>>, vector<18x128xbf16>
    tpu.vector_store %arg5[%c0_13, %c0_14], %27 {strides = array<i32>} : memref<18x128xbf16, #tpu.memory_space<vmem>>, vector<18x128xbf16>,
    return
  }
  func.func @transform_0(%arg0: i32) -> (i32, i32) {
    %c0_i32 = arith.constant 0 : i32
    %c0_i32_0 = arith.constant 0 : i32
    %c0_i32_1 = arith.constant 0 : i32
    return %c0_i32, %c0_i32_0 : i32, i32
  }
  func.func @transform_1(%arg0: i32) -> (i32, i32) {
    %c0_i32 = arith.constant 0 : i32
    %c0_i32_0 = arith.constant 0 : i32
    return %c0_i32, %arg0 : i32, i32
  }
  func.func @transform_2(%arg0: i32) -> (i32, i32) {
    %c0_i32 = arith.constant 0 : i32
    %c0_i32_0 = arith.constant 0 : i32
    return %c0_i32, %arg0 : i32, i32
  }
  func.func @transform_3(%arg0: i32) -> (i32, i32) {
    %c0_i32 = arith.constant 0 : i32
    %c0_i32_0 = arith.constant 0 : i32
    return %c0_i32, %arg0 : i32, i32
  }
  func.func @transform_4(%arg0: i32) -> (i32, i32) {
    %c0_i32 = arith.constant 0 : i32
    %c0_i32_0 = arith.constant 0 : i32
    return %c0_i32, %arg0 : i32, i32
  }
}

module attributes {stable_mosaic.version = 11 : i64} {
  func.func @_matmul_bias_act_kernel(%arg0: i32, %arg1: i32, %arg2: memref<8x2048xbf16, #tpu.memory_space<vmem>>, %arg3: memref<2048x128xbf16, #tpu.memory_space<vmem>>, %arg4: memref<1x128xf32, #tpu.memory_space<vmem>>, %arg5: memref<8x128xf32, #tpu.memory_space<vmem>>) attributes {dimension_semantics = [#tpu.dimension_semantics<parallel>, #tpu.dimension_semantics<parallel>], iteration_bounds = array<i64: 1, 1>, scalar_prefetch = 0 : i64, scratch_operands = 0 : i64, tpu.core_type = #tpu.core_type<tc>, window_params = [{transform_indices = @transform_0, window_bounds = array<i64: 8, 2048>}, {transform_indices = @transform_1, window_bounds = array<i64: 2048, 128>}, {transform_indices = @transform_2, window_bounds = array<i64: 1, 128>}, {transform_indices = @transform_3, window_bounds = array<i64: 8, 128>}]} {
    %c0 = arith.constant 0 : index
    %c0_0 = arith.constant 0 : index
    %0 = vector.load %arg2[%c0, %c0_0] : memref<8x2048xbf16, #tpu.memory_space<vmem>>, vector<8x2048xbf16>
    %c0_1 = arith.constant 0 : index
    %c0_2 = arith.constant 0 : index
    %1 = vector.load %arg3[%c0_1, %c0_2] : memref<2048x128xbf16, #tpu.memory_space<vmem>>, vector<2048x128xbf16>
    %cst = arith.constant dense<0.000000e+00> : vector<8x128xf32>
    %2 = tpu.matmul %0, %1, %cst {dimension_numbers = #tpu.dot_dimension_numbers<[1], [0], [0], [1], [0, 0, 1, 1], [], []>} : vector<8x2048xbf16>, vector<2048x128xbf16>, vector<8x128xf32> -> vector<8x128xf32>
    %c0_3 = arith.constant 0 : index
    %c0_4 = arith.constant 0 : index
    %3 = vector.load %arg4[%c0_3, %c0_4] : memref<1x128xf32, #tpu.memory_space<vmem>>, vector<1x128xf32>
    %4 = vector.broadcast %3 : vector<1x128xf32> to vector<8x128xf32>
    %5 = arith.addf %2, %4 : vector<8x128xf32>
    %c0_5 = arith.constant 0 : index
    %c0_6 = arith.constant 0 : index
    %6 = vector.load %arg5[%c0_5, %c0_6] : memref<8x128xf32, #tpu.memory_space<vmem>>, vector<8x128xf32>
    tpu.vector_store %arg5[%c0_5, %c0_6], %5 {strides = array<i32>} : memref<8x128xf32, #tpu.memory_space<vmem>>, vector<8x128xf32>,
    return
  }
  func.func @transform_0(%arg0: i32, %arg1: i32) -> (i32, i32) {
    %c0_i32 = arith.constant 0 : i32
    %c0_i32_0 = arith.constant 0 : i32
    return %arg0, %c0_i32 : i32, i32
  }
  func.func @transform_1(%arg0: i32, %arg1: i32) -> (i32, i32) {
    %c0_i32 = arith.constant 0 : i32
    %c0_i32_0 = arith.constant 0 : i32
    return %c0_i32, %arg1 : i32, i32
  }
  func.func @transform_2(%arg0: i32, %arg1: i32) -> (i32, i32) {
    %c0_i32 = arith.constant 0 : i32
    %c0_i32_0 = arith.constant 0 : i32
    return %c0_i32, %arg1 : i32, i32
  }
  func.func @transform_3(%arg0: i32, %arg1: i32) -> (i32, i32) {
    %c0_i32 = arith.constant 0 : i32
    return %arg0, %arg1 : i32, i32
  }
}

</mosaic_0001>

<llo_original>
// kernel: _lambda_.5
$region0: #{_lambda_.5}
  #allocation0 [shape = 'u32[]', space=smem, size = 0x4, offset = 0x4, fixed_abs, tag = 'smem constant byte address 0x4 - core index']
  #allocation1 [shape = 'u32[72,128]{1,0:T(1,128)}', space=vmem, size = 0x9000, scoped, tag = 'internal scratch']
  %s0 = inlined_call_operand.vmem [shape: bf16[512,128], index: 0, kind: input, shape index: {}]
  %s1 = inlined_call_operand.vmem [shape: bf16[128,128], index: 1, kind: input, shape index: {}]
  %s2 = inlined_call_operand.vmem [shape: f32[1,128], index: 2, kind: input, shape index: {}]
  %s3 = inlined_call_operand.vmem [shape: bf16[512,128], index: 3, kind: output, shape index: {}]
  %s4 = sld [smem:[#allocation0]]
  $region45: #{_lambda_.5} parent=0
    _
  %s6 = ssub.s32 1, %s4
  %s7 = scalar_select 0, %s6, %s4
  loop: start=0, step=1, limit=4
  $region2: #{_lambda_.5} parent=0 // loop_pre_header
    _
  $region3: #{_lambda_.5} parent=0 // loop_header
    %s9 = sphi 0, %s13
    %p10 = scmp.ge.s32.totalorder %s9, 4
    %s16 = sphi 0, %s28
    %s17 = sphi 0, %s24
    %s18 = sphi 0, %s16
    %s19 = sphi 0, %s17
    %s20 = sphi 0, %s18
    %s21 = sphi 0, %s19
    %s31 = sphi 0, %s33
    %s34 = sphi 0, %s31
    %s35 = sphi 0, %s34
    %s51 = sphi 0, %s35
    %s57 = sphi 0, %s59
    %s60 = sphi 0, %s57
    %s61 = sphi 0, %s60
    %s77 = sphi 0, %s61
    %s83 = sphi 0, %s85
    %s86 = sphi 0, %s83
    %s87 = sphi 0, %s86
    %s103 = sphi 0, %s87
    %s111 = sphi 0, %s113
    %s114 = sphi 0, %s111
    %s115 = sphi 0, %s114
    %s131 = sphi 0, %s115
  $region4: #{_lambda_.5} parent=0 // loop_header_branch
    %12 = sbr.rel (%p10) target = $region8
  $region5: #{_lambda_.5} parent=0 // loop_body
    %s14 = ssub.s32 %s9, 1
    %s15 = ssub.s32 %s9, 2
    %s22 = sadd.s32 1, %s17
    %p23 = scmp.ge.s32.totalorder %s22, 1
    %s24 = scalar_select %p23, 0, %s22
    %s25 = sadd.s32 1, %s16
    %s26 = scalar_select %p23, %s25, %s16
    %p27 = scmp.ge.s32.totalorder %s26, 2
    %s28 = scalar_select %p27, 0, %s26
    %s29 = ssub.s32 %s16, %s28
    %p30 = scmp.eq.s32.totalorder %s29, 0
    %s32 = sadd.s32 %s31, 1
    %s33 = scalar_select %p30, %s31, %s32
    %p36 = pneg %p30
    %p37 = scmp.eq.s32.totalorder %s9, 1
    %p38 = por %p36, %p37
    %p39 = scmp.ne.s32.totalorder %s31, %s34
    %p40 = scmp.eq.s32.totalorder %s9, 0
    %p41 = por %p39, %p40
    %p42 = scmp.ne.s32.totalorder %s31, %s34
    %p43 = scmp.eq.s32.totalorder %s14, 1
    %p44 = por %p42, %p43
    %p45 = scmp.ne.s32.totalorder %s34, %s35
    %p46 = scmp.eq.s32.totalorder %s14, 0
    %p47 = por %p45, %p46
    %p48 = scmp.ne.s32.totalorder %s34, %s35
    %p49 = scmp.eq.s32.totalorder %s15, 1
    %p50 = por %p48, %p49
    %p52 = scmp.ne.s32.totalorder %s35, %s51
    %p53 = scmp.eq.s32.totalorder %s15, 0
    %p54 = por %p52, %p53
    %s55 = ssub.s32 %s17, %s24
    %p56 = scmp.eq.s32.totalorder %s55, 0
    %s58 = sadd.s32 %s57, 1
    %s59 = scalar_select %p56, %s57, %s58
    %p62 = pneg %p56
    %p63 = scmp.eq.s32.totalorder %s9, 1
    %p64 = por %p62, %p63
    %p65 = scmp.ne.s32.totalorder %s57, %s60
    %p66 = scmp.eq.s32.totalorder %s9, 0
    %p67 = por %p65, %p66
    %p68 = scmp.ne.s32.totalorder %s57, %s60
    %p69 = scmp.eq.s32.totalorder %s14, 1
    %p70 = por %p68, %p69
    %p71 = scmp.ne.s32.totalorder %s60, %s61
    %p72 = scmp.eq.s32.totalorder %s14, 0
    %p73 = por %p71, %p72
    %p74 = scmp.ne.s32.totalorder %s60, %s61
    %p75 = scmp.eq.s32.totalorder %s15, 1
    %p76 = por %p74, %p75
    %p78 = scmp.ne.s32.totalorder %s61, %s77
    %p79 = scmp.eq.s32.totalorder %s15, 0
    %p80 = por %p78, %p79
    %s81 = ssub.s32 %s17, %s24
    %p82 = scmp.eq.s32.totalorder %s81, 0
    %s84 = sadd.s32 %s83, 1
    %s85 = scalar_select %p82, %s83, %s84
    %p88 = pneg %p82
    %p89 = scmp.eq.s32.totalorder %s9, 1
    %p90 = por %p88, %p89
    %p91 = scmp.ne.s32.totalorder %s83, %s86
    %p92 = scmp.eq.s32.totalorder %s9, 0
    %p93 = por %p91, %p92
    %p94 = scmp.ne.s32.totalorder %s83, %s86
    %p95 = scmp.eq.s32.totalorder %s14, 1
    %p96 = por %p94, %p95
    %p97 = scmp.ne.s32.totalorder %s86, %s87
    %p98 = scmp.eq.s32.totalorder %s14, 0
    %p99 = por %p97, %p98
    %p100 = scmp.ne.s32.totalorder %s86, %s87
    %p101 = scmp.eq.s32.totalorder %s15, 1
    %p102 = por %p100, %p101
    %p104 = scmp.ne.s32.totalorder %s87, %s103
    %p105 = scmp.eq.s32.totalorder %s15, 0
    %p106 = por %p104, %p105
    %s107 = ssub.s32 %s16, %s28
    %s108 = ssub.s32 %s17, %s24
    %s109 = sor.u32 %s107, %s108
    %p110 = scmp.eq.s32.totalorder %s109, 0
    %s112 = sadd.s32 %s111, 1
    %s113 = scalar_select %p110, %s111, %s112
    %p116 = pneg %p110
    %p117 = scmp.eq.s32.totalorder %s9, 1
    %p118 = por %p116, %p117
    %p119 = scmp.ne.s32.totalorder %s111, %s114
    %p120 = scmp.eq.s32.totalorder %s9, 0
    %p121 = por %p119, %p120
    %p122 = scmp.ne.s32.totalorder %s111, %s114
    %p123 = scmp.eq.s32.totalorder %s14, 1
    %p124 = por %p122, %p123
    %p125 = scmp.ne.s32.totalorder %s114, %s115
    %p126 = scmp.eq.s32.totalorder %s14, 0
    %p127 = por %p125, %p126
    %p128 = scmp.ne.s32.totalorder %s114, %s115
    %p129 = scmp.eq.s32.totalorder %s15, 1
    %p130 = por %p128, %p129
    %p132 = scmp.ne.s32.totalorder %s115, %s131
    %p133 = scmp.eq.s32.totalorder %s15, 0
    %p134 = por %p132, %p133
    %p135 = scmp.le.s32.totalorder 1, %s9
    %p136 = scmp.lt.s32.totalorder %s9, 3
    %p137 = pnand %p135, %p136
    %p138 = pneg %p137
    // Predicated region
    $region9: #{_lambda_.5} parent=5 // pred_check
      _
    $region10: #{_lambda_.5} parent=5 // pred_check_branch
      %140 = sbr.rel (%p137) target = $region12
    $region11: #{_lambda_.5} parent=5 // pred_region
      %s141 = ssub.s32 %s9, 1
      // Predicated region
      $region13: #{_lambda_.5} parent=11 // pred_check
        %p142 = pneg %p73
      $region14: #{_lambda_.5} parent=11 // pred_check_branch
        %144 = sbr.rel (%p142) target = $region16
      $region15: #{_lambda_.5} parent=11 // pred_region
        %p145 = scmp.lt.s32.totalorder %s19, 0
        %s146 = scalar_select %p145, %s19, 0
        %s147 = smul.addr %s146, 4
        %s148 = scalar_lea.vmem %s1, %s147
      $region16: #{_lambda_.5} parent=11 // pred_fallthru
        _
      // Predicated region
      $region17: #{_lambda_.5} parent=11 // pred_check
        %p149 = pneg %p99
      $region18: #{_lambda_.5} parent=11 // pred_check_branch
        %151 = sbr.rel (%p149) target = $region20
      $region19: #{_lambda_.5} parent=11 // pred_region
        %p152 = scmp.lt.s32.totalorder %s19, 0
        %s153 = scalar_select %p152, %s19, 0
        %s154 = scalar_lea.vmem %s2, %s153
      $region20: #{_lambda_.5} parent=11 // pred_fallthru
        _
    $region12: #{_lambda_.5} parent=5 // pred_fallthru
      _
    %p155 = scmp.lt.s32.totalorder %s9, 2
    // Predicated region
    $region21: #{_lambda_.5} parent=5 // pred_check
      %p156 = pneg %p155
    $region22: #{_lambda_.5} parent=5 // pred_check_branch
      %158 = sbr.rel (%p156) target = $region24
    $region23: #{_lambda_.5} parent=5 // pred_region
      // Predicated region
      $region25: #{_lambda_.5} parent=23 // pred_check
        %p159 = pneg %p41
      $region26: #{_lambda_.5} parent=23 // pred_check_branch
        %161 = sbr.rel (%p159) target = $region28
      $region27: #{_lambda_.5} parent=23 // pred_region
        %s162 = smul.u32 32, %s16
        %p163 = scmp.lt.s32.totalorder %s162, 63
        %s164 = scalar_select %p163, %s162, 63
        %s165 = smul.addr %s164, 4
        %s166 = scalar_lea.vmem %s0, %s165
        %s167 = smul.u32 32, %s16
      $region28: #{_lambda_.5} parent=23 // pred_fallthru
        _
    $region24: #{_lambda_.5} parent=5 // pred_fallthru
      _
    %p168 = scmp.le.s32.totalorder 1, %s9
    %p169 = scmp.lt.s32.totalorder %s9, 3
    %p170 = pnand %p168, %p169
    %p171 = pneg %p170
    // Predicated region
    $region29: #{_lambda_.5} parent=5 // pred_check
      _
    $region30: #{_lambda_.5} parent=5 // pred_check_branch
      %173 = sbr.rel (%p170) target = $region32
    $region31: #{_lambda_.5} parent=5 // pred_region
      %s174 = ssub.s32 %s9, 1
      %s175 = smul.u32 32, %s18
      %p176 = scmp.lt.s32.totalorder %s175, 63
      %s177 = scalar_select %p176, %s175, 63
      %s178 = smul.addr %s177, 4
      %s179 = scalar_lea.vmem %s0, %s178
      %p180 = pneg %p47
      %p181 = pneg %p44
      %p182 = scmp.lt.s32.totalorder %s19, 0
      %s183 = scalar_select %p182, %s19, 0
      %s184 = smul.addr %s183, 4
      %s185 = scalar_lea.vmem %s1, %s184
      %p186 = pneg %p73
      %p187 = pneg %p70
      %p188 = scmp.lt.s32.totalorder %s19, 0
      %s189 = scalar_select %p188, %s19, 0
      %s190 = scalar_lea.vmem %s2, %s189
      %p191 = pneg %p99
      %p192 = pneg %p96
      %p193 = pneg %p127
      %p194 = pneg %p124
      %s195 = smul.u32 32, %s18
      %p196 = scmp.lt.s32.totalorder %s195, 63
      %s197 = scalar_select %p196, %s195, 63
      %p198 = scmp.lt.s32.totalorder %s19, 0
      %s199 = scalar_select %p198, %s19, 0
      %s200 = sadd.s32 %s199, %s197
      %s201 = smul.addr %s200, 4
      %s202 = scalar_lea.vmem %s3, %s201
      %s203 = smul.u32 32, %s18
      %p204 = scmp.lt.s32.totalorder %s203, 63
      %s205 = scalar_select %p204, %s203, 63
      %s206 = smul.addr %s205, 4
      %s207 = scalar_lea.vmem %s0, %s206
      %s208 = smul.u32 32, %s18
      %p209 = scmp.lt.s32.totalorder %s19, 0
      %s210 = scalar_select %p209, %s19, 0
      %s211 = smul.addr %s210, 4
      %s212 = scalar_lea.vmem %s1, %s211
      %p213 = scmp.lt.s32.totalorder %s19, 0
      %s214 = scalar_select %p213, %s19, 0
      %s215 = scalar_lea.vmem %s2, %s214
      %s216 = smul.u32 32, %s18
      %p217 = scmp.lt.s32.totalorder %s216, 63
      %s218 = scalar_select %p217, %s216, 63
      %p219 = scmp.lt.s32.totalorder %s19, 0
      %s220 = scalar_select %p219, %s19, 0
      %s221 = sadd.s32 %s220, %s218
      %s222 = smul.addr %s221, 4
      %s223 = scalar_lea.vmem %s3, %s222
      %s224 = smul.u32 32, %s18
      %v225 = vld [vmem:[%s207] sm:$0xf]
      %v226 = vld [vmem:[%s207 + $0x4] sm:$0xf]
      %v227 = vld [vmem:[%s207 + $0x8] sm:$0xf]
      %v228 = vld [vmem:[%s207 + $0xc] sm:$0xf]
      %v229 = vld [vmem:[%s207 + $0x10] sm:$0xf]
      %v230 = vld [vmem:[%s207 + $0x14] sm:$0xf]
      %v231 = vld [vmem:[%s207 + $0x18] sm:$0xf]
      %v232 = vld [vmem:[%s207 + $0x1c] sm:$0xf]
      %v233 = vld [vmem:[%s207 + $0x20] sm:$0xf]
      %v234 = vld [vmem:[%s207 + $0x24] sm:$0xf]
      %v235 = vld [vmem:[%s207 + $0x28] sm:$0xf]
      %v236 = vld [vmem:[%s207 + $0x2c] sm:$0xf]
      %v237 = vld [vmem:[%s207 + $0x30] sm:$0xf]
      %v238 = vld [vmem:[%s207 + $0x34] sm:$0xf]
      %v239 = vld [vmem:[%s207 + $0x38] sm:$0xf]
      %v240 = vld [vmem:[%s207 + $0x3c] sm:$0xf]
      %v241 = vld [vmem:[%s207 + $0x40] sm:$0xf]
      %v242 = vld [vmem:[%s207 + $0x44] sm:$0xf]
      %v243 = vld [vmem:[%s207 + $0x48] sm:$0xf]
      %v244 = vld [vmem:[%s207 + $0x4c] sm:$0xf]
      %v245 = vld [vmem:[%s207 + $0x50] sm:$0xf]
      %v246 = vld [vmem:[%s207 + $0x54] sm:$0xf]
      %v247 = vld [vmem:[%s207 + $0x58] sm:$0xf]
      %v248 = vld [vmem:[%s207 + $0x5c] sm:$0xf]
      %v249 = vld [vmem:[%s207 + $0x60] sm:$0xf]
      %v250 = vld [vmem:[%s207 + $0x64] sm:$0xf]
      %v251 = vld [vmem:[%s207 + $0x68] sm:$0xf]
      %v252 = vld [vmem:[%s207 + $0x6c] sm:$0xf]
      %v253 = vld [vmem:[%s207 + $0x70] sm:$0xf]
      %v254 = vld [vmem:[%s207 + $0x74] sm:$0xf]
      %v255 = vld [vmem:[%s207 + $0x78] sm:$0xf]
      %v256 = vld [vmem:[%s207 + $0x7c] sm:$0xf]
      %v257 = vld [vmem:[%s212] sm:$0xf]
      %v258 = vld [vmem:[%s212 + $0x4] sm:$0xf]
      %v259 = vld [vmem:[%s212 + $0x8] sm:$0xf]
      %v260 = vld [vmem:[%s212 + $0xc] sm:$0xf]
      %v261 = vld [vmem:[%s212 + $0x10] sm:$0xf]
      %v262 = vld [vmem:[%s212 + $0x14] sm:$0xf]
      %v263 = vld [vmem:[%s212 + $0x18] sm:$0xf]
      %v264 = vld [vmem:[%s212 + $0x1c] sm:$0xf]
      %v265 = vld [vmem:[%s212 + $0x20] sm:$0xf]
      %v266 = vld [vmem:[%s212 + $0x24] sm:$0xf]
      %v267 = vld [vmem:[%s212 + $0x28] sm:$0xf]
      %v268 = vld [vmem:[%s212 + $0x2c] sm:$0xf]
      %v269 = vld [vmem:[%s212 + $0x30] sm:$0xf]
      %v270 = vld [vmem:[%s212 + $0x34] sm:$0xf]
      %v271 = vld [vmem:[%s212 + $0x38] sm:$0xf]
      %v272 = vld [vmem:[%s212 + $0x3c] sm:$0xf]
      %v273 = vld [vmem:[%s215] sm:$0x1]
      %v275 = vperm.slane %v273, 0
      %v309 = vunpack.c.l.b16 %v225
      %v310 = vunpack.c.l.b16 %v226
      %v311 = vunpack.c.l.b16 %v227
      %v312 = vunpack.c.l.b16 %v228
      %v313 = vunpack.c.l.b16 %v229
      %v314 = vunpack.c.l.b16 %v230
      %v315 = vunpack.c.l.b16 %v231
      %v316 = vunpack.c.l.b16 %v232
      %v317 = vunpack.c.l.b16 %v233
      %v318 = vunpack.c.l.b16 %v234
      %v319 = vunpack.c.l.b16 %v235
      %v320 = vunpack.c.l.b16 %v236
      %v321 = vunpack.c.l.b16 %v237
      %v322 = vunpack.c.l.b16 %v238
      %v323 = vunpack.c.l.b16 %v239
      %v324 = vunpack.c.l.b16 %v240
      %v325 = vunpack.c.l.b16 %v241
      %v326 = vunpack.c.l.b16 %v242
      %v327 = vunpack.c.l.b16 %v243
      %v328 = vunpack.c.l.b16 %v244
      %v329 = vunpack.c.l.b16 %v245
      %v330 = vunpack.c.l.b16 %v246
      %v331 = vunpack.c.l.b16 %v247
      %v332 = vunpack.c.l.b16 %v248
      %v333 = vunpack.c.l.b16 %v249
      %v334 = vunpack.c.l.b16 %v250
      %v335 = vunpack.c.l.b16 %v251
      %v336 = vunpack.c.l.b16 %v252
      %v337 = vunpack.c.l.b16 %v253
      %v338 = vunpack.c.l.b16 %v254
      %v339 = vunpack.c.l.b16 %v255
      %v340 = vunpack.c.l.b16 %v256
      %v341 = vpack.c.b16 %v310, %v309
      %v342 = vpack.c.b16 %v312, %v311
      %v343 = vpack.c.b16 %v314, %v313
      %v344 = vpack.c.b16 %v316, %v315
      %v345 = vpack.c.b16 %v318, %v317
      %v346 = vpack.c.b16 %v320, %v319
      %v347 = vpack.c.b16 %v322, %v321
      %v348 = vpack.c.b16 %v324, %v323
      %v349 = vpack.c.b16 %v326, %v325
      %v350 = vpack.c.b16 %v328, %v327
      %v351 = vpack.c.b16 %v330, %v329
      %v352 = vpack.c.b16 %v332, %v331
      %v353 = vpack.c.b16 %v334, %v333
      %v354 = vpack.c.b16 %v336, %v335
      %v355 = vpack.c.b16 %v338, %v337
      %v356 = vpack.c.b16 %v340, %v339
      %v389 = vunpack.c.l.b16 %v257
      %v390 = vunpack.c.l.b16 %v258
      %v391 = vunpack.c.l.b16 %v259
      %v392 = vunpack.c.l.b16 %v260
      %v393 = vunpack.c.l.b16 %v261
      %v394 = vunpack.c.l.b16 %v262
      %v395 = vunpack.c.l.b16 %v263
      %v396 = vunpack.c.l.b16 %v264
      %v397 = vunpack.c.l.b16 %v265
      %v398 = vunpack.c.l.b16 %v266
      %v399 = vunpack.c.l.b16 %v267
      %v400 = vunpack.c.l.b16 %v268
      %v401 = vunpack.c.l.b16 %v269
      %v402 = vunpack.c.l.b16 %v270
      %v403 = vunpack.c.l.b16 %v271
      %v404 = vunpack.c.l.b16 %v272
      %v405 = vpack.c.b16 %v390, %v389
      %v406 = vpack.c.b16 %v392, %v391
      %v407 = vpack.c.b16 %v394, %v393
      %v408 = vpack.c.b16 %v396, %v395
      %v409 = vpack.c.b16 %v398, %v397
      %v410 = vpack.c.b16 %v400, %v399
      %v411 = vpack.c.b16 %v402, %v401
      %v412 = vpack.c.b16 %v404, %v403
      %421 = vmatpush.bf16.msra.mxu0 %v412
      %422 = vmatpush.bf16.msra.mxu0 %v411
      %423 = vmatpush.bf16.msra.mxu0 %v410
      %424 = vmatpush.bf16.msra.mxu0 %v409
      %425 = vmatpush.bf16.msra.mxu0 %v408
      %426 = vmatpush.bf16.msra.mxu0 %v407
      %427 = vmatpush.bf16.msra.mxu0 %v406
      %428 = vmatpush.bf16.msra.mxu0 %v405
      %429 = vmatmul.bf16.gmra.mxu0 %v341
      %v430 = vpop.f32.mrf.mxu0
      %v431 = vadd.f32 %v275, %v430
      %v432 = vpop.f32.mrf.mxu0
      %v433 = vadd.f32 %v275, %v432
      %434 = vmatmul.bf16.gmra.mxu0 %v342
      %v435 = vpop.f32.mrf.mxu0
      %v436 = vadd.f32 %v275, %v435
      %v437 = vpop.f32.mrf.mxu0
      %v438 = vadd.f32 %v275, %v437
      %439 = vmatmul.bf16.gmra.mxu0 %v343
      %v440 = vpop.f32.mrf.mxu0
      %v441 = vadd.f32 %v275, %v440
      %v442 = vpop.f32.mrf.mxu0
      %v443 = vadd.f32 %v275, %v442
      %444 = vmatmul.bf16.gmra.mxu0 %v344
      %v445 = vpop.f32.mrf.mxu0
      %v446 = vadd.f32 %v275, %v445
      %v447 = vpop.f32.mrf.mxu0
      %v448 = vadd.f32 %v275, %v447
      %449 = vmatmul.bf16.gmra.mxu0 %v345
      %v450 = vpop.f32.mrf.mxu0
      %v451 = vadd.f32 %v275, %v450
      %v452 = vpop.f32.mrf.mxu0
      %v453 = vadd.f32 %v275, %v452
      %454 = vmatmul.bf16.gmra.mxu0 %v346
      %v455 = vpop.f32.mrf.mxu0
      %v456 = vadd.f32 %v275, %v455
      %v457 = vpop.f32.mrf.mxu0
      %v458 = vadd.f32 %v275, %v457
      %459 = vmatmul.bf16.gmra.mxu0 %v347
      %v460 = vpop.f32.mrf.mxu0
      %v461 = vadd.f32 %v275, %v460
      %v462 = vpop.f32.mrf.mxu0
      %v463 = vadd.f32 %v275, %v462
      %464 = vmatmul.bf16.gmra.mxu0 %v348
      %v465 = vpop.f32.mrf.mxu0
      %v466 = vadd.f32 %v275, %v465
      %v467 = vpop.f32.mrf.mxu0
      %v468 = vadd.f32 %v275, %v467
      %469 = vmatmul.bf16.gmra.mxu0 %v349
      %v470 = vpop.f32.mrf.mxu0
      %v471 = vadd.f32 %v275, %v470
      %v472 = vpop.f32.mrf.mxu0
      %v473 = vadd.f32 %v275, %v472
      %474 = vmatmul.bf16.gmra.mxu0 %v350
      %v475 = vpop.f32.mrf.mxu0
      %v476 = vadd.f32 %v275, %v475
      %v477 = vpop.f32.mrf.mxu0
      %v478 = vadd.f32 %v275, %v477
      %479 = vmatmul.bf16.gmra.mxu0 %v351
      %v480 = vpop.f32.mrf.mxu0
      %v481 = vadd.f32 %v275, %v480
      %v482 = vpop.f32.mrf.mxu0
      %v483 = vadd.f32 %v275, %v482
      %484 = vmatmul.bf16.gmra.mxu0 %v352
      %v485 = vpop.f32.mrf.mxu0
      %v486 = vadd.f32 %v275, %v485
      %v487 = vpop.f32.mrf.mxu0
      %v488 = vadd.f32 %v275, %v487
      %489 = vmatmul.bf16.gmra.mxu0 %v353
      %v490 = vpop.f32.mrf.mxu0
      %v491 = vadd.f32 %v275, %v490
      %v492 = vpop.f32.mrf.mxu0
      %v493 = vadd.f32 %v275, %v492
      %494 = vmatmul.bf16.gmra.mxu0 %v354
      %v495 = vpop.f32.mrf.mxu0
      %v496 = vadd.f32 %v275, %v495
      %v497 = vpop.f32.mrf.mxu0
      %v498 = vadd.f32 %v275, %v497
      %499 = vmatmul.bf16.gmra.mxu0 %v355
      %v500 = vpop.f32.mrf.mxu0
      %v501 = vadd.f32 %v275, %v500
      %v502 = vpop.f32.mrf.mxu0
      %v503 = vadd.f32 %v275, %v502
      %504 = vmatmul.bf16.gmra.mxu0 %v356
      %v505 = vpop.f32.mrf.mxu0
      %v506 = vadd.f32 %v275, %v505
      %v507 = vpop.f32.mrf.mxu0
      %v508 = vadd.f32 %v275, %v507
      %509 = vdwg.mxu0
      %v510 = vmul.f32 %v431, 0.2
      %v511 = vmul.f32 %v433, 0.2
      %v512 = vmul.f32 %v436, 0.2
      %v513 = vmul.f32 %v438, 0.2
      %v514 = vmul.f32 %v441, 0.2
      %v515 = vmul.f32 %v443, 0.2
      %v516 = vmul.f32 %v446, 0.2
      %v517 = vmul.f32 %v448, 0.2
      %v518 = vmul.f32 %v451, 0.2
      %v519 = vmul.f32 %v453, 0.2
      %v520 = vmul.f32 %v456, 0.2
      %v521 = vmul.f32 %v458, 0.2
      %v522 = vmul.f32 %v461, 0.2
      %v523 = vmul.f32 %v463, 0.2
      %v524 = vmul.f32 %v466, 0.2
      %v525 = vmul.f32 %v468, 0.2
      %v526 = vmul.f32 %v471, 0.2
      %v527 = vmul.f32 %v473, 0.2
      %v528 = vmul.f32 %v476, 0.2
      %v529 = vmul.f32 %v478, 0.2
      %v530 = vmul.f32 %v481, 0.2
      %v531 = vmul.f32 %v483, 0.2
      %v532 = vmul.f32 %v486, 0.2
      %v533 = vmul.f32 %v488, 0.2
      %v534 = vmul.f32 %v491, 0.2
      %v535 = vmul.f32 %v493, 0.2
      %v536 = vmul.f32 %v496, 0.2
      %v537 = vmul.f32 %v498, 0.2
      %v538 = vmul.f32 %v501, 0.2
      %v539 = vmul.f32 %v503, 0.2
      %v540 = vmul.f32 %v506, 0.2
      %v541 = vmul.f32 %v508, 0.2
      %v542 = vmax.f32 %v431, %v510
      %v543 = vmax.f32 %v433, %v511
      %v544 = vmax.f32 %v436, %v512
      %v545 = vmax.f32 %v438, %v513
      %v546 = vmax.f32 %v441, %v514
      %v547 = vmax.f32 %v443, %v515
      %v548 = vmax.f32 %v446, %v516
      %v549 = vmax.f32 %v448, %v517
      %v550 = vmax.f32 %v451, %v518
      %v551 = vmax.f32 %v453, %v519
      %v552 = vmax.f32 %v456, %v520
      %v553 = vmax.f32 %v458, %v521
      %v554 = vmax.f32 %v461, %v522
      %v555 = vmax.f32 %v463, %v523
      %v556 = vmax.f32 %v466, %v524
      %v557 = vmax.f32 %v468, %v525
      %v558 = vmax.f32 %v471, %v526
      %v559 = vmax.f32 %v473, %v527
      %v560 = vmax.f32 %v476, %v528
      %v561 = vmax.f32 %v478, %v529
      %v562 = vmax.f32 %v481, %v530
      %v563 = vmax.f32 %v483, %v531
      %v564 = vmax.f32 %v486, %v532
      %v565 = vmax.f32 %v488, %v533
      %v566 = vmax.f32 %v491, %v534
      %v567 = vmax.f32 %v493, %v535
      %v568 = vmax.f32 %v496, %v536
      %v569 = vmax.f32 %v498, %v537
      %v570 = vmax.f32 %v501, %v538
      %v571 = vmax.f32 %v503, %v539
      %v572 = vmax.f32 %v506, %v540
      %v573 = vmax.f32 %v508, %v541
      %v574 = vpack.c.bf16 %v542, %v542
      %v575 = vpack.c.bf16 %v543, %v543
      %v576 = vpack.c.bf16 %v544, %v544
      %v577 = vpack.c.bf16 %v545, %v545
      %v578 = vpack.c.bf16 %v546, %v546
      %v579 = vpack.c.bf16 %v547, %v547
      %v580 = vpack.c.bf16 %v548, %v548
      %v581 = vpack.c.bf16 %v549, %v549
      %v582 = vpack.c.bf16 %v550, %v550
      %v583 = vpack.c.bf16 %v551, %v551
      %v584 = vpack.c.bf16 %v552, %v552
      %v585 = vpack.c.bf16 %v553, %v553
      %v586 = vpack.c.bf16 %v554, %v554
      %v587 = vpack.c.bf16 %v555, %v555
      %v588 = vpack.c.bf16 %v556, %v556
      %v589 = vpack.c.bf16 %v557, %v557
      %v590 = vpack.c.bf16 %v558, %v558
      %v591 = vpack.c.bf16 %v559, %v559
      %v592 = vpack.c.bf16 %v560, %v560
      %v593 = vpack.c.bf16 %v561, %v561
      %v594 = vpack.c.bf16 %v562, %v562
      %v595 = vpack.c.bf16 %v563, %v563
      %v596 = vpack.c.bf16 %v564, %v564
      %v597 = vpack.c.bf16 %v565, %v565
      %v598 = vpack.c.bf16 %v566, %v566
      %v599 = vpack.c.bf16 %v567, %v567
      %v600 = vpack.c.bf16 %v568, %v568
      %v601 = vpack.c.bf16 %v569, %v569
      %v602 = vpack.c.bf16 %v570, %v570
      %v603 = vpack.c.bf16 %v571, %v571
      %v604 = vpack.c.bf16 %v572, %v572
      %v605 = vpack.c.bf16 %v573, %v573
      %606 = vst [vmem:[%s223] sm:$0xf] %v574
      %607 = vst [vmem:[%s223 + $0x4] sm:$0xf] %v575
      %608 = vst [vmem:[%s223 + $0x8] sm:$0xf] %v576
      %609 = vst [vmem:[%s223 + $0xc] sm:$0xf] %v577
      %610 = vst [vmem:[%s223 + $0x10] sm:$0xf] %v578
      %611 = vst [vmem:[%s223 + $0x14] sm:$0xf] %v579
      %612 = vst [vmem:[%s223 + $0x18] sm:$0xf] %v580
      %613 = vst [vmem:[%s223 + $0x1c] sm:$0xf] %v581
      %614 = vst [vmem:[%s223 + $0x20] sm:$0xf] %v582
      %615 = vst [vmem:[%s223 + $0x24] sm:$0xf] %v583
      %616 = vst [vmem:[%s223 + $0x28] sm:$0xf] %v584
      %617 = vst [vmem:[%s223 + $0x2c] sm:$0xf] %v585
      %618 = vst [vmem:[%s223 + $0x30] sm:$0xf] %v586
      %619 = vst [vmem:[%s223 + $0x34] sm:$0xf] %v587
      %620 = vst [vmem:[%s223 + $0x38] sm:$0xf] %v588
      %621 = vst [vmem:[%s223 + $0x3c] sm:$0xf] %v589
      %622 = vst [vmem:[%s223 + $0x40] sm:$0xf] %v590
      %623 = vst [vmem:[%s223 + $0x44] sm:$0xf] %v591
      %624 = vst [vmem:[%s223 + $0x48] sm:$0xf] %v592
      %625 = vst [vmem:[%s223 + $0x4c] sm:$0xf] %v593
      %626 = vst [vmem:[%s223 + $0x50] sm:$0xf] %v594
      %627 = vst [vmem:[%s223 + $0x54] sm:$0xf] %v595
      %628 = vst [vmem:[%s223 + $0x58] sm:$0xf] %v596
      %629 = vst [vmem:[%s223 + $0x5c] sm:$0xf] %v597
      %630 = vst [vmem:[%s223 + $0x60] sm:$0xf] %v598
      %631 = vst [vmem:[%s223 + $0x64] sm:$0xf] %v599
      %632 = vst [vmem:[%s223 + $0x68] sm:$0xf] %v600
      %633 = vst [vmem:[%s223 + $0x6c] sm:$0xf] %v601
      %634 = vst [vmem:[%s223 + $0x70] sm:$0xf] %v602
      %635 = vst [vmem:[%s223 + $0x74] sm:$0xf] %v603
      %636 = vst [vmem:[%s223 + $0x78] sm:$0xf] %v604
      %637 = vst [vmem:[%s223 + $0x7c] sm:$0xf] %v605
      %s638 = smul.u32 32, %s18
      %p639 = scmp.lt.s32.totalorder %s638, 63
      %s640 = scalar_select %p639, %s638, 63
      %p641 = scmp.lt.s32.totalorder %s19, 0
      %s642 = scalar_select %p641, %s19, 0
      %s643 = sadd.s32 %s642, %s640
      %s644 = smul.addr %s643, 4
      %s645 = scalar_lea.vmem %s3, %s644
      // Predicated region
      $region33: #{_lambda_.5} parent=31 // pred_check
        %p646 = pneg %p124
      $region34: #{_lambda_.5} parent=31 // pred_check_branch
        %648 = sbr.rel (%p646) target = $region36
      $region35: #{_lambda_.5} parent=31 // pred_region
        %s649 = smul.u32 32, %s18
      $region36: #{_lambda_.5} parent=31 // pred_fallthru
        _
    $region32: #{_lambda_.5} parent=5 // pred_fallthru
      _
    %p650 = scmp.le.s32.totalorder 2, %s9
    // Predicated region
    $region37: #{_lambda_.5} parent=5 // pred_check
      %p651 = pneg %p650
    $region38: #{_lambda_.5} parent=5 // pred_check_branch
      %653 = sbr.rel (%p651) target = $region40
    $region39: #{_lambda_.5} parent=5 // pred_region
      %s654 = ssub.s32 %s9, 2
      // Predicated region
      $region41: #{_lambda_.5} parent=39 // pred_check
        %p655 = pneg %p130
      $region42: #{_lambda_.5} parent=39 // pred_check_branch
        %657 = sbr.rel (%p655) target = $region44
      $region43: #{_lambda_.5} parent=39 // pred_region
        %s658 = smul.u32 32, %s20
        %p659 = scmp.lt.s32.totalorder %s658, 63
        %s660 = scalar_select %p659, %s658, 63
        %p661 = scmp.lt.s32.totalorder %s21, 0
        %s662 = scalar_select %p661, %s21, 0
        %s663 = sadd.s32 %s662, %s660
        %s664 = smul.addr %s663, 4
        %s665 = scalar_lea.vmem %s3, %s664
      $region44: #{_lambda_.5} parent=39 // pred_fallthru
        _
    $region40: #{_lambda_.5} parent=5 // pred_fallthru
      _
  $region6: #{_lambda_.5} parent=0 // loop_footer
    %s13 = sadd.s32 1, %s9
  $region7: #{_lambda_.5} parent=0 // loop_footer_branch
    %8 = sbr.rel target = $region3
  $region8: #{_lambda_.5} parent=0 // loop_exit
    _

// kernel: _lambda_.6
$region0: #{_lambda_.6}
  #allocation0 [shape = 'u32[]', space=smem, size = 0x4, offset = 0x4, fixed_abs, tag = 'smem constant byte address 0x4 - core index']
  #allocation1 [shape = 'u32[72,128]{1,0:T(1,128)}', space=vmem, size = 0x9000, scoped, tag = 'internal scratch']
  %s0 = inlined_call_operand.vmem [shape: bf16[128,2048], index: 0, kind: input, shape index: {}]
  %s1 = inlined_call_operand.vmem [shape: bf16[2048,128], index: 1, kind: input, shape index: {}]
  %s2 = inlined_call_operand.vmem [shape: f32[1,128], index: 2, kind: input, shape index: {}]
  %s3 = inlined_call_operand.vmem [shape: f32[1,128], index: 3, kind: input, shape index: {}]
  %s4 = inlined_call_operand.vmem [shape: bf16[128,128], index: 4, kind: output, shape index: {}]
  %s5 = sld [smem:[#allocation0]]
  $region26: #{_lambda_.6} parent=0
    _
  %s7 = ssub.s32 1, %s5
  %s8 = scalar_select 0, %s7, %s5
  // Predicated region
  $region2: #{_lambda_.6} parent=0 // pred_check
    _
  $region3: #{_lambda_.6} parent=0 // pred_check_branch
    %10 = sbr.rel (0) target = $region5
  $region4: #{_lambda_.6} parent=0 // pred_region
    _
  $region5: #{_lambda_.6} parent=0 // pred_fallthru
    _
  // Predicated region
  $region6: #{_lambda_.6} parent=0 // pred_check
    _
  $region7: #{_lambda_.6} parent=0 // pred_check_branch
    %12 = sbr.rel (0) target = $region9
  $region8: #{_lambda_.6} parent=0 // pred_region
    _
  $region9: #{_lambda_.6} parent=0 // pred_fallthru
    _
  // Predicated region
  $region10: #{_lambda_.6} parent=0 // pred_check
    _
  $region11: #{_lambda_.6} parent=0 // pred_check_branch
    %14 = sbr.rel (0) target = $region13
  $region12: #{_lambda_.6} parent=0 // pred_region
    _
  $region13: #{_lambda_.6} parent=0 // pred_fallthru
    _
  // Predicated region
  $region14: #{_lambda_.6} parent=0 // pred_check
    _
  $region15: #{_lambda_.6} parent=0 // pred_check_branch
    %16 = sbr.rel (0) target = $region17
  $region16: #{_lambda_.6} parent=0 // pred_region
    _
  $region17: #{_lambda_.6} parent=0 // pred_fallthru
    _
  %v17 = vld [vmem:[%s0] sm:$0xff]
  %v18 = vld [vmem:[%s0 + $0x8] sm:$0xff]
  %v19 = vld [vmem:[%s0 + $0x10] sm:$0xff]
  %v20 = vld [vmem:[%s0 + $0x18] sm:$0xff]
  %v21 = vld [vmem:[%s0 + $0x20] sm:$0xff]
  %v22 = vld [vmem:[%s0 + $0x28] sm:$0xff]
  %v23 = vld [vmem:[%s0 + $0x30] sm:$0xff]
  %v24 = vld [vmem:[%s0 + $0x38] sm:$0xff]
  %v25 = vld [vmem:[%s0 + $0x40] sm:$0xff]
  %v26 = vld [vmem:[%s0 + $0x48] sm:$0xff]
  %v27 = vld [vmem:[%s0 + $0x50] sm:$0xff]
  %v28 = vld [vmem:[%s0 + $0x58] sm:$0xff]
  %v29 = vld [vmem:[%s0 + $0x60] sm:$0xff]
  %v30 = vld [vmem:[%s0 + $0x68] sm:$0xff]
  %v31 = vld [vmem:[%s0 + $0x70] sm:$0xff]
  %v32 = vld [vmem:[%s0 + $0x78] sm:$0xff]
  %v33 = vld [vmem:[%s0 + $0x80] sm:$0xff]
  %v34 = vld [vmem:[%s0 + $0x88] sm:$0xff]
  %v35 = vld [vmem:[%s0 + $0x90] sm:$0xff]
  %v36 = vld [vmem:[%s0 + $0x98] sm:$0xff]
  %v37 = vld [vmem:[%s0 + $0xa0] sm:$0xff]
  %v38 = vld [vmem:[%s0 + $0xa8] sm:$0xff]
  %v39 = vld [vmem:[%s0 + $0xb0] sm:$0xff]
  %v40 = vld [vmem:[%s0 + $0xb8] sm:$0xff]
  %v41 = vld [vmem:[%s0 + $0xc0] sm:$0xff]
  %v42 = vld [vmem:[%s0 + $0xc8] sm:$0xff]
  %v43 = vld [vmem:[%s0 + $0xd0] sm:$0xff]
  %v44 = vld [vmem:[%s0 + $0xd8] sm:$0xff]
  %v45 = vld [vmem:[%s0 + $0xe0] sm:$0xff]
  %v46 = vld [vmem:[%s0 + $0xe8] sm:$0xff]
  %v47 = vld [vmem:[%s0 + $0xf0] sm:$0xff]
  %v48 = vld [vmem:[%s0 + $0xf8] sm:$0xff]
  %v49 = vld [vmem:[%s0 + $0x100] sm:$0xff]
  %v50 = vld [vmem:[%s0 + $0x108] sm:$0xff]
  %v51 = vld [vmem:[%s0 + $0x110] sm:$0xff]
  %v52 = vld [vmem:[%s0 + $0x118] sm:$0xff]
  %v53 = vld [vmem:[%s0 + $0x120] sm:$0xff]
  %v54 = vld [vmem:[%s0 + $0x128] sm:$0xff]
  %v55 = vld [vmem:[%s0 + $0x130] sm:$0xff]
  %v56 = vld [vmem:[%s0 + $0x138] sm:$0xff]
  %v57 = vld [vmem:[%s0 + $0x140] sm:$0xff]
  %v58 = vld [vmem:[%s0 + $0x148] sm:$0xff]
  %v59 = vld [vmem:[%s0 + $0x150] sm:$0xff]
  %v60 = vld [vmem:[%s0 + $0x158] sm:$0xff]
  %v61 = vld [vmem:[%s0 + $0x160] sm:$0xff]
  %v62 = vld [vmem:[%s0 + $0x168] sm:$0xff]
  %v63 = vld [vmem:[%s0 + $0x170] sm:$0xff]
  %v64 = vld [vmem:[%s0 + $0x178] sm:$0xff]
  %v65 = vld [vmem:[%s0 + $0x180] sm:$0xff]
  %v66 = vld [vmem:[%s0 + $0x188] sm:$0xff]
  %v67 = vld [vmem:[%s0 + $0x190] sm:$0xff]
  %v68 = vld [vmem:[%s0 + $0x198] sm:$0xff]
  %v69 = vld [vmem:[%s0 + $0x1a0] sm:$0xff]
  %v70 = vld [vmem:[%s0 + $0x1a8] sm:$0xff]
  %v71 = vld [vmem:[%s0 + $0x1b0] sm:$0xff]
  %v72 = vld [vmem:[%s0 + $0x1b8] sm:$0xff]
  %v73 = vld [vmem:[%s0 + $0x1c0] sm:$0xff]
  %v74 = vld [vmem:[%s0 + $0x1c8] sm:$0xff]
  %v75 = vld [vmem:[%s0 + $0x1d0] sm:$0xff]
  %v76 = vld [vmem:[%s0 + $0x1d8] sm:$0xff]
  %v77 = vld [vmem:[%s0 + $0x1e0] sm:$0xff]
  %v78 = vld [vmem:[%s0 + $0x1e8] sm:$0xff]
  %v79 = vld [vmem:[%s0 + $0x1f0] sm:$0xff]
  %v80 = vld [vmem:[%s0 + $0x1f8] sm:$0xff]
  %v81 = vld [vmem:[%s0 + $0x200] sm:$0xff]
  %v82 = vld [vmem:[%s0 + $0x208] sm:$0xff]
  %v83 = vld [vmem:[%s0 + $0x210] sm:$0xff]
  %v84 = vld [vmem:[%s0 + $0x218] sm:$0xff]
  %v85 = vld [vmem:[%s0 + $0x220] sm:$0xff]
  %v86 = vld [vmem:[%s0 + $0x228] sm:$0xff]
  %v87 = vld [vmem:[%s0 + $0x230] sm:$0xff]
  %v88 = vld [vmem:[%s0 + $0x238] sm:$0xff]
  %v89 = vld [vmem:[%s0 + $0x240] sm:$0xff]
  %v90 = vld [vmem:[%s0 + $0x248] sm:$0xff]
  %v91 = vld [vmem:[%s0 + $0x250] sm:$0xff]
  %v92 = vld [vmem:[%s0 + $0x258] sm:$0xff]
  %v93 = vld [vmem:[%s0 + $0x260] sm:$0xff]
  %v94 = vld [vmem:[%s0 + $0x268] sm:$0xff]
  %v95 = vld [vmem:[%s0 + $0x270] sm:$0xff]
  %v96 = vld [vmem:[%s0 + $0x278] sm:$0xff]
  %v97 = vld [vmem:[%s0 + $0x280] sm:$0xff]
  %v98 = vld [vmem:[%s0 + $0x288] sm:$0xff]
  %v99 = vld [vmem:[%s0 + $0x290] sm:$0xff]
  %v100 = vld [vmem:[%s0 + $0x298] sm:$0xff]
  %v101 = vld [vmem:[%s0 + $0x2a0] sm:$0xff]
  %v102 = vld [vmem:[%s0 + $0x2a8] sm:$0xff]
  %v103 = vld [vmem:[%s0 + $0x2b0] sm:$0xff]
  %v104 = vld [vmem:[%s0 + $0x2b8] sm:$0xff]
  %v105 = vld [vmem:[%s0 + $0x2c0] sm:$0xff]
  %v106 = vld [vmem:[%s0 + $0x2c8] sm:$0xff]
  %v107 = vld [vmem:[%s0 + $0x2d0] sm:$0xff]
  %v108 = vld [vmem:[%s0 + $0x2d8] sm:$0xff]
  %v109 = vld [vmem:[%s0 + $0x2e0] sm:$0xff]
  %v110 = vld [vmem:[%s0 + $0x2e8] sm:$0xff]
  %v111 = vld [vmem:[%s0 + $0x2f0] sm:$0xff]
  %v112 = vld [vmem:[%s0 + $0x2f8] sm:$0xff]
  %v113 = vld [vmem:[%s0 + $0x300] sm:$0xff]
  %v114 = vld [vmem:[%s0 + $0x308] sm:$0xff]
  %v115 = vld [vmem:[%s0 + $0x310] sm:$0xff]
  %v116 = vld [vmem:[%s0 + $0x318] sm:$0xff]
  %v117 = vld [vmem:[%s0 + $0x320] sm:$0xff]
  %v118 = vld [vmem:[%s0 + $0x328] sm:$0xff]
  %v119 = vld [vmem:[%s0 + $0x330] sm:$0xff]
  %v120 = vld [vmem:[%s0 + $0x338] sm:$0xff]
  %v121 = vld [vmem:[%s0 + $0x340] sm:$0xff]
  %v122 = vld [vmem:[%s0 + $0x348] sm:$0xff]
  %v123 = vld [vmem:[%s0 + $0x350] sm:$0xff]
  %v124 = vld [vmem:[%s0 + $0x358] sm:$0xff]
  %v125 = vld [vmem:[%s0 + $0x360] sm:$0xff]
  %v126 = vld [vmem:[%s0 + $0x368] sm:$0xff]
  %v127 = vld [vmem:[%s0 + $0x370] sm:$0xff]
  %v128 = vld [vmem:[%s0 + $0x378] sm:$0xff]
  %v129 = vld [vmem:[%s0 + $0x380] sm:$0xff]
  %v130 = vld [vmem:[%s0 + $0x388] sm:$0xff]
  %v131 = vld [vmem:[%s0 + $0x390] sm:$0xff]
  %v132 = vld [vmem:[%s0 + $0x398] sm:$0xff]
  %v133 = vld [vmem:[%s0 + $0x3a0] sm:$0xff]
  %v134 = vld [vmem:[%s0 + $0x3a8] sm:$0xff]
  %v135 = vld [vmem:[%s0 + $0x3b0] sm:$0xff]
  %v136 = vld [vmem:[%s0 + $0x3b8] sm:$0xff]
  %v137 = vld [vmem:[%s0 + $0x3c0] sm:$0xff]
  %v138 = vld [vmem:[%s0 + $0x3c8] sm:$0xff]
  %v139 = vld [vmem:[%s0 + $0x3d0] sm:$0xff]
  %v140 = vld [vmem:[%s0 + $0x3d8] sm:$0xff]
  %v141 = vld [vmem:[%s0 + $0x3e0] sm:$0xff]
  %v142 = vld [vmem:[%s0 + $0x3e8] sm:$0xff]
  %v143 = vld [vmem:[%s0 + $0x3f0] sm:$0xff]
  %v144 = vld [vmem:[%s0 + $0x3f8] sm:$0xff]
  %v145 = vld [vmem:[%s1] sm:$0xf]
  %v146 = vld [vmem:[%s1 + $0x4] sm:$0xf]
  %v147 = vld [vmem:[%s1 + $0x8] sm:$0xf]
  %v148 = vld [vmem:[%s1 + $0xc] sm:$0xf]
  %v149 = vld [vmem:[%s1 + $0x10] sm:$0xf]
  %v150 = vld [vmem:[%s1 + $0x14] sm:$0xf]
  %v151 = vld [vmem:[%s1 + $0x18] sm:$0xf]
  %v152 = vld [vmem:[%s1 + $0x1c] sm:$0xf]
  %v153 = vld [vmem:[%s1 + $0x20] sm:$0xf]
  %v154 = vld [vmem:[%s1 + $0x24] sm:$0xf]
  %v155 = vld [vmem:[%s1 + $0x28] sm:$0xf]
  %v156 = vld [vmem:[%s1 + $0x2c] sm:$0xf]
  %v157 = vld [vmem:[%s1 + $0x30] sm:$0xf]
  %v158 = vld [vmem:[%s1 + $0x34] sm:$0xf]
  %v159 = vld [vmem:[%s1 + $0x38] sm:$0xf]
  %v160 = vld [vmem:[%s1 + $0x3c] sm:$0xf]
  %v161 = vld [vmem:[%s1 + $0x40] sm:$0xf]
  %v162 = vld [vmem:[%s1 + $0x44] sm:$0xf]
  %v163 = vld [vmem:[%s1 + $0x48] sm:$0xf]
  %v164 = vld [vmem:[%s1 + $0x4c] sm:$0xf]
  %v165 = vld [vmem:[%s1 + $0x50] sm:$0xf]
  %v166 = vld [vmem:[%s1 + $0x54] sm:$0xf]
  %v167 = vld [vmem:[%s1 + $0x58] sm:$0xf]
  %v168 = vld [vmem:[%s1 + $0x5c] sm:$0xf]
  %v169 = vld [vmem:[%s1 + $0x60] sm:$0xf]
  %v170 = vld [vmem:[%s1 + $0x64] sm:$0xf]
  %v171 = vld [vmem:[%s1 + $0x68] sm:$0xf]
  %v172 = vld [vmem:[%s1 + $0x6c] sm:$0xf]
  %v173 = vld [vmem:[%s1 + $0x70] sm:$0xf]
  %v174 = vld [vmem:[%s1 + $0x74] sm:$0xf]
  %v175 = vld [vmem:[%s1 + $0x78] sm:$0xf]
  %v176 = vld [vmem:[%s1 + $0x7c] sm:$0xf]
  %v177 = vld [vmem:[%s1 + $0x80] sm:$0xf]
  %v178 = vld [vmem:[%s1 + $0x84] sm:$0xf]
  %v179 = vld [vmem:[%s1 + $0x88] sm:$0xf]
  %v180 = vld [vmem:[%s1 + $0x8c] sm:$0xf]
  %v181 = vld [vmem:[%s1 + $0x90] sm:$0xf]
  %v182 = vld [vmem:[%s1 + $0x94] sm:$0xf]
  %v183 = vld [vmem:[%s1 + $0x98] sm:$0xf]
  %v184 = vld [vmem:[%s1 + $0x9c] sm:$0xf]
  %v185 = vld [vmem:[%s1 + $0xa0] sm:$0xf]
  %v186 = vld [vmem:[%s1 + $0xa4] sm:$0xf]
  %v187 = vld [vmem:[%s1 + $0xa8] sm:$0xf]
  %v188 = vld [vmem:[%s1 + $0xac] sm:$0xf]
  %v189 = vld [vmem:[%s1 + $0xb0] sm:$0xf]
  %v190 = vld [vmem:[%s1 + $0xb4] sm:$0xf]
  %v191 = vld [vmem:[%s1 + $0xb8] sm:$0xf]
  %v192 = vld [vmem:[%s1 + $0xbc] sm:$0xf]
  %v193 = vld [vmem:[%s1 + $0xc0] sm:$0xf]
  %v194 = vld [vmem:[%s1 + $0xc4] sm:$0xf]
  %v195 = vld [vmem:[%s1 + $0xc8] sm:$0xf]
  %v196 = vld [vmem:[%s1 + $0xcc] sm:$0xf]
  %v197 = vld [vmem:[%s1 + $0xd0] sm:$0xf]
  %v198 = vld [vmem:[%s1 + $0xd4] sm:$0xf]
  %v199 = vld [vmem:[%s1 + $0xd8] sm:$0xf]
  %v200 = vld [vmem:[%s1 + $0xdc] sm:$0xf]
  %v201 = vld [vmem:[%s1 + $0xe0] sm:$0xf]
  %v202 = vld [vmem:[%s1 + $0xe4] sm:$0xf]
  %v203 = vld [vmem:[%s1 + $0xe8] sm:$0xf]
  %v204 = vld [vmem:[%s1 + $0xec] sm:$0xf]
  %v205 = vld [vmem:[%s1 + $0xf0] sm:$0xf]
  %v206 = vld [vmem:[%s1 + $0xf4] sm:$0xf]
  %v207 = vld [vmem:[%s1 + $0xf8] sm:$0xf]
  %v208 = vld [vmem:[%s1 + $0xfc] sm:$0xf]
  %v209 = vld [vmem:[%s1 + $0x100] sm:$0xf]
  %v210 = vld [vmem:[%s1 + $0x104] sm:$0xf]
  %v211 = vld [vmem:[%s1 + $0x108] sm:$0xf]
  %v212 = vld [vmem:[%s1 + $0x10c] sm:$0xf]
  %v213 = vld [vmem:[%s1 + $0x110] sm:$0xf]
  %v214 = vld [vmem:[%s1 + $0x114] sm:$0xf]
  %v215 = vld [vmem:[%s1 + $0x118] sm:$0xf]
  %v216 = vld [vmem:[%s1 + $0x11c] sm:$0xf]
  %v217 = vld [vmem:[%s1 + $0x120] sm:$0xf]
  %v218 = vld [vmem:[%s1 + $0x124] sm:$0xf]
  %v219 = vld [vmem:[%s1 + $0x128] sm:$0xf]
  %v220 = vld [vmem:[%s1 + $0x12c] sm:$0xf]
  %v221 = vld [vmem:[%s1 + $0x130] sm:$0xf]
  %v222 = vld [vmem:[%s1 + $0x134] sm:$0xf]
  %v223 = vld [vmem:[%s1 + $0x138] sm:$0xf]
  %v224 = vld [vmem:[%s1 + $0x13c] sm:$0xf]
  %v225 = vld [vmem:[%s1 + $0x140] sm:$0xf]
  %v226 = vld [vmem:[%s1 + $0x144] sm:$0xf]
  %v227 = vld [vmem:[%s1 + $0x148] sm:$0xf]
  %v228 = vld [vmem:[%s1 + $0x14c] sm:$0xf]
  %v229 = vld [vmem:[%s1 + $0x150] sm:$0xf]
  %v230 = vld [vmem:[%s1 + $0x154] sm:$0xf]
  %v231 = vld [vmem:[%s1 + $0x158] sm:$0xf]
  %v232 = vld [vmem:[%s1 + $0x15c] sm:$0xf]
  %v233 = vld [vmem:[%s1 + $0x160] sm:$0xf]
  %v234 = vld [vmem:[%s1 + $0x164] sm:$0xf]
  %v235 = vld [vmem:[%s1 + $0x168] sm:$0xf]
  %v236 = vld [vmem:[%s1 + $0x16c] sm:$0xf]
  %v237 = vld [vmem:[%s1 + $0x170] sm:$0xf]
  %v238 = vld [vmem:[%s1 + $0x174] sm:$0xf]
  %v239 = vld [vmem:[%s1 + $0x178] sm:$0xf]
  %v240 = vld [vmem:[%s1 + $0x17c] sm:$0xf]
  %v241 = vld [vmem:[%s1 + $0x180] sm:$0xf]
  %v242 = vld [vmem:[%s1 + $0x184] sm:$0xf]
  %v243 = vld [vmem:[%s1 + $0x188] sm:$0xf]
  %v244 = vld [vmem:[%s1 + $0x18c] sm:$0xf]
  %v245 = vld [vmem:[%s1 + $0x190] sm:$0xf]
  %v246 = vld [vmem:[%s1 + $0x194] sm:$0xf]
  %v247 = vld [vmem:[%s1 + $0x198] sm:$0xf]
  %v248 = vld [vmem:[%s1 + $0x19c] sm:$0xf]
  %v249 = vld [vmem:[%s1 + $0x1a0] sm:$0xf]
  %v250 = vld [vmem:[%s1 + $0x1a4] sm:$0xf]
  %v251 = vld [vmem:[%s1 + $0x1a8] sm:$0xf]
  %v252 = vld [vmem:[%s1 + $0x1ac] sm:$0xf]
  %v253 = vld [vmem:[%s1 + $0x1b0] sm:$0xf]
  %v254 = vld [vmem:[%s1 + $0x1b4] sm:$0xf]
  %v255 = vld [vmem:[%s1 + $0x1b8] sm:$0xf]
  %v256 = vld [vmem:[%s1 + $0x1bc] sm:$0xf]
  %v257 = vld [vmem:[%s1 + $0x1c0] sm:$0xf]
  %v258 = vld [vmem:[%s1 + $0x1c4] sm:$0xf]
  %v259 = vld [vmem:[%s1 + $0x1c8] sm:$0xf]
  %v260 = vld [vmem:[%s1 + $0x1cc] sm:$0xf]
  %v261 = vld [vmem:[%s1 + $0x1d0] sm:$0xf]
  %v262 = vld [vmem:[%s1 + $0x1d4] sm:$0xf]
  %v263 = vld [vmem:[%s1 + $0x1d8] sm:$0xf]
  %v264 = vld [vmem:[%s1 + $0x1dc] sm:$0xf]
  %v265 = vld [vmem:[%s1 + $0x1e0] sm:$0xf]
  %v266 = vld [vmem:[%s1 + $0x1e4] sm:$0xf]
  %v267 = vld [vmem:[%s1 + $0x1e8] sm:$0xf]
  %v268 = vld [vmem:[%s1 + $0x1ec] sm:$0xf]
  %v269 = vld [vmem:[%s1 + $0x1f0] sm:$0xf]
  %v270 = vld [vmem:[%s1 + $0x1f4] sm:$0xf]
  %v271 = vld [vmem:[%s1 + $0x1f8] sm:$0xf]
  %v272 = vld [vmem:[%s1 + $0x1fc] sm:$0xf]
  %v273 = vld [vmem:[%s1 + $0x200] sm:$0xf]
  %v274 = vld [vmem:[%s1 + $0x204] sm:$0xf]
  %v275 = vld [vmem:[%s1 + $0x208] sm:$0xf]
  %v276 = vld [vmem:[%s1 + $0x20c] sm:$0xf]
  %v277 = vld [vmem:[%s1 + $0x210] sm:$0xf]
  %v278 = vld [vmem:[%s1 + $0x214] sm:$0xf]
  %v279 = vld [vmem:[%s1 + $0x218] sm:$0xf]
  %v280 = vld [vmem:[%s1 + $0x21c] sm:$0xf]
  %v281 = vld [vmem:[%s1 + $0x220] sm:$0xf]
  %v282 = vld [vmem:[%s1 + $0x224] sm:$0xf]
  %v283 = vld [vmem:[%s1 + $0x228] sm:$0xf]
  %v284 = vld [vmem:[%s1 + $0x22c] sm:$0xf]
  %v285 = vld [vmem:[%s1 + $0x230] sm:$0xf]
  %v286 = vld [vmem:[%s1 + $0x234] sm:$0xf]
  %v287 = vld [vmem:[%s1 + $0x238] sm:$0xf]
  %v288 = vld [vmem:[%s1 + $0x23c] sm:$0xf]
  %v289 = vld [vmem:[%s1 + $0x240] sm:$0xf]
  %v290 = vld [vmem:[%s1 + $0x244] sm:$0xf]
  %v291 = vld [vmem:[%s1 + $0x248] sm:$0xf]
  %v292 = vld [vmem:[%s1 + $0x24c] sm:$0xf]
  %v293 = vld [vmem:[%s1 + $0x250] sm:$0xf]
  %v294 = vld [vmem:[%s1 + $0x254] sm:$0xf]
  %v295 = vld [vmem:[%s1 + $0x258] sm:$0xf]
  %v296 = vld [vmem:[%s1 + $0x25c] sm:$0xf]
  %v297 = vld [vmem:[%s1 + $0x260] sm:$0xf]
  %v298 = vld [vmem:[%s1 + $0x264] sm:$0xf]
  %v299 = vld [vmem:[%s1 + $0x268] sm:$0xf]
  %v300 = vld [vmem:[%s1 + $0x26c] sm:$0xf]
  %v301 = vld [vmem:[%s1 + $0x270] sm:$0xf]
  %v302 = vld [vmem:[%s1 + $0x274] sm:$0xf]
  %v303 = vld [vmem:[%s1 + $0x278] sm:$0xf]
  %v304 = vld [vmem:[%s1 + $0x27c] sm:$0xf]
  %v305 = vld [vmem:[%s1 + $0x280] sm:$0xf]
  %v306 = vld [vmem:[%s1 + $0x284] sm:$0xf]
  %v307 = vld [vmem:[%s1 + $0x288] sm:$0xf]
  %v308 = vld [vmem:[%s1 + $0x28c] sm:$0xf]
  %v309 = vld [vmem:[%s1 + $0x290] sm:$0xf]
  %v310 = vld [vmem:[%s1 + $0x294] sm:$0xf]
  %v311 = vld [vmem:[%s1 + $0x298] sm:$0xf]
  %v312 = vld [vmem:[%s1 + $0x29c] sm:$0xf]
  %v313 = vld [vmem:[%s1 + $0x2a0] sm:$0xf]
  %v314 = vld [vmem:[%s1 + $0x2a4] sm:$0xf]
  %v315 = vld [vmem:[%s1 + $0x2a8] sm:$0xf]
  %v316 = vld [vmem:[%s1 + $0x2ac] sm:$0xf]
  %v317 = vld [vmem:[%s1 + $0x2b0] sm:$0xf]
  %v318 = vld [vmem:[%s1 + $0x2b4] sm:$0xf]
  %v319 = vld [vmem:[%s1 + $0x2b8] sm:$0xf]
  %v320 = vld [vmem:[%s1 + $0x2bc] sm:$0xf]
  %v321 = vld [vmem:[%s1 + $0x2c0] sm:$0xf]
  %v322 = vld [vmem:[%s1 + $0x2c4] sm:$0xf]
  %v323 = vld [vmem:[%s1 + $0x2c8] sm:$0xf]
  %v324 = vld [vmem:[%s1 + $0x2cc] sm:$0xf]
  %v325 = vld [vmem:[%s1 + $0x2d0] sm:$0xf]
  %v326 = vld [vmem:[%s1 + $0x2d4] sm:$0xf]
  %v327 = vld [vmem:[%s1 + $0x2d8] sm:$0xf]
  %v328 = vld [vmem:[%s1 + $0x2dc] sm:$0xf]
  %v329 = vld [vmem:[%s1 + $0x2e0] sm:$0xf]
  %v330 = vld [vmem:[%s1 + $0x2e4] sm:$0xf]
  %v331 = vld [vmem:[%s1 + $0x2e8] sm:$0xf]
  %v332 = vld [vmem:[%s1 + $0x2ec] sm:$0xf]
  %v333 = vld [vmem:[%s1 + $0x2f0] sm:$0xf]
  %v334 = vld [vmem:[%s1 + $0x2f4] sm:$0xf]
  %v335 = vld [vmem:[%s1 + $0x2f8] sm:$0xf]
  %v336 = vld [vmem:[%s1 + $0x2fc] sm:$0xf]
  %v337 = vld [vmem:[%s1 + $0x300] sm:$0xf]
  %v338 = vld [vmem:[%s1 + $0x304] sm:$0xf]
  %v339 = vld [vmem:[%s1 + $0x308] sm:$0xf]
  %v340 = vld [vmem:[%s1 + $0x30c] sm:$0xf]
  %v341 = vld [vmem:[%s1 + $0x310] sm:$0xf]
  %v342 = vld [vmem:[%s1 + $0x314] sm:$0xf]
  %v343 = vld [vmem:[%s1 + $0x318] sm:$0xf]
  %v344 = vld [vmem:[%s1 + $0x31c] sm:$0xf]
  %v345 = vld [vmem:[%s1 + $0x320] sm:$0xf]
  %v346 = vld [vmem:[%s1 + $0x324] sm:$0xf]
  %v347 = vld [vmem:[%s1 + $0x328] sm:$0xf]
  %v348 = vld [vmem:[%s1 + $0x32c] sm:$0xf]
  %v349 = vld [vmem:[%s1 + $0x330] sm:$0xf]
  %v350 = vld [vmem:[%s1 + $0x334] sm:$0xf]
  %v351 = vld [vmem:[%s1 + $0x338] sm:$0xf]
  %v352 = vld [vmem:[%s1 + $0x33c] sm:$0xf]
  %v353 = vld [vmem:[%s1 + $0x340] sm:$0xf]
  %v354 = vld [vmem:[%s1 + $0x344] sm:$0xf]
  %v355 = vld [vmem:[%s1 + $0x348] sm:$0xf]
  %v356 = vld [vmem:[%s1 + $0x34c] sm:$0xf]
  %v357 = vld [vmem:[%s1 + $0x350] sm:$0xf]
  %v358 = vld [vmem:[%s1 + $0x354] sm:$0xf]
  %v359 = vld [vmem:[%s1 + $0x358] sm:$0xf]
  %v360 = vld [vmem:[%s1 + $0x35c] sm:$0xf]
  %v361 = vld [vmem:[%s1 + $0x360] sm:$0xf]
  %v362 = vld [vmem:[%s1 + $0x364] sm:$0xf]
  %v363 = vld [vmem:[%s1 + $0x368] sm:$0xf]
  %v364 = vld [vmem:[%s1 + $0x36c] sm:$0xf]
  %v365 = vld [vmem:[%s1 + $0x370] sm:$0xf]
  %v366 = vld [vmem:[%s1 + $0x374] sm:$0xf]
  %v367 = vld [vmem:[%s1 + $0x378] sm:$0xf]
  %v368 = vld [vmem:[%s1 + $0x37c] sm:$0xf]
  %v369 = vld [vmem:[%s1 + $0x380] sm:$0xf]
  %v370 = vld [vmem:[%s1 + $0x384] sm:$0xf]
  %v371 = vld [vmem:[%s1 + $0x388] sm:$0xf]
  %v372 = vld [vmem:[%s1 + $0x38c] sm:$0xf]
  %v373 = vld [vmem:[%s1 + $0x390] sm:$0xf]
  %v374 = vld [vmem:[%s1 + $0x394] sm:$0xf]
  %v375 = vld [vmem:[%s1 + $0x398] sm:$0xf]
  %v376 = vld [vmem:[%s1 + $0x39c] sm:$0xf]
  %v377 = vld [vmem:[%s1 + $0x3a0] sm:$0xf]
  %v378 = vld [vmem:[%s1 + $0x3a4] sm:$0xf]
  %v379 = vld [vmem:[%s1 + $0x3a8] sm:$0xf]
  %v380 = vld [vmem:[%s1 + $0x3ac] sm:$0xf]
  %v381 = vld [vmem:[%s1 + $0x3b0] sm:$0xf]
  %v382 = vld [vmem:[%s1 + $0x3b4] sm:$0xf]
  %v383 = vld [vmem:[%s1 + $0x3b8] sm:$0xf]
  %v384 = vld [vmem:[%s1 + $0x3bc] sm:$0xf]
  %v385 = vld [vmem:[%s1 + $0x3c0] sm:$0xf]
  %v386 = vld [vmem:[%s1 + $0x3c4] sm:$0xf]
  %v387 = vld [vmem:[%s1 + $0x3c8] sm:$0xf]
  %v388 = vld [vmem:[%s1 + $0x3cc] sm:$0xf]
  %v389 = vld [vmem:[%s1 + $0x3d0] sm:$0xf]
  %v390 = vld [vmem:[%s1 + $0x3d4] sm:$0xf]
  %v391 = vld [vmem:[%s1 + $0x3d8] sm:$0xf]
  %v392 = vld [vmem:[%s1 + $0x3dc] sm:$0xf]
  %v393 = vld [vmem:[%s1 + $0x3e0] sm:$0xf]
  %v394 = vld [vmem:[%s1 + $0x3e4] sm:$0xf]
  %v395 = vld [vmem:[%s1 + $0x3e8] sm:$0xf]
  %v396 = vld [vmem:[%s1 + $0x3ec] sm:$0xf]
  %v397 = vld [vmem:[%s1 + $0x3f0] sm:$0xf]
  %v398 = vld [vmem:[%s1 + $0x3f4] sm:$0xf]
  %v399 = vld [vmem:[%s1 + $0x3f8] sm:$0xf]
  %v400 = vld [vmem:[%s1 + $0x3fc] sm:$0xf]
  %v529 = vunpack.c.l.b16 %v17
  %v530 = vunpack.c.h.b16 %v17
  %v531 = vunpack.c.l.b16 %v18
  %v532 = vunpack.c.h.b16 %v18
  %v533 = vunpack.c.l.b16 %v19
  %v534 = vunpack.c.h.b16 %v19
  %v535 = vunpack.c.l.b16 %v20
  %v536 = vunpack.c.h.b16 %v20
  %v537 = vunpack.c.l.b16 %v21
  %v538 = vunpack.c.h.b16 %v21
  %v539 = vunpack.c.l.b16 %v22
  %v540 = vunpack.c.h.b16 %v22
  %v541 = vunpack.c.l.b16 %v23
  %v542 = vunpack.c.h.b16 %v23
  %v543 = vunpack.c.l.b16 %v24
  %v544 = vunpack.c.h.b16 %v24
  %v545 = vunpack.c.l.b16 %v25
  %v546 = vunpack.c.h.b16 %v25
  %v547 = vunpack.c.l.b16 %v26
  %v548 = vunpack.c.h.b16 %v26
  %v549 = vunpack.c.l.b16 %v27
  %v550 = vunpack.c.h.b16 %v27
  %v551 = vunpack.c.l.b16 %v28
  %v552 = vunpack.c.h.b16 %v28
  %v553 = vunpack.c.l.b16 %v29
  %v554 = vunpack.c.h.b16 %v29
  %v555 = vunpack.c.l.b16 %v30
  %v556 = vunpack.c.h.b16 %v30
  %v557 = vunpack.c.l.b16 %v31
  %v558 = vunpack.c.h.b16 %v31
  %v559 = vunpack.c.l.b16 %v32
  %v560 = vunpack.c.h.b16 %v32
  %v561 = vunpack.c.l.b16 %v33
  %v562 = vunpack.c.h.b16 %v33
  %v563 = vunpack.c.l.b16 %v34
  %v564 = vunpack.c.h.b16 %v34
  %v565 = vunpack.c.l.b16 %v35
  %v566 = vunpack.c.h.b16 %v35
  %v567 = vunpack.c.l.b16 %v36
  %v568 = vunpack.c.h.b16 %v36
  %v569 = vunpack.c.l.b16 %v37
  %v570 = vunpack.c.h.b16 %v37
  %v571 = vunpack.c.l.b16 %v38
  %v572 = vunpack.c.h.b16 %v38
  %v573 = vunpack.c.l.b16 %v39
  %v574 = vunpack.c.h.b16 %v39
  %v575 = vunpack.c.l.b16 %v40
  %v576 = vunpack.c.h.b16 %v40
  %v577 = vunpack.c.l.b16 %v41
  %v578 = vunpack.c.h.b16 %v41
  %v579 = vunpack.c.l.b16 %v42
  %v580 = vunpack.c.h.b16 %v42
  %v581 = vunpack.c.l.b16 %v43
  %v582 = vunpack.c.h.b16 %v43
  %v583 = vunpack.c.l.b16 %v44
  %v584 = vunpack.c.h.b16 %v44
  %v585 = vunpack.c.l.b16 %v45
  %v586 = vunpack.c.h.b16 %v45
  %v587 = vunpack.c.l.b16 %v46
  %v588 = vunpack.c.h.b16 %v46
  %v589 = vunpack.c.l.b16 %v47
  %v590 = vunpack.c.h.b16 %v47
  %v591 = vunpack.c.l.b16 %v48
  %v592 = vunpack.c.h.b16 %v48
  %v593 = vunpack.c.l.b16 %v49
  %v594 = vunpack.c.h.b16 %v49
  %v595 = vunpack.c.l.b16 %v50
  %v596 = vunpack.c.h.b16 %v50
  %v597 = vunpack.c.l.b16 %v51
  %v598 = vunpack.c.h.b16 %v51
  %v599 = vunpack.c.l.b16 %v52
  %v600 = vunpack.c.h.b16 %v52
  %v601 = vunpack.c.l.b16 %v53
  %v602 = vunpack.c.h.b16 %v53
  %v603 = vunpack.c.l.b16 %v54
  %v604 = vunpack.c.h.b16 %v54
  %v605 = vunpack.c.l.b16 %v55
  %v606 = vunpack.c.h.b16 %v55
  %v607 = vunpack.c.l.b16 %v56
  %v608 = vunpack.c.h.b16 %v56
  %v609 = vunpack.c.l.b16 %v57
  %v610 = vunpack.c.h.b16 %v57
  %v611 = vunpack.c.l.b16 %v58
  %v612 = vunpack.c.h.b16 %v58
  %v613 = vunpack.c.l.b16 %v59
  %v614 = vunpack.c.h.b16 %v59
  %v615 = vunpack.c.l.b16 %v60
  %v616 = vunpack.c.h.b16 %v60
  %v617 = vunpack.c.l.b16 %v61
  %v618 = vunpack.c.h.b16 %v61
  %v619 = vunpack.c.l.b16 %v62
  %v620 = vunpack.c.h.b16 %v62
  %v621 = vunpack.c.l.b16 %v63
  %v622 = vunpack.c.h.b16 %v63
  %v623 = vunpack.c.l.b16 %v64
  %v624 = vunpack.c.h.b16 %v64
  %v625 = vunpack.c.l.b16 %v65
  %v626 = vunpack.c.h.b16 %v65
  %v627 = vunpack.c.l.b16 %v66
  %v628 = vunpack.c.h.b16 %v66
  %v629 = vunpack.c.l.b16 %v67
  %v630 = vunpack.c.h.b16 %v67
  %v631 = vunpack.c.l.b16 %v68
  %v632 = vunpack.c.h.b16 %v68
  %v633 = vunpack.c.l.b16 %v69
  %v634 = vunpack.c.h.b16 %v69
  %v635 = vunpack.c.l.b16 %v70
  %v636 = vunpack.c.h.b16 %v70
  %v637 = vunpack.c.l.b16 %v71
  %v638 = vunpack.c.h.b16 %v71
  %v639 = vunpack.c.l.b16 %v72
  %v640 = vunpack.c.h.b16 %v72
  %v641 = vunpack.c.l.b16 %v73
  %v642 = vunpack.c.h.b16 %v73
  %v643 = vunpack.c.l.b16 %v74
  %v644 = vunpack.c.h.b16 %v74
  %v645 = vunpack.c.l.b16 %v75
  %v646 = vunpack.c.h.b16 %v75
  %v647 = vunpack.c.l.b16 %v76
  %v648 = vunpack.c.h.b16 %v76
  %v649 = vunpack.c.l.b16 %v77
  %v650 = vunpack.c.h.b16 %v77
  %v651 = vunpack.c.l.b16 %v78
  %v652 = vunpack.c.h.b16 %v78
  %v653 = vunpack.c.l.b16 %v79
  %v654 = vunpack.c.h.b16 %v79
  %v655 = vunpack.c.l.b16 %v80
  %v656 = vunpack.c.h.b16 %v80
  %v657 = vunpack.c.l.b16 %v81
  %v658 = vunpack.c.h.b16 %v81
  %v659 = vunpack.c.l.b16 %v82
  %v660 = vunpack.c.h.b16 %v82
  %v661 = vunpack.c.l.b16 %v83
  %v662 = vunpack.c.h.b16 %v83
  %v663 = vunpack.c.l.b16 %v84
  %v664 = vunpack.c.h.b16 %v84
  %v665 = vunpack.c.l.b16 %v85
  %v666 = vunpack.c.h.b16 %v85
  %v667 = vunpack.c.l.b16 %v86
  %v668 = vunpack.c.h.b16 %v86
  %v669 = vunpack.c.l.b16 %v87
  %v670 = vunpack.c.h.b16 %v87
  %v671 = vunpack.c.l.b16 %v88
  %v672 = vunpack.c.h.b16 %v88
  %v673 = vunpack.c.l.b16 %v89
  %v674 = vunpack.c.h.b16 %v89
  %v675 = vunpack.c.l.b16 %v90
  %v676 = vunpack.c.h.b16 %v90
  %v677 = vunpack.c.l.b16 %v91
  %v678 = vunpack.c.h.b16 %v91
  %v679 = vunpack.c.l.b16 %v92
  %v680 = vunpack.c.h.b16 %v92
  %v681 = vunpack.c.l.b16 %v93
  %v682 = vunpack.c.h.b16 %v93
  %v683 = vunpack.c.l.b16 %v94
  %v684 = vunpack.c.h.b16 %v94
  %v685 = vunpack.c.l.b16 %v95
  %v686 = vunpack.c.h.b16 %v95
  %v687 = vunpack.c.l.b16 %v96
  %v688 = vunpack.c.h.b16 %v96
  %v689 = vunpack.c.l.b16 %v97
  %v690 = vunpack.c.h.b16 %v97
  %v691 = vunpack.c.l.b16 %v98
  %v692 = vunpack.c.h.b16 %v98
  %v693 = vunpack.c.l.b16 %v99
  %v694 = vunpack.c.h.b16 %v99
  %v695 = vunpack.c.l.b16 %v100
  %v696 = vunpack.c.h.b16 %v100
  %v697 = vunpack.c.l.b16 %v101
  %v698 = vunpack.c.h.b16 %v101
  %v699 = vunpack.c.l.b16 %v102
  %v700 = vunpack.c.h.b16 %v102
  %v701 = vunpack.c.l.b16 %v103
  %v702 = vunpack.c.h.b16 %v103
  %v703 = vunpack.c.l.b16 %v104
  %v704 = vunpack.c.h.b16 %v104
  %v705 = vunpack.c.l.b16 %v105
  %v706 = vunpack.c.h.b16 %v105
  %v707 = vunpack.c.l.b16 %v106
  %v708 = vunpack.c.h.b16 %v106
  %v709 = vunpack.c.l.b16 %v107
  %v710 = vunpack.c.h.b16 %v107
  %v711 = vunpack.c.l.b16 %v108
  %v712 = vunpack.c.h.b16 %v108
  %v713 = vunpack.c.l.b16 %v109
  %v714 = vunpack.c.h.b16 %v109
  %v715 = vunpack.c.l.b16 %v110
  %v716 = vunpack.c.h.b16 %v110
  %v717 = vunpack.c.l.b16 %v111
  %v718 = vunpack.c.h.b16 %v111
  %v719 = vunpack.c.l.b16 %v112
  %v720 = vunpack.c.h.b16 %v112
  %v721 = vunpack.c.l.b16 %v113
  %v722 = vunpack.c.h.b16 %v113
  %v723 = vunpack.c.l.b16 %v114
  %v724 = vunpack.c.h.b16 %v114
  %v725 = vunpack.c.l.b16 %v115
  %v726 = vunpack.c.h.b16 %v115
  %v727 = vunpack.c.l.b16 %v116
  %v728 = vunpack.c.h.b16 %v116
  %v729 = vunpack.c.l.b16 %v117
  %v730 = vunpack.c.h.b16 %v117
  %v731 = vunpack.c.l.b16 %v118
  %v732 = vunpack.c.h.b16 %v118
  %v733 = vunpack.c.l.b16 %v119
  %v734 = vunpack.c.h.b16 %v119
  %v735 = vunpack.c.l.b16 %v120
  %v736 = vunpack.c.h.b16 %v120
  %v737 = vunpack.c.l.b16 %v121
  %v738 = vunpack.c.h.b16 %v121
  %v739 = vunpack.c.l.b16 %v122
  %v740 = vunpack.c.h.b16 %v122
  %v741 = vunpack.c.l.b16 %v123
  %v742 = vunpack.c.h.b16 %v123
  %v743 = vunpack.c.l.b16 %v124
  %v744 = vunpack.c.h.b16 %v124
  %v745 = vunpack.c.l.b16 %v125
  %v746 = vunpack.c.h.b16 %v125
  %v747 = vunpack.c.l.b16 %v126
  %v748 = vunpack.c.h.b16 %v126
  %v749 = vunpack.c.l.b16 %v127
  %v750 = vunpack.c.h.b16 %v127
  %v751 = vunpack.c.l.b16 %v128
  %v752 = vunpack.c.h.b16 %v128
  %v753 = vunpack.c.l.b16 %v129
  %v754 = vunpack.c.h.b16 %v129
  %v755 = vunpack.c.l.b16 %v130
  %v756 = vunpack.c.h.b16 %v130
  %v757 = vunpack.c.l.b16 %v131
  %v758 = vunpack.c.h.b16 %v131
  %v759 = vunpack.c.l.b16 %v132
  %v760 = vunpack.c.h.b16 %v132
  %v761 = vunpack.c.l.b16 %v133
  %v762 = vunpack.c.h.b16 %v133
  %v763 = vunpack.c.l.b16 %v134
  %v764 = vunpack.c.h.b16 %v134
  %v765 = vunpack.c.l.b16 %v135
  %v766 = vunpack.c.h.b16 %v135
  %v767 = vunpack.c.l.b16 %v136
  %v768 = vunpack.c.h.b16 %v136
  %v769 = vunpack.c.l.b16 %v137
  %v770 = vunpack.c.h.b16 %v137
  %v771 = vunpack.c.l.b16 %v138
  %v772 = vunpack.c.h.b16 %v138
  %v773 = vunpack.c.l.b16 %v139
  %v774 = vunpack.c.h.b16 %v139
  %v775 = vunpack.c.l.b16 %v140
  %v776 = vunpack.c.h.b16 %v140
  %v777 = vunpack.c.l.b16 %v141
  %v778 = vunpack.c.h.b16 %v141
  %v779 = vunpack.c.l.b16 %v142
  %v780 = vunpack.c.h.b16 %v142
  %v781 = vunpack.c.l.b16 %v143
  %v782 = vunpack.c.h.b16 %v143
  %v783 = vunpack.c.l.b16 %v144
  %v784 = vunpack.c.h.b16 %v144
  %v785 = vpack.c.b16 %v545, %v529
  %v786 = vpack.c.b16 %v546, %v530
  %v787 = vpack.c.b16 %v547, %v531
  %v788 = vpack.c.b16 %v548, %v532
  %v789 = vpack.c.b16 %v549, %v533
  %v790 = vpack.c.b16 %v550, %v534
  %v791 = vpack.c.b16 %v551, %v535
  %v792 = vpack.c.b16 %v552, %v536
  %v793 = vpack.c.b16 %v553, %v537
  %v794 = vpack.c.b16 %v554, %v538
  %v795 = vpack.c.b16 %v555, %v539
  %v796 = vpack.c.b16 %v556, %v540
  %v797 = vpack.c.b16 %v557, %v541
  %v798 = vpack.c.b16 %v558, %v542
  %v799 = vpack.c.b16 %v559, %v543
  %v800 = vpack.c.b16 %v560, %v544
  %v801 = vpack.c.b16 %v577, %v561
  %v802 = vpack.c.b16 %v578, %v562
  %v803 = vpack.c.b16 %v579, %v563
  %v804 = vpack.c.b16 %v580, %v564
  %v805 = vpack.c.b16 %v581, %v565
  %v806 = vpack.c.b16 %v582, %v566
  %v807 = vpack.c.b16 %v583, %v567
  %v808 = vpack.c.b16 %v584, %v568
  %v809 = vpack.c.b16 %v585, %v569
  %v810 = vpack.c.b16 %v586, %v570
  %v811 = vpack.c.b16 %v587, %v571
  %v812 = vpack.c.b16 %v588, %v572
  %v813 = vpack.c.b16 %v589, %v573
  %v814 = vpack.c.b16 %v590, %v574
  %v815 = vpack.c.b16 %v591, %v575
  %v816 = vpack.c.b16 %v592, %v576
  %v817 = vpack.c.b16 %v609, %v593
  %v818 = vpack.c.b16 %v610, %v594
  %v819 = vpack.c.b16 %v611, %v595
  %v820 = vpack.c.b16 %v612, %v596
  %v821 = vpack.c.b16 %v613, %v597
  %v822 = vpack.c.b16 %v614, %v598
  %v823 = vpack.c.b16 %v615, %v599
  %v824 = vpack.c.b16 %v616, %v600
  %v825 = vpack.c.b16 %v617, %v601
  %v826 = vpack.c.b16 %v618, %v602
  %v827 = vpack.c.b16 %v619, %v603
  %v828 = vpack.c.b16 %v620, %v604
  %v829 = vpack.c.b16 %v621, %v605
  %v830 = vpack.c.b16 %v622, %v606
  %v831 = vpack.c.b16 %v623, %v607
  %v832 = vpack.c.b16 %v624, %v608
  %v833 = vpack.c.b16 %v641, %v625
  %v834 = vpack.c.b16 %v642, %v626
  %v835 = vpack.c.b16 %v643, %v627
  %v836 = vpack.c.b16 %v644, %v628
  %v837 = vpack.c.b16 %v645, %v629
  %v838 = vpack.c.b16 %v646, %v630
  %v839 = vpack.c.b16 %v647, %v631
  %v840 = vpack.c.b16 %v648, %v632
  %v841 = vpack.c.b16 %v649, %v633
  %v842 = vpack.c.b16 %v650, %v634
  %v843 = vpack.c.b16 %v651, %v635
  %v844 = vpack.c.b16 %v652, %v636
  %v845 = vpack.c.b16 %v653, %v637
  %v846 = vpack.c.b16 %v654, %v638
  %v847 = vpack.c.b16 %v655, %v639
  %v848 = vpack.c.b16 %v656, %v640
  %v849 = vpack.c.b16 %v673, %v657
  %v850 = vpack.c.b16 %v674, %v658
  %v851 = vpack.c.b16 %v675, %v659
  %v852 = vpack.c.b16 %v676, %v660
  %v853 = vpack.c.b16 %v677, %v661
  %v854 = vpack.c.b16 %v678, %v662
  %v855 = vpack.c.b16 %v679, %v663
  %v856 = vpack.c.b16 %v680, %v664
  %v857 = vpack.c.b16 %v681, %v665
  %v858 = vpack.c.b16 %v682, %v666
  %v859 = vpack.c.b16 %v683, %v667
  %v860 = vpack.c.b16 %v684, %v668
  %v861 = vpack.c.b16 %v685, %v669
  %v862 = vpack.c.b16 %v686, %v670
  %v863 = vpack.c.b16 %v687, %v671
  %v864 = vpack.c.b16 %v688, %v672
  %v865 = vpack.c.b16 %v705, %v689
  %v866 = vpack.c.b16 %v706, %v690
  %v867 = vpack.c.b16 %v707, %v691
  %v868 = vpack.c.b16 %v708, %v692
  %v869 = vpack.c.b16 %v709, %v693
  %v870 = vpack.c.b16 %v710, %v694
  %v871 = vpack.c.b16 %v711, %v695
  %v872 = vpack.c.b16 %v712, %v696
  %v873 = vpack.c.b16 %v713, %v697
  %v874 = vpack.c.b16 %v714, %v698
  %v875 = vpack.c.b16 %v715, %v699
  %v876 = vpack.c.b16 %v716, %v700
  %v877 = vpack.c.b16 %v717, %v701
  %v878 = vpack.c.b16 %v718, %v702
  %v879 = vpack.c.b16 %v719, %v703
  %v880 = vpack.c.b16 %v720, %v704
  %v881 = vpack.c.b16 %v737, %v721
  %v882 = vpack.c.b16 %v738, %v722
  %v883 = vpack.c.b16 %v739, %v723
  %v884 = vpack.c.b16 %v740, %v724
  %v885 = vpack.c.b16 %v741, %v725
  %v886 = vpack.c.b16 %v742, %v726
  %v887 = vpack.c.b16 %v743, %v727
  %v888 = vpack.c.b16 %v744, %v728
  %v889 = vpack.c.b16 %v745, %v729
  %v890 = vpack.c.b16 %v746, %v730
  %v891 = vpack.c.b16 %v747, %v731
  %v892 = vpack.c.b16 %v748, %v732
  %v893 = vpack.c.b16 %v749, %v733
  %v894 = vpack.c.b16 %v750, %v734
  %v895 = vpack.c.b16 %v751, %v735
  %v896 = vpack.c.b16 %v752, %v736
  %v897 = vpack.c.b16 %v769, %v753
  %v898 = vpack.c.b16 %v770, %v754
  %v899 = vpack.c.b16 %v771, %v755
  %v900 = vpack.c.b16 %v772, %v756
  %v901 = vpack.c.b16 %v773, %v757
  %v902 = vpack.c.b16 %v774, %v758
  %v903 = vpack.c.b16 %v775, %v759
  %v904 = vpack.c.b16 %v776, %v760
  %v905 = vpack.c.b16 %v777, %v761
  %v906 = vpack.c.b16 %v778, %v762
  %v907 = vpack.c.b16 %v779, %v763
  %v908 = vpack.c.b16 %v780, %v764
  %v909 = vpack.c.b16 %v781, %v765
  %v910 = vpack.c.b16 %v782, %v766
  %v911 = vpack.c.b16 %v783, %v767
  %v912 = vpack.c.b16 %v784, %v768
  %v1297 = vunpack.c.l.b16 %v145
  %v1298 = vunpack.c.l.b16 %v146
  %v1299 = vunpack.c.l.b16 %v147
  %v1300 = vunpack.c.l.b16 %v148
  %v1301 = vunpack.c.l.b16 %v149
  %v1302 = vunpack.c.l.b16 %v150
  %v1303 = vunpack.c.l.b16 %v151
  %v1304 = vunpack.c.l.b16 %v152
  %v1305 = vunpack.c.l.b16 %v153
  %v1306 = vunpack.c.l.b16 %v154
  %v1307 = vunpack.c.l.b16 %v155
  %v1308 = vunpack.c.l.b16 %v156
  %v1309 = vunpack.c.l.b16 %v157
  %v1310 = vunpack.c.l.b16 %v158
  %v1311 = vunpack.c.l.b16 %v159
  %v1312 = vunpack.c.l.b16 %v160
  %v1313 = vunpack.c.l.b16 %v161
  %v1314 = vunpack.c.l.b16 %v162
  %v1315 = vunpack.c.l.b16 %v163
  %v1316 = vunpack.c.l.b16 %v164
  %v1317 = vunpack.c.l.b16 %v165
  %v1318 = vunpack.c.l.b16 %v166
  %v1319 = vunpack.c.l.b16 %v167
  %v1320 = vunpack.c.l.b16 %v168
  %v1321 = vunpack.c.l.b16 %v169
  %v1322 = vunpack.c.l.b16 %v170
  %v1323 = vunpack.c.l.b16 %v171
  %v1324 = vunpack.c.l.b16 %v172
  %v1325 = vunpack.c.l.b16 %v173
  %v1326 = vunpack.c.l.b16 %v174
  %v1327 = vunpack.c.l.b16 %v175
  %v1328 = vunpack.c.l.b16 %v176
  %v1329 = vunpack.c.l.b16 %v177
  %v1330 = vunpack.c.l.b16 %v178
  %v1331 = vunpack.c.l.b16 %v179
  %v1332 = vunpack.c.l.b16 %v180
  %v1333 = vunpack.c.l.b16 %v181
  %v1334 = vunpack.c.l.b16 %v182
  %v1335 = vunpack.c.l.b16 %v183
  %v1336 = vunpack.c.l.b16 %v184
  %v1337 = vunpack.c.l.b16 %v185
  %v1338 = vunpack.c.l.b16 %v186
  %v1339 = vunpack.c.l.b16 %v187
  %v1340 = vunpack.c.l.b16 %v188
  %v1341 = vunpack.c.l.b16 %v189
  %v1342 = vunpack.c.l.b16 %v190
  %v1343 = vunpack.c.l.b16 %v191
  %v1344 = vunpack.c.l.b16 %v192
  %v1345 = vunpack.c.l.b16 %v193
  %v1346 = vunpack.c.l.b16 %v194
  %v1347 = vunpack.c.l.b16 %v195
  %v1348 = vunpack.c.l.b16 %v196
  %v1349 = vunpack.c.l.b16 %v197
  %v1350 = vunpack.c.l.b16 %v198
  %v1351 = vunpack.c.l.b16 %v199
  %v1352 = vunpack.c.l.b16 %v200
  %v1353 = vunpack.c.l.b16 %v201
  %v1354 = vunpack.c.l.b16 %v202
  %v1355 = vunpack.c.l.b16 %v203
  %v1356 = vunpack.c.l.b16 %v204
  %v1357 = vunpack.c.l.b16 %v205
  %v1358 = vunpack.c.l.b16 %v206
  %v1359 = vunpack.c.l.b16 %v207
  %v1360 = vunpack.c.l.b16 %v208
  %v1361 = vunpack.c.l.b16 %v209
  %v1362 = vunpack.c.l.b16 %v210
  %v1363 = vunpack.c.l.b16 %v211
  %v1364 = vunpack.c.l.b16 %v212
  %v1365 = vunpack.c.l.b16 %v213
  %v1366 = vunpack.c.l.b16 %v214
  %v1367 = vunpack.c.l.b16 %v215
  %v1368 = vunpack.c.l.b16 %v216
  %v1369 = vunpack.c.l.b16 %v217
  %v1370 = vunpack.c.l.b16 %v218
  %v1371 = vunpack.c.l.b16 %v219
  %v1372 = vunpack.c.l.b16 %v220
  %v1373 = vunpack.c.l.b16 %v221
  %v1374 = vunpack.c.l.b16 %v222
  %v1375 = vunpack.c.l.b16 %v223
  %v1376 = vunpack.c.l.b16 %v224
  %v1377 = vunpack.c.l.b16 %v225
  %v1378 = vunpack.c.l.b16 %v226
  %v1379 = vunpack.c.l.b16 %v227
  %v1380 = vunpack.c.l.b16 %v228
  %v1381 = vunpack.c.l.b16 %v229
  %v1382 = vunpack.c.l.b16 %v230
  %v1383 = vunpack.c.l.b16 %v231
  %v1384 = vunpack.c.l.b16 %v232
  %v1385 = vunpack.c.l.b16 %v233
  %v1386 = vunpack.c.l.b16 %v234
  %v1387 = vunpack.c.l.b16 %v235
  %v1388 = vunpack.c.l.b16 %v236
  %v1389 = vunpack.c.l.b16 %v237
  %v1390 = vunpack.c.l.b16 %v238
  %v1391 = vunpack.c.l.b16 %v239
  %v1392 = vunpack.c.l.b16 %v240
  %v1393 = vunpack.c.l.b16 %v241
  %v1394 = vunpack.c.l.b16 %v242
  %v1395 = vunpack.c.l.b16 %v243
  %v1396 = vunpack.c.l.b16 %v244
  %v1397 = vunpack.c.l.b16 %v245
  %v1398 = vunpack.c.l.b16 %v246
  %v1399 = vunpack.c.l.b16 %v247
  %v1400 = vunpack.c.l.b16 %v248
  %v1401 = vunpack.c.l.b16 %v249
  %v1402 = vunpack.c.l.b16 %v250
  %v1403 = vunpack.c.l.b16 %v251
  %v1404 = vunpack.c.l.b16 %v252
  %v1405 = vunpack.c.l.b16 %v253
  %v1406 = vunpack.c.l.b16 %v254
  %v1407 = vunpack.c.l.b16 %v255
  %v1408 = vunpack.c.l.b16 %v256
  %v1409 = vunpack.c.l.b16 %v257
  %v1410 = vunpack.c.l.b16 %v258
  %v1411 = vunpack.c.l.b16 %v259
  %v1412 = vunpack.c.l.b16 %v260
  %v1413 = vunpack.c.l.b16 %v261
  %v1414 = vunpack.c.l.b16 %v262
  %v1415 = vunpack.c.l.b16 %v263
  %v1416 = vunpack.c.l.b16 %v264
  %v1417 = vunpack.c.l.b16 %v265
  %v1418 = vunpack.c.l.b16 %v266
  %v1419 = vunpack.c.l.b16 %v267
  %v1420 = vunpack.c.l.b16 %v268
  %v1421 = vunpack.c.l.b16 %v269
  %v1422 = vunpack.c.l.b16 %v270
  %v1423 = vunpack.c.l.b16 %v271
  %v1424 = vunpack.c.l.b16 %v272
  %v1425 = vunpack.c.l.b16 %v273
  %v1426 = vunpack.c.l.b16 %v274
  %v1427 = vunpack.c.l.b16 %v275
  %v1428 = vunpack.c.l.b16 %v276
  %v1429 = vunpack.c.l.b16 %v277
  %v1430 = vunpack.c.l.b16 %v278
  %v1431 = vunpack.c.l.b16 %v279
  %v1432 = vunpack.c.l.b16 %v280
  %v1433 = vunpack.c.l.b16 %v281
  %v1434 = vunpack.c.l.b16 %v282
  %v1435 = vunpack.c.l.b16 %v283
  %v1436 = vunpack.c.l.b16 %v284
  %v1437 = vunpack.c.l.b16 %v285
  %v1438 = vunpack.c.l.b16 %v286
  %v1439 = vunpack.c.l.b16 %v287
  %v1440 = vunpack.c.l.b16 %v288
  %v1441 = vunpack.c.l.b16 %v289
  %v1442 = vunpack.c.l.b16 %v290
  %v1443 = vunpack.c.l.b16 %v291
  %v1444 = vunpack.c.l.b16 %v292
  %v1445 = vunpack.c.l.b16 %v293
  %v1446 = vunpack.c.l.b16 %v294
  %v1447 = vunpack.c.l.b16 %v295
  %v1448 = vunpack.c.l.b16 %v296
  %v1449 = vunpack.c.l.b16 %v297
  %v1450 = vunpack.c.l.b16 %v298
  %v1451 = vunpack.c.l.b16 %v299
  %v1452 = vunpack.c.l.b16 %v300
  %v1453 = vunpack.c.l.b16 %v301
  %v1454 = vunpack.c.l.b16 %v302
  %v1455 = vunpack.c.l.b16 %v303
  %v1456 = vunpack.c.l.b16 %v304
  %v1457 = vunpack.c.l.b16 %v305
  %v1458 = vunpack.c.l.b16 %v306
  %v1459 = vunpack.c.l.b16 %v307
  %v1460 = vunpack.c.l.b16 %v308
  %v1461 = vunpack.c.l.b16 %v309
  %v1462 = vunpack.c.l.b16 %v310
  %v1463 = vunpack.c.l.b16 %v311
  %v1464 = vunpack.c.l.b16 %v312
  %v1465 = vunpack.c.l.b16 %v313
  %v1466 = vunpack.c.l.b16 %v314
  %v1467 = vunpack.c.l.b16 %v315
  %v1468 = vunpack.c.l.b16 %v316
  %v1469 = vunpack.c.l.b16 %v317
  %v1470 = vunpack.c.l.b16 %v318
  %v1471 = vunpack.c.l.b16 %v319
  %v1472 = vunpack.c.l.b16 %v320
  %v1473 = vunpack.c.l.b16 %v321
  %v1474 = vunpack.c.l.b16 %v322
  %v1475 = vunpack.c.l.b16 %v323
  %v1476 = vunpack.c.l.b16 %v324
  %v1477 = vunpack.c.l.b16 %v325
  %v1478 = vunpack.c.l.b16 %v326
  %v1479 = vunpack.c.l.b16 %v327
  %v1480 = vunpack.c.l.b16 %v328
  %v1481 = vunpack.c.l.b16 %v329
  %v1482 = vunpack.c.l.b16 %v330
  %v1483 = vunpack.c.l.b16 %v331
  %v1484 = vunpack.c.l.b16 %v332
  %v1485 = vunpack.c.l.b16 %v333
  %v1486 = vunpack.c.l.b16 %v334
  %v1487 = vunpack.c.l.b16 %v335
  %v1488 = vunpack.c.l.b16 %v336
  %v1489 = vunpack.c.l.b16 %v337
  %v1490 = vunpack.c.l.b16 %v338
  %v1491 = vunpack.c.l.b16 %v339
  %v1492 = vunpack.c.l.b16 %v340
  %v1493 = vunpack.c.l.b16 %v341
  %v1494 = vunpack.c.l.b16 %v342
  %v1495 = vunpack.c.l.b16 %v343
  %v1496 = vunpack.c.l.b16 %v344
  %v1497 = vunpack.c.l.b16 %v345
  %v1498 = vunpack.c.l.b16 %v346
  %v1499 = vunpack.c.l.b16 %v347
  %v1500 = vunpack.c.l.b16 %v348
  %v1501 = vunpack.c.l.b16 %v349
  %v1502 = vunpack.c.l.b16 %v350
  %v1503 = vunpack.c.l.b16 %v351
  %v1504 = vunpack.c.l.b16 %v352
  %v1505 = vunpack.c.l.b16 %v353
  %v1506 = vunpack.c.l.b16 %v354
  %v1507 = vunpack.c.l.b16 %v355
  %v1508 = vunpack.c.l.b16 %v356
  %v1509 = vunpack.c.l.b16 %v357
  %v1510 = vunpack.c.l.b16 %v358
  %v1511 = vunpack.c.l.b16 %v359
  %v1512 = vunpack.c.l.b16 %v360
  %v1513 = vunpack.c.l.b16 %v361
  %v1514 = vunpack.c.l.b16 %v362
  %v1515 = vunpack.c.l.b16 %v363
  %v1516 = vunpack.c.l.b16 %v364
  %v1517 = vunpack.c.l.b16 %v365
  %v1518 = vunpack.c.l.b16 %v366
  %v1519 = vunpack.c.l.b16 %v367
  %v1520 = vunpack.c.l.b16 %v368
  %v1521 = vunpack.c.l.b16 %v369
  %v1522 = vunpack.c.l.b16 %v370
  %v1523 = vunpack.c.l.b16 %v371
  %v1524 = vunpack.c.l.b16 %v372
  %v1525 = vunpack.c.l.b16 %v373
  %v1526 = vunpack.c.l.b16 %v374
  %v1527 = vunpack.c.l.b16 %v375
  %v1528 = vunpack.c.l.b16 %v376
  %v1529 = vunpack.c.l.b16 %v377
  %v1530 = vunpack.c.l.b16 %v378
  %v1531 = vunpack.c.l.b16 %v379
  %v1532 = vunpack.c.l.b16 %v380
  %v1533 = vunpack.c.l.b16 %v381
  %v1534 = vunpack.c.l.b16 %v382
  %v1535 = vunpack.c.l.b16 %v383
  %v1536 = vunpack.c.l.b16 %v384
  %v1537 = vunpack.c.l.b16 %v385
  %v1538 = vunpack.c.l.b16 %v386
  %v1539 = vunpack.c.l.b16 %v387
  %v1540 = vunpack.c.l.b16 %v388
  %v1541 = vunpack.c.l.b16 %v389
  %v1542 = vunpack.c.l.b16 %v390
  %v1543 = vunpack.c.l.b16 %v391
  %v1544 = vunpack.c.l.b16 %v392
  %v1545 = vunpack.c.l.b16 %v393
  %v1546 = vunpack.c.l.b16 %v394
  %v1547 = vunpack.c.l.b16 %v395
  %v1548 = vunpack.c.l.b16 %v396
  %v1549 = vunpack.c.l.b16 %v397
  %v1550 = vunpack.c.l.b16 %v398
  %v1551 = vunpack.c.l.b16 %v399
  %v1552 = vunpack.c.l.b16 %v400
  %v1553 = vpack.c.b16 %v1298, %v1297
  %v1554 = vpack.c.b16 %v1300, %v1299
  %v1555 = vpack.c.b16 %v1302, %v1301
  %v1556 = vpack.c.b16 %v1304, %v1303
  %v1557 = vpack.c.b16 %v1306, %v1305
  %v1558 = vpack.c.b16 %v1308, %v1307
  %v1559 = vpack.c.b16 %v1310, %v1309
  %v1560 = vpack.c.b16 %v1312, %v1311
  %v1561 = vpack.c.b16 %v1314, %v1313
  %v1562 = vpack.c.b16 %v1316, %v1315
  %v1563 = vpack.c.b16 %v1318, %v1317
  %v1564 = vpack.c.b16 %v1320, %v1319
  %v1565 = vpack.c.b16 %v1322, %v1321
  %v1566 = vpack.c.b16 %v1324, %v1323
  %v1567 = vpack.c.b16 %v1326, %v1325
  %v1568 = vpack.c.b16 %v1328, %v1327
  %v1569 = vpack.c.b16 %v1330, %v1329
  %v1570 = vpack.c.b16 %v1332, %v1331
  %v1571 = vpack.c.b16 %v1334, %v1333
  %v1572 = vpack.c.b16 %v1336, %v1335
  %v1573 = vpack.c.b16 %v1338, %v1337
  %v1574 = vpack.c.b16 %v1340, %v1339
  %v1575 = vpack.c.b16 %v1342, %v1341
  %v1576 = vpack.c.b16 %v1344, %v1343
  %v1577 = vpack.c.b16 %v1346, %v1345
  %v1578 = vpack.c.b16 %v1348, %v1347
  %v1579 = vpack.c.b16 %v1350, %v1349
  %v1580 = vpack.c.b16 %v1352, %v1351
  %v1581 = vpack.c.b16 %v1354, %v1353
  %v1582 = vpack.c.b16 %v1356, %v1355
  %v1583 = vpack.c.b16 %v1358, %v1357
  %v1584 = vpack.c.b16 %v1360, %v1359
  %v1585 = vpack.c.b16 %v1362, %v1361
  %v1586 = vpack.c.b16 %v1364, %v1363
  %v1587 = vpack.c.b16 %v1366, %v1365
  %v1588 = vpack.c.b16 %v1368, %v1367
  %v1589 = vpack.c.b16 %v1370, %v1369
  %v1590 = vpack.c.b16 %v1372, %v1371
  %v1591 = vpack.c.b16 %v1374, %v1373
  %v1592 = vpack.c.b16 %v1376, %v1375
  %v1593 = vpack.c.b16 %v1378, %v1377
  %v1594 = vpack.c.b16 %v1380, %v1379
  %v1595 = vpack.c.b16 %v1382, %v1381
  %v1596 = vpack.c.b16 %v1384, %v1383
  %v1597 = vpack.c.b16 %v1386, %v1385
  %v1598 = vpack.c.b16 %v1388, %v1387
  %v1599 = vpack.c.b16 %v1390, %v1389
  %v1600 = vpack.c.b16 %v1392, %v1391
  %v1601 = vpack.c.b16 %v1394, %v1393
  %v1602 = vpack.c.b16 %v1396, %v1395
  %v1603 = vpack.c.b16 %v1398, %v1397
  %v1604 = vpack.c.b16 %v1400, %v1399
  %v1605 = vpack.c.b16 %v1402, %v1401
  %v1606 = vpack.c.b16 %v1404, %v1403
  %v1607 = vpack.c.b16 %v1406, %v1405
  %v1608 = vpack.c.b16 %v1408, %v1407
  %v1609 = vpack.c.b16 %v1410, %v1409
  %v1610 = vpack.c.b16 %v1412, %v1411
  %v1611 = vpack.c.b16 %v1414, %v1413
  %v1612 = vpack.c.b16 %v1416, %v1415
  %v1613 = vpack.c.b16 %v1418, %v1417
  %v1614 = vpack.c.b16 %v1420, %v1419
  %v1615 = vpack.c.b16 %v1422, %v1421
  %v1616 = vpack.c.b16 %v1424, %v1423
  %v1617 = vpack.c.b16 %v1426, %v1425
  %v1618 = vpack.c.b16 %v1428, %v1427
  %v1619 = vpack.c.b16 %v1430, %v1429
  %v1620 = vpack.c.b16 %v1432, %v1431
  %v1621 = vpack.c.b16 %v1434, %v1433
  %v1622 = vpack.c.b16 %v1436, %v1435
  %v1623 = vpack.c.b16 %v1438, %v1437
  %v1624 = vpack.c.b16 %v1440, %v1439
  %v1625 = vpack.c.b16 %v1442, %v1441
  %v1626 = vpack.c.b16 %v1444, %v1443
  %v1627 = vpack.c.b16 %v1446, %v1445
  %v1628 = vpack.c.b16 %v1448, %v1447
  %v1629 = vpack.c.b16 %v1450, %v1449
  %v1630 = vpack.c.b16 %v1452, %v1451
  %v1631 = vpack.c.b16 %v1454, %v1453
  %v1632 = vpack.c.b16 %v1456, %v1455
  %v1633 = vpack.c.b16 %v1458, %v1457
  %v1634 = vpack.c.b16 %v1460, %v1459
  %v1635 = vpack.c.b16 %v1462, %v1461
  %v1636 = vpack.c.b16 %v1464, %v1463
  %v1637 = vpack.c.b16 %v1466, %v1465
  %v1638 = vpack.c.b16 %v1468, %v1467
  %v1639 = vpack.c.b16 %v1470, %v1469
  %v1640 = vpack.c.b16 %v1472, %v1471
  %v1641 = vpack.c.b16 %v1474, %v1473
  %v1642 = vpack.c.b16 %v1476, %v1475
  %v1643 = vpack.c.b16 %v1478, %v1477
  %v1644 = vpack.c.b16 %v1480, %v1479
  %v1645 = vpack.c.b16 %v1482, %v1481
  %v1646 = vpack.c.b16 %v1484, %v1483
  %v1647 = vpack.c.b16 %v1486, %v1485
  %v1648 = vpack.c.b16 %v1488, %v1487
  %v1649 = vpack.c.b16 %v1490, %v1489
  %v1650 = vpack.c.b16 %v1492, %v1491
  %v1651 = vpack.c.b16 %v1494, %v1493
  %v1652 = vpack.c.b16 %v1496, %v1495
  %v1653 = vpack.c.b16 %v1498, %v1497
  %v1654 = vpack.c.b16 %v1500, %v1499
  %v1655 = vpack.c.b16 %v1502, %v1501
  %v1656 = vpack.c.b16 %v1504, %v1503
  %v1657 = vpack.c.b16 %v1506, %v1505
  %v1658 = vpack.c.b16 %v1508, %v1507
  %v1659 = vpack.c.b16 %v1510, %v1509
  %v1660 = vpack.c.b16 %v1512, %v1511
  %v1661 = vpack.c.b16 %v1514, %v1513
  %v1662 = vpack.c.b16 %v1516, %v1515
  %v1663 = vpack.c.b16 %v1518, %v1517
  %v1664 = vpack.c.b16 %v1520, %v1519
  %v1665 = vpack.c.b16 %v1522, %v1521
  %v1666 = vpack.c.b16 %v1524, %v1523
  %v1667 = vpack.c.b16 %v1526, %v1525
  %v1668 = vpack.c.b16 %v1528, %v1527
  %v1669 = vpack.c.b16 %v1530, %v1529
  %v1670 = vpack.c.b16 %v1532, %v1531
  %v1671 = vpack.c.b16 %v1534, %v1533
  %v1672 = vpack.c.b16 %v1536, %v1535
  %v1673 = vpack.c.b16 %v1538, %v1537
  %v1674 = vpack.c.b16 %v1540, %v1539
  %v1675 = vpack.c.b16 %v1542, %v1541
  %v1676 = vpack.c.b16 %v1544, %v1543
  %v1677 = vpack.c.b16 %v1546, %v1545
  %v1678 = vpack.c.b16 %v1548, %v1547
  %v1679 = vpack.c.b16 %v1550, %v1549
  %v1680 = vpack.c.b16 %v1552, %v1551
  %1809 = vmatpush.bf16.msra.mxu0 %v1560
  %1810 = vmatpush.bf16.msra.mxu0 %v1559
  %1811 = vmatpush.bf16.msra.mxu0 %v1558
  %1812 = vmatpush.bf16.msra.mxu0 %v1557
  %1813 = vmatpush.bf16.msra.mxu0 %v1556
  %1814 = vmatpush.bf16.msra.mxu0 %v1555
  %1815 = vmatpush.bf16.msra.mxu0 %v1554
  %1816 = vmatpush.bf16.msra.mxu0 %v1553
  %1817 = vmatmul.bf16.gmra.mxu0 %v785
  %v1818 = vpop.f32.mrf.mxu0
  %v1819 = vadd.f32 0.0, %v1818
  %v1820 = vpop.f32.mrf.mxu0
  %v1821 = vadd.f32 0.0, %v1820
  %1822 = vmatmul.bf16.gmra.mxu0 %v801
  %v1823 = vpop.f32.mrf.mxu0
  %v1824 = vadd.f32 0.0, %v1823
  %v1825 = vpop.f32.mrf.mxu0
  %v1826 = vadd.f32 0.0, %v1825
  %1827 = vmatmul.bf16.gmra.mxu0 %v817
  %v1828 = vpop.f32.mrf.mxu0
  %v1829 = vadd.f32 0.0, %v1828
  %v1830 = vpop.f32.mrf.mxu0
  %v1831 = vadd.f32 0.0, %v1830
  %1832 = vmatmul.bf16.gmra.mxu0 %v833
  %v1833 = vpop.f32.mrf.mxu0
  %v1834 = vadd.f32 0.0, %v1833
  %v1835 = vpop.f32.mrf.mxu0
  %v1836 = vadd.f32 0.0, %v1835
  %1837 = vmatmul.bf16.gmra.mxu0 %v849
  %v1838 = vpop.f32.mrf.mxu0
  %v1839 = vadd.f32 0.0, %v1838
  %v1840 = vpop.f32.mrf.mxu0
  %v1841 = vadd.f32 0.0, %v1840
  %1842 = vmatmul.bf16.gmra.mxu0 %v865
  %v1843 = vpop.f32.mrf.mxu0
  %v1844 = vadd.f32 0.0, %v1843
  %v1845 = vpop.f32.mrf.mxu0
  %v1846 = vadd.f32 0.0, %v1845
  %1847 = vmatmul.bf16.gmra.mxu0 %v881
  %v1848 = vpop.f32.mrf.mxu0
  %v1849 = vadd.f32 0.0, %v1848
  %v1850 = vpop.f32.mrf.mxu0
  %v1851 = vadd.f32 0.0, %v1850
  %1852 = vmatmul.bf16.gmra.mxu0 %v897
  %v1853 = vpop.f32.mrf.mxu0
  %v1854 = vadd.f32 0.0, %v1853
  %v1855 = vpop.f32.mrf.mxu0
  %v1856 = vadd.f32 0.0, %v1855
  %1857 = vdwg.mxu0
  %1858 = vmatpush.bf16.msra.mxu0 %v1568
  %1859 = vmatpush.bf16.msra.mxu0 %v1567
  %1860 = vmatpush.bf16.msra.mxu0 %v1566
  %1861 = vmatpush.bf16.msra.mxu0 %v1565
  %1862 = vmatpush.bf16.msra.mxu0 %v1564
  %1863 = vmatpush.bf16.msra.mxu0 %v1563
  %1864 = vmatpush.bf16.msra.mxu0 %v1562
  %1865 = vmatpush.bf16.msra.mxu0 %v1561
  %1866 = vmatmul.bf16.gmra.mxu0 %v786
  %v1867 = vpop.f32.mrf.mxu0
  %v1868 = vadd.f32 %v1819, %v1867
  %v1869 = vpop.f32.mrf.mxu0
  %v1870 = vadd.f32 %v1821, %v1869
  %1871 = vmatmul.bf16.gmra.mxu0 %v802
  %v1872 = vpop.f32.mrf.mxu0
  %v1873 = vadd.f32 %v1824, %v1872
  %v1874 = vpop.f32.mrf.mxu0
  %v1875 = vadd.f32 %v1826, %v1874
  %1876 = vmatmul.bf16.gmra.mxu0 %v818
  %v1877 = vpop.f32.mrf.mxu0
  %v1878 = vadd.f32 %v1829, %v1877
  %v1879 = vpop.f32.mrf.mxu0
  %v1880 = vadd.f32 %v1831, %v1879
  %1881 = vmatmul.bf16.gmra.mxu0 %v834
  %v1882 = vpop.f32.mrf.mxu0
  %v1883 = vadd.f32 %v1834, %v1882
  %v1884 = vpop.f32.mrf.mxu0
  %v1885 = vadd.f32 %v1836, %v1884
  %1886 = vmatmul.bf16.gmra.mxu0 %v850
  %v1887 = vpop.f32.mrf.mxu0
  %v1888 = vadd.f32 %v1839, %v1887
  %v1889 = vpop.f32.mrf.mxu0
  %v1890 = vadd.f32 %v1841, %v1889
  %1891 = vmatmul.bf16.gmra.mxu0 %v866
  %v1892 = vpop.f32.mrf.mxu0
  %v1893 = vadd.f32 %v1844, %v1892
  %v1894 = vpop.f32.mrf.mxu0
  %v1895 = vadd.f32 %v1846, %v1894
  %1896 = vmatmul.bf16.gmra.mxu0 %v882
  %v1897 = vpop.f32.mrf.mxu0
  %v1898 = vadd.f32 %v1849, %v1897
  %v1899 = vpop.f32.mrf.mxu0
  %v1900 = vadd.f32 %v1851, %v1899
  %1901 = vmatmul.bf16.gmra.mxu0 %v898
  %v1902 = vpop.f32.mrf.mxu0
  %v1903 = vadd.f32 %v1854, %v1902
  %v1904 = vpop.f32.mrf.mxu0
  %v1905 = vadd.f32 %v1856, %v1904
  %1906 = vdwg.mxu0
  %1907 = vmatpush.bf16.msra.mxu0 %v1576
  %1908 = vmatpush.bf16.msra.mxu0 %v1575
  %1909 = vmatpush.bf16.msra.mxu0 %v1574
  %1910 = vmatpush.bf16.msra.mxu0 %v1573
  %1911 = vmatpush.bf16.msra.mxu0 %v1572
  %1912 = vmatpush.bf16.msra.mxu0 %v1571
  %1913 = vmatpush.bf16.msra.mxu0 %v1570
  %1914 = vmatpush.bf16.msra.mxu0 %v1569
  %1915 = vmatmul.bf16.gmra.mxu0 %v787
  %v1916 = vpop.f32.mrf.mxu0
  %v1917 = vadd.f32 %v1868, %v1916
  %v1918 = vpop.f32.mrf.mxu0
  %v1919 = vadd.f32 %v1870, %v1918
  %1920 = vmatmul.bf16.gmra.mxu0 %v803
  %v1921 = vpop.f32.mrf.mxu0
  %v1922 = vadd.f32 %v1873, %v1921
  %v1923 = vpop.f32.mrf.mxu0
  %v1924 = vadd.f32 %v1875, %v1923
  %1925 = vmatmul.bf16.gmra.mxu0 %v819
  %v1926 = vpop.f32.mrf.mxu0
  %v1927 = vadd.f32 %v1878, %v1926
  %v1928 = vpop.f32.mrf.mxu0
  %v1929 = vadd.f32 %v1880, %v1928
  %1930 = vmatmul.bf16.gmra.mxu0 %v835
  %v1931 = vpop.f32.mrf.mxu0
  %v1932 = vadd.f32 %v1883, %v1931
  %v1933 = vpop.f32.mrf.mxu0
  %v1934 = vadd.f32 %v1885, %v1933
  %1935 = vmatmul.bf16.gmra.mxu0 %v851
  %v1936 = vpop.f32.mrf.mxu0
  %v1937 = vadd.f32 %v1888, %v1936
  %v1938 = vpop.f32.mrf.mxu0
  %v1939 = vadd.f32 %v1890, %v1938
  %1940 = vmatmul.bf16.gmra.mxu0 %v867
  %v1941 = vpop.f32.mrf.mxu0
  %v1942 = vadd.f32 %v1893, %v1941
  %v1943 = vpop.f32.mrf.mxu0
  %v1944 = vadd.f32 %v1895, %v1943
  %1945 = vmatmul.bf16.gmra.mxu0 %v883
  %v1946 = vpop.f32.mrf.mxu0
  %v1947 = vadd.f32 %v1898, %v1946
  %v1948 = vpop.f32.mrf.mxu0
  %v1949 = vadd.f32 %v1900, %v1948
  %1950 = vmatmul.bf16.gmra.mxu0 %v899
  %v1951 = vpop.f32.mrf.mxu0
  %v1952 = vadd.f32 %v1903, %v1951
  %v1953 = vpop.f32.mrf.mxu0
  %v1954 = vadd.f32 %v1905, %v1953
  %1955 = vdwg.mxu0
  %1956 = vmatpush.bf16.msra.mxu0 %v1584
  %1957 = vmatpush.bf16.msra.mxu0 %v1583
  %1958 = vmatpush.bf16.msra.mxu0 %v1582
  %1959 = vmatpush.bf16.msra.mxu0 %v1581
  %1960 = vmatpush.bf16.msra.mxu0 %v1580
  %1961 = vmatpush.bf16.msra.mxu0 %v1579
  %1962 = vmatpush.bf16.msra.mxu0 %v1578
  %1963 = vmatpush.bf16.msra.mxu0 %v1577
  %1964 = vmatmul.bf16.gmra.mxu0 %v788
  %v1965 = vpop.f32.mrf.mxu0
  %v1966 = vadd.f32 %v1917, %v1965
  %v1967 = vpop.f32.mrf.mxu0
  %v1968 = vadd.f32 %v1919, %v1967
  %1969 = vmatmul.bf16.gmra.mxu0 %v804
  %v1970 = vpop.f32.mrf.mxu0
  %v1971 = vadd.f32 %v1922, %v1970
  %v1972 = vpop.f32.mrf.mxu0
  %v1973 = vadd.f32 %v1924, %v1972
  %1974 = vmatmul.bf16.gmra.mxu0 %v820
  %v1975 = vpop.f32.mrf.mxu0
  %v1976 = vadd.f32 %v1927, %v1975
  %v1977 = vpop.f32.mrf.mxu0
  %v1978 = vadd.f32 %v1929, %v1977
  %1979 = vmatmul.bf16.gmra.mxu0 %v836
  %v1980 = vpop.f32.mrf.mxu0
  %v1981 = vadd.f32 %v1932, %v1980
  %v1982 = vpop.f32.mrf.mxu0
  %v1983 = vadd.f32 %v1934, %v1982
  %1984 = vmatmul.bf16.gmra.mxu0 %v852
  %v1985 = vpop.f32.mrf.mxu0
  %v1986 = vadd.f32 %v1937, %v1985
  %v1987 = vpop.f32.mrf.mxu0
  %v1988 = vadd.f32 %v1939, %v1987
  %1989 = vmatmul.bf16.gmra.mxu0 %v868
  %v1990 = vpop.f32.mrf.mxu0
  %v1991 = vadd.f32 %v1942, %v1990
  %v1992 = vpop.f32.mrf.mxu0
  %v1993 = vadd.f32 %v1944, %v1992
  %1994 = vmatmul.bf16.gmra.mxu0 %v884
  %v1995 = vpop.f32.mrf.mxu0
  %v1996 = vadd.f32 %v1947, %v1995
  %v1997 = vpop.f32.mrf.mxu0
  %v1998 = vadd.f32 %v1949, %v1997
  %1999 = vmatmul.bf16.gmra.mxu0 %v900
  %v2000 = vpop.f32.mrf.mxu0
  %v2001 = vadd.f32 %v1952, %v2000
  %v2002 = vpop.f32.mrf.mxu0
  %v2003 = vadd.f32 %v1954, %v2002
  %2004 = vdwg.mxu0
  %2005 = vmatpush.bf16.msra.mxu0 %v1592
  %2006 = vmatpush.bf16.msra.mxu0 %v1591
  %2007 = vmatpush.bf16.msra.mxu0 %v1590
  %2008 = vmatpush.bf16.msra.mxu0 %v1589
  %2009 = vmatpush.bf16.msra.mxu0 %v1588
  %2010 = vmatpush.bf16.msra.mxu0 %v1587
  %2011 = vmatpush.bf16.msra.mxu0 %v1586
  %2012 = vmatpush.bf16.msra.mxu0 %v1585
  %2013 = vmatmul.bf16.gmra.mxu0 %v789
  %v2014 = vpop.f32.mrf.mxu0
  %v2015 = vadd.f32 %v1966, %v2014
  %v2016 = vpop.f32.mrf.mxu0
  %v2017 = vadd.f32 %v1968, %v2016
  %2018 = vmatmul.bf16.gmra.mxu0 %v805
  %v2019 = vpop.f32.mrf.mxu0
  %v2020 = vadd.f32 %v1971, %v2019
  %v2021 = vpop.f32.mrf.mxu0
  %v2022 = vadd.f32 %v1973, %v2021
  %2023 = vmatmul.bf16.gmra.mxu0 %v821
  %v2024 = vpop.f32.mrf.mxu0
  %v2025 = vadd.f32 %v1976, %v2024
  %v2026 = vpop.f32.mrf.mxu0
  %v2027 = vadd.f32 %v1978, %v2026
  %2028 = vmatmul.bf16.gmra.mxu0 %v837
  %v2029 = vpop.f32.mrf.mxu0
  %v2030 = vadd.f32 %v1981, %v2029
  %v2031 = vpop.f32.mrf.mxu0
  %v2032 = vadd.f32 %v1983, %v2031
  %2033 = vmatmul.bf16.gmra.mxu0 %v853
  %v2034 = vpop.f32.mrf.mxu0
  %v2035 = vadd.f32 %v1986, %v2034
  %v2036 = vpop.f32.mrf.mxu0
  %v2037 = vadd.f32 %v1988, %v2036
  %2038 = vmatmul.bf16.gmra.mxu0 %v869
  %v2039 = vpop.f32.mrf.mxu0
  %v2040 = vadd.f32 %v1991, %v2039
  %v2041 = vpop.f32.mrf.mxu0
  %v2042 = vadd.f32 %v1993, %v2041
  %2043 = vmatmul.bf16.gmra.mxu0 %v885
  %v2044 = vpop.f32.mrf.mxu0
  %v2045 = vadd.f32 %v1996, %v2044
  %v2046 = vpop.f32.mrf.mxu0
  %v2047 = vadd.f32 %v1998, %v2046
  %2048 = vmatmul.bf16.gmra.mxu0 %v901
  %v2049 = vpop.f32.mrf.mxu0
  %v2050 = vadd.f32 %v2001, %v2049
  %v2051 = vpop.f32.mrf.mxu0
  %v2052 = vadd.f32 %v2003, %v2051
  %2053 = vdwg.mxu0
  %2054 = vmatpush.bf16.msra.mxu0 %v1600
  %2055 = vmatpush.bf16.msra.mxu0 %v1599
  %2056 = vmatpush.bf16.msra.mxu0 %v1598
  %2057 = vmatpush.bf16.msra.mxu0 %v1597
  %2058 = vmatpush.bf16.msra.mxu0 %v1596
  %2059 = vmatpush.bf16.msra.mxu0 %v1595
  %2060 = vmatpush.bf16.msra.mxu0 %v1594
  %2061 = vmatpush.bf16.msra.mxu0 %v1593
  %2062 = vmatmul.bf16.gmra.mxu0 %v790
  %v2063 = vpop.f32.mrf.mxu0
  %v2064 = vadd.f32 %v2015, %v2063
  %v2065 = vpop.f32.mrf.mxu0
  %v2066 = vadd.f32 %v2017, %v2065
  %2067 = vmatmul.bf16.gmra.mxu0 %v806
  %v2068 = vpop.f32.mrf.mxu0
  %v2069 = vadd.f32 %v2020, %v2068
  %v2070 = vpop.f32.mrf.mxu0
  %v2071 = vadd.f32 %v2022, %v2070
  %2072 = vmatmul.bf16.gmra.mxu0 %v822
  %v2073 = vpop.f32.mrf.mxu0
  %v2074 = vadd.f32 %v2025, %v2073
  %v2075 = vpop.f32.mrf.mxu0
  %v2076 = vadd.f32 %v2027, %v2075
  %2077 = vmatmul.bf16.gmra.mxu0 %v838
  %v2078 = vpop.f32.mrf.mxu0
  %v2079 = vadd.f32 %v2030, %v2078
  %v2080 = vpop.f32.mrf.mxu0
  %v2081 = vadd.f32 %v2032, %v2080
  %2082 = vmatmul.bf16.gmra.mxu0 %v854
  %v2083 = vpop.f32.mrf.mxu0
  %v2084 = vadd.f32 %v2035, %v2083
  %v2085 = vpop.f32.mrf.mxu0
  %v2086 = vadd.f32 %v2037, %v2085
  %2087 = vmatmul.bf16.gmra.mxu0 %v870
  %v2088 = vpop.f32.mrf.mxu0
  %v2089 = vadd.f32 %v2040, %v2088
  %v2090 = vpop.f32.mrf.mxu0
  %v2091 = vadd.f32 %v2042, %v2090
  %2092 = vmatmul.bf16.gmra.mxu0 %v886
  %v2093 = vpop.f32.mrf.mxu0
  %v2094 = vadd.f32 %v2045, %v2093
  %v2095 = vpop.f32.mrf.mxu0
  %v2096 = vadd.f32 %v2047, %v2095
  %2097 = vmatmul.bf16.gmra.mxu0 %v902
  %v2098 = vpop.f32.mrf.mxu0
  %v2099 = vadd.f32 %v2050, %v2098
  %v2100 = vpop.f32.mrf.mxu0
  %v2101 = vadd.f32 %v2052, %v2100
  %2102 = vdwg.mxu0
  %2103 = vmatpush.bf16.msra.mxu0 %v1608
  %2104 = vmatpush.bf16.msra.mxu0 %v1607
  %2105 = vmatpush.bf16.msra.mxu0 %v1606
  %2106 = vmatpush.bf16.msra.mxu0 %v1605
  %2107 = vmatpush.bf16.msra.mxu0 %v1604
  %2108 = vmatpush.bf16.msra.mxu0 %v1603
  %2109 = vmatpush.bf16.msra.mxu0 %v1602
  %2110 = vmatpush.bf16.msra.mxu0 %v1601
  %2111 = vmatmul.bf16.gmra.mxu0 %v791
  %v2112 = vpop.f32.mrf.mxu0
  %v2113 = vadd.f32 %v2064, %v2112
  %v2114 = vpop.f32.mrf.mxu0
  %v2115 = vadd.f32 %v2066, %v2114
  %2116 = vmatmul.bf16.gmra.mxu0 %v807
  %v2117 = vpop.f32.mrf.mxu0
  %v2118 = vadd.f32 %v2069, %v2117
  %v2119 = vpop.f32.mrf.mxu0
  %v2120 = vadd.f32 %v2071, %v2119
  %2121 = vmatmul.bf16.gmra.mxu0 %v823
  %v2122 = vpop.f32.mrf.mxu0
  %v2123 = vadd.f32 %v2074, %v2122
  %v2124 = vpop.f32.mrf.mxu0
  %v2125 = vadd.f32 %v2076, %v2124
  %2126 = vmatmul.bf16.gmra.mxu0 %v839
  %v2127 = vpop.f32.mrf.mxu0
  %v2128 = vadd.f32 %v2079, %v2127
  %v2129 = vpop.f32.mrf.mxu0
  %v2130 = vadd.f32 %v2081, %v2129
  %2131 = vmatmul.bf16.gmra.mxu0 %v855
  %v2132 = vpop.f32.mrf.mxu0
  %v2133 = vadd.f32 %v2084, %v2132
  %v2134 = vpop.f32.mrf.mxu0
  %v2135 = vadd.f32 %v2086, %v2134
  %2136 = vmatmul.bf16.gmra.mxu0 %v871
  %v2137 = vpop.f32.mrf.mxu0
  %v2138 = vadd.f32 %v2089, %v2137
  %v2139 = vpop.f32.mrf.mxu0
  %v2140 = vadd.f32 %v2091, %v2139
  %2141 = vmatmul.bf16.gmra.mxu0 %v887
  %v2142 = vpop.f32.mrf.mxu0
  %v2143 = vadd.f32 %v2094, %v2142
  %v2144 = vpop.f32.mrf.mxu0
  %v2145 = vadd.f32 %v2096, %v2144
  %2146 = vmatmul.bf16.gmra.mxu0 %v903
  %v2147 = vpop.f32.mrf.mxu0
  %v2148 = vadd.f32 %v2099, %v2147
  %v2149 = vpop.f32.mrf.mxu0
  %v2150 = vadd.f32 %v2101, %v2149
  %2151 = vdwg.mxu0
  %2152 = vmatpush.bf16.msra.mxu0 %v1616
  %2153 = vmatpush.bf16.msra.mxu0 %v1615
  %2154 = vmatpush.bf16.msra.mxu0 %v1614
  %2155 = vmatpush.bf16.msra.mxu0 %v1613
  %2156 = vmatpush.bf16.msra.mxu0 %v1612
  %2157 = vmatpush.bf16.msra.mxu0 %v1611
  %2158 = vmatpush.bf16.msra.mxu0 %v1610
  %2159 = vmatpush.bf16.msra.mxu0 %v1609
  %2160 = vmatmul.bf16.gmra.mxu0 %v792
  %v2161 = vpop.f32.mrf.mxu0
  %v2162 = vadd.f32 %v2113, %v2161
  %v2163 = vpop.f32.mrf.mxu0
  %v2164 = vadd.f32 %v2115, %v2163
  %2165 = vmatmul.bf16.gmra.mxu0 %v808
  %v2166 = vpop.f32.mrf.mxu0
  %v2167 = vadd.f32 %v2118, %v2166
  %v2168 = vpop.f32.mrf.mxu0
  %v2169 = vadd.f32 %v2120, %v2168
  %2170 = vmatmul.bf16.gmra.mxu0 %v824
  %v2171 = vpop.f32.mrf.mxu0
  %v2172 = vadd.f32 %v2123, %v2171
  %v2173 = vpop.f32.mrf.mxu0
  %v2174 = vadd.f32 %v2125, %v2173
  %2175 = vmatmul.bf16.gmra.mxu0 %v840
  %v2176 = vpop.f32.mrf.mxu0
  %v2177 = vadd.f32 %v2128, %v2176
  %v2178 = vpop.f32.mrf.mxu0
  %v2179 = vadd.f32 %v2130, %v2178
  %2180 = vmatmul.bf16.gmra.mxu0 %v856
  %v2181 = vpop.f32.mrf.mxu0
  %v2182 = vadd.f32 %v2133, %v2181
  %v2183 = vpop.f32.mrf.mxu0
  %v2184 = vadd.f32 %v2135, %v2183
  %2185 = vmatmul.bf16.gmra.mxu0 %v872
  %v2186 = vpop.f32.mrf.mxu0
  %v2187 = vadd.f32 %v2138, %v2186
  %v2188 = vpop.f32.mrf.mxu0
  %v2189 = vadd.f32 %v2140, %v2188
  %2190 = vmatmul.bf16.gmra.mxu0 %v888
  %v2191 = vpop.f32.mrf.mxu0
  %v2192 = vadd.f32 %v2143, %v2191
  %v2193 = vpop.f32.mrf.mxu0
  %v2194 = vadd.f32 %v2145, %v2193
  %2195 = vmatmul.bf16.gmra.mxu0 %v904
  %v2196 = vpop.f32.mrf.mxu0
  %v2197 = vadd.f32 %v2148, %v2196
  %v2198 = vpop.f32.mrf.mxu0
  %v2199 = vadd.f32 %v2150, %v2198
  %2200 = vdwg.mxu0
  %2201 = vmatpush.bf16.msra.mxu0 %v1624
  %2202 = vmatpush.bf16.msra.mxu0 %v1623
  %2203 = vmatpush.bf16.msra.mxu0 %v1622
  %2204 = vmatpush.bf16.msra.mxu0 %v1621
  %2205 = vmatpush.bf16.msra.mxu0 %v1620
  %2206 = vmatpush.bf16.msra.mxu0 %v1619
  %2207 = vmatpush.bf16.msra.mxu0 %v1618
  %2208 = vmatpush.bf16.msra.mxu0 %v1617
  %2209 = vmatmul.bf16.gmra.mxu0 %v793
  %v2210 = vpop.f32.mrf.mxu0
  %v2211 = vadd.f32 %v2162, %v2210
  %v2212 = vpop.f32.mrf.mxu0
  %v2213 = vadd.f32 %v2164, %v2212
  %2214 = vmatmul.bf16.gmra.mxu0 %v809
  %v2215 = vpop.f32.mrf.mxu0
  %v2216 = vadd.f32 %v2167, %v2215
  %v2217 = vpop.f32.mrf.mxu0
  %v2218 = vadd.f32 %v2169, %v2217
  %2219 = vmatmul.bf16.gmra.mxu0 %v825
  %v2220 = vpop.f32.mrf.mxu0
  %v2221 = vadd.f32 %v2172, %v2220
  %v2222 = vpop.f32.mrf.mxu0
  %v2223 = vadd.f32 %v2174, %v2222
  %2224 = vmatmul.bf16.gmra.mxu0 %v841
  %v2225 = vpop.f32.mrf.mxu0
  %v2226 = vadd.f32 %v2177, %v2225
  %v2227 = vpop.f32.mrf.mxu0
  %v2228 = vadd.f32 %v2179, %v2227
  %2229 = vmatmul.bf16.gmra.mxu0 %v857
  %v2230 = vpop.f32.mrf.mxu0
  %v2231 = vadd.f32 %v2182, %v2230
  %v2232 = vpop.f32.mrf.mxu0
  %v2233 = vadd.f32 %v2184, %v2232
  %2234 = vmatmul.bf16.gmra.mxu0 %v873
  %v2235 = vpop.f32.mrf.mxu0
  %v2236 = vadd.f32 %v2187, %v2235
  %v2237 = vpop.f32.mrf.mxu0
  %v2238 = vadd.f32 %v2189, %v2237
  %2239 = vmatmul.bf16.gmra.mxu0 %v889
  %v2240 = vpop.f32.mrf.mxu0
  %v2241 = vadd.f32 %v2192, %v2240
  %v2242 = vpop.f32.mrf.mxu0
  %v2243 = vadd.f32 %v2194, %v2242
  %2244 = vmatmul.bf16.gmra.mxu0 %v905
  %v2245 = vpop.f32.mrf.mxu0
  %v2246 = vadd.f32 %v2197, %v2245
  %v2247 = vpop.f32.mrf.mxu0
  %v2248 = vadd.f32 %v2199, %v2247
  %2249 = vdwg.mxu0
  %2250 = vmatpush.bf16.msra.mxu0 %v1632
  %2251 = vmatpush.bf16.msra.mxu0 %v1631
  %2252 = vmatpush.bf16.msra.mxu0 %v1630
  %2253 = vmatpush.bf16.msra.mxu0 %v1629
  %2254 = vmatpush.bf16.msra.mxu0 %v1628
  %2255 = vmatpush.bf16.msra.mxu0 %v1627
  %2256 = vmatpush.bf16.msra.mxu0 %v1626
  %2257 = vmatpush.bf16.msra.mxu0 %v1625
  %2258 = vmatmul.bf16.gmra.mxu0 %v794
  %v2259 = vpop.f32.mrf.mxu0
  %v2260 = vadd.f32 %v2211, %v2259
  %v2261 = vpop.f32.mrf.mxu0
  %v2262 = vadd.f32 %v2213, %v2261
  %2263 = vmatmul.bf16.gmra.mxu0 %v810
  %v2264 = vpop.f32.mrf.mxu0
  %v2265 = vadd.f32 %v2216, %v2264
  %v2266 = vpop.f32.mrf.mxu0
  %v2267 = vadd.f32 %v2218, %v2266
  %2268 = vmatmul.bf16.gmra.mxu0 %v826
  %v2269 = vpop.f32.mrf.mxu0
  %v2270 = vadd.f32 %v2221, %v2269
  %v2271 = vpop.f32.mrf.mxu0
  %v2272 = vadd.f32 %v2223, %v2271
  %2273 = vmatmul.bf16.gmra.mxu0 %v842
  %v2274 = vpop.f32.mrf.mxu0
  %v2275 = vadd.f32 %v2226, %v2274
  %v2276 = vpop.f32.mrf.mxu0
  %v2277 = vadd.f32 %v2228, %v2276
  %2278 = vmatmul.bf16.gmra.mxu0 %v858
  %v2279 = vpop.f32.mrf.mxu0
  %v2280 = vadd.f32 %v2231, %v2279
  %v2281 = vpop.f32.mrf.mxu0
  %v2282 = vadd.f32 %v2233, %v2281
  %2283 = vmatmul.bf16.gmra.mxu0 %v874
  %v2284 = vpop.f32.mrf.mxu0
  %v2285 = vadd.f32 %v2236, %v2284
  %v2286 = vpop.f32.mrf.mxu0
  %v2287 = vadd.f32 %v2238, %v2286
  %2288 = vmatmul.bf16.gmra.mxu0 %v890
  %v2289 = vpop.f32.mrf.mxu0
  %v2290 = vadd.f32 %v2241, %v2289
  %v2291 = vpop.f32.mrf.mxu0
  %v2292 = vadd.f32 %v2243, %v2291
  %2293 = vmatmul.bf16.gmra.mxu0 %v906
  %v2294 = vpop.f32.mrf.mxu0
  %v2295 = vadd.f32 %v2246, %v2294
  %v2296 = vpop.f32.mrf.mxu0
  %v2297 = vadd.f32 %v2248, %v2296
  %2298 = vdwg.mxu0
  %2299 = vmatpush.bf16.msra.mxu0 %v1640
  %2300 = vmatpush.bf16.msra.mxu0 %v1639
  %2301 = vmatpush.bf16.msra.mxu0 %v1638
  %2302 = vmatpush.bf16.msra.mxu0 %v1637
  %2303 = vmatpush.bf16.msra.mxu0 %v1636
  %2304 = vmatpush.bf16.msra.mxu0 %v1635
  %2305 = vmatpush.bf16.msra.mxu0 %v1634
  %2306 = vmatpush.bf16.msra.mxu0 %v1633
  %2307 = vmatmul.bf16.gmra.mxu0 %v795
  %v2308 = vpop.f32.mrf.mxu0
  %v2309 = vadd.f32 %v2260, %v2308
  %v2310 = vpop.f32.mrf.mxu0
  %v2311 = vadd.f32 %v2262, %v2310
  %2312 = vmatmul.bf16.gmra.mxu0 %v811
  %v2313 = vpop.f32.mrf.mxu0
  %v2314 = vadd.f32 %v2265, %v2313
  %v2315 = vpop.f32.mrf.mxu0
  %v2316 = vadd.f32 %v2267, %v2315
  %2317 = vmatmul.bf16.gmra.mxu0 %v827
  %v2318 = vpop.f32.mrf.mxu0
  %v2319 = vadd.f32 %v2270, %v2318
  %v2320 = vpop.f32.mrf.mxu0
  %v2321 = vadd.f32 %v2272, %v2320
  %2322 = vmatmul.bf16.gmra.mxu0 %v843
  %v2323 = vpop.f32.mrf.mxu0
  %v2324 = vadd.f32 %v2275, %v2323
  %v2325 = vpop.f32.mrf.mxu0
  %v2326 = vadd.f32 %v2277, %v2325
  %2327 = vmatmul.bf16.gmra.mxu0 %v859
  %v2328 = vpop.f32.mrf.mxu0
  %v2329 = vadd.f32 %v2280, %v2328
  %v2330 = vpop.f32.mrf.mxu0
  %v2331 = vadd.f32 %v2282, %v2330
  %2332 = vmatmul.bf16.gmra.mxu0 %v875
  %v2333 = vpop.f32.mrf.mxu0
  %v2334 = vadd.f32 %v2285, %v2333
  %v2335 = vpop.f32.mrf.mxu0
  %v2336 = vadd.f32 %v2287, %v2335
  %2337 = vmatmul.bf16.gmra.mxu0 %v891
  %v2338 = vpop.f32.mrf.mxu0
  %v2339 = vadd.f32 %v2290, %v2338
  %v2340 = vpop.f32.mrf.mxu0
  %v2341 = vadd.f32 %v2292, %v2340
  %2342 = vmatmul.bf16.gmra.mxu0 %v907
  %v2343 = vpop.f32.mrf.mxu0
  %v2344 = vadd.f32 %v2295, %v2343
  %v2345 = vpop.f32.mrf.mxu0
  %v2346 = vadd.f32 %v2297, %v2345
  %2347 = vdwg.mxu0
  %2348 = vmatpush.bf16.msra.mxu0 %v1648
  %2349 = vmatpush.bf16.msra.mxu0 %v1647
  %2350 = vmatpush.bf16.msra.mxu0 %v1646
  %2351 = vmatpush.bf16.msra.mxu0 %v1645
  %2352 = vmatpush.bf16.msra.mxu0 %v1644
  %2353 = vmatpush.bf16.msra.mxu0 %v1643
  %2354 = vmatpush.bf16.msra.mxu0 %v1642
  %2355 = vmatpush.bf16.msra.mxu0 %v1641
  %2356 = vmatmul.bf16.gmra.mxu0 %v796
  %v2357 = vpop.f32.mrf.mxu0
  %v2358 = vadd.f32 %v2309, %v2357
  %v2359 = vpop.f32.mrf.mxu0
  %v2360 = vadd.f32 %v2311, %v2359
  %2361 = vmatmul.bf16.gmra.mxu0 %v812
  %v2362 = vpop.f32.mrf.mxu0
  %v2363 = vadd.f32 %v2314, %v2362
  %v2364 = vpop.f32.mrf.mxu0
  %v2365 = vadd.f32 %v2316, %v2364
  %2366 = vmatmul.bf16.gmra.mxu0 %v828
  %v2367 = vpop.f32.mrf.mxu0
  %v2368 = vadd.f32 %v2319, %v2367
  %v2369 = vpop.f32.mrf.mxu0
  %v2370 = vadd.f32 %v2321, %v2369
  %2371 = vmatmul.bf16.gmra.mxu0 %v844
  %v2372 = vpop.f32.mrf.mxu0
  %v2373 = vadd.f32 %v2324, %v2372
  %v2374 = vpop.f32.mrf.mxu0
  %v2375 = vadd.f32 %v2326, %v2374
  %2376 = vmatmul.bf16.gmra.mxu0 %v860
  %v2377 = vpop.f32.mrf.mxu0
  %v2378 = vadd.f32 %v2329, %v2377
  %v2379 = vpop.f32.mrf.mxu0
  %v2380 = vadd.f32 %v2331, %v2379
  %2381 = vmatmul.bf16.gmra.mxu0 %v876
  %v2382 = vpop.f32.mrf.mxu0
  %v2383 = vadd.f32 %v2334, %v2382
  %v2384 = vpop.f32.mrf.mxu0
  %v2385 = vadd.f32 %v2336, %v2384
  %2386 = vmatmul.bf16.gmra.mxu0 %v892
  %v2387 = vpop.f32.mrf.mxu0
  %v2388 = vadd.f32 %v2339, %v2387
  %v2389 = vpop.f32.mrf.mxu0
  %v2390 = vadd.f32 %v2341, %v2389
  %2391 = vmatmul.bf16.gmra.mxu0 %v908
  %v2392 = vpop.f32.mrf.mxu0
  %v2393 = vadd.f32 %v2344, %v2392
  %v2394 = vpop.f32.mrf.mxu0
  %v2395 = vadd.f32 %v2346, %v2394
  %2396 = vdwg.mxu0
  %2397 = vmatpush.bf16.msra.mxu0 %v1656
  %2398 = vmatpush.bf16.msra.mxu0 %v1655
  %2399 = vmatpush.bf16.msra.mxu0 %v1654
  %2400 = vmatpush.bf16.msra.mxu0 %v1653
  %2401 = vmatpush.bf16.msra.mxu0 %v1652
  %2402 = vmatpush.bf16.msra.mxu0 %v1651
  %2403 = vmatpush.bf16.msra.mxu0 %v1650
  %2404 = vmatpush.bf16.msra.mxu0 %v1649
  %2405 = vmatmul.bf16.gmra.mxu0 %v797
  %v2406 = vpop.f32.mrf.mxu0
  %v2407 = vadd.f32 %v2358, %v2406
  %v2408 = vpop.f32.mrf.mxu0
  %v2409 = vadd.f32 %v2360, %v2408
  %2410 = vmatmul.bf16.gmra.mxu0 %v813
  %v2411 = vpop.f32.mrf.mxu0
  %v2412 = vadd.f32 %v2363, %v2411
  %v2413 = vpop.f32.mrf.mxu0
  %v2414 = vadd.f32 %v2365, %v2413
  %2415 = vmatmul.bf16.gmra.mxu0 %v829
  %v2416 = vpop.f32.mrf.mxu0
  %v2417 = vadd.f32 %v2368, %v2416
  %v2418 = vpop.f32.mrf.mxu0
  %v2419 = vadd.f32 %v2370, %v2418
  %2420 = vmatmul.bf16.gmra.mxu0 %v845
  %v2421 = vpop.f32.mrf.mxu0
  %v2422 = vadd.f32 %v2373, %v2421
  %v2423 = vpop.f32.mrf.mxu0
  %v2424 = vadd.f32 %v2375, %v2423
  %2425 = vmatmul.bf16.gmra.mxu0 %v861
  %v2426 = vpop.f32.mrf.mxu0
  %v2427 = vadd.f32 %v2378, %v2426
  %v2428 = vpop.f32.mrf.mxu0
  %v2429 = vadd.f32 %v2380, %v2428
  %2430 = vmatmul.bf16.gmra.mxu0 %v877
  %v2431 = vpop.f32.mrf.mxu0
  %v2432 = vadd.f32 %v2383, %v2431
  %v2433 = vpop.f32.mrf.mxu0
  %v2434 = vadd.f32 %v2385, %v2433
  %2435 = vmatmul.bf16.gmra.mxu0 %v893
  %v2436 = vpop.f32.mrf.mxu0
  %v2437 = vadd.f32 %v2388, %v2436
  %v2438 = vpop.f32.mrf.mxu0
  %v2439 = vadd.f32 %v2390, %v2438
  %2440 = vmatmul.bf16.gmra.mxu0 %v909
  %v2441 = vpop.f32.mrf.mxu0
  %v2442 = vadd.f32 %v2393, %v2441
  %v2443 = vpop.f32.mrf.mxu0
  %v2444 = vadd.f32 %v2395, %v2443
  %2445 = vdwg.mxu0
  %2446 = vmatpush.bf16.msra.mxu0 %v1664
  %2447 = vmatpush.bf16.msra.mxu0 %v1663
  %2448 = vmatpush.bf16.msra.mxu0 %v1662
  %2449 = vmatpush.bf16.msra.mxu0 %v1661
  %2450 = vmatpush.bf16.msra.mxu0 %v1660
  %2451 = vmatpush.bf16.msra.mxu0 %v1659
  %2452 = vmatpush.bf16.msra.mxu0 %v1658
  %2453 = vmatpush.bf16.msra.mxu0 %v1657
  %2454 = vmatmul.bf16.gmra.mxu0 %v798
  %v2455 = vpop.f32.mrf.mxu0
  %v2456 = vadd.f32 %v2407, %v2455
  %v2457 = vpop.f32.mrf.mxu0
  %v2458 = vadd.f32 %v2409, %v2457
  %2459 = vmatmul.bf16.gmra.mxu0 %v814
  %v2460 = vpop.f32.mrf.mxu0
  %v2461 = vadd.f32 %v2412, %v2460
  %v2462 = vpop.f32.mrf.mxu0
  %v2463 = vadd.f32 %v2414, %v2462
  %2464 = vmatmul.bf16.gmra.mxu0 %v830
  %v2465 = vpop.f32.mrf.mxu0
  %v2466 = vadd.f32 %v2417, %v2465
  %v2467 = vpop.f32.mrf.mxu0
  %v2468 = vadd.f32 %v2419, %v2467
  %2469 = vmatmul.bf16.gmra.mxu0 %v846
  %v2470 = vpop.f32.mrf.mxu0
  %v2471 = vadd.f32 %v2422, %v2470
  %v2472 = vpop.f32.mrf.mxu0
  %v2473 = vadd.f32 %v2424, %v2472
  %2474 = vmatmul.bf16.gmra.mxu0 %v862
  %v2475 = vpop.f32.mrf.mxu0
  %v2476 = vadd.f32 %v2427, %v2475
  %v2477 = vpop.f32.mrf.mxu0
  %v2478 = vadd.f32 %v2429, %v2477
  %2479 = vmatmul.bf16.gmra.mxu0 %v878
  %v2480 = vpop.f32.mrf.mxu0
  %v2481 = vadd.f32 %v2432, %v2480
  %v2482 = vpop.f32.mrf.mxu0
  %v2483 = vadd.f32 %v2434, %v2482
  %2484 = vmatmul.bf16.gmra.mxu0 %v894
  %v2485 = vpop.f32.mrf.mxu0
  %v2486 = vadd.f32 %v2437, %v2485
  %v2487 = vpop.f32.mrf.mxu0
  %v2488 = vadd.f32 %v2439, %v2487
  %2489 = vmatmul.bf16.gmra.mxu0 %v910
  %v2490 = vpop.f32.mrf.mxu0
  %v2491 = vadd.f32 %v2442, %v2490
  %v2492 = vpop.f32.mrf.mxu0
  %v2493 = vadd.f32 %v2444, %v2492
  %2494 = vdwg.mxu0
  %2495 = vmatpush.bf16.msra.mxu0 %v1672
  %2496 = vmatpush.bf16.msra.mxu0 %v1671
  %2497 = vmatpush.bf16.msra.mxu0 %v1670
  %2498 = vmatpush.bf16.msra.mxu0 %v1669
  %2499 = vmatpush.bf16.msra.mxu0 %v1668
  %2500 = vmatpush.bf16.msra.mxu0 %v1667
  %2501 = vmatpush.bf16.msra.mxu0 %v1666
  %2502 = vmatpush.bf16.msra.mxu0 %v1665
  %2503 = vmatmul.bf16.gmra.mxu0 %v799
  %v2504 = vpop.f32.mrf.mxu0
  %v2505 = vadd.f32 %v2456, %v2504
  %v2506 = vpop.f32.mrf.mxu0
  %v2507 = vadd.f32 %v2458, %v2506
  %2508 = vmatmul.bf16.gmra.mxu0 %v815
  %v2509 = vpop.f32.mrf.mxu0
  %v2510 = vadd.f32 %v2461, %v2509
  %v2511 = vpop.f32.mrf.mxu0
  %v2512 = vadd.f32 %v2463, %v2511
  %2513 = vmatmul.bf16.gmra.mxu0 %v831
  %v2514 = vpop.f32.mrf.mxu0
  %v2515 = vadd.f32 %v2466, %v2514
  %v2516 = vpop.f32.mrf.mxu0
  %v2517 = vadd.f32 %v2468, %v2516
  %2518 = vmatmul.bf16.gmra.mxu0 %v847
  %v2519 = vpop.f32.mrf.mxu0
  %v2520 = vadd.f32 %v2471, %v2519
  %v2521 = vpop.f32.mrf.mxu0
  %v2522 = vadd.f32 %v2473, %v2521
  %2523 = vmatmul.bf16.gmra.mxu0 %v863
  %v2524 = vpop.f32.mrf.mxu0
  %v2525 = vadd.f32 %v2476, %v2524
  %v2526 = vpop.f32.mrf.mxu0
  %v2527 = vadd.f32 %v2478, %v2526
  %2528 = vmatmul.bf16.gmra.mxu0 %v879
  %v2529 = vpop.f32.mrf.mxu0
  %v2530 = vadd.f32 %v2481, %v2529
  %v2531 = vpop.f32.mrf.mxu0
  %v2532 = vadd.f32 %v2483, %v2531
  %2533 = vmatmul.bf16.gmra.mxu0 %v895
  %v2534 = vpop.f32.mrf.mxu0
  %v2535 = vadd.f32 %v2486, %v2534
  %v2536 = vpop.f32.mrf.mxu0
  %v2537 = vadd.f32 %v2488, %v2536
  %2538 = vmatmul.bf16.gmra.mxu0 %v911
  %v2539 = vpop.f32.mrf.mxu0
  %v2540 = vadd.f32 %v2491, %v2539
  %v2541 = vpop.f32.mrf.mxu0
  %v2542 = vadd.f32 %v2493, %v2541
  %2543 = vdwg.mxu0
  %2544 = vmatpush.bf16.msra.mxu0 %v1680
  %2545 = vmatpush.bf16.msra.mxu0 %v1679
  %2546 = vmatpush.bf16.msra.mxu0 %v1678
  %2547 = vmatpush.bf16.msra.mxu0 %v1677
  %2548 = vmatpush.bf16.msra.mxu0 %v1676
  %2549 = vmatpush.bf16.msra.mxu0 %v1675
  %2550 = vmatpush.bf16.msra.mxu0 %v1674
  %2551 = vmatpush.bf16.msra.mxu0 %v1673
  %2552 = vmatmul.bf16.gmra.mxu0 %v800
  %v2553 = vpop.f32.mrf.mxu0
  %v2554 = vadd.f32 %v2505, %v2553
  %v2555 = vpop.f32.mrf.mxu0
  %v2556 = vadd.f32 %v2507, %v2555
  %2557 = vmatmul.bf16.gmra.mxu0 %v816
  %v2558 = vpop.f32.mrf.mxu0
  %v2559 = vadd.f32 %v2510, %v2558
  %v2560 = vpop.f32.mrf.mxu0
  %v2561 = vadd.f32 %v2512, %v2560
  %2562 = vmatmul.bf16.gmra.mxu0 %v832
  %v2563 = vpop.f32.mrf.mxu0
  %v2564 = vadd.f32 %v2515, %v2563
  %v2565 = vpop.f32.mrf.mxu0
  %v2566 = vadd.f32 %v2517, %v2565
  %2567 = vmatmul.bf16.gmra.mxu0 %v848
  %v2568 = vpop.f32.mrf.mxu0
  %v2569 = vadd.f32 %v2520, %v2568
  %v2570 = vpop.f32.mrf.mxu0
  %v2571 = vadd.f32 %v2522, %v2570
  %2572 = vmatmul.bf16.gmra.mxu0 %v864
  %v2573 = vpop.f32.mrf.mxu0
  %v2574 = vadd.f32 %v2525, %v2573
  %v2575 = vpop.f32.mrf.mxu0
  %v2576 = vadd.f32 %v2527, %v2575
  %2577 = vmatmul.bf16.gmra.mxu0 %v880
  %v2578 = vpop.f32.mrf.mxu0
  %v2579 = vadd.f32 %v2530, %v2578
  %v2580 = vpop.f32.mrf.mxu0
  %v2581 = vadd.f32 %v2532, %v2580
  %2582 = vmatmul.bf16.gmra.mxu0 %v896
  %v2583 = vpop.f32.mrf.mxu0
  %v2584 = vadd.f32 %v2535, %v2583
  %v2585 = vpop.f32.mrf.mxu0
  %v2586 = vadd.f32 %v2537, %v2585
  %2587 = vmatmul.bf16.gmra.mxu0 %v912
  %v2588 = vpop.f32.mrf.mxu0
  %v2589 = vadd.f32 %v2540, %v2588
  %v2590 = vpop.f32.mrf.mxu0
  %v2591 = vadd.f32 %v2542, %v2590
  %2592 = vdwg.mxu0
  %v2593 = vadd.f32 %v2554, %v2556
  %v2594 = vadd.f32 %v2593, %v2559
  %v2595 = vadd.f32 %v2594, %v2561
  %v2596 = vadd.f32 %v2595, %v2564
  %v2597 = vadd.f32 %v2596, %v2566
  %v2598 = vadd.f32 %v2597, %v2569
  %v2599 = vadd.f32 %v2598, %v2571
  %v2600 = vadd.f32 %v2599, %v2574
  %v2601 = vadd.f32 %v2600, %v2576
  %v2602 = vadd.f32 %v2601, %v2579
  %v2603 = vadd.f32 %v2602, %v2581
  %v2604 = vadd.f32 %v2603, %v2584
  %v2605 = vadd.f32 %v2604, %v2586
  %v2606 = vadd.f32 %v2605, %v2589
  %v2607 = vadd.f32 %v2606, %v2591
  %v2608 = vrot.slane %v2607, 4
  %v2609 = vadd.f32 %v2607, %v2608
  %v2610 = vrot.slane %v2609, 2
  %v2611 = vadd.f32 %v2609, %v2610
  %v2612 = vrot.slane %v2611, 1
  %v2613 = vadd.f32 %v2611, %v2612
  %v2614 = vmul.f32 %v2613, 0.0078125
  %v2615 = vsub.f32 %v2554, %v2614
  %v2616 = vsub.f32 %v2556, %v2614
  %v2617 = vsub.f32 %v2559, %v2614
  %v2618 = vsub.f32 %v2561, %v2614
  %v2619 = vsub.f32 %v2564, %v2614
  %v2620 = vsub.f32 %v2566, %v2614
  %v2621 = vsub.f32 %v2569, %v2614
  %v2622 = vsub.f32 %v2571, %v2614
  %v2623 = vsub.f32 %v2574, %v2614
  %v2624 = vsub.f32 %v2576, %v2614
  %v2625 = vsub.f32 %v2579, %v2614
  %v2626 = vsub.f32 %v2581, %v2614
  %v2627 = vsub.f32 %v2584, %v2614
  %v2628 = vsub.f32 %v2586, %v2614
  %v2629 = vsub.f32 %v2589, %v2614
  %v2630 = vsub.f32 %v2591, %v2614
  %v2631 = vmul.f32 %v2615, %v2615
  %v2632 = vmul.f32 %v2616, %v2616
  %v2633 = vmul.f32 %v2617, %v2617
  %v2634 = vmul.f32 %v2618, %v2618
  %v2635 = vmul.f32 %v2619, %v2619
  %v2636 = vmul.f32 %v2620, %v2620
  %v2637 = vmul.f32 %v2621, %v2621
  %v2638 = vmul.f32 %v2622, %v2622
  %v2639 = vmul.f32 %v2623, %v2623
  %v2640 = vmul.f32 %v2624, %v2624
  %v2641 = vmul.f32 %v2625, %v2625
  %v2642 = vmul.f32 %v2626, %v2626
  %v2643 = vmul.f32 %v2627, %v2627
  %v2644 = vmul.f32 %v2628, %v2628
  %v2645 = vmul.f32 %v2629, %v2629
  %v2646 = vmul.f32 %v2630, %v2630
  %v2647 = vadd.f32 %v2631, %v2632
  %v2648 = vadd.f32 %v2647, %v2633
  %v2649 = vadd.f32 %v2648, %v2634
  %v2650 = vadd.f32 %v2649, %v2635
  %v2651 = vadd.f32 %v2650, %v2636
  %v2652 = vadd.f32 %v2651, %v2637
  %v2653 = vadd.f32 %v2652, %v2638
  %v2654 = vadd.f32 %v2653, %v2639
  %v2655 = vadd.f32 %v2654, %v2640
  %v2656 = vadd.f32 %v2655, %v2641
  %v2657 = vadd.f32 %v2656, %v2642
  %v2658 = vadd.f32 %v2657, %v2643
  %v2659 = vadd.f32 %v2658, %v2644
  %v2660 = vadd.f32 %v2659, %v2645
  %v2661 = vadd.f32 %v2660, %v2646
  %v2662 = vrot.slane %v2661, 4
  %v2663 = vadd.f32 %v2661, %v2662
  %v2664 = vrot.slane %v2663, 2
  %v2665 = vadd.f32 %v2663, %v2664
  %v2666 = vrot.slane %v2665, 1
  %v2667 = vadd.f32 %v2665, %v2666
  %v2668 = vmul.f32 %v2667, 0.0078125
  %v2669 = vadd.f32 %v2668, 1e-05
  %v2670 = vrsqrt.pop %v2669
  %v2671 = vmul.f32 %v2670, %v2669
  %v2672 = vmul.f32 %v2671, %v2670
  %v2673 = vmul.f32 0.5, %v2672
  %v2674 = vsub.f32 1.5, %v2673
  %v2675 = vmul.f32 %v2670, %v2674
  %vm2676 = vweird.f32 %v2669
  %vm2677 = vweird.f32 %v2670
  %vm2678 = vmor %vm2676, %vm2677
  %v2679 = vsel %vm2678, %v2670, %v2675
  %v2680 = vld [vmem:[%s2] sm:$0x1]
  %v2681 = vmul.f32 %v2679, %v2680
  %v2682 = vperm.slane %v2681, 0
  %v2683 = vmul.f32 %v2615, %v2682
  %v2684 = vmul.f32 %v2616, %v2682
  %v2685 = vmul.f32 %v2617, %v2682
  %v2686 = vmul.f32 %v2618, %v2682
  %v2687 = vmul.f32 %v2619, %v2682
  %v2688 = vmul.f32 %v2620, %v2682
  %v2689 = vmul.f32 %v2621, %v2682
  %v2690 = vmul.f32 %v2622, %v2682
  %v2691 = vmul.f32 %v2623, %v2682
  %v2692 = vmul.f32 %v2624, %v2682
  %v2693 = vmul.f32 %v2625, %v2682
  %v2694 = vmul.f32 %v2626, %v2682
  %v2695 = vmul.f32 %v2627, %v2682
  %v2696 = vmul.f32 %v2628, %v2682
  %v2697 = vmul.f32 %v2629, %v2682
  %v2698 = vmul.f32 %v2630, %v2682
  %v2699 = vld [vmem:[%s3] sm:$0x1]
  %v2701 = vperm.slane %v2699, 0
  %v2703 = vadd.f32 %v2683, %v2701
  %v2704 = vadd.f32 %v2684, %v2701
  %v2705 = vadd.f32 %v2685, %v2701
  %v2706 = vadd.f32 %v2686, %v2701
  %v2707 = vadd.f32 %v2687, %v2701
  %v2708 = vadd.f32 %v2688, %v2701
  %v2709 = vadd.f32 %v2689, %v2701
  %v2710 = vadd.f32 %v2690, %v2701
  %v2711 = vadd.f32 %v2691, %v2701
  %v2712 = vadd.f32 %v2692, %v2701
  %v2713 = vadd.f32 %v2693, %v2701
  %v2714 = vadd.f32 %v2694, %v2701
  %v2715 = vadd.f32 %v2695, %v2701
  %v2716 = vadd.f32 %v2696, %v2701
  %v2717 = vadd.f32 %v2697, %v2701
  %v2718 = vadd.f32 %v2698, %v2701
  %v2719 = vmul.f32 %v2703, 0.2
  %v2720 = vmul.f32 %v2704, 0.2
  %v2721 = vmul.f32 %v2705, 0.2
  %v2722 = vmul.f32 %v2706, 0.2
  %v2723 = vmul.f32 %v2707, 0.2
  %v2724 = vmul.f32 %v2708, 0.2
  %v2725 = vmul.f32 %v2709, 0.2
  %v2726 = vmul.f32 %v2710, 0.2
  %v2727 = vmul.f32 %v2711, 0.2
  %v2728 = vmul.f32 %v2712, 0.2
  %v2729 = vmul.f32 %v2713, 0.2
  %v2730 = vmul.f32 %v2714, 0.2
  %v2731 = vmul.f32 %v2715, 0.2
  %v2732 = vmul.f32 %v2716, 0.2
  %v2733 = vmul.f32 %v2717, 0.2
  %v2734 = vmul.f32 %v2718, 0.2
  %v2735 = vmax.f32 %v2703, %v2719
  %v2736 = vmax.f32 %v2704, %v2720
  %v2737 = vmax.f32 %v2705, %v2721
  %v2738 = vmax.f32 %v2706, %v2722
  %v2739 = vmax.f32 %v2707, %v2723
  %v2740 = vmax.f32 %v2708, %v2724
  %v2741 = vmax.f32 %v2709, %v2725
  %v2742 = vmax.f32 %v2710, %v2726
  %v2743 = vmax.f32 %v2711, %v2727
  %v2744 = vmax.f32 %v2712, %v2728
  %v2745 = vmax.f32 %v2713, %v2729
  %v2746 = vmax.f32 %v2714, %v2730
  %v2747 = vmax.f32 %v2715, %v2731
  %v2748 = vmax.f32 %v2716, %v2732
  %v2749 = vmax.f32 %v2717, %v2733
  %v2750 = vmax.f32 %v2718, %v2734
  %v2751 = vpack.c.bf16 %v2735, %v2735
  %v2752 = vpack.c.bf16 %v2736, %v2736
  %v2753 = vpack.c.bf16 %v2737, %v2737
  %v2754 = vpack.c.bf16 %v2738, %v2738
  %v2755 = vpack.c.bf16 %v2739, %v2739
  %v2756 = vpack.c.bf16 %v2740, %v2740
  %v2757 = vpack.c.bf16 %v2741, %v2741
  %v2758 = vpack.c.bf16 %v2742, %v2742
  %v2759 = vpack.c.bf16 %v2743, %v2743
  %v2760 = vpack.c.bf16 %v2744, %v2744
  %v2761 = vpack.c.bf16 %v2745, %v2745
  %v2762 = vpack.c.bf16 %v2746, %v2746
  %v2763 = vpack.c.bf16 %v2747, %v2747
  %v2764 = vpack.c.bf16 %v2748, %v2748
  %v2765 = vpack.c.bf16 %v2749, %v2749
  %v2766 = vpack.c.bf16 %v2750, %v2750
  %2767 = vst [vmem:[%s4] sm:$0xf] %v2751
  %2768 = vst [vmem:[%s4 + $0x4] sm:$0xf] %v2752
  %2769 = vst [vmem:[%s4 + $0x8] sm:$0xf] %v2753
  %2770 = vst [vmem:[%s4 + $0xc] sm:$0xf] %v2754
  %2771 = vst [vmem:[%s4 + $0x10] sm:$0xf] %v2755
  %2772 = vst [vmem:[%s4 + $0x14] sm:$0xf] %v2756
  %2773 = vst [vmem:[%s4 + $0x18] sm:$0xf] %v2757
  %2774 = vst [vmem:[%s4 + $0x1c] sm:$0xf] %v2758
  %2775 = vst [vmem:[%s4 + $0x20] sm:$0xf] %v2759
  %2776 = vst [vmem:[%s4 + $0x24] sm:$0xf] %v2760
  %2777 = vst [vmem:[%s4 + $0x28] sm:$0xf] %v2761
  %2778 = vst [vmem:[%s4 + $0x2c] sm:$0xf] %v2762
  %2779 = vst [vmem:[%s4 + $0x30] sm:$0xf] %v2763
  %2780 = vst [vmem:[%s4 + $0x34] sm:$0xf] %v2764
  %2781 = vst [vmem:[%s4 + $0x38] sm:$0xf] %v2765
  %2782 = vst [vmem:[%s4 + $0x3c] sm:$0xf] %v2766
  // Predicated region
  $region18: #{_lambda_.6} parent=0 // pred_check
    _
  $region19: #{_lambda_.6} parent=0 // pred_check_branch
    %2784 = sbr.rel (0) target = $region21
  $region20: #{_lambda_.6} parent=0 // pred_region
    _
  $region21: #{_lambda_.6} parent=0 // pred_fallthru
    _
  // Predicated region
  $region22: #{_lambda_.6} parent=0 // pred_check
    _
  $region23: #{_lambda_.6} parent=0 // pred_check_branch
    %2786 = sbr.rel (0) target = $region25
  $region24: #{_lambda_.6} parent=0 // pred_region
    _
  $region25: #{_lambda_.6} parent=0 // pred_fallthru
    _

// kernel: _lambda_.7
$region0: #{_lambda_.7}
  #allocation0 [shape = 'u32[]', space=smem, size = 0x4, offset = 0x4, fixed_abs, tag = 'smem constant byte address 0x4 - core index']
  #allocation1 [shape = 'u32[72,128]{1,0:T(1,128)}', space=vmem, size = 0x9000, scoped, tag = 'internal scratch']
  %s0 = inlined_call_operand.vmem [shape: bf16[32,2048], index: 0, kind: input, shape index: {}]
  %s1 = inlined_call_operand.vmem [shape: bf16[2048,128], index: 1, kind: input, shape index: {}]
  %s2 = inlined_call_operand.vmem [shape: f32[1,128], index: 2, kind: input, shape index: {}]
  %s3 = inlined_call_operand.vmem [shape: f32[1,128], index: 3, kind: input, shape index: {}]
  %s4 = inlined_call_operand.vmem [shape: bf16[32,128], index: 4, kind: output, shape index: {}]
  %s5 = sld [smem:[#allocation0]]
  $region26: #{_lambda_.7} parent=0
    _
  %s7 = ssub.s32 1, %s5
  %s8 = scalar_select 0, %s7, %s5
  // Predicated region
  $region2: #{_lambda_.7} parent=0 // pred_check
    _
  $region3: #{_lambda_.7} parent=0 // pred_check_branch
    %10 = sbr.rel (0) target = $region5
  $region4: #{_lambda_.7} parent=0 // pred_region
    _
  $region5: #{_lambda_.7} parent=0 // pred_fallthru
    _
  // Predicated region
  $region6: #{_lambda_.7} parent=0 // pred_check
    _
  $region7: #{_lambda_.7} parent=0 // pred_check_branch
    %12 = sbr.rel (0) target = $region9
  $region8: #{_lambda_.7} parent=0 // pred_region
    _
  $region9: #{_lambda_.7} parent=0 // pred_fallthru
    _
  // Predicated region
  $region10: #{_lambda_.7} parent=0 // pred_check
    _
  $region11: #{_lambda_.7} parent=0 // pred_check_branch
    %14 = sbr.rel (0) target = $region13
  $region12: #{_lambda_.7} parent=0 // pred_region
    _
  $region13: #{_lambda_.7} parent=0 // pred_fallthru
    _
  // Predicated region
  $region14: #{_lambda_.7} parent=0 // pred_check
    _
  $region15: #{_lambda_.7} parent=0 // pred_check_branch
    %16 = sbr.rel (0) target = $region17
  $region16: #{_lambda_.7} parent=0 // pred_region
    _
  $region17: #{_lambda_.7} parent=0 // pred_fallthru
    _
  %v17 = vld [vmem:[%s0] sm:$0xff]
  %v18 = vld [vmem:[%s0 + $0x8] sm:$0xff]
  %v19 = vld [vmem:[%s0 + $0x10] sm:$0xff]
  %v20 = vld [vmem:[%s0 + $0x18] sm:$0xff]
  %v21 = vld [vmem:[%s0 + $0x20] sm:$0xff]
  %v22 = vld [vmem:[%s0 + $0x28] sm:$0xff]
  %v23 = vld [vmem:[%s0 + $0x30] sm:$0xff]
  %v24 = vld [vmem:[%s0 + $0x38] sm:$0xff]
  %v25 = vld [vmem:[%s0 + $0x40] sm:$0xff]
  %v26 = vld [vmem:[%s0 + $0x48] sm:$0xff]
  %v27 = vld [vmem:[%s0 + $0x50] sm:$0xff]
  %v28 = vld [vmem:[%s0 + $0x58] sm:$0xff]
  %v29 = vld [vmem:[%s0 + $0x60] sm:$0xff]
  %v30 = vld [vmem:[%s0 + $0x68] sm:$0xff]
  %v31 = vld [vmem:[%s0 + $0x70] sm:$0xff]
  %v32 = vld [vmem:[%s0 + $0x78] sm:$0xff]
  %v33 = vld [vmem:[%s0 + $0x80] sm:$0xff]
  %v34 = vld [vmem:[%s0 + $0x88] sm:$0xff]
  %v35 = vld [vmem:[%s0 + $0x90] sm:$0xff]
  %v36 = vld [vmem:[%s0 + $0x98] sm:$0xff]
  %v37 = vld [vmem:[%s0 + $0xa0] sm:$0xff]
  %v38 = vld [vmem:[%s0 + $0xa8] sm:$0xff]
  %v39 = vld [vmem:[%s0 + $0xb0] sm:$0xff]
  %v40 = vld [vmem:[%s0 + $0xb8] sm:$0xff]
  %v41 = vld [vmem:[%s0 + $0xc0] sm:$0xff]
  %v42 = vld [vmem:[%s0 + $0xc8] sm:$0xff]
  %v43 = vld [vmem:[%s0 + $0xd0] sm:$0xff]
  %v44 = vld [vmem:[%s0 + $0xd8] sm:$0xff]
  %v45 = vld [vmem:[%s0 + $0xe0] sm:$0xff]
  %v46 = vld [vmem:[%s0 + $0xe8] sm:$0xff]
  %v47 = vld [vmem:[%s0 + $0xf0] sm:$0xff]
  %v48 = vld [vmem:[%s0 + $0xf8] sm:$0xff]
  %v49 = vld [vmem:[%s1] sm:$0xf]
  %v50 = vld [vmem:[%s1 + $0x4] sm:$0xf]
  %v51 = vld [vmem:[%s1 + $0x8] sm:$0xf]
  %v52 = vld [vmem:[%s1 + $0xc] sm:$0xf]
  %v53 = vld [vmem:[%s1 + $0x10] sm:$0xf]
  %v54 = vld [vmem:[%s1 + $0x14] sm:$0xf]
  %v55 = vld [vmem:[%s1 + $0x18] sm:$0xf]
  %v56 = vld [vmem:[%s1 + $0x1c] sm:$0xf]
  %v57 = vld [vmem:[%s1 + $0x20] sm:$0xf]
  %v58 = vld [vmem:[%s1 + $0x24] sm:$0xf]
  %v59 = vld [vmem:[%s1 + $0x28] sm:$0xf]
  %v60 = vld [vmem:[%s1 + $0x2c] sm:$0xf]
  %v61 = vld [vmem:[%s1 + $0x30] sm:$0xf]
  %v62 = vld [vmem:[%s1 + $0x34] sm:$0xf]
  %v63 = vld [vmem:[%s1 + $0x38] sm:$0xf]
  %v64 = vld [vmem:[%s1 + $0x3c] sm:$0xf]
  %v65 = vld [vmem:[%s1 + $0x40] sm:$0xf]
  %v66 = vld [vmem:[%s1 + $0x44] sm:$0xf]
  %v67 = vld [vmem:[%s1 + $0x48] sm:$0xf]
  %v68 = vld [vmem:[%s1 + $0x4c] sm:$0xf]
  %v69 = vld [vmem:[%s1 + $0x50] sm:$0xf]
  %v70 = vld [vmem:[%s1 + $0x54] sm:$0xf]
  %v71 = vld [vmem:[%s1 + $0x58] sm:$0xf]
  %v72 = vld [vmem:[%s1 + $0x5c] sm:$0xf]
  %v73 = vld [vmem:[%s1 + $0x60] sm:$0xf]
  %v74 = vld [vmem:[%s1 + $0x64] sm:$0xf]
  %v75 = vld [vmem:[%s1 + $0x68] sm:$0xf]
  %v76 = vld [vmem:[%s1 + $0x6c] sm:$0xf]
  %v77 = vld [vmem:[%s1 + $0x70] sm:$0xf]
  %v78 = vld [vmem:[%s1 + $0x74] sm:$0xf]
  %v79 = vld [vmem:[%s1 + $0x78] sm:$0xf]
  %v80 = vld [vmem:[%s1 + $0x7c] sm:$0xf]
  %v81 = vld [vmem:[%s1 + $0x80] sm:$0xf]
  %v82 = vld [vmem:[%s1 + $0x84] sm:$0xf]
  %v83 = vld [vmem:[%s1 + $0x88] sm:$0xf]
  %v84 = vld [vmem:[%s1 + $0x8c] sm:$0xf]
  %v85 = vld [vmem:[%s1 + $0x90] sm:$0xf]
  %v86 = vld [vmem:[%s1 + $0x94] sm:$0xf]
  %v87 = vld [vmem:[%s1 + $0x98] sm:$0xf]
  %v88 = vld [vmem:[%s1 + $0x9c] sm:$0xf]
  %v89 = vld [vmem:[%s1 + $0xa0] sm:$0xf]
  %v90 = vld [vmem:[%s1 + $0xa4] sm:$0xf]
  %v91 = vld [vmem:[%s1 + $0xa8] sm:$0xf]
  %v92 = vld [vmem:[%s1 + $0xac] sm:$0xf]
  %v93 = vld [vmem:[%s1 + $0xb0] sm:$0xf]
  %v94 = vld [vmem:[%s1 + $0xb4] sm:$0xf]
  %v95 = vld [vmem:[%s1 + $0xb8] sm:$0xf]
  %v96 = vld [vmem:[%s1 + $0xbc] sm:$0xf]
  %v97 = vld [vmem:[%s1 + $0xc0] sm:$0xf]
  %v98 = vld [vmem:[%s1 + $0xc4] sm:$0xf]
  %v99 = vld [vmem:[%s1 + $0xc8] sm:$0xf]
  %v100 = vld [vmem:[%s1 + $0xcc] sm:$0xf]
  %v101 = vld [vmem:[%s1 + $0xd0] sm:$0xf]
  %v102 = vld [vmem:[%s1 + $0xd4] sm:$0xf]
  %v103 = vld [vmem:[%s1 + $0xd8] sm:$0xf]
  %v104 = vld [vmem:[%s1 + $0xdc] sm:$0xf]
  %v105 = vld [vmem:[%s1 + $0xe0] sm:$0xf]
  %v106 = vld [vmem:[%s1 + $0xe4] sm:$0xf]
  %v107 = vld [vmem:[%s1 + $0xe8] sm:$0xf]
  %v108 = vld [vmem:[%s1 + $0xec] sm:$0xf]
  %v109 = vld [vmem:[%s1 + $0xf0] sm:$0xf]
  %v110 = vld [vmem:[%s1 + $0xf4] sm:$0xf]
  %v111 = vld [vmem:[%s1 + $0xf8] sm:$0xf]
  %v112 = vld [vmem:[%s1 + $0xfc] sm:$0xf]
  %v113 = vld [vmem:[%s1 + $0x100] sm:$0xf]
  %v114 = vld [vmem:[%s1 + $0x104] sm:$0xf]
  %v115 = vld [vmem:[%s1 + $0x108] sm:$0xf]
  %v116 = vld [vmem:[%s1 + $0x10c] sm:$0xf]
  %v117 = vld [vmem:[%s1 + $0x110] sm:$0xf]
  %v118 = vld [vmem:[%s1 + $0x114] sm:$0xf]
  %v119 = vld [vmem:[%s1 + $0x118] sm:$0xf]
  %v120 = vld [vmem:[%s1 + $0x11c] sm:$0xf]
  %v121 = vld [vmem:[%s1 + $0x120] sm:$0xf]
  %v122 = vld [vmem:[%s1 + $0x124] sm:$0xf]
  %v123 = vld [vmem:[%s1 + $0x128] sm:$0xf]
  %v124 = vld [vmem:[%s1 + $0x12c] sm:$0xf]
  %v125 = vld [vmem:[%s1 + $0x130] sm:$0xf]
  %v126 = vld [vmem:[%s1 + $0x134] sm:$0xf]
  %v127 = vld [vmem:[%s1 + $0x138] sm:$0xf]
  %v128 = vld [vmem:[%s1 + $0x13c] sm:$0xf]
  %v129 = vld [vmem:[%s1 + $0x140] sm:$0xf]
  %v130 = vld [vmem:[%s1 + $0x144] sm:$0xf]
  %v131 = vld [vmem:[%s1 + $0x148] sm:$0xf]
  %v132 = vld [vmem:[%s1 + $0x14c] sm:$0xf]
  %v133 = vld [vmem:[%s1 + $0x150] sm:$0xf]
  %v134 = vld [vmem:[%s1 + $0x154] sm:$0xf]
  %v135 = vld [vmem:[%s1 + $0x158] sm:$0xf]
  %v136 = vld [vmem:[%s1 + $0x15c] sm:$0xf]
  %v137 = vld [vmem:[%s1 + $0x160] sm:$0xf]
  %v138 = vld [vmem:[%s1 + $0x164] sm:$0xf]
  %v139 = vld [vmem:[%s1 + $0x168] sm:$0xf]
  %v140 = vld [vmem:[%s1 + $0x16c] sm:$0xf]
  %v141 = vld [vmem:[%s1 + $0x170] sm:$0xf]
  %v142 = vld [vmem:[%s1 + $0x174] sm:$0xf]
  %v143 = vld [vmem:[%s1 + $0x178] sm:$0xf]
  %v144 = vld [vmem:[%s1 + $0x17c] sm:$0xf]
  %v145 = vld [vmem:[%s1 + $0x180] sm:$0xf]
  %v146 = vld [vmem:[%s1 + $0x184] sm:$0xf]
  %v147 = vld [vmem:[%s1 + $0x188] sm:$0xf]
  %v148 = vld [vmem:[%s1 + $0x18c] sm:$0xf]
  %v149 = vld [vmem:[%s1 + $0x190] sm:$0xf]
  %v150 = vld [vmem:[%s1 + $0x194] sm:$0xf]
  %v151 = vld [vmem:[%s1 + $0x198] sm:$0xf]
  %v152 = vld [vmem:[%s1 + $0x19c] sm:$0xf]
  %v153 = vld [vmem:[%s1 + $0x1a0] sm:$0xf]
  %v154 = vld [vmem:[%s1 + $0x1a4] sm:$0xf]
  %v155 = vld [vmem:[%s1 + $0x1a8] sm:$0xf]
  %v156 = vld [vmem:[%s1 + $0x1ac] sm:$0xf]
  %v157 = vld [vmem:[%s1 + $0x1b0] sm:$0xf]
  %v158 = vld [vmem:[%s1 + $0x1b4] sm:$0xf]
  %v159 = vld [vmem:[%s1 + $0x1b8] sm:$0xf]
  %v160 = vld [vmem:[%s1 + $0x1bc] sm:$0xf]
  %v161 = vld [vmem:[%s1 + $0x1c0] sm:$0xf]
  %v162 = vld [vmem:[%s1 + $0x1c4] sm:$0xf]
  %v163 = vld [vmem:[%s1 + $0x1c8] sm:$0xf]
  %v164 = vld [vmem:[%s1 + $0x1cc] sm:$0xf]
  %v165 = vld [vmem:[%s1 + $0x1d0] sm:$0xf]
  %v166 = vld [vmem:[%s1 + $0x1d4] sm:$0xf]
  %v167 = vld [vmem:[%s1 + $0x1d8] sm:$0xf]
  %v168 = vld [vmem:[%s1 + $0x1dc] sm:$0xf]
  %v169 = vld [vmem:[%s1 + $0x1e0] sm:$0xf]
  %v170 = vld [vmem:[%s1 + $0x1e4] sm:$0xf]
  %v171 = vld [vmem:[%s1 + $0x1e8] sm:$0xf]
  %v172 = vld [vmem:[%s1 + $0x1ec] sm:$0xf]
  %v173 = vld [vmem:[%s1 + $0x1f0] sm:$0xf]
  %v174 = vld [vmem:[%s1 + $0x1f4] sm:$0xf]
  %v175 = vld [vmem:[%s1 + $0x1f8] sm:$0xf]
  %v176 = vld [vmem:[%s1 + $0x1fc] sm:$0xf]
  %v177 = vld [vmem:[%s1 + $0x200] sm:$0xf]
  %v178 = vld [vmem:[%s1 + $0x204] sm:$0xf]
  %v179 = vld [vmem:[%s1 + $0x208] sm:$0xf]
  %v180 = vld [vmem:[%s1 + $0x20c] sm:$0xf]
  %v181 = vld [vmem:[%s1 + $0x210] sm:$0xf]
  %v182 = vld [vmem:[%s1 + $0x214] sm:$0xf]
  %v183 = vld [vmem:[%s1 + $0x218] sm:$0xf]
  %v184 = vld [vmem:[%s1 + $0x21c] sm:$0xf]
  %v185 = vld [vmem:[%s1 + $0x220] sm:$0xf]
  %v186 = vld [vmem:[%s1 + $0x224] sm:$0xf]
  %v187 = vld [vmem:[%s1 + $0x228] sm:$0xf]
  %v188 = vld [vmem:[%s1 + $0x22c] sm:$0xf]
  %v189 = vld [vmem:[%s1 + $0x230] sm:$0xf]
  %v190 = vld [vmem:[%s1 + $0x234] sm:$0xf]
  %v191 = vld [vmem:[%s1 + $0x238] sm:$0xf]
  %v192 = vld [vmem:[%s1 + $0x23c] sm:$0xf]
  %v193 = vld [vmem:[%s1 + $0x240] sm:$0xf]
  %v194 = vld [vmem:[%s1 + $0x244] sm:$0xf]
  %v195 = vld [vmem:[%s1 + $0x248] sm:$0xf]
  %v196 = vld [vmem:[%s1 + $0x24c] sm:$0xf]
  %v197 = vld [vmem:[%s1 + $0x250] sm:$0xf]
  %v198 = vld [vmem:[%s1 + $0x254] sm:$0xf]
  %v199 = vld [vmem:[%s1 + $0x258] sm:$0xf]
  %v200 = vld [vmem:[%s1 + $0x25c] sm:$0xf]
  %v201 = vld [vmem:[%s1 + $0x260] sm:$0xf]
  %v202 = vld [vmem:[%s1 + $0x264] sm:$0xf]
  %v203 = vld [vmem:[%s1 + $0x268] sm:$0xf]
  %v204 = vld [vmem:[%s1 + $0x26c] sm:$0xf]
  %v205 = vld [vmem:[%s1 + $0x270] sm:$0xf]
  %v206 = vld [vmem:[%s1 + $0x274] sm:$0xf]
  %v207 = vld [vmem:[%s1 + $0x278] sm:$0xf]
  %v208 = vld [vmem:[%s1 + $0x27c] sm:$0xf]
  %v209 = vld [vmem:[%s1 + $0x280] sm:$0xf]
  %v210 = vld [vmem:[%s1 + $0x284] sm:$0xf]
  %v211 = vld [vmem:[%s1 + $0x288] sm:$0xf]
  %v212 = vld [vmem:[%s1 + $0x28c] sm:$0xf]
  %v213 = vld [vmem:[%s1 + $0x290] sm:$0xf]
  %v214 = vld [vmem:[%s1 + $0x294] sm:$0xf]
  %v215 = vld [vmem:[%s1 + $0x298] sm:$0xf]
  %v216 = vld [vmem:[%s1 + $0x29c] sm:$0xf]
  %v217 = vld [vmem:[%s1 + $0x2a0] sm:$0xf]
  %v218 = vld [vmem:[%s1 + $0x2a4] sm:$0xf]
  %v219 = vld [vmem:[%s1 + $0x2a8] sm:$0xf]
  %v220 = vld [vmem:[%s1 + $0x2ac] sm:$0xf]
  %v221 = vld [vmem:[%s1 + $0x2b0] sm:$0xf]
  %v222 = vld [vmem:[%s1 + $0x2b4] sm:$0xf]
  %v223 = vld [vmem:[%s1 + $0x2b8] sm:$0xf]
  %v224 = vld [vmem:[%s1 + $0x2bc] sm:$0xf]
  %v225 = vld [vmem:[%s1 + $0x2c0] sm:$0xf]
  %v226 = vld [vmem:[%s1 + $0x2c4] sm:$0xf]
  %v227 = vld [vmem:[%s1 + $0x2c8] sm:$0xf]
  %v228 = vld [vmem:[%s1 + $0x2cc] sm:$0xf]
  %v229 = vld [vmem:[%s1 + $0x2d0] sm:$0xf]
  %v230 = vld [vmem:[%s1 + $0x2d4] sm:$0xf]
  %v231 = vld [vmem:[%s1 + $0x2d8] sm:$0xf]
  %v232 = vld [vmem:[%s1 + $0x2dc] sm:$0xf]
  %v233 = vld [vmem:[%s1 + $0x2e0] sm:$0xf]
  %v234 = vld [vmem:[%s1 + $0x2e4] sm:$0xf]
  %v235 = vld [vmem:[%s1 + $0x2e8] sm:$0xf]
  %v236 = vld [vmem:[%s1 + $0x2ec] sm:$0xf]
  %v237 = vld [vmem:[%s1 + $0x2f0] sm:$0xf]
  %v238 = vld [vmem:[%s1 + $0x2f4] sm:$0xf]
  %v239 = vld [vmem:[%s1 + $0x2f8] sm:$0xf]
  %v240 = vld [vmem:[%s1 + $0x2fc] sm:$0xf]
  %v241 = vld [vmem:[%s1 + $0x300] sm:$0xf]
  %v242 = vld [vmem:[%s1 + $0x304] sm:$0xf]
  %v243 = vld [vmem:[%s1 + $0x308] sm:$0xf]
  %v244 = vld [vmem:[%s1 + $0x30c] sm:$0xf]
  %v245 = vld [vmem:[%s1 + $0x310] sm:$0xf]
  %v246 = vld [vmem:[%s1 + $0x314] sm:$0xf]
  %v247 = vld [vmem:[%s1 + $0x318] sm:$0xf]
  %v248 = vld [vmem:[%s1 + $0x31c] sm:$0xf]
  %v249 = vld [vmem:[%s1 + $0x320] sm:$0xf]
  %v250 = vld [vmem:[%s1 + $0x324] sm:$0xf]
  %v251 = vld [vmem:[%s1 + $0x328] sm:$0xf]
  %v252 = vld [vmem:[%s1 + $0x32c] sm:$0xf]
  %v253 = vld [vmem:[%s1 + $0x330] sm:$0xf]
  %v254 = vld [vmem:[%s1 + $0x334] sm:$0xf]
  %v255 = vld [vmem:[%s1 + $0x338] sm:$0xf]
  %v256 = vld [vmem:[%s1 + $0x33c] sm:$0xf]
  %v257 = vld [vmem:[%s1 + $0x340] sm:$0xf]
  %v258 = vld [vmem:[%s1 + $0x344] sm:$0xf]
  %v259 = vld [vmem:[%s1 + $0x348] sm:$0xf]
  %v260 = vld [vmem:[%s1 + $0x34c] sm:$0xf]
  %v261 = vld [vmem:[%s1 + $0x350] sm:$0xf]
  %v262 = vld [vmem:[%s1 + $0x354] sm:$0xf]
  %v263 = vld [vmem:[%s1 + $0x358] sm:$0xf]
  %v264 = vld [vmem:[%s1 + $0x35c] sm:$0xf]
  %v265 = vld [vmem:[%s1 + $0x360] sm:$0xf]
  %v266 = vld [vmem:[%s1 + $0x364] sm:$0xf]
  %v267 = vld [vmem:[%s1 + $0x368] sm:$0xf]
  %v268 = vld [vmem:[%s1 + $0x36c] sm:$0xf]
  %v269 = vld [vmem:[%s1 + $0x370] sm:$0xf]
  %v270 = vld [vmem:[%s1 + $0x374] sm:$0xf]
  %v271 = vld [vmem:[%s1 + $0x378] sm:$0xf]
  %v272 = vld [vmem:[%s1 + $0x37c] sm:$0xf]
  %v273 = vld [vmem:[%s1 + $0x380] sm:$0xf]
  %v274 = vld [vmem:[%s1 + $0x384] sm:$0xf]
  %v275 = vld [vmem:[%s1 + $0x388] sm:$0xf]
  %v276 = vld [vmem:[%s1 + $0x38c] sm:$0xf]
  %v277 = vld [vmem:[%s1 + $0x390] sm:$0xf]
  %v278 = vld [vmem:[%s1 + $0x394] sm:$0xf]
  %v279 = vld [vmem:[%s1 + $0x398] sm:$0xf]
  %v280 = vld [vmem:[%s1 + $0x39c] sm:$0xf]
  %v281 = vld [vmem:[%s1 + $0x3a0] sm:$0xf]
  %v282 = vld [vmem:[%s1 + $0x3a4] sm:$0xf]
  %v283 = vld [vmem:[%s1 + $0x3a8] sm:$0xf]
  %v284 = vld [vmem:[%s1 + $0x3ac] sm:$0xf]
  %v285 = vld [vmem:[%s1 + $0x3b0] sm:$0xf]
  %v286 = vld [vmem:[%s1 + $0x3b4] sm:$0xf]
  %v287 = vld [vmem:[%s1 + $0x3b8] sm:$0xf]
  %v288 = vld [vmem:[%s1 + $0x3bc] sm:$0xf]
  %v289 = vld [vmem:[%s1 + $0x3c0] sm:$0xf]
  %v290 = vld [vmem:[%s1 + $0x3c4] sm:$0xf]
  %v291 = vld [vmem:[%s1 + $0x3c8] sm:$0xf]
  %v292 = vld [vmem:[%s1 + $0x3cc] sm:$0xf]
  %v293 = vld [vmem:[%s1 + $0x3d0] sm:$0xf]
  %v294 = vld [vmem:[%s1 + $0x3d4] sm:$0xf]
  %v295 = vld [vmem:[%s1 + $0x3d8] sm:$0xf]
  %v296 = vld [vmem:[%s1 + $0x3dc] sm:$0xf]
  %v297 = vld [vmem:[%s1 + $0x3e0] sm:$0xf]
  %v298 = vld [vmem:[%s1 + $0x3e4] sm:$0xf]
  %v299 = vld [vmem:[%s1 + $0x3e8] sm:$0xf]
  %v300 = vld [vmem:[%s1 + $0x3ec] sm:$0xf]
  %v301 = vld [vmem:[%s1 + $0x3f0] sm:$0xf]
  %v302 = vld [vmem:[%s1 + $0x3f4] sm:$0xf]
  %v303 = vld [vmem:[%s1 + $0x3f8] sm:$0xf]
  %v304 = vld [vmem:[%s1 + $0x3fc] sm:$0xf]
  %v337 = vunpack.c.l.b16 %v17
  %v338 = vunpack.c.h.b16 %v17
  %v339 = vunpack.c.l.b16 %v18
  %v340 = vunpack.c.h.b16 %v18
  %v341 = vunpack.c.l.b16 %v19
  %v342 = vunpack.c.h.b16 %v19
  %v343 = vunpack.c.l.b16 %v20
  %v344 = vunpack.c.h.b16 %v20
  %v345 = vunpack.c.l.b16 %v21
  %v346 = vunpack.c.h.b16 %v21
  %v347 = vunpack.c.l.b16 %v22
  %v348 = vunpack.c.h.b16 %v22
  %v349 = vunpack.c.l.b16 %v23
  %v350 = vunpack.c.h.b16 %v23
  %v351 = vunpack.c.l.b16 %v24
  %v352 = vunpack.c.h.b16 %v24
  %v353 = vunpack.c.l.b16 %v25
  %v354 = vunpack.c.h.b16 %v25
  %v355 = vunpack.c.l.b16 %v26
  %v356 = vunpack.c.h.b16 %v26
  %v357 = vunpack.c.l.b16 %v27
  %v358 = vunpack.c.h.b16 %v27
  %v359 = vunpack.c.l.b16 %v28
  %v360 = vunpack.c.h.b16 %v28
  %v361 = vunpack.c.l.b16 %v29
  %v362 = vunpack.c.h.b16 %v29
  %v363 = vunpack.c.l.b16 %v30
  %v364 = vunpack.c.h.b16 %v30
  %v365 = vunpack.c.l.b16 %v31
  %v366 = vunpack.c.h.b16 %v31
  %v367 = vunpack.c.l.b16 %v32
  %v368 = vunpack.c.h.b16 %v32
  %v369 = vunpack.c.l.b16 %v33
  %v370 = vunpack.c.h.b16 %v33
  %v371 = vunpack.c.l.b16 %v34
  %v372 = vunpack.c.h.b16 %v34
  %v373 = vunpack.c.l.b16 %v35
  %v374 = vunpack.c.h.b16 %v35
  %v375 = vunpack.c.l.b16 %v36
  %v376 = vunpack.c.h.b16 %v36
  %v377 = vunpack.c.l.b16 %v37
  %v378 = vunpack.c.h.b16 %v37
  %v379 = vunpack.c.l.b16 %v38
  %v380 = vunpack.c.h.b16 %v38
  %v381 = vunpack.c.l.b16 %v39
  %v382 = vunpack.c.h.b16 %v39
  %v383 = vunpack.c.l.b16 %v40
  %v384 = vunpack.c.h.b16 %v40
  %v385 = vunpack.c.l.b16 %v41
  %v386 = vunpack.c.h.b16 %v41
  %v387 = vunpack.c.l.b16 %v42
  %v388 = vunpack.c.h.b16 %v42
  %v389 = vunpack.c.l.b16 %v43
  %v390 = vunpack.c.h.b16 %v43
  %v391 = vunpack.c.l.b16 %v44
  %v392 = vunpack.c.h.b16 %v44
  %v393 = vunpack.c.l.b16 %v45
  %v394 = vunpack.c.h.b16 %v45
  %v395 = vunpack.c.l.b16 %v46
  %v396 = vunpack.c.h.b16 %v46
  %v397 = vunpack.c.l.b16 %v47
  %v398 = vunpack.c.h.b16 %v47
  %v399 = vunpack.c.l.b16 %v48
  %v400 = vunpack.c.h.b16 %v48
  %v401 = vpack.c.b16 %v353, %v337
  %v402 = vpack.c.b16 %v354, %v338
  %v403 = vpack.c.b16 %v355, %v339
  %v404 = vpack.c.b16 %v356, %v340
  %v405 = vpack.c.b16 %v357, %v341
  %v406 = vpack.c.b16 %v358, %v342
  %v407 = vpack.c.b16 %v359, %v343
  %v408 = vpack.c.b16 %v360, %v344
  %v409 = vpack.c.b16 %v361, %v345
  %v410 = vpack.c.b16 %v362, %v346
  %v411 = vpack.c.b16 %v363, %v347
  %v412 = vpack.c.b16 %v364, %v348
  %v413 = vpack.c.b16 %v365, %v349
  %v414 = vpack.c.b16 %v366, %v350
  %v415 = vpack.c.b16 %v367, %v351
  %v416 = vpack.c.b16 %v368, %v352
  %v417 = vpack.c.b16 %v385, %v369
  %v418 = vpack.c.b16 %v386, %v370
  %v419 = vpack.c.b16 %v387, %v371
  %v420 = vpack.c.b16 %v388, %v372
  %v421 = vpack.c.b16 %v389, %v373
  %v422 = vpack.c.b16 %v390, %v374
  %v423 = vpack.c.b16 %v391, %v375
  %v424 = vpack.c.b16 %v392, %v376
  %v425 = vpack.c.b16 %v393, %v377
  %v426 = vpack.c.b16 %v394, %v378
  %v427 = vpack.c.b16 %v395, %v379
  %v428 = vpack.c.b16 %v396, %v380
  %v429 = vpack.c.b16 %v397, %v381
  %v430 = vpack.c.b16 %v398, %v382
  %v431 = vpack.c.b16 %v399, %v383
  %v432 = vpack.c.b16 %v400, %v384
  %v721 = vunpack.c.l.b16 %v49
  %v722 = vunpack.c.l.b16 %v50
  %v723 = vunpack.c.l.b16 %v51
  %v724 = vunpack.c.l.b16 %v52
  %v725 = vunpack.c.l.b16 %v53
  %v726 = vunpack.c.l.b16 %v54
  %v727 = vunpack.c.l.b16 %v55
  %v728 = vunpack.c.l.b16 %v56
  %v729 = vunpack.c.l.b16 %v57
  %v730 = vunpack.c.l.b16 %v58
  %v731 = vunpack.c.l.b16 %v59
  %v732 = vunpack.c.l.b16 %v60
  %v733 = vunpack.c.l.b16 %v61
  %v734 = vunpack.c.l.b16 %v62
  %v735 = vunpack.c.l.b16 %v63
  %v736 = vunpack.c.l.b16 %v64
  %v737 = vunpack.c.l.b16 %v65
  %v738 = vunpack.c.l.b16 %v66
  %v739 = vunpack.c.l.b16 %v67
  %v740 = vunpack.c.l.b16 %v68
  %v741 = vunpack.c.l.b16 %v69
  %v742 = vunpack.c.l.b16 %v70
  %v743 = vunpack.c.l.b16 %v71
  %v744 = vunpack.c.l.b16 %v72
  %v745 = vunpack.c.l.b16 %v73
  %v746 = vunpack.c.l.b16 %v74
  %v747 = vunpack.c.l.b16 %v75
  %v748 = vunpack.c.l.b16 %v76
  %v749 = vunpack.c.l.b16 %v77
  %v750 = vunpack.c.l.b16 %v78
  %v751 = vunpack.c.l.b16 %v79
  %v752 = vunpack.c.l.b16 %v80
  %v753 = vunpack.c.l.b16 %v81
  %v754 = vunpack.c.l.b16 %v82
  %v755 = vunpack.c.l.b16 %v83
  %v756 = vunpack.c.l.b16 %v84
  %v757 = vunpack.c.l.b16 %v85
  %v758 = vunpack.c.l.b16 %v86
  %v759 = vunpack.c.l.b16 %v87
  %v760 = vunpack.c.l.b16 %v88
  %v761 = vunpack.c.l.b16 %v89
  %v762 = vunpack.c.l.b16 %v90
  %v763 = vunpack.c.l.b16 %v91
  %v764 = vunpack.c.l.b16 %v92
  %v765 = vunpack.c.l.b16 %v93
  %v766 = vunpack.c.l.b16 %v94
  %v767 = vunpack.c.l.b16 %v95
  %v768 = vunpack.c.l.b16 %v96
  %v769 = vunpack.c.l.b16 %v97
  %v770 = vunpack.c.l.b16 %v98
  %v771 = vunpack.c.l.b16 %v99
  %v772 = vunpack.c.l.b16 %v100
  %v773 = vunpack.c.l.b16 %v101
  %v774 = vunpack.c.l.b16 %v102
  %v775 = vunpack.c.l.b16 %v103
  %v776 = vunpack.c.l.b16 %v104
  %v777 = vunpack.c.l.b16 %v105
  %v778 = vunpack.c.l.b16 %v106
  %v779 = vunpack.c.l.b16 %v107
  %v780 = vunpack.c.l.b16 %v108
  %v781 = vunpack.c.l.b16 %v109
  %v782 = vunpack.c.l.b16 %v110
  %v783 = vunpack.c.l.b16 %v111
  %v784 = vunpack.c.l.b16 %v112
  %v785 = vunpack.c.l.b16 %v113
  %v786 = vunpack.c.l.b16 %v114
  %v787 = vunpack.c.l.b16 %v115
  %v788 = vunpack.c.l.b16 %v116
  %v789 = vunpack.c.l.b16 %v117
  %v790 = vunpack.c.l.b16 %v118
  %v791 = vunpack.c.l.b16 %v119
  %v792 = vunpack.c.l.b16 %v120
  %v793 = vunpack.c.l.b16 %v121
  %v794 = vunpack.c.l.b16 %v122
  %v795 = vunpack.c.l.b16 %v123
  %v796 = vunpack.c.l.b16 %v124
  %v797 = vunpack.c.l.b16 %v125
  %v798 = vunpack.c.l.b16 %v126
  %v799 = vunpack.c.l.b16 %v127
  %v800 = vunpack.c.l.b16 %v128
  %v801 = vunpack.c.l.b16 %v129
  %v802 = vunpack.c.l.b16 %v130
  %v803 = vunpack.c.l.b16 %v131
  %v804 = vunpack.c.l.b16 %v132
  %v805 = vunpack.c.l.b16 %v133
  %v806 = vunpack.c.l.b16 %v134
  %v807 = vunpack.c.l.b16 %v135
  %v808 = vunpack.c.l.b16 %v136
  %v809 = vunpack.c.l.b16 %v137
  %v810 = vunpack.c.l.b16 %v138
  %v811 = vunpack.c.l.b16 %v139
  %v812 = vunpack.c.l.b16 %v140
  %v813 = vunpack.c.l.b16 %v141
  %v814 = vunpack.c.l.b16 %v142
  %v815 = vunpack.c.l.b16 %v143
  %v816 = vunpack.c.l.b16 %v144
  %v817 = vunpack.c.l.b16 %v145
  %v818 = vunpack.c.l.b16 %v146
  %v819 = vunpack.c.l.b16 %v147
  %v820 = vunpack.c.l.b16 %v148
  %v821 = vunpack.c.l.b16 %v149
  %v822 = vunpack.c.l.b16 %v150
  %v823 = vunpack.c.l.b16 %v151
  %v824 = vunpack.c.l.b16 %v152
  %v825 = vunpack.c.l.b16 %v153
  %v826 = vunpack.c.l.b16 %v154
  %v827 = vunpack.c.l.b16 %v155
  %v828 = vunpack.c.l.b16 %v156
  %v829 = vunpack.c.l.b16 %v157
  %v830 = vunpack.c.l.b16 %v158
  %v831 = vunpack.c.l.b16 %v159
  %v832 = vunpack.c.l.b16 %v160
  %v833 = vunpack.c.l.b16 %v161
  %v834 = vunpack.c.l.b16 %v162
  %v835 = vunpack.c.l.b16 %v163
  %v836 = vunpack.c.l.b16 %v164
  %v837 = vunpack.c.l.b16 %v165
  %v838 = vunpack.c.l.b16 %v166
  %v839 = vunpack.c.l.b16 %v167
  %v840 = vunpack.c.l.b16 %v168
  %v841 = vunpack.c.l.b16 %v169
  %v842 = vunpack.c.l.b16 %v170
  %v843 = vunpack.c.l.b16 %v171
  %v844 = vunpack.c.l.b16 %v172
  %v845 = vunpack.c.l.b16 %v173
  %v846 = vunpack.c.l.b16 %v174
  %v847 = vunpack.c.l.b16 %v175
  %v848 = vunpack.c.l.b16 %v176
  %v849 = vunpack.c.l.b16 %v177
  %v850 = vunpack.c.l.b16 %v178
  %v851 = vunpack.c.l.b16 %v179
  %v852 = vunpack.c.l.b16 %v180
  %v853 = vunpack.c.l.b16 %v181
  %v854 = vunpack.c.l.b16 %v182
  %v855 = vunpack.c.l.b16 %v183
  %v856 = vunpack.c.l.b16 %v184
  %v857 = vunpack.c.l.b16 %v185
  %v858 = vunpack.c.l.b16 %v186
  %v859 = vunpack.c.l.b16 %v187
  %v860 = vunpack.c.l.b16 %v188
  %v861 = vunpack.c.l.b16 %v189
  %v862 = vunpack.c.l.b16 %v190
  %v863 = vunpack.c.l.b16 %v191
  %v864 = vunpack.c.l.b16 %v192
  %v865 = vunpack.c.l.b16 %v193
  %v866 = vunpack.c.l.b16 %v194
  %v867 = vunpack.c.l.b16 %v195
  %v868 = vunpack.c.l.b16 %v196
  %v869 = vunpack.c.l.b16 %v197
  %v870 = vunpack.c.l.b16 %v198
  %v871 = vunpack.c.l.b16 %v199
  %v872 = vunpack.c.l.b16 %v200
  %v873 = vunpack.c.l.b16 %v201
  %v874 = vunpack.c.l.b16 %v202
  %v875 = vunpack.c.l.b16 %v203
  %v876 = vunpack.c.l.b16 %v204
  %v877 = vunpack.c.l.b16 %v205
  %v878 = vunpack.c.l.b16 %v206
  %v879 = vunpack.c.l.b16 %v207
  %v880 = vunpack.c.l.b16 %v208
  %v881 = vunpack.c.l.b16 %v209
  %v882 = vunpack.c.l.b16 %v210
  %v883 = vunpack.c.l.b16 %v211
  %v884 = vunpack.c.l.b16 %v212
  %v885 = vunpack.c.l.b16 %v213
  %v886 = vunpack.c.l.b16 %v214
  %v887 = vunpack.c.l.b16 %v215
  %v888 = vunpack.c.l.b16 %v216
  %v889 = vunpack.c.l.b16 %v217
  %v890 = vunpack.c.l.b16 %v218
  %v891 = vunpack.c.l.b16 %v219
  %v892 = vunpack.c.l.b16 %v220
  %v893 = vunpack.c.l.b16 %v221
  %v894 = vunpack.c.l.b16 %v222
  %v895 = vunpack.c.l.b16 %v223
  %v896 = vunpack.c.l.b16 %v224
  %v897 = vunpack.c.l.b16 %v225
  %v898 = vunpack.c.l.b16 %v226
  %v899 = vunpack.c.l.b16 %v227
  %v900 = vunpack.c.l.b16 %v228
  %v901 = vunpack.c.l.b16 %v229
  %v902 = vunpack.c.l.b16 %v230
  %v903 = vunpack.c.l.b16 %v231
  %v904 = vunpack.c.l.b16 %v232
  %v905 = vunpack.c.l.b16 %v233
  %v906 = vunpack.c.l.b16 %v234
  %v907 = vunpack.c.l.b16 %v235
  %v908 = vunpack.c.l.b16 %v236
  %v909 = vunpack.c.l.b16 %v237
  %v910 = vunpack.c.l.b16 %v238
  %v911 = vunpack.c.l.b16 %v239
  %v912 = vunpack.c.l.b16 %v240
  %v913 = vunpack.c.l.b16 %v241
  %v914 = vunpack.c.l.b16 %v242
  %v915 = vunpack.c.l.b16 %v243
  %v916 = vunpack.c.l.b16 %v244
  %v917 = vunpack.c.l.b16 %v245
  %v918 = vunpack.c.l.b16 %v246
  %v919 = vunpack.c.l.b16 %v247
  %v920 = vunpack.c.l.b16 %v248
  %v921 = vunpack.c.l.b16 %v249
  %v922 = vunpack.c.l.b16 %v250
  %v923 = vunpack.c.l.b16 %v251
  %v924 = vunpack.c.l.b16 %v252
  %v925 = vunpack.c.l.b16 %v253
  %v926 = vunpack.c.l.b16 %v254
  %v927 = vunpack.c.l.b16 %v255
  %v928 = vunpack.c.l.b16 %v256
  %v929 = vunpack.c.l.b16 %v257
  %v930 = vunpack.c.l.b16 %v258
  %v931 = vunpack.c.l.b16 %v259
  %v932 = vunpack.c.l.b16 %v260
  %v933 = vunpack.c.l.b16 %v261
  %v934 = vunpack.c.l.b16 %v262
  %v935 = vunpack.c.l.b16 %v263
  %v936 = vunpack.c.l.b16 %v264
  %v937 = vunpack.c.l.b16 %v265
  %v938 = vunpack.c.l.b16 %v266
  %v939 = vunpack.c.l.b16 %v267
  %v940 = vunpack.c.l.b16 %v268
  %v941 = vunpack.c.l.b16 %v269
  %v942 = vunpack.c.l.b16 %v270
  %v943 = vunpack.c.l.b16 %v271
  %v944 = vunpack.c.l.b16 %v272
  %v945 = vunpack.c.l.b16 %v273
  %v946 = vunpack.c.l.b16 %v274
  %v947 = vunpack.c.l.b16 %v275
  %v948 = vunpack.c.l.b16 %v276
  %v949 = vunpack.c.l.b16 %v277
  %v950 = vunpack.c.l.b16 %v278
  %v951 = vunpack.c.l.b16 %v279
  %v952 = vunpack.c.l.b16 %v280
  %v953 = vunpack.c.l.b16 %v281
  %v954 = vunpack.c.l.b16 %v282
  %v955 = vunpack.c.l.b16 %v283
  %v956 = vunpack.c.l.b16 %v284
  %v957 = vunpack.c.l.b16 %v285
  %v958 = vunpack.c.l.b16 %v286
  %v959 = vunpack.c.l.b16 %v287
  %v960 = vunpack.c.l.b16 %v288
  %v961 = vunpack.c.l.b16 %v289
  %v962 = vunpack.c.l.b16 %v290
  %v963 = vunpack.c.l.b16 %v291
  %v964 = vunpack.c.l.b16 %v292
  %v965 = vunpack.c.l.b16 %v293
  %v966 = vunpack.c.l.b16 %v294
  %v967 = vunpack.c.l.b16 %v295
  %v968 = vunpack.c.l.b16 %v296
  %v969 = vunpack.c.l.b16 %v297
  %v970 = vunpack.c.l.b16 %v298
  %v971 = vunpack.c.l.b16 %v299
  %v972 = vunpack.c.l.b16 %v300
  %v973 = vunpack.c.l.b16 %v301
  %v974 = vunpack.c.l.b16 %v302
  %v975 = vunpack.c.l.b16 %v303
  %v976 = vunpack.c.l.b16 %v304
  %v977 = vpack.c.b16 %v722, %v721
  %v978 = vpack.c.b16 %v724, %v723
  %v979 = vpack.c.b16 %v726, %v725
  %v980 = vpack.c.b16 %v728, %v727
  %v981 = vpack.c.b16 %v730, %v729
  %v982 = vpack.c.b16 %v732, %v731
  %v983 = vpack.c.b16 %v734, %v733
  %v984 = vpack.c.b16 %v736, %v735
  %v985 = vpack.c.b16 %v738, %v737
  %v986 = vpack.c.b16 %v740, %v739
  %v987 = vpack.c.b16 %v742, %v741
  %v988 = vpack.c.b16 %v744, %v743
  %v989 = vpack.c.b16 %v746, %v745
  %v990 = vpack.c.b16 %v748, %v747
  %v991 = vpack.c.b16 %v750, %v749
  %v992 = vpack.c.b16 %v752, %v751
  %v993 = vpack.c.b16 %v754, %v753
  %v994 = vpack.c.b16 %v756, %v755
  %v995 = vpack.c.b16 %v758, %v757
  %v996 = vpack.c.b16 %v760, %v759
  %v997 = vpack.c.b16 %v762, %v761
  %v998 = vpack.c.b16 %v764, %v763
  %v999 = vpack.c.b16 %v766, %v765
  %v1000 = vpack.c.b16 %v768, %v767
  %v1001 = vpack.c.b16 %v770, %v769
  %v1002 = vpack.c.b16 %v772, %v771
  %v1003 = vpack.c.b16 %v774, %v773
  %v1004 = vpack.c.b16 %v776, %v775
  %v1005 = vpack.c.b16 %v778, %v777
  %v1006 = vpack.c.b16 %v780, %v779
  %v1007 = vpack.c.b16 %v782, %v781
  %v1008 = vpack.c.b16 %v784, %v783
  %v1009 = vpack.c.b16 %v786, %v785
  %v1010 = vpack.c.b16 %v788, %v787
  %v1011 = vpack.c.b16 %v790, %v789
  %v1012 = vpack.c.b16 %v792, %v791
  %v1013 = vpack.c.b16 %v794, %v793
  %v1014 = vpack.c.b16 %v796, %v795
  %v1015 = vpack.c.b16 %v798, %v797
  %v1016 = vpack.c.b16 %v800, %v799
  %v1017 = vpack.c.b16 %v802, %v801
  %v1018 = vpack.c.b16 %v804, %v803
  %v1019 = vpack.c.b16 %v806, %v805
  %v1020 = vpack.c.b16 %v808, %v807
  %v1021 = vpack.c.b16 %v810, %v809
  %v1022 = vpack.c.b16 %v812, %v811
  %v1023 = vpack.c.b16 %v814, %v813
  %v1024 = vpack.c.b16 %v816, %v815
  %v1025 = vpack.c.b16 %v818, %v817
  %v1026 = vpack.c.b16 %v820, %v819
  %v1027 = vpack.c.b16 %v822, %v821
  %v1028 = vpack.c.b16 %v824, %v823
  %v1029 = vpack.c.b16 %v826, %v825
  %v1030 = vpack.c.b16 %v828, %v827
  %v1031 = vpack.c.b16 %v830, %v829
  %v1032 = vpack.c.b16 %v832, %v831
  %v1033 = vpack.c.b16 %v834, %v833
  %v1034 = vpack.c.b16 %v836, %v835
  %v1035 = vpack.c.b16 %v838, %v837
  %v1036 = vpack.c.b16 %v840, %v839
  %v1037 = vpack.c.b16 %v842, %v841
  %v1038 = vpack.c.b16 %v844, %v843
  %v1039 = vpack.c.b16 %v846, %v845
  %v1040 = vpack.c.b16 %v848, %v847
  %v1041 = vpack.c.b16 %v850, %v849
  %v1042 = vpack.c.b16 %v852, %v851
  %v1043 = vpack.c.b16 %v854, %v853
  %v1044 = vpack.c.b16 %v856, %v855
  %v1045 = vpack.c.b16 %v858, %v857
  %v1046 = vpack.c.b16 %v860, %v859
  %v1047 = vpack.c.b16 %v862, %v861
  %v1048 = vpack.c.b16 %v864, %v863
  %v1049 = vpack.c.b16 %v866, %v865
  %v1050 = vpack.c.b16 %v868, %v867
  %v1051 = vpack.c.b16 %v870, %v869
  %v1052 = vpack.c.b16 %v872, %v871
  %v1053 = vpack.c.b16 %v874, %v873
  %v1054 = vpack.c.b16 %v876, %v875
  %v1055 = vpack.c.b16 %v878, %v877
  %v1056 = vpack.c.b16 %v880, %v879
  %v1057 = vpack.c.b16 %v882, %v881
  %v1058 = vpack.c.b16 %v884, %v883
  %v1059 = vpack.c.b16 %v886, %v885
  %v1060 = vpack.c.b16 %v888, %v887
  %v1061 = vpack.c.b16 %v890, %v889
  %v1062 = vpack.c.b16 %v892, %v891
  %v1063 = vpack.c.b16 %v894, %v893
  %v1064 = vpack.c.b16 %v896, %v895
  %v1065 = vpack.c.b16 %v898, %v897
  %v1066 = vpack.c.b16 %v900, %v899
  %v1067 = vpack.c.b16 %v902, %v901
  %v1068 = vpack.c.b16 %v904, %v903
  %v1069 = vpack.c.b16 %v906, %v905
  %v1070 = vpack.c.b16 %v908, %v907
  %v1071 = vpack.c.b16 %v910, %v909
  %v1072 = vpack.c.b16 %v912, %v911
  %v1073 = vpack.c.b16 %v914, %v913
  %v1074 = vpack.c.b16 %v916, %v915
  %v1075 = vpack.c.b16 %v918, %v917
  %v1076 = vpack.c.b16 %v920, %v919
  %v1077 = vpack.c.b16 %v922, %v921
  %v1078 = vpack.c.b16 %v924, %v923
  %v1079 = vpack.c.b16 %v926, %v925
  %v1080 = vpack.c.b16 %v928, %v927
  %v1081 = vpack.c.b16 %v930, %v929
  %v1082 = vpack.c.b16 %v932, %v931
  %v1083 = vpack.c.b16 %v934, %v933
  %v1084 = vpack.c.b16 %v936, %v935
  %v1085 = vpack.c.b16 %v938, %v937
  %v1086 = vpack.c.b16 %v940, %v939
  %v1087 = vpack.c.b16 %v942, %v941
  %v1088 = vpack.c.b16 %v944, %v943
  %v1089 = vpack.c.b16 %v946, %v945
  %v1090 = vpack.c.b16 %v948, %v947
  %v1091 = vpack.c.b16 %v950, %v949
  %v1092 = vpack.c.b16 %v952, %v951
  %v1093 = vpack.c.b16 %v954, %v953
  %v1094 = vpack.c.b16 %v956, %v955
  %v1095 = vpack.c.b16 %v958, %v957
  %v1096 = vpack.c.b16 %v960, %v959
  %v1097 = vpack.c.b16 %v962, %v961
  %v1098 = vpack.c.b16 %v964, %v963
  %v1099 = vpack.c.b16 %v966, %v965
  %v1100 = vpack.c.b16 %v968, %v967
  %v1101 = vpack.c.b16 %v970, %v969
  %v1102 = vpack.c.b16 %v972, %v971
  %v1103 = vpack.c.b16 %v974, %v973
  %v1104 = vpack.c.b16 %v976, %v975
  %1233 = vmatpush.bf16.msra.mxu0 %v984
  %1234 = vmatpush.bf16.msra.mxu0 %v983
  %1235 = vmatpush.bf16.msra.mxu0 %v982
  %1236 = vmatpush.bf16.msra.mxu0 %v981
  %1237 = vmatpush.bf16.msra.mxu0 %v980
  %1238 = vmatpush.bf16.msra.mxu0 %v979
  %1239 = vmatpush.bf16.msra.mxu0 %v978
  %1240 = vmatpush.bf16.msra.mxu0 %v977
  %1241 = vmatmul.bf16.gmra.mxu0 %v401
  %v1242 = vpop.f32.mrf.mxu0
  %v1243 = vadd.f32 0.0, %v1242
  %v1244 = vpop.f32.mrf.mxu0
  %v1245 = vadd.f32 0.0, %v1244
  %1246 = vmatmul.bf16.gmra.mxu0 %v417
  %v1247 = vpop.f32.mrf.mxu0
  %v1248 = vadd.f32 0.0, %v1247
  %v1249 = vpop.f32.mrf.mxu0
  %v1250 = vadd.f32 0.0, %v1249
  %1251 = vdwg.mxu0
  %1252 = vmatpush.bf16.msra.mxu0 %v992
  %1253 = vmatpush.bf16.msra.mxu0 %v991
  %1254 = vmatpush.bf16.msra.mxu0 %v990
  %1255 = vmatpush.bf16.msra.mxu0 %v989
  %1256 = vmatpush.bf16.msra.mxu0 %v988
  %1257 = vmatpush.bf16.msra.mxu0 %v987
  %1258 = vmatpush.bf16.msra.mxu0 %v986
  %1259 = vmatpush.bf16.msra.mxu0 %v985
  %1260 = vmatmul.bf16.gmra.mxu0 %v402
  %v1261 = vpop.f32.mrf.mxu0
  %v1262 = vadd.f32 %v1243, %v1261
  %v1263 = vpop.f32.mrf.mxu0
  %v1264 = vadd.f32 %v1245, %v1263
  %1265 = vmatmul.bf16.gmra.mxu0 %v418
  %v1266 = vpop.f32.mrf.mxu0
  %v1267 = vadd.f32 %v1248, %v1266
  %v1268 = vpop.f32.mrf.mxu0
  %v1269 = vadd.f32 %v1250, %v1268
  %1270 = vdwg.mxu0
  %1271 = vmatpush.bf16.msra.mxu0 %v1000
  %1272 = vmatpush.bf16.msra.mxu0 %v999
  %1273 = vmatpush.bf16.msra.mxu0 %v998
  %1274 = vmatpush.bf16.msra.mxu0 %v997
  %1275 = vmatpush.bf16.msra.mxu0 %v996
  %1276 = vmatpush.bf16.msra.mxu0 %v995
  %1277 = vmatpush.bf16.msra.mxu0 %v994
  %1278 = vmatpush.bf16.msra.mxu0 %v993
  %1279 = vmatmul.bf16.gmra.mxu0 %v403
  %v1280 = vpop.f32.mrf.mxu0
  %v1281 = vadd.f32 %v1262, %v1280
  %v1282 = vpop.f32.mrf.mxu0
  %v1283 = vadd.f32 %v1264, %v1282
  %1284 = vmatmul.bf16.gmra.mxu0 %v419
  %v1285 = vpop.f32.mrf.mxu0
  %v1286 = vadd.f32 %v1267, %v1285
  %v1287 = vpop.f32.mrf.mxu0
  %v1288 = vadd.f32 %v1269, %v1287
  %1289 = vdwg.mxu0
  %1290 = vmatpush.bf16.msra.mxu0 %v1008
  %1291 = vmatpush.bf16.msra.mxu0 %v1007
  %1292 = vmatpush.bf16.msra.mxu0 %v1006
  %1293 = vmatpush.bf16.msra.mxu0 %v1005
  %1294 = vmatpush.bf16.msra.mxu0 %v1004
  %1295 = vmatpush.bf16.msra.mxu0 %v1003
  %1296 = vmatpush.bf16.msra.mxu0 %v1002
  %1297 = vmatpush.bf16.msra.mxu0 %v1001
  %1298 = vmatmul.bf16.gmra.mxu0 %v404
  %v1299 = vpop.f32.mrf.mxu0
  %v1300 = vadd.f32 %v1281, %v1299
  %v1301 = vpop.f32.mrf.mxu0
  %v1302 = vadd.f32 %v1283, %v1301
  %1303 = vmatmul.bf16.gmra.mxu0 %v420
  %v1304 = vpop.f32.mrf.mxu0
  %v1305 = vadd.f32 %v1286, %v1304
  %v1306 = vpop.f32.mrf.mxu0
  %v1307 = vadd.f32 %v1288, %v1306
  %1308 = vdwg.mxu0
  %1309 = vmatpush.bf16.msra.mxu0 %v1016
  %1310 = vmatpush.bf16.msra.mxu0 %v1015
  %1311 = vmatpush.bf16.msra.mxu0 %v1014
  %1312 = vmatpush.bf16.msra.mxu0 %v1013
  %1313 = vmatpush.bf16.msra.mxu0 %v1012
  %1314 = vmatpush.bf16.msra.mxu0 %v1011
  %1315 = vmatpush.bf16.msra.mxu0 %v1010
  %1316 = vmatpush.bf16.msra.mxu0 %v1009
  %1317 = vmatmul.bf16.gmra.mxu0 %v405
  %v1318 = vpop.f32.mrf.mxu0
  %v1319 = vadd.f32 %v1300, %v1318
  %v1320 = vpop.f32.mrf.mxu0
  %v1321 = vadd.f32 %v1302, %v1320
  %1322 = vmatmul.bf16.gmra.mxu0 %v421
  %v1323 = vpop.f32.mrf.mxu0
  %v1324 = vadd.f32 %v1305, %v1323
  %v1325 = vpop.f32.mrf.mxu0
  %v1326 = vadd.f32 %v1307, %v1325
  %1327 = vdwg.mxu0
  %1328 = vmatpush.bf16.msra.mxu0 %v1024
  %1329 = vmatpush.bf16.msra.mxu0 %v1023
  %1330 = vmatpush.bf16.msra.mxu0 %v1022
  %1331 = vmatpush.bf16.msra.mxu0 %v1021
  %1332 = vmatpush.bf16.msra.mxu0 %v1020
  %1333 = vmatpush.bf16.msra.mxu0 %v1019
  %1334 = vmatpush.bf16.msra.mxu0 %v1018
  %1335 = vmatpush.bf16.msra.mxu0 %v1017
  %1336 = vmatmul.bf16.gmra.mxu0 %v406
  %v1337 = vpop.f32.mrf.mxu0
  %v1338 = vadd.f32 %v1319, %v1337
  %v1339 = vpop.f32.mrf.mxu0
  %v1340 = vadd.f32 %v1321, %v1339
  %1341 = vmatmul.bf16.gmra.mxu0 %v422
  %v1342 = vpop.f32.mrf.mxu0
  %v1343 = vadd.f32 %v1324, %v1342
  %v1344 = vpop.f32.mrf.mxu0
  %v1345 = vadd.f32 %v1326, %v1344
  %1346 = vdwg.mxu0
  %1347 = vmatpush.bf16.msra.mxu0 %v1032
  %1348 = vmatpush.bf16.msra.mxu0 %v1031
  %1349 = vmatpush.bf16.msra.mxu0 %v1030
  %1350 = vmatpush.bf16.msra.mxu0 %v1029
  %1351 = vmatpush.bf16.msra.mxu0 %v1028
  %1352 = vmatpush.bf16.msra.mxu0 %v1027
  %1353 = vmatpush.bf16.msra.mxu0 %v1026
  %1354 = vmatpush.bf16.msra.mxu0 %v1025
  %1355 = vmatmul.bf16.gmra.mxu0 %v407
  %v1356 = vpop.f32.mrf.mxu0
  %v1357 = vadd.f32 %v1338, %v1356
  %v1358 = vpop.f32.mrf.mxu0
  %v1359 = vadd.f32 %v1340, %v1358
  %1360 = vmatmul.bf16.gmra.mxu0 %v423
  %v1361 = vpop.f32.mrf.mxu0
  %v1362 = vadd.f32 %v1343, %v1361
  %v1363 = vpop.f32.mrf.mxu0
  %v1364 = vadd.f32 %v1345, %v1363
  %1365 = vdwg.mxu0
  %1366 = vmatpush.bf16.msra.mxu0 %v1040
  %1367 = vmatpush.bf16.msra.mxu0 %v1039
  %1368 = vmatpush.bf16.msra.mxu0 %v1038
  %1369 = vmatpush.bf16.msra.mxu0 %v1037
  %1370 = vmatpush.bf16.msra.mxu0 %v1036
  %1371 = vmatpush.bf16.msra.mxu0 %v1035
  %1372 = vmatpush.bf16.msra.mxu0 %v1034
  %1373 = vmatpush.bf16.msra.mxu0 %v1033
  %1374 = vmatmul.bf16.gmra.mxu0 %v408
  %v1375 = vpop.f32.mrf.mxu0
  %v1376 = vadd.f32 %v1357, %v1375
  %v1377 = vpop.f32.mrf.mxu0
  %v1378 = vadd.f32 %v1359, %v1377
  %1379 = vmatmul.bf16.gmra.mxu0 %v424
  %v1380 = vpop.f32.mrf.mxu0
  %v1381 = vadd.f32 %v1362, %v1380
  %v1382 = vpop.f32.mrf.mxu0
  %v1383 = vadd.f32 %v1364, %v1382
  %1384 = vdwg.mxu0
  %1385 = vmatpush.bf16.msra.mxu0 %v1048
  %1386 = vmatpush.bf16.msra.mxu0 %v1047
  %1387 = vmatpush.bf16.msra.mxu0 %v1046
  %1388 = vmatpush.bf16.msra.mxu0 %v1045
  %1389 = vmatpush.bf16.msra.mxu0 %v1044
  %1390 = vmatpush.bf16.msra.mxu0 %v1043
  %1391 = vmatpush.bf16.msra.mxu0 %v1042
  %1392 = vmatpush.bf16.msra.mxu0 %v1041
  %1393 = vmatmul.bf16.gmra.mxu0 %v409
  %v1394 = vpop.f32.mrf.mxu0
  %v1395 = vadd.f32 %v1376, %v1394
  %v1396 = vpop.f32.mrf.mxu0
  %v1397 = vadd.f32 %v1378, %v1396
  %1398 = vmatmul.bf16.gmra.mxu0 %v425
  %v1399 = vpop.f32.mrf.mxu0
  %v1400 = vadd.f32 %v1381, %v1399
  %v1401 = vpop.f32.mrf.mxu0
  %v1402 = vadd.f32 %v1383, %v1401
  %1403 = vdwg.mxu0
  %1404 = vmatpush.bf16.msra.mxu0 %v1056
  %1405 = vmatpush.bf16.msra.mxu0 %v1055
  %1406 = vmatpush.bf16.msra.mxu0 %v1054
  %1407 = vmatpush.bf16.msra.mxu0 %v1053
  %1408 = vmatpush.bf16.msra.mxu0 %v1052
  %1409 = vmatpush.bf16.msra.mxu0 %v1051
  %1410 = vmatpush.bf16.msra.mxu0 %v1050
  %1411 = vmatpush.bf16.msra.mxu0 %v1049
  %1412 = vmatmul.bf16.gmra.mxu0 %v410
  %v1413 = vpop.f32.mrf.mxu0
  %v1414 = vadd.f32 %v1395, %v1413
  %v1415 = vpop.f32.mrf.mxu0
  %v1416 = vadd.f32 %v1397, %v1415
  %1417 = vmatmul.bf16.gmra.mxu0 %v426
  %v1418 = vpop.f32.mrf.mxu0
  %v1419 = vadd.f32 %v1400, %v1418
  %v1420 = vpop.f32.mrf.mxu0
  %v1421 = vadd.f32 %v1402, %v1420
  %1422 = vdwg.mxu0
  %1423 = vmatpush.bf16.msra.mxu0 %v1064
  %1424 = vmatpush.bf16.msra.mxu0 %v1063
  %1425 = vmatpush.bf16.msra.mxu0 %v1062
  %1426 = vmatpush.bf16.msra.mxu0 %v1061
  %1427 = vmatpush.bf16.msra.mxu0 %v1060
  %1428 = vmatpush.bf16.msra.mxu0 %v1059
  %1429 = vmatpush.bf16.msra.mxu0 %v1058
  %1430 = vmatpush.bf16.msra.mxu0 %v1057
  %1431 = vmatmul.bf16.gmra.mxu0 %v411
  %v1432 = vpop.f32.mrf.mxu0
  %v1433 = vadd.f32 %v1414, %v1432
  %v1434 = vpop.f32.mrf.mxu0
  %v1435 = vadd.f32 %v1416, %v1434
  %1436 = vmatmul.bf16.gmra.mxu0 %v427
  %v1437 = vpop.f32.mrf.mxu0
  %v1438 = vadd.f32 %v1419, %v1437
  %v1439 = vpop.f32.mrf.mxu0
  %v1440 = vadd.f32 %v1421, %v1439
  %1441 = vdwg.mxu0
  %1442 = vmatpush.bf16.msra.mxu0 %v1072
  %1443 = vmatpush.bf16.msra.mxu0 %v1071
  %1444 = vmatpush.bf16.msra.mxu0 %v1070
  %1445 = vmatpush.bf16.msra.mxu0 %v1069
  %1446 = vmatpush.bf16.msra.mxu0 %v1068
  %1447 = vmatpush.bf16.msra.mxu0 %v1067
  %1448 = vmatpush.bf16.msra.mxu0 %v1066
  %1449 = vmatpush.bf16.msra.mxu0 %v1065
  %1450 = vmatmul.bf16.gmra.mxu0 %v412
  %v1451 = vpop.f32.mrf.mxu0
  %v1452 = vadd.f32 %v1433, %v1451
  %v1453 = vpop.f32.mrf.mxu0
  %v1454 = vadd.f32 %v1435, %v1453
  %1455 = vmatmul.bf16.gmra.mxu0 %v428
  %v1456 = vpop.f32.mrf.mxu0
  %v1457 = vadd.f32 %v1438, %v1456
  %v1458 = vpop.f32.mrf.mxu0
  %v1459 = vadd.f32 %v1440, %v1458
  %1460 = vdwg.mxu0
  %1461 = vmatpush.bf16.msra.mxu0 %v1080
  %1462 = vmatpush.bf16.msra.mxu0 %v1079
  %1463 = vmatpush.bf16.msra.mxu0 %v1078
  %1464 = vmatpush.bf16.msra.mxu0 %v1077
  %1465 = vmatpush.bf16.msra.mxu0 %v1076
  %1466 = vmatpush.bf16.msra.mxu0 %v1075
  %1467 = vmatpush.bf16.msra.mxu0 %v1074
  %1468 = vmatpush.bf16.msra.mxu0 %v1073
  %1469 = vmatmul.bf16.gmra.mxu0 %v413
  %v1470 = vpop.f32.mrf.mxu0
  %v1471 = vadd.f32 %v1452, %v1470
  %v1472 = vpop.f32.mrf.mxu0
  %v1473 = vadd.f32 %v1454, %v1472
  %1474 = vmatmul.bf16.gmra.mxu0 %v429
  %v1475 = vpop.f32.mrf.mxu0
  %v1476 = vadd.f32 %v1457, %v1475
  %v1477 = vpop.f32.mrf.mxu0
  %v1478 = vadd.f32 %v1459, %v1477
  %1479 = vdwg.mxu0
  %1480 = vmatpush.bf16.msra.mxu0 %v1088
  %1481 = vmatpush.bf16.msra.mxu0 %v1087
  %1482 = vmatpush.bf16.msra.mxu0 %v1086
  %1483 = vmatpush.bf16.msra.mxu0 %v1085
  %1484 = vmatpush.bf16.msra.mxu0 %v1084
  %1485 = vmatpush.bf16.msra.mxu0 %v1083
  %1486 = vmatpush.bf16.msra.mxu0 %v1082
  %1487 = vmatpush.bf16.msra.mxu0 %v1081
  %1488 = vmatmul.bf16.gmra.mxu0 %v414
  %v1489 = vpop.f32.mrf.mxu0
  %v1490 = vadd.f32 %v1471, %v1489
  %v1491 = vpop.f32.mrf.mxu0
  %v1492 = vadd.f32 %v1473, %v1491
  %1493 = vmatmul.bf16.gmra.mxu0 %v430
  %v1494 = vpop.f32.mrf.mxu0
  %v1495 = vadd.f32 %v1476, %v1494
  %v1496 = vpop.f32.mrf.mxu0
  %v1497 = vadd.f32 %v1478, %v1496
  %1498 = vdwg.mxu0
  %1499 = vmatpush.bf16.msra.mxu0 %v1096
  %1500 = vmatpush.bf16.msra.mxu0 %v1095
  %1501 = vmatpush.bf16.msra.mxu0 %v1094
  %1502 = vmatpush.bf16.msra.mxu0 %v1093
  %1503 = vmatpush.bf16.msra.mxu0 %v1092
  %1504 = vmatpush.bf16.msra.mxu0 %v1091
  %1505 = vmatpush.bf16.msra.mxu0 %v1090
  %1506 = vmatpush.bf16.msra.mxu0 %v1089
  %1507 = vmatmul.bf16.gmra.mxu0 %v415
  %v1508 = vpop.f32.mrf.mxu0
  %v1509 = vadd.f32 %v1490, %v1508
  %v1510 = vpop.f32.mrf.mxu0
  %v1511 = vadd.f32 %v1492, %v1510
  %1512 = vmatmul.bf16.gmra.mxu0 %v431
  %v1513 = vpop.f32.mrf.mxu0
  %v1514 = vadd.f32 %v1495, %v1513
  %v1515 = vpop.f32.mrf.mxu0
  %v1516 = vadd.f32 %v1497, %v1515
  %1517 = vdwg.mxu0
  %1518 = vmatpush.bf16.msra.mxu0 %v1104
  %1519 = vmatpush.bf16.msra.mxu0 %v1103
  %1520 = vmatpush.bf16.msra.mxu0 %v1102
  %1521 = vmatpush.bf16.msra.mxu0 %v1101
  %1522 = vmatpush.bf16.msra.mxu0 %v1100
  %1523 = vmatpush.bf16.msra.mxu0 %v1099
  %1524 = vmatpush.bf16.msra.mxu0 %v1098
  %1525 = vmatpush.bf16.msra.mxu0 %v1097
  %1526 = vmatmul.bf16.gmra.mxu0 %v416
  %v1527 = vpop.f32.mrf.mxu0
  %v1528 = vadd.f32 %v1509, %v1527
  %v1529 = vpop.f32.mrf.mxu0
  %v1530 = vadd.f32 %v1511, %v1529
  %1531 = vmatmul.bf16.gmra.mxu0 %v432
  %v1532 = vpop.f32.mrf.mxu0
  %v1533 = vadd.f32 %v1514, %v1532
  %v1534 = vpop.f32.mrf.mxu0
  %v1535 = vadd.f32 %v1516, %v1534
  %1536 = vdwg.mxu0
  %v1537 = vadd.f32 %v1528, %v1530
  %v1538 = vadd.f32 %v1537, %v1533
  %v1539 = vadd.f32 %v1538, %v1535
  %v1540 = vrot.slane %v1539, 4
  %v1541 = vadd.f32 %v1539, %v1540
  %v1542 = vrot.slane %v1541, 2
  %v1543 = vadd.f32 %v1541, %v1542
  %v1544 = vrot.slane %v1543, 1
  %v1545 = vadd.f32 %v1543, %v1544
  %v1546 = vmul.f32 %v1545, 0.03125
  %v1547 = vsub.f32 %v1528, %v1546
  %v1548 = vsub.f32 %v1530, %v1546
  %v1549 = vsub.f32 %v1533, %v1546
  %v1550 = vsub.f32 %v1535, %v1546
  %v1551 = vmul.f32 %v1547, %v1547
  %v1552 = vmul.f32 %v1548, %v1548
  %v1553 = vmul.f32 %v1549, %v1549
  %v1554 = vmul.f32 %v1550, %v1550
  %v1555 = vadd.f32 %v1551, %v1552
  %v1556 = vadd.f32 %v1555, %v1553
  %v1557 = vadd.f32 %v1556, %v1554
  %v1558 = vrot.slane %v1557, 4
  %v1559 = vadd.f32 %v1557, %v1558
  %v1560 = vrot.slane %v1559, 2
  %v1561 = vadd.f32 %v1559, %v1560
  %v1562 = vrot.slane %v1561, 1
  %v1563 = vadd.f32 %v1561, %v1562
  %v1564 = vmul.f32 %v1563, 0.03125
  %v1565 = vadd.f32 %v1564, 1e-05
  %v1566 = vrsqrt.pop %v1565
  %v1567 = vmul.f32 %v1566, %v1565
  %v1568 = vmul.f32 %v1567, %v1566
  %v1569 = vmul.f32 0.5, %v1568
  %v1570 = vsub.f32 1.5, %v1569
  %v1571 = vmul.f32 %v1566, %v1570
  %vm1572 = vweird.f32 %v1565
  %vm1573 = vweird.f32 %v1566
  %vm1574 = vmor %vm1572, %vm1573
  %v1575 = vsel %vm1574, %v1566, %v1571
  %v1576 = vld [vmem:[%s2] sm:$0x1]
  %v1577 = vmul.f32 %v1575, %v1576
  %v1578 = vperm.slane %v1577, 0
  %v1579 = vmul.f32 %v1547, %v1578
  %v1580 = vmul.f32 %v1548, %v1578
  %v1581 = vmul.f32 %v1549, %v1578
  %v1582 = vmul.f32 %v1550, %v1578
  %v1583 = vld [vmem:[%s3] sm:$0x1]
  %v1585 = vperm.slane %v1583, 0
  %v1587 = vadd.f32 %v1579, %v1585
  %v1588 = vadd.f32 %v1580, %v1585
  %v1589 = vadd.f32 %v1581, %v1585
  %v1590 = vadd.f32 %v1582, %v1585
  %v1591 = vmul.f32 %v1587, 0.2
  %v1592 = vmul.f32 %v1588, 0.2
  %v1593 = vmul.f32 %v1589, 0.2
  %v1594 = vmul.f32 %v1590, 0.2
  %v1595 = vmax.f32 %v1587, %v1591
  %v1596 = vmax.f32 %v1588, %v1592
  %v1597 = vmax.f32 %v1589, %v1593
  %v1598 = vmax.f32 %v1590, %v1594
  %v1599 = vpack.c.bf16 %v1595, %v1595
  %v1600 = vpack.c.bf16 %v1596, %v1596
  %v1601 = vpack.c.bf16 %v1597, %v1597
  %v1602 = vpack.c.bf16 %v1598, %v1598
  %1603 = vst [vmem:[%s4] sm:$0xf] %v1599
  %1604 = vst [vmem:[%s4 + $0x4] sm:$0xf] %v1600
  %1605 = vst [vmem:[%s4 + $0x8] sm:$0xf] %v1601
  %1606 = vst [vmem:[%s4 + $0xc] sm:$0xf] %v1602
  // Predicated region
  $region18: #{_lambda_.7} parent=0 // pred_check
    _
  $region19: #{_lambda_.7} parent=0 // pred_check_branch
    %1608 = sbr.rel (0) target = $region21
  $region20: #{_lambda_.7} parent=0 // pred_region
    _
  $region21: #{_lambda_.7} parent=0 // pred_fallthru
    _
  // Predicated region
  $region22: #{_lambda_.7} parent=0 // pred_check
    _
  $region23: #{_lambda_.7} parent=0 // pred_check_branch
    %1610 = sbr.rel (0) target = $region25
  $region24: #{_lambda_.7} parent=0 // pred_region
    _
  $region25: #{_lambda_.7} parent=0 // pred_fallthru
    _

// kernel: _lambda_.8
$region0: #{_lambda_.8}
  #allocation0 [shape = 'u32[]', space=smem, size = 0x4, offset = 0x4, fixed_abs, tag = 'smem constant byte address 0x4 - core index']
  #allocation1 [shape = 'u32[72,128]{1,0:T(1,128)}', space=vmem, size = 0x9000, scoped, tag = 'internal scratch']
  %s0 = inlined_call_operand.vmem [shape: bf16[18,2048], index: 0, kind: input, shape index: {}]
  %s1 = inlined_call_operand.vmem [shape: bf16[2048,128], index: 1, kind: input, shape index: {}]
  %s2 = inlined_call_operand.vmem [shape: f32[1,128], index: 2, kind: input, shape index: {}]
  %s3 = inlined_call_operand.vmem [shape: f32[1,128], index: 3, kind: input, shape index: {}]
  %s4 = inlined_call_operand.vmem [shape: bf16[18,128], index: 4, kind: output, shape index: {}]
  %s5 = sld [smem:[#allocation0]]
  $region26: #{_lambda_.8} parent=0
    _
  %s7 = ssub.s32 1, %s5
  %s8 = scalar_select 0, %s7, %s5
  // Predicated region
  $region2: #{_lambda_.8} parent=0 // pred_check
    _
  $region3: #{_lambda_.8} parent=0 // pred_check_branch
    %10 = sbr.rel (0) target = $region5
  $region4: #{_lambda_.8} parent=0 // pred_region
    _
  $region5: #{_lambda_.8} parent=0 // pred_fallthru
    _
  // Predicated region
  $region6: #{_lambda_.8} parent=0 // pred_check
    _
  $region7: #{_lambda_.8} parent=0 // pred_check_branch
    %12 = sbr.rel (0) target = $region9
  $region8: #{_lambda_.8} parent=0 // pred_region
    _
  $region9: #{_lambda_.8} parent=0 // pred_fallthru
    _
  // Predicated region
  $region10: #{_lambda_.8} parent=0 // pred_check
    _
  $region11: #{_lambda_.8} parent=0 // pred_check_branch
    %14 = sbr.rel (0) target = $region13
  $region12: #{_lambda_.8} parent=0 // pred_region
    _
  $region13: #{_lambda_.8} parent=0 // pred_fallthru
    _
  // Predicated region
  $region14: #{_lambda_.8} parent=0 // pred_check
    _
  $region15: #{_lambda_.8} parent=0 // pred_check_branch
    %16 = sbr.rel (0) target = $region17
  $region16: #{_lambda_.8} parent=0 // pred_region
    _
  $region17: #{_lambda_.8} parent=0 // pred_fallthru
    _
  %v17 = vld [vmem:[%s0] sm:$0xff]
  %v18 = vld [vmem:[%s0 + $0x8] sm:$0xff]
  %v19 = vld [vmem:[%s0 + $0x10] sm:$0xff]
  %v20 = vld [vmem:[%s0 + $0x18] sm:$0xff]
  %v21 = vld [vmem:[%s0 + $0x20] sm:$0xff]
  %v22 = vld [vmem:[%s0 + $0x28] sm:$0xff]
  %v23 = vld [vmem:[%s0 + $0x30] sm:$0xff]
  %v24 = vld [vmem:[%s0 + $0x38] sm:$0xff]
  %v25 = vld [vmem:[%s0 + $0x40] sm:$0xff]
  %v26 = vld [vmem:[%s0 + $0x48] sm:$0xff]
  %v27 = vld [vmem:[%s0 + $0x50] sm:$0xff]
  %v28 = vld [vmem:[%s0 + $0x58] sm:$0xff]
  %v29 = vld [vmem:[%s0 + $0x60] sm:$0xff]
  %v30 = vld [vmem:[%s0 + $0x68] sm:$0xff]
  %v31 = vld [vmem:[%s0 + $0x70] sm:$0xff]
  %v32 = vld [vmem:[%s0 + $0x78] sm:$0xff]
  %v33 = vld [vmem:[%s0 + $0x80] sm:$0x11]
  %v34 = vld [vmem:[%s0 + $0x88] sm:$0x11]
  %v35 = vld [vmem:[%s0 + $0x90] sm:$0x11]
  %v36 = vld [vmem:[%s0 + $0x98] sm:$0x11]
  %v37 = vld [vmem:[%s0 + $0xa0] sm:$0x11]
  %v38 = vld [vmem:[%s0 + $0xa8] sm:$0x11]
  %v39 = vld [vmem:[%s0 + $0xb0] sm:$0x11]
  %v40 = vld [vmem:[%s0 + $0xb8] sm:$0x11]
  %v41 = vld [vmem:[%s1] sm:$0xf]
  %v42 = vld [vmem:[%s1 + $0x4] sm:$0xf]
  %v43 = vld [vmem:[%s1 + $0x8] sm:$0xf]
  %v44 = vld [vmem:[%s1 + $0xc] sm:$0xf]
  %v45 = vld [vmem:[%s1 + $0x10] sm:$0xf]
  %v46 = vld [vmem:[%s1 + $0x14] sm:$0xf]
  %v47 = vld [vmem:[%s1 + $0x18] sm:$0xf]
  %v48 = vld [vmem:[%s1 + $0x1c] sm:$0xf]
  %v49 = vld [vmem:[%s1 + $0x20] sm:$0xf]
  %v50 = vld [vmem:[%s1 + $0x24] sm:$0xf]
  %v51 = vld [vmem:[%s1 + $0x28] sm:$0xf]
  %v52 = vld [vmem:[%s1 + $0x2c] sm:$0xf]
  %v53 = vld [vmem:[%s1 + $0x30] sm:$0xf]
  %v54 = vld [vmem:[%s1 + $0x34] sm:$0xf]
  %v55 = vld [vmem:[%s1 + $0x38] sm:$0xf]
  %v56 = vld [vmem:[%s1 + $0x3c] sm:$0xf]
  %v57 = vld [vmem:[%s1 + $0x40] sm:$0xf]
  %v58 = vld [vmem:[%s1 + $0x44] sm:$0xf]
  %v59 = vld [vmem:[%s1 + $0x48] sm:$0xf]
  %v60 = vld [vmem:[%s1 + $0x4c] sm:$0xf]
  %v61 = vld [vmem:[%s1 + $0x50] sm:$0xf]
  %v62 = vld [vmem:[%s1 + $0x54] sm:$0xf]
  %v63 = vld [vmem:[%s1 + $0x58] sm:$0xf]
  %v64 = vld [vmem:[%s1 + $0x5c] sm:$0xf]
  %v65 = vld [vmem:[%s1 + $0x60] sm:$0xf]
  %v66 = vld [vmem:[%s1 + $0x64] sm:$0xf]
  %v67 = vld [vmem:[%s1 + $0x68] sm:$0xf]
  %v68 = vld [vmem:[%s1 + $0x6c] sm:$0xf]
  %v69 = vld [vmem:[%s1 + $0x70] sm:$0xf]
  %v70 = vld [vmem:[%s1 + $0x74] sm:$0xf]
  %v71 = vld [vmem:[%s1 + $0x78] sm:$0xf]
  %v72 = vld [vmem:[%s1 + $0x7c] sm:$0xf]
  %v73 = vld [vmem:[%s1 + $0x80] sm:$0xf]
  %v74 = vld [vmem:[%s1 + $0x84] sm:$0xf]
  %v75 = vld [vmem:[%s1 + $0x88] sm:$0xf]
  %v76 = vld [vmem:[%s1 + $0x8c] sm:$0xf]
  %v77 = vld [vmem:[%s1 + $0x90] sm:$0xf]
  %v78 = vld [vmem:[%s1 + $0x94] sm:$0xf]
  %v79 = vld [vmem:[%s1 + $0x98] sm:$0xf]
  %v80 = vld [vmem:[%s1 + $0x9c] sm:$0xf]
  %v81 = vld [vmem:[%s1 + $0xa0] sm:$0xf]
  %v82 = vld [vmem:[%s1 + $0xa4] sm:$0xf]
  %v83 = vld [vmem:[%s1 + $0xa8] sm:$0xf]
  %v84 = vld [vmem:[%s1 + $0xac] sm:$0xf]
  %v85 = vld [vmem:[%s1 + $0xb0] sm:$0xf]
  %v86 = vld [vmem:[%s1 + $0xb4] sm:$0xf]
  %v87 = vld [vmem:[%s1 + $0xb8] sm:$0xf]
  %v88 = vld [vmem:[%s1 + $0xbc] sm:$0xf]
  %v89 = vld [vmem:[%s1 + $0xc0] sm:$0xf]
  %v90 = vld [vmem:[%s1 + $0xc4] sm:$0xf]
  %v91 = vld [vmem:[%s1 + $0xc8] sm:$0xf]
  %v92 = vld [vmem:[%s1 + $0xcc] sm:$0xf]
  %v93 = vld [vmem:[%s1 + $0xd0] sm:$0xf]
  %v94 = vld [vmem:[%s1 + $0xd4] sm:$0xf]
  %v95 = vld [vmem:[%s1 + $0xd8] sm:$0xf]
  %v96 = vld [vmem:[%s1 + $0xdc] sm:$0xf]
  %v97 = vld [vmem:[%s1 + $0xe0] sm:$0xf]
  %v98 = vld [vmem:[%s1 + $0xe4] sm:$0xf]
  %v99 = vld [vmem:[%s1 + $0xe8] sm:$0xf]
  %v100 = vld [vmem:[%s1 + $0xec] sm:$0xf]
  %v101 = vld [vmem:[%s1 + $0xf0] sm:$0xf]
  %v102 = vld [vmem:[%s1 + $0xf4] sm:$0xf]
  %v103 = vld [vmem:[%s1 + $0xf8] sm:$0xf]
  %v104 = vld [vmem:[%s1 + $0xfc] sm:$0xf]
  %v105 = vld [vmem:[%s1 + $0x100] sm:$0xf]
  %v106 = vld [vmem:[%s1 + $0x104] sm:$0xf]
  %v107 = vld [vmem:[%s1 + $0x108] sm:$0xf]
  %v108 = vld [vmem:[%s1 + $0x10c] sm:$0xf]
  %v109 = vld [vmem:[%s1 + $0x110] sm:$0xf]
  %v110 = vld [vmem:[%s1 + $0x114] sm:$0xf]
  %v111 = vld [vmem:[%s1 + $0x118] sm:$0xf]
  %v112 = vld [vmem:[%s1 + $0x11c] sm:$0xf]
  %v113 = vld [vmem:[%s1 + $0x120] sm:$0xf]
  %v114 = vld [vmem:[%s1 + $0x124] sm:$0xf]
  %v115 = vld [vmem:[%s1 + $0x128] sm:$0xf]
  %v116 = vld [vmem:[%s1 + $0x12c] sm:$0xf]
  %v117 = vld [vmem:[%s1 + $0x130] sm:$0xf]
  %v118 = vld [vmem:[%s1 + $0x134] sm:$0xf]
  %v119 = vld [vmem:[%s1 + $0x138] sm:$0xf]
  %v120 = vld [vmem:[%s1 + $0x13c] sm:$0xf]
  %v121 = vld [vmem:[%s1 + $0x140] sm:$0xf]
  %v122 = vld [vmem:[%s1 + $0x144] sm:$0xf]
  %v123 = vld [vmem:[%s1 + $0x148] sm:$0xf]
  %v124 = vld [vmem:[%s1 + $0x14c] sm:$0xf]
  %v125 = vld [vmem:[%s1 + $0x150] sm:$0xf]
  %v126 = vld [vmem:[%s1 + $0x154] sm:$0xf]
  %v127 = vld [vmem:[%s1 + $0x158] sm:$0xf]
  %v128 = vld [vmem:[%s1 + $0x15c] sm:$0xf]
  %v129 = vld [vmem:[%s1 + $0x160] sm:$0xf]
  %v130 = vld [vmem:[%s1 + $0x164] sm:$0xf]
  %v131 = vld [vmem:[%s1 + $0x168] sm:$0xf]
  %v132 = vld [vmem:[%s1 + $0x16c] sm:$0xf]
  %v133 = vld [vmem:[%s1 + $0x170] sm:$0xf]
  %v134 = vld [vmem:[%s1 + $0x174] sm:$0xf]
  %v135 = vld [vmem:[%s1 + $0x178] sm:$0xf]
  %v136 = vld [vmem:[%s1 + $0x17c] sm:$0xf]
  %v137 = vld [vmem:[%s1 + $0x180] sm:$0xf]
  %v138 = vld [vmem:[%s1 + $0x184] sm:$0xf]
  %v139 = vld [vmem:[%s1 + $0x188] sm:$0xf]
  %v140 = vld [vmem:[%s1 + $0x18c] sm:$0xf]
  %v141 = vld [vmem:[%s1 + $0x190] sm:$0xf]
  %v142 = vld [vmem:[%s1 + $0x194] sm:$0xf]
  %v143 = vld [vmem:[%s1 + $0x198] sm:$0xf]
  %v144 = vld [vmem:[%s1 + $0x19c] sm:$0xf]
  %v145 = vld [vmem:[%s1 + $0x1a0] sm:$0xf]
  %v146 = vld [vmem:[%s1 + $0x1a4] sm:$0xf]
  %v147 = vld [vmem:[%s1 + $0x1a8] sm:$0xf]
  %v148 = vld [vmem:[%s1 + $0x1ac] sm:$0xf]
  %v149 = vld [vmem:[%s1 + $0x1b0] sm:$0xf]
  %v150 = vld [vmem:[%s1 + $0x1b4] sm:$0xf]
  %v151 = vld [vmem:[%s1 + $0x1b8] sm:$0xf]
  %v152 = vld [vmem:[%s1 + $0x1bc] sm:$0xf]
  %v153 = vld [vmem:[%s1 + $0x1c0] sm:$0xf]
  %v154 = vld [vmem:[%s1 + $0x1c4] sm:$0xf]
  %v155 = vld [vmem:[%s1 + $0x1c8] sm:$0xf]
  %v156 = vld [vmem:[%s1 + $0x1cc] sm:$0xf]
  %v157 = vld [vmem:[%s1 + $0x1d0] sm:$0xf]
  %v158 = vld [vmem:[%s1 + $0x1d4] sm:$0xf]
  %v159 = vld [vmem:[%s1 + $0x1d8] sm:$0xf]
  %v160 = vld [vmem:[%s1 + $0x1dc] sm:$0xf]
  %v161 = vld [vmem:[%s1 + $0x1e0] sm:$0xf]
  %v162 = vld [vmem:[%s1 + $0x1e4] sm:$0xf]
  %v163 = vld [vmem:[%s1 + $0x1e8] sm:$0xf]
  %v164 = vld [vmem:[%s1 + $0x1ec] sm:$0xf]
  %v165 = vld [vmem:[%s1 + $0x1f0] sm:$0xf]
  %v166 = vld [vmem:[%s1 + $0x1f4] sm:$0xf]
  %v167 = vld [vmem:[%s1 + $0x1f8] sm:$0xf]
  %v168 = vld [vmem:[%s1 + $0x1fc] sm:$0xf]
  %v169 = vld [vmem:[%s1 + $0x200] sm:$0xf]
  %v170 = vld [vmem:[%s1 + $0x204] sm:$0xf]
  %v171 = vld [vmem:[%s1 + $0x208] sm:$0xf]
  %v172 = vld [vmem:[%s1 + $0x20c] sm:$0xf]
  %v173 = vld [vmem:[%s1 + $0x210] sm:$0xf]
  %v174 = vld [vmem:[%s1 + $0x214] sm:$0xf]
  %v175 = vld [vmem:[%s1 + $0x218] sm:$0xf]
  %v176 = vld [vmem:[%s1 + $0x21c] sm:$0xf]
  %v177 = vld [vmem:[%s1 + $0x220] sm:$0xf]
  %v178 = vld [vmem:[%s1 + $0x224] sm:$0xf]
  %v179 = vld [vmem:[%s1 + $0x228] sm:$0xf]
  %v180 = vld [vmem:[%s1 + $0x22c] sm:$0xf]
  %v181 = vld [vmem:[%s1 + $0x230] sm:$0xf]
  %v182 = vld [vmem:[%s1 + $0x234] sm:$0xf]
  %v183 = vld [vmem:[%s1 + $0x238] sm:$0xf]
  %v184 = vld [vmem:[%s1 + $0x23c] sm:$0xf]
  %v185 = vld [vmem:[%s1 + $0x240] sm:$0xf]
  %v186 = vld [vmem:[%s1 + $0x244] sm:$0xf]
  %v187 = vld [vmem:[%s1 + $0x248] sm:$0xf]
  %v188 = vld [vmem:[%s1 + $0x24c] sm:$0xf]
  %v189 = vld [vmem:[%s1 + $0x250] sm:$0xf]
  %v190 = vld [vmem:[%s1 + $0x254] sm:$0xf]
  %v191 = vld [vmem:[%s1 + $0x258] sm:$0xf]
  %v192 = vld [vmem:[%s1 + $0x25c] sm:$0xf]
  %v193 = vld [vmem:[%s1 + $0x260] sm:$0xf]
  %v194 = vld [vmem:[%s1 + $0x264] sm:$0xf]
  %v195 = vld [vmem:[%s1 + $0x268] sm:$0xf]
  %v196 = vld [vmem:[%s1 + $0x26c] sm:$0xf]
  %v197 = vld [vmem:[%s1 + $0x270] sm:$0xf]
  %v198 = vld [vmem:[%s1 + $0x274] sm:$0xf]
  %v199 = vld [vmem:[%s1 + $0x278] sm:$0xf]
  %v200 = vld [vmem:[%s1 + $0x27c] sm:$0xf]
  %v201 = vld [vmem:[%s1 + $0x280] sm:$0xf]
  %v202 = vld [vmem:[%s1 + $0x284] sm:$0xf]
  %v203 = vld [vmem:[%s1 + $0x288] sm:$0xf]
  %v204 = vld [vmem:[%s1 + $0x28c] sm:$0xf]
  %v205 = vld [vmem:[%s1 + $0x290] sm:$0xf]
  %v206 = vld [vmem:[%s1 + $0x294] sm:$0xf]
  %v207 = vld [vmem:[%s1 + $0x298] sm:$0xf]
  %v208 = vld [vmem:[%s1 + $0x29c] sm:$0xf]
  %v209 = vld [vmem:[%s1 + $0x2a0] sm:$0xf]
  %v210 = vld [vmem:[%s1 + $0x2a4] sm:$0xf]
  %v211 = vld [vmem:[%s1 + $0x2a8] sm:$0xf]
  %v212 = vld [vmem:[%s1 + $0x2ac] sm:$0xf]
  %v213 = vld [vmem:[%s1 + $0x2b0] sm:$0xf]
  %v214 = vld [vmem:[%s1 + $0x2b4] sm:$0xf]
  %v215 = vld [vmem:[%s1 + $0x2b8] sm:$0xf]
  %v216 = vld [vmem:[%s1 + $0x2bc] sm:$0xf]
  %v217 = vld [vmem:[%s1 + $0x2c0] sm:$0xf]
  %v218 = vld [vmem:[%s1 + $0x2c4] sm:$0xf]
  %v219 = vld [vmem:[%s1 + $0x2c8] sm:$0xf]
  %v220 = vld [vmem:[%s1 + $0x2cc] sm:$0xf]
  %v221 = vld [vmem:[%s1 + $0x2d0] sm:$0xf]
  %v222 = vld [vmem:[%s1 + $0x2d4] sm:$0xf]
  %v223 = vld [vmem:[%s1 + $0x2d8] sm:$0xf]
  %v224 = vld [vmem:[%s1 + $0x2dc] sm:$0xf]
  %v225 = vld [vmem:[%s1 + $0x2e0] sm:$0xf]
  %v226 = vld [vmem:[%s1 + $0x2e4] sm:$0xf]
  %v227 = vld [vmem:[%s1 + $0x2e8] sm:$0xf]
  %v228 = vld [vmem:[%s1 + $0x2ec] sm:$0xf]
  %v229 = vld [vmem:[%s1 + $0x2f0] sm:$0xf]
  %v230 = vld [vmem:[%s1 + $0x2f4] sm:$0xf]
  %v231 = vld [vmem:[%s1 + $0x2f8] sm:$0xf]
  %v232 = vld [vmem:[%s1 + $0x2fc] sm:$0xf]
  %v233 = vld [vmem:[%s1 + $0x300] sm:$0xf]
  %v234 = vld [vmem:[%s1 + $0x304] sm:$0xf]
  %v235 = vld [vmem:[%s1 + $0x308] sm:$0xf]
  %v236 = vld [vmem:[%s1 + $0x30c] sm:$0xf]
  %v237 = vld [vmem:[%s1 + $0x310] sm:$0xf]
  %v238 = vld [vmem:[%s1 + $0x314] sm:$0xf]
  %v239 = vld [vmem:[%s1 + $0x318] sm:$0xf]
  %v240 = vld [vmem:[%s1 + $0x31c] sm:$0xf]
  %v241 = vld [vmem:[%s1 + $0x320] sm:$0xf]
  %v242 = vld [vmem:[%s1 + $0x324] sm:$0xf]
  %v243 = vld [vmem:[%s1 + $0x328] sm:$0xf]
  %v244 = vld [vmem:[%s1 + $0x32c] sm:$0xf]
  %v245 = vld [vmem:[%s1 + $0x330] sm:$0xf]
  %v246 = vld [vmem:[%s1 + $0x334] sm:$0xf]
  %v247 = vld [vmem:[%s1 + $0x338] sm:$0xf]
  %v248 = vld [vmem:[%s1 + $0x33c] sm:$0xf]
  %v249 = vld [vmem:[%s1 + $0x340] sm:$0xf]
  %v250 = vld [vmem:[%s1 + $0x344] sm:$0xf]
  %v251 = vld [vmem:[%s1 + $0x348] sm:$0xf]
  %v252 = vld [vmem:[%s1 + $0x34c] sm:$0xf]
  %v253 = vld [vmem:[%s1 + $0x350] sm:$0xf]
  %v254 = vld [vmem:[%s1 + $0x354] sm:$0xf]
  %v255 = vld [vmem:[%s1 + $0x358] sm:$0xf]
  %v256 = vld [vmem:[%s1 + $0x35c] sm:$0xf]
  %v257 = vld [vmem:[%s1 + $0x360] sm:$0xf]
  %v258 = vld [vmem:[%s1 + $0x364] sm:$0xf]
  %v259 = vld [vmem:[%s1 + $0x368] sm:$0xf]
  %v260 = vld [vmem:[%s1 + $0x36c] sm:$0xf]
  %v261 = vld [vmem:[%s1 + $0x370] sm:$0xf]
  %v262 = vld [vmem:[%s1 + $0x374] sm:$0xf]
  %v263 = vld [vmem:[%s1 + $0x378] sm:$0xf]
  %v264 = vld [vmem:[%s1 + $0x37c] sm:$0xf]
  %v265 = vld [vmem:[%s1 + $0x380] sm:$0xf]
  %v266 = vld [vmem:[%s1 + $0x384] sm:$0xf]
  %v267 = vld [vmem:[%s1 + $0x388] sm:$0xf]
  %v268 = vld [vmem:[%s1 + $0x38c] sm:$0xf]
  %v269 = vld [vmem:[%s1 + $0x390] sm:$0xf]
  %v270 = vld [vmem:[%s1 + $0x394] sm:$0xf]
  %v271 = vld [vmem:[%s1 + $0x398] sm:$0xf]
  %v272 = vld [vmem:[%s1 + $0x39c] sm:$0xf]
  %v273 = vld [vmem:[%s1 + $0x3a0] sm:$0xf]
  %v274 = vld [vmem:[%s1 + $0x3a4] sm:$0xf]
  %v275 = vld [vmem:[%s1 + $0x3a8] sm:$0xf]
  %v276 = vld [vmem:[%s1 + $0x3ac] sm:$0xf]
  %v277 = vld [vmem:[%s1 + $0x3b0] sm:$0xf]
  %v278 = vld [vmem:[%s1 + $0x3b4] sm:$0xf]
  %v279 = vld [vmem:[%s1 + $0x3b8] sm:$0xf]
  %v280 = vld [vmem:[%s1 + $0x3bc] sm:$0xf]
  %v281 = vld [vmem:[%s1 + $0x3c0] sm:$0xf]
  %v282 = vld [vmem:[%s1 + $0x3c4] sm:$0xf]
  %v283 = vld [vmem:[%s1 + $0x3c8] sm:$0xf]
  %v284 = vld [vmem:[%s1 + $0x3cc] sm:$0xf]
  %v285 = vld [vmem:[%s1 + $0x3d0] sm:$0xf]
  %v286 = vld [vmem:[%s1 + $0x3d4] sm:$0xf]
  %v287 = vld [vmem:[%s1 + $0x3d8] sm:$0xf]
  %v288 = vld [vmem:[%s1 + $0x3dc] sm:$0xf]
  %v289 = vld [vmem:[%s1 + $0x3e0] sm:$0xf]
  %v290 = vld [vmem:[%s1 + $0x3e4] sm:$0xf]
  %v291 = vld [vmem:[%s1 + $0x3e8] sm:$0xf]
  %v292 = vld [vmem:[%s1 + $0x3ec] sm:$0xf]
  %v293 = vld [vmem:[%s1 + $0x3f0] sm:$0xf]
  %v294 = vld [vmem:[%s1 + $0x3f4] sm:$0xf]
  %v295 = vld [vmem:[%s1 + $0x3f8] sm:$0xf]
  %v296 = vld [vmem:[%s1 + $0x3fc] sm:$0xf]
  %v321 = vunpack.c.l.b16 %v17
  %v322 = vunpack.c.h.b16 %v17
  %v323 = vunpack.c.l.b16 %v18
  %v324 = vunpack.c.h.b16 %v18
  %v325 = vunpack.c.l.b16 %v19
  %v326 = vunpack.c.h.b16 %v19
  %v327 = vunpack.c.l.b16 %v20
  %v328 = vunpack.c.h.b16 %v20
  %v329 = vunpack.c.l.b16 %v21
  %v330 = vunpack.c.h.b16 %v21
  %v331 = vunpack.c.l.b16 %v22
  %v332 = vunpack.c.h.b16 %v22
  %v333 = vunpack.c.l.b16 %v23
  %v334 = vunpack.c.h.b16 %v23
  %v335 = vunpack.c.l.b16 %v24
  %v336 = vunpack.c.h.b16 %v24
  %v337 = vunpack.c.l.b16 %v25
  %v338 = vunpack.c.h.b16 %v25
  %v339 = vunpack.c.l.b16 %v26
  %v340 = vunpack.c.h.b16 %v26
  %v341 = vunpack.c.l.b16 %v27
  %v342 = vunpack.c.h.b16 %v27
  %v343 = vunpack.c.l.b16 %v28
  %v344 = vunpack.c.h.b16 %v28
  %v345 = vunpack.c.l.b16 %v29
  %v346 = vunpack.c.h.b16 %v29
  %v347 = vunpack.c.l.b16 %v30
  %v348 = vunpack.c.h.b16 %v30
  %v349 = vunpack.c.l.b16 %v31
  %v350 = vunpack.c.h.b16 %v31
  %v351 = vunpack.c.l.b16 %v32
  %v352 = vunpack.c.h.b16 %v32
  %v353 = vunpack.c.l.b16 %v33
  %v354 = vunpack.c.h.b16 %v33
  %v355 = vunpack.c.l.b16 %v34
  %v356 = vunpack.c.h.b16 %v34
  %v357 = vunpack.c.l.b16 %v35
  %v358 = vunpack.c.h.b16 %v35
  %v359 = vunpack.c.l.b16 %v36
  %v360 = vunpack.c.h.b16 %v36
  %v361 = vunpack.c.l.b16 %v37
  %v362 = vunpack.c.h.b16 %v37
  %v363 = vunpack.c.l.b16 %v38
  %v364 = vunpack.c.h.b16 %v38
  %v365 = vunpack.c.l.b16 %v39
  %v366 = vunpack.c.h.b16 %v39
  %v367 = vunpack.c.l.b16 %v40
  %v368 = vunpack.c.h.b16 %v40
  %v369 = vpack.c.b16 %v337, %v321
  %v370 = vpack.c.b16 %v338, %v322
  %v371 = vpack.c.b16 %v339, %v323
  %v372 = vpack.c.b16 %v340, %v324
  %v373 = vpack.c.b16 %v341, %v325
  %v374 = vpack.c.b16 %v342, %v326
  %v375 = vpack.c.b16 %v343, %v327
  %v376 = vpack.c.b16 %v344, %v328
  %v377 = vpack.c.b16 %v345, %v329
  %v378 = vpack.c.b16 %v346, %v330
  %v379 = vpack.c.b16 %v347, %v331
  %v380 = vpack.c.b16 %v348, %v332
  %v381 = vpack.c.b16 %v349, %v333
  %v382 = vpack.c.b16 %v350, %v334
  %v383 = vpack.c.b16 %v351, %v335
  %v384 = vpack.c.b16 %v352, %v336
  %v385 = vpack.c.b16 %v353, %v353
  %v386 = vpack.c.b16 %v354, %v354
  %v387 = vpack.c.b16 %v355, %v355
  %v388 = vpack.c.b16 %v356, %v356
  %v389 = vpack.c.b16 %v357, %v357
  %v390 = vpack.c.b16 %v358, %v358
  %v391 = vpack.c.b16 %v359, %v359
  %v392 = vpack.c.b16 %v360, %v360
  %v393 = vpack.c.b16 %v361, %v361
  %v394 = vpack.c.b16 %v362, %v362
  %v395 = vpack.c.b16 %v363, %v363
  %v396 = vpack.c.b16 %v364, %v364
  %v397 = vpack.c.b16 %v365, %v365
  %v398 = vpack.c.b16 %v366, %v366
  %v399 = vpack.c.b16 %v367, %v367
  %v400 = vpack.c.b16 %v368, %v368
  %v689 = vunpack.c.l.b16 %v41
  %v690 = vunpack.c.l.b16 %v42
  %v691 = vunpack.c.l.b16 %v43
  %v692 = vunpack.c.l.b16 %v44
  %v693 = vunpack.c.l.b16 %v45
  %v694 = vunpack.c.l.b16 %v46
  %v695 = vunpack.c.l.b16 %v47
  %v696 = vunpack.c.l.b16 %v48
  %v697 = vunpack.c.l.b16 %v49
  %v698 = vunpack.c.l.b16 %v50
  %v699 = vunpack.c.l.b16 %v51
  %v700 = vunpack.c.l.b16 %v52
  %v701 = vunpack.c.l.b16 %v53
  %v702 = vunpack.c.l.b16 %v54
  %v703 = vunpack.c.l.b16 %v55
  %v704 = vunpack.c.l.b16 %v56
  %v705 = vunpack.c.l.b16 %v57
  %v706 = vunpack.c.l.b16 %v58
  %v707 = vunpack.c.l.b16 %v59
  %v708 = vunpack.c.l.b16 %v60
  %v709 = vunpack.c.l.b16 %v61
  %v710 = vunpack.c.l.b16 %v62
  %v711 = vunpack.c.l.b16 %v63
  %v712 = vunpack.c.l.b16 %v64
  %v713 = vunpack.c.l.b16 %v65
  %v714 = vunpack.c.l.b16 %v66
  %v715 = vunpack.c.l.b16 %v67
  %v716 = vunpack.c.l.b16 %v68
  %v717 = vunpack.c.l.b16 %v69
  %v718 = vunpack.c.l.b16 %v70
  %v719 = vunpack.c.l.b16 %v71
  %v720 = vunpack.c.l.b16 %v72
  %v721 = vunpack.c.l.b16 %v73
  %v722 = vunpack.c.l.b16 %v74
  %v723 = vunpack.c.l.b16 %v75
  %v724 = vunpack.c.l.b16 %v76
  %v725 = vunpack.c.l.b16 %v77
  %v726 = vunpack.c.l.b16 %v78
  %v727 = vunpack.c.l.b16 %v79
  %v728 = vunpack.c.l.b16 %v80
  %v729 = vunpack.c.l.b16 %v81
  %v730 = vunpack.c.l.b16 %v82
  %v731 = vunpack.c.l.b16 %v83
  %v732 = vunpack.c.l.b16 %v84
  %v733 = vunpack.c.l.b16 %v85
  %v734 = vunpack.c.l.b16 %v86
  %v735 = vunpack.c.l.b16 %v87
  %v736 = vunpack.c.l.b16 %v88
  %v737 = vunpack.c.l.b16 %v89
  %v738 = vunpack.c.l.b16 %v90
  %v739 = vunpack.c.l.b16 %v91
  %v740 = vunpack.c.l.b16 %v92
  %v741 = vunpack.c.l.b16 %v93
  %v742 = vunpack.c.l.b16 %v94
  %v743 = vunpack.c.l.b16 %v95
  %v744 = vunpack.c.l.b16 %v96
  %v745 = vunpack.c.l.b16 %v97
  %v746 = vunpack.c.l.b16 %v98
  %v747 = vunpack.c.l.b16 %v99
  %v748 = vunpack.c.l.b16 %v100
  %v749 = vunpack.c.l.b16 %v101
  %v750 = vunpack.c.l.b16 %v102
  %v751 = vunpack.c.l.b16 %v103
  %v752 = vunpack.c.l.b16 %v104
  %v753 = vunpack.c.l.b16 %v105
  %v754 = vunpack.c.l.b16 %v106
  %v755 = vunpack.c.l.b16 %v107
  %v756 = vunpack.c.l.b16 %v108
  %v757 = vunpack.c.l.b16 %v109
  %v758 = vunpack.c.l.b16 %v110
  %v759 = vunpack.c.l.b16 %v111
  %v760 = vunpack.c.l.b16 %v112
  %v761 = vunpack.c.l.b16 %v113
  %v762 = vunpack.c.l.b16 %v114
  %v763 = vunpack.c.l.b16 %v115
  %v764 = vunpack.c.l.b16 %v116
  %v765 = vunpack.c.l.b16 %v117
  %v766 = vunpack.c.l.b16 %v118
  %v767 = vunpack.c.l.b16 %v119
  %v768 = vunpack.c.l.b16 %v120
  %v769 = vunpack.c.l.b16 %v121
  %v770 = vunpack.c.l.b16 %v122
  %v771 = vunpack.c.l.b16 %v123
  %v772 = vunpack.c.l.b16 %v124
  %v773 = vunpack.c.l.b16 %v125
  %v774 = vunpack.c.l.b16 %v126
  %v775 = vunpack.c.l.b16 %v127
  %v776 = vunpack.c.l.b16 %v128
  %v777 = vunpack.c.l.b16 %v129
  %v778 = vunpack.c.l.b16 %v130
  %v779 = vunpack.c.l.b16 %v131
  %v780 = vunpack.c.l.b16 %v132
  %v781 = vunpack.c.l.b16 %v133
  %v782 = vunpack.c.l.b16 %v134
  %v783 = vunpack.c.l.b16 %v135
  %v784 = vunpack.c.l.b16 %v136
  %v785 = vunpack.c.l.b16 %v137
  %v786 = vunpack.c.l.b16 %v138
  %v787 = vunpack.c.l.b16 %v139
  %v788 = vunpack.c.l.b16 %v140
  %v789 = vunpack.c.l.b16 %v141
  %v790 = vunpack.c.l.b16 %v142
  %v791 = vunpack.c.l.b16 %v143
  %v792 = vunpack.c.l.b16 %v144
  %v793 = vunpack.c.l.b16 %v145
  %v794 = vunpack.c.l.b16 %v146
  %v795 = vunpack.c.l.b16 %v147
  %v796 = vunpack.c.l.b16 %v148
  %v797 = vunpack.c.l.b16 %v149
  %v798 = vunpack.c.l.b16 %v150
  %v799 = vunpack.c.l.b16 %v151
  %v800 = vunpack.c.l.b16 %v152
  %v801 = vunpack.c.l.b16 %v153
  %v802 = vunpack.c.l.b16 %v154
  %v803 = vunpack.c.l.b16 %v155
  %v804 = vunpack.c.l.b16 %v156
  %v805 = vunpack.c.l.b16 %v157
  %v806 = vunpack.c.l.b16 %v158
  %v807 = vunpack.c.l.b16 %v159
  %v808 = vunpack.c.l.b16 %v160
  %v809 = vunpack.c.l.b16 %v161
  %v810 = vunpack.c.l.b16 %v162
  %v811 = vunpack.c.l.b16 %v163
  %v812 = vunpack.c.l.b16 %v164
  %v813 = vunpack.c.l.b16 %v165
  %v814 = vunpack.c.l.b16 %v166
  %v815 = vunpack.c.l.b16 %v167
  %v816 = vunpack.c.l.b16 %v168
  %v817 = vunpack.c.l.b16 %v169
  %v818 = vunpack.c.l.b16 %v170
  %v819 = vunpack.c.l.b16 %v171
  %v820 = vunpack.c.l.b16 %v172
  %v821 = vunpack.c.l.b16 %v173
  %v822 = vunpack.c.l.b16 %v174
  %v823 = vunpack.c.l.b16 %v175
  %v824 = vunpack.c.l.b16 %v176
  %v825 = vunpack.c.l.b16 %v177
  %v826 = vunpack.c.l.b16 %v178
  %v827 = vunpack.c.l.b16 %v179
  %v828 = vunpack.c.l.b16 %v180
  %v829 = vunpack.c.l.b16 %v181
  %v830 = vunpack.c.l.b16 %v182
  %v831 = vunpack.c.l.b16 %v183
  %v832 = vunpack.c.l.b16 %v184
  %v833 = vunpack.c.l.b16 %v185
  %v834 = vunpack.c.l.b16 %v186
  %v835 = vunpack.c.l.b16 %v187
  %v836 = vunpack.c.l.b16 %v188
  %v837 = vunpack.c.l.b16 %v189
  %v838 = vunpack.c.l.b16 %v190
  %v839 = vunpack.c.l.b16 %v191
  %v840 = vunpack.c.l.b16 %v192
  %v841 = vunpack.c.l.b16 %v193
  %v842 = vunpack.c.l.b16 %v194
  %v843 = vunpack.c.l.b16 %v195
  %v844 = vunpack.c.l.b16 %v196
  %v845 = vunpack.c.l.b16 %v197
  %v846 = vunpack.c.l.b16 %v198
  %v847 = vunpack.c.l.b16 %v199
  %v848 = vunpack.c.l.b16 %v200
  %v849 = vunpack.c.l.b16 %v201
  %v850 = vunpack.c.l.b16 %v202
  %v851 = vunpack.c.l.b16 %v203
  %v852 = vunpack.c.l.b16 %v204
  %v853 = vunpack.c.l.b16 %v205
  %v854 = vunpack.c.l.b16 %v206
  %v855 = vunpack.c.l.b16 %v207
  %v856 = vunpack.c.l.b16 %v208
  %v857 = vunpack.c.l.b16 %v209
  %v858 = vunpack.c.l.b16 %v210
  %v859 = vunpack.c.l.b16 %v211
  %v860 = vunpack.c.l.b16 %v212
  %v861 = vunpack.c.l.b16 %v213
  %v862 = vunpack.c.l.b16 %v214
  %v863 = vunpack.c.l.b16 %v215
  %v864 = vunpack.c.l.b16 %v216
  %v865 = vunpack.c.l.b16 %v217
  %v866 = vunpack.c.l.b16 %v218
  %v867 = vunpack.c.l.b16 %v219
  %v868 = vunpack.c.l.b16 %v220
  %v869 = vunpack.c.l.b16 %v221
  %v870 = vunpack.c.l.b16 %v222
  %v871 = vunpack.c.l.b16 %v223
  %v872 = vunpack.c.l.b16 %v224
  %v873 = vunpack.c.l.b16 %v225
  %v874 = vunpack.c.l.b16 %v226
  %v875 = vunpack.c.l.b16 %v227
  %v876 = vunpack.c.l.b16 %v228
  %v877 = vunpack.c.l.b16 %v229
  %v878 = vunpack.c.l.b16 %v230
  %v879 = vunpack.c.l.b16 %v231
  %v880 = vunpack.c.l.b16 %v232
  %v881 = vunpack.c.l.b16 %v233
  %v882 = vunpack.c.l.b16 %v234
  %v883 = vunpack.c.l.b16 %v235
  %v884 = vunpack.c.l.b16 %v236
  %v885 = vunpack.c.l.b16 %v237
  %v886 = vunpack.c.l.b16 %v238
  %v887 = vunpack.c.l.b16 %v239
  %v888 = vunpack.c.l.b16 %v240
  %v889 = vunpack.c.l.b16 %v241
  %v890 = vunpack.c.l.b16 %v242
  %v891 = vunpack.c.l.b16 %v243
  %v892 = vunpack.c.l.b16 %v244
  %v893 = vunpack.c.l.b16 %v245
  %v894 = vunpack.c.l.b16 %v246
  %v895 = vunpack.c.l.b16 %v247
  %v896 = vunpack.c.l.b16 %v248
  %v897 = vunpack.c.l.b16 %v249
  %v898 = vunpack.c.l.b16 %v250
  %v899 = vunpack.c.l.b16 %v251
  %v900 = vunpack.c.l.b16 %v252
  %v901 = vunpack.c.l.b16 %v253
  %v902 = vunpack.c.l.b16 %v254
  %v903 = vunpack.c.l.b16 %v255
  %v904 = vunpack.c.l.b16 %v256
  %v905 = vunpack.c.l.b16 %v257
  %v906 = vunpack.c.l.b16 %v258
  %v907 = vunpack.c.l.b16 %v259
  %v908 = vunpack.c.l.b16 %v260
  %v909 = vunpack.c.l.b16 %v261
  %v910 = vunpack.c.l.b16 %v262
  %v911 = vunpack.c.l.b16 %v263
  %v912 = vunpack.c.l.b16 %v264
  %v913 = vunpack.c.l.b16 %v265
  %v914 = vunpack.c.l.b16 %v266
  %v915 = vunpack.c.l.b16 %v267
  %v916 = vunpack.c.l.b16 %v268
  %v917 = vunpack.c.l.b16 %v269
  %v918 = vunpack.c.l.b16 %v270
  %v919 = vunpack.c.l.b16 %v271
  %v920 = vunpack.c.l.b16 %v272
  %v921 = vunpack.c.l.b16 %v273
  %v922 = vunpack.c.l.b16 %v274
  %v923 = vunpack.c.l.b16 %v275
  %v924 = vunpack.c.l.b16 %v276
  %v925 = vunpack.c.l.b16 %v277
  %v926 = vunpack.c.l.b16 %v278
  %v927 = vunpack.c.l.b16 %v279
  %v928 = vunpack.c.l.b16 %v280
  %v929 = vunpack.c.l.b16 %v281
  %v930 = vunpack.c.l.b16 %v282
  %v931 = vunpack.c.l.b16 %v283
  %v932 = vunpack.c.l.b16 %v284
  %v933 = vunpack.c.l.b16 %v285
  %v934 = vunpack.c.l.b16 %v286
  %v935 = vunpack.c.l.b16 %v287
  %v936 = vunpack.c.l.b16 %v288
  %v937 = vunpack.c.l.b16 %v289
  %v938 = vunpack.c.l.b16 %v290
  %v939 = vunpack.c.l.b16 %v291
  %v940 = vunpack.c.l.b16 %v292
  %v941 = vunpack.c.l.b16 %v293
  %v942 = vunpack.c.l.b16 %v294
  %v943 = vunpack.c.l.b16 %v295
  %v944 = vunpack.c.l.b16 %v296
  %v945 = vpack.c.b16 %v690, %v689
  %v946 = vpack.c.b16 %v692, %v691
  %v947 = vpack.c.b16 %v694, %v693
  %v948 = vpack.c.b16 %v696, %v695
  %v949 = vpack.c.b16 %v698, %v697
  %v950 = vpack.c.b16 %v700, %v699
  %v951 = vpack.c.b16 %v702, %v701
  %v952 = vpack.c.b16 %v704, %v703
  %v953 = vpack.c.b16 %v706, %v705
  %v954 = vpack.c.b16 %v708, %v707
  %v955 = vpack.c.b16 %v710, %v709
  %v956 = vpack.c.b16 %v712, %v711
  %v957 = vpack.c.b16 %v714, %v713
  %v958 = vpack.c.b16 %v716, %v715
  %v959 = vpack.c.b16 %v718, %v717
  %v960 = vpack.c.b16 %v720, %v719
  %v961 = vpack.c.b16 %v722, %v721
  %v962 = vpack.c.b16 %v724, %v723
  %v963 = vpack.c.b16 %v726, %v725
  %v964 = vpack.c.b16 %v728, %v727
  %v965 = vpack.c.b16 %v730, %v729
  %v966 = vpack.c.b16 %v732, %v731
  %v967 = vpack.c.b16 %v734, %v733
  %v968 = vpack.c.b16 %v736, %v735
  %v969 = vpack.c.b16 %v738, %v737
  %v970 = vpack.c.b16 %v740, %v739
  %v971 = vpack.c.b16 %v742, %v741
  %v972 = vpack.c.b16 %v744, %v743
  %v973 = vpack.c.b16 %v746, %v745
  %v974 = vpack.c.b16 %v748, %v747
  %v975 = vpack.c.b16 %v750, %v749
  %v976 = vpack.c.b16 %v752, %v751
  %v977 = vpack.c.b16 %v754, %v753
  %v978 = vpack.c.b16 %v756, %v755
  %v979 = vpack.c.b16 %v758, %v757
  %v980 = vpack.c.b16 %v760, %v759
  %v981 = vpack.c.b16 %v762, %v761
  %v982 = vpack.c.b16 %v764, %v763
  %v983 = vpack.c.b16 %v766, %v765
  %v984 = vpack.c.b16 %v768, %v767
  %v985 = vpack.c.b16 %v770, %v769
  %v986 = vpack.c.b16 %v772, %v771
  %v987 = vpack.c.b16 %v774, %v773
  %v988 = vpack.c.b16 %v776, %v775
  %v989 = vpack.c.b16 %v778, %v777
  %v990 = vpack.c.b16 %v780, %v779
  %v991 = vpack.c.b16 %v782, %v781
  %v992 = vpack.c.b16 %v784, %v783
  %v993 = vpack.c.b16 %v786, %v785
  %v994 = vpack.c.b16 %v788, %v787
  %v995 = vpack.c.b16 %v790, %v789
  %v996 = vpack.c.b16 %v792, %v791
  %v997 = vpack.c.b16 %v794, %v793
  %v998 = vpack.c.b16 %v796, %v795
  %v999 = vpack.c.b16 %v798, %v797
  %v1000 = vpack.c.b16 %v800, %v799
  %v1001 = vpack.c.b16 %v802, %v801
  %v1002 = vpack.c.b16 %v804, %v803
  %v1003 = vpack.c.b16 %v806, %v805
  %v1004 = vpack.c.b16 %v808, %v807
  %v1005 = vpack.c.b16 %v810, %v809
  %v1006 = vpack.c.b16 %v812, %v811
  %v1007 = vpack.c.b16 %v814, %v813
  %v1008 = vpack.c.b16 %v816, %v815
  %v1009 = vpack.c.b16 %v818, %v817
  %v1010 = vpack.c.b16 %v820, %v819
  %v1011 = vpack.c.b16 %v822, %v821
  %v1012 = vpack.c.b16 %v824, %v823
  %v1013 = vpack.c.b16 %v826, %v825
  %v1014 = vpack.c.b16 %v828, %v827
  %v1015 = vpack.c.b16 %v830, %v829
  %v1016 = vpack.c.b16 %v832, %v831
  %v1017 = vpack.c.b16 %v834, %v833
  %v1018 = vpack.c.b16 %v836, %v835
  %v1019 = vpack.c.b16 %v838, %v837
  %v1020 = vpack.c.b16 %v840, %v839
  %v1021 = vpack.c.b16 %v842, %v841
  %v1022 = vpack.c.b16 %v844, %v843
  %v1023 = vpack.c.b16 %v846, %v845
  %v1024 = vpack.c.b16 %v848, %v847
  %v1025 = vpack.c.b16 %v850, %v849
  %v1026 = vpack.c.b16 %v852, %v851
  %v1027 = vpack.c.b16 %v854, %v853
  %v1028 = vpack.c.b16 %v856, %v855
  %v1029 = vpack.c.b16 %v858, %v857
  %v1030 = vpack.c.b16 %v860, %v859
  %v1031 = vpack.c.b16 %v862, %v861
  %v1032 = vpack.c.b16 %v864, %v863
  %v1033 = vpack.c.b16 %v866, %v865
  %v1034 = vpack.c.b16 %v868, %v867
  %v1035 = vpack.c.b16 %v870, %v869
  %v1036 = vpack.c.b16 %v872, %v871
  %v1037 = vpack.c.b16 %v874, %v873
  %v1038 = vpack.c.b16 %v876, %v875
  %v1039 = vpack.c.b16 %v878, %v877
  %v1040 = vpack.c.b16 %v880, %v879
  %v1041 = vpack.c.b16 %v882, %v881
  %v1042 = vpack.c.b16 %v884, %v883
  %v1043 = vpack.c.b16 %v886, %v885
  %v1044 = vpack.c.b16 %v888, %v887
  %v1045 = vpack.c.b16 %v890, %v889
  %v1046 = vpack.c.b16 %v892, %v891
  %v1047 = vpack.c.b16 %v894, %v893
  %v1048 = vpack.c.b16 %v896, %v895
  %v1049 = vpack.c.b16 %v898, %v897
  %v1050 = vpack.c.b16 %v900, %v899
  %v1051 = vpack.c.b16 %v902, %v901
  %v1052 = vpack.c.b16 %v904, %v903
  %v1053 = vpack.c.b16 %v906, %v905
  %v1054 = vpack.c.b16 %v908, %v907
  %v1055 = vpack.c.b16 %v910, %v909
  %v1056 = vpack.c.b16 %v912, %v911
  %v1057 = vpack.c.b16 %v914, %v913
  %v1058 = vpack.c.b16 %v916, %v915
  %v1059 = vpack.c.b16 %v918, %v917
  %v1060 = vpack.c.b16 %v920, %v919
  %v1061 = vpack.c.b16 %v922, %v921
  %v1062 = vpack.c.b16 %v924, %v923
  %v1063 = vpack.c.b16 %v926, %v925
  %v1064 = vpack.c.b16 %v928, %v927
  %v1065 = vpack.c.b16 %v930, %v929
  %v1066 = vpack.c.b16 %v932, %v931
  %v1067 = vpack.c.b16 %v934, %v933
  %v1068 = vpack.c.b16 %v936, %v935
  %v1069 = vpack.c.b16 %v938, %v937
  %v1070 = vpack.c.b16 %v940, %v939
  %v1071 = vpack.c.b16 %v942, %v941
  %v1072 = vpack.c.b16 %v944, %v943
  %1201 = vmatpush.bf16.msra.mxu0 %v952
  %1202 = vmatpush.bf16.msra.mxu0 %v951
  %1203 = vmatpush.bf16.msra.mxu0 %v950
  %1204 = vmatpush.bf16.msra.mxu0 %v949
  %1205 = vmatpush.bf16.msra.mxu0 %v948
  %1206 = vmatpush.bf16.msra.mxu0 %v947
  %1207 = vmatpush.bf16.msra.mxu0 %v946
  %1208 = vmatpush.bf16.msra.mxu0 %v945
  %1209 = vmatmul.bf16.gmra.mxu0 %v369
  %v1210 = vpop.f32.mrf.mxu0
  %v1211 = vadd.f32 0.0, %v1210
  %v1212 = vpop.f32.mrf.mxu0
  %v1213 = vadd.f32 0.0, %v1212
  %1214 = vmatmul.bf16.gmra.mxu0 %v385
  %v1215 = vpop.f32.mrf.mxu0
  %v1216 = vadd.f32 0.0, %v1215
  %v1217 = vpop.f32.mrf.mxu0
  %1218 = vdwg.mxu0
  %1219 = vmatpush.bf16.msra.mxu0 %v960
  %1220 = vmatpush.bf16.msra.mxu0 %v959
  %1221 = vmatpush.bf16.msra.mxu0 %v958
  %1222 = vmatpush.bf16.msra.mxu0 %v957
  %1223 = vmatpush.bf16.msra.mxu0 %v956
  %1224 = vmatpush.bf16.msra.mxu0 %v955
  %1225 = vmatpush.bf16.msra.mxu0 %v954
  %1226 = vmatpush.bf16.msra.mxu0 %v953
  %1227 = vmatmul.bf16.gmra.mxu0 %v370
  %v1228 = vpop.f32.mrf.mxu0
  %v1229 = vadd.f32 %v1211, %v1228
  %v1230 = vpop.f32.mrf.mxu0
  %v1231 = vadd.f32 %v1213, %v1230
  %1232 = vmatmul.bf16.gmra.mxu0 %v386
  %v1233 = vpop.f32.mrf.mxu0
  %v1234 = vadd.f32 %v1216, %v1233
  %v1235 = vpop.f32.mrf.mxu0
  %1236 = vdwg.mxu0
  %1237 = vmatpush.bf16.msra.mxu0 %v968
  %1238 = vmatpush.bf16.msra.mxu0 %v967
  %1239 = vmatpush.bf16.msra.mxu0 %v966
  %1240 = vmatpush.bf16.msra.mxu0 %v965
  %1241 = vmatpush.bf16.msra.mxu0 %v964
  %1242 = vmatpush.bf16.msra.mxu0 %v963
  %1243 = vmatpush.bf16.msra.mxu0 %v962
  %1244 = vmatpush.bf16.msra.mxu0 %v961
  %1245 = vmatmul.bf16.gmra.mxu0 %v371
  %v1246 = vpop.f32.mrf.mxu0
  %v1247 = vadd.f32 %v1229, %v1246
  %v1248 = vpop.f32.mrf.mxu0
  %v1249 = vadd.f32 %v1231, %v1248
  %1250 = vmatmul.bf16.gmra.mxu0 %v387
  %v1251 = vpop.f32.mrf.mxu0
  %v1252 = vadd.f32 %v1234, %v1251
  %v1253 = vpop.f32.mrf.mxu0
  %1254 = vdwg.mxu0
  %1255 = vmatpush.bf16.msra.mxu0 %v976
  %1256 = vmatpush.bf16.msra.mxu0 %v975
  %1257 = vmatpush.bf16.msra.mxu0 %v974
  %1258 = vmatpush.bf16.msra.mxu0 %v973
  %1259 = vmatpush.bf16.msra.mxu0 %v972
  %1260 = vmatpush.bf16.msra.mxu0 %v971
  %1261 = vmatpush.bf16.msra.mxu0 %v970
  %1262 = vmatpush.bf16.msra.mxu0 %v969
  %1263 = vmatmul.bf16.gmra.mxu0 %v372
  %v1264 = vpop.f32.mrf.mxu0
  %v1265 = vadd.f32 %v1247, %v1264
  %v1266 = vpop.f32.mrf.mxu0
  %v1267 = vadd.f32 %v1249, %v1266
  %1268 = vmatmul.bf16.gmra.mxu0 %v388
  %v1269 = vpop.f32.mrf.mxu0
  %v1270 = vadd.f32 %v1252, %v1269
  %v1271 = vpop.f32.mrf.mxu0
  %1272 = vdwg.mxu0
  %1273 = vmatpush.bf16.msra.mxu0 %v984
  %1274 = vmatpush.bf16.msra.mxu0 %v983
  %1275 = vmatpush.bf16.msra.mxu0 %v982
  %1276 = vmatpush.bf16.msra.mxu0 %v981
  %1277 = vmatpush.bf16.msra.mxu0 %v980
  %1278 = vmatpush.bf16.msra.mxu0 %v979
  %1279 = vmatpush.bf16.msra.mxu0 %v978
  %1280 = vmatpush.bf16.msra.mxu0 %v977
  %1281 = vmatmul.bf16.gmra.mxu0 %v373
  %v1282 = vpop.f32.mrf.mxu0
  %v1283 = vadd.f32 %v1265, %v1282
  %v1284 = vpop.f32.mrf.mxu0
  %v1285 = vadd.f32 %v1267, %v1284
  %1286 = vmatmul.bf16.gmra.mxu0 %v389
  %v1287 = vpop.f32.mrf.mxu0
  %v1288 = vadd.f32 %v1270, %v1287
  %v1289 = vpop.f32.mrf.mxu0
  %1290 = vdwg.mxu0
  %1291 = vmatpush.bf16.msra.mxu0 %v992
  %1292 = vmatpush.bf16.msra.mxu0 %v991
  %1293 = vmatpush.bf16.msra.mxu0 %v990
  %1294 = vmatpush.bf16.msra.mxu0 %v989
  %1295 = vmatpush.bf16.msra.mxu0 %v988
  %1296 = vmatpush.bf16.msra.mxu0 %v987
  %1297 = vmatpush.bf16.msra.mxu0 %v986
  %1298 = vmatpush.bf16.msra.mxu0 %v985
  %1299 = vmatmul.bf16.gmra.mxu0 %v374
  %v1300 = vpop.f32.mrf.mxu0
  %v1301 = vadd.f32 %v1283, %v1300
  %v1302 = vpop.f32.mrf.mxu0
  %v1303 = vadd.f32 %v1285, %v1302
  %1304 = vmatmul.bf16.gmra.mxu0 %v390
  %v1305 = vpop.f32.mrf.mxu0
  %v1306 = vadd.f32 %v1288, %v1305
  %v1307 = vpop.f32.mrf.mxu0
  %1308 = vdwg.mxu0
  %1309 = vmatpush.bf16.msra.mxu0 %v1000
  %1310 = vmatpush.bf16.msra.mxu0 %v999
  %1311 = vmatpush.bf16.msra.mxu0 %v998
  %1312 = vmatpush.bf16.msra.mxu0 %v997
  %1313 = vmatpush.bf16.msra.mxu0 %v996
  %1314 = vmatpush.bf16.msra.mxu0 %v995
  %1315 = vmatpush.bf16.msra.mxu0 %v994
  %1316 = vmatpush.bf16.msra.mxu0 %v993
  %1317 = vmatmul.bf16.gmra.mxu0 %v375
  %v1318 = vpop.f32.mrf.mxu0
  %v1319 = vadd.f32 %v1301, %v1318
  %v1320 = vpop.f32.mrf.mxu0
  %v1321 = vadd.f32 %v1303, %v1320
  %1322 = vmatmul.bf16.gmra.mxu0 %v391
  %v1323 = vpop.f32.mrf.mxu0
  %v1324 = vadd.f32 %v1306, %v1323
  %v1325 = vpop.f32.mrf.mxu0
  %1326 = vdwg.mxu0
  %1327 = vmatpush.bf16.msra.mxu0 %v1008
  %1328 = vmatpush.bf16.msra.mxu0 %v1007
  %1329 = vmatpush.bf16.msra.mxu0 %v1006
  %1330 = vmatpush.bf16.msra.mxu0 %v1005
  %1331 = vmatpush.bf16.msra.mxu0 %v1004
  %1332 = vmatpush.bf16.msra.mxu0 %v1003
  %1333 = vmatpush.bf16.msra.mxu0 %v1002
  %1334 = vmatpush.bf16.msra.mxu0 %v1001
  %1335 = vmatmul.bf16.gmra.mxu0 %v376
  %v1336 = vpop.f32.mrf.mxu0
  %v1337 = vadd.f32 %v1319, %v1336
  %v1338 = vpop.f32.mrf.mxu0
  %v1339 = vadd.f32 %v1321, %v1338
  %1340 = vmatmul.bf16.gmra.mxu0 %v392
  %v1341 = vpop.f32.mrf.mxu0
  %v1342 = vadd.f32 %v1324, %v1341
  %v1343 = vpop.f32.mrf.mxu0
  %1344 = vdwg.mxu0
  %1345 = vmatpush.bf16.msra.mxu0 %v1016
  %1346 = vmatpush.bf16.msra.mxu0 %v1015
  %1347 = vmatpush.bf16.msra.mxu0 %v1014
  %1348 = vmatpush.bf16.msra.mxu0 %v1013
  %1349 = vmatpush.bf16.msra.mxu0 %v1012
  %1350 = vmatpush.bf16.msra.mxu0 %v1011
  %1351 = vmatpush.bf16.msra.mxu0 %v1010
  %1352 = vmatpush.bf16.msra.mxu0 %v1009
  %1353 = vmatmul.bf16.gmra.mxu0 %v377
  %v1354 = vpop.f32.mrf.mxu0
  %v1355 = vadd.f32 %v1337, %v1354
  %v1356 = vpop.f32.mrf.mxu0
  %v1357 = vadd.f32 %v1339, %v1356
  %1358 = vmatmul.bf16.gmra.mxu0 %v393
  %v1359 = vpop.f32.mrf.mxu0
  %v1360 = vadd.f32 %v1342, %v1359
  %v1361 = vpop.f32.mrf.mxu0
  %1362 = vdwg.mxu0
  %1363 = vmatpush.bf16.msra.mxu0 %v1024
  %1364 = vmatpush.bf16.msra.mxu0 %v1023
  %1365 = vmatpush.bf16.msra.mxu0 %v1022
  %1366 = vmatpush.bf16.msra.mxu0 %v1021
  %1367 = vmatpush.bf16.msra.mxu0 %v1020
  %1368 = vmatpush.bf16.msra.mxu0 %v1019
  %1369 = vmatpush.bf16.msra.mxu0 %v1018
  %1370 = vmatpush.bf16.msra.mxu0 %v1017
  %1371 = vmatmul.bf16.gmra.mxu0 %v378
  %v1372 = vpop.f32.mrf.mxu0
  %v1373 = vadd.f32 %v1355, %v1372
  %v1374 = vpop.f32.mrf.mxu0
  %v1375 = vadd.f32 %v1357, %v1374
  %1376 = vmatmul.bf16.gmra.mxu0 %v394
  %v1377 = vpop.f32.mrf.mxu0
  %v1378 = vadd.f32 %v1360, %v1377
  %v1379 = vpop.f32.mrf.mxu0
  %1380 = vdwg.mxu0
  %1381 = vmatpush.bf16.msra.mxu0 %v1032
  %1382 = vmatpush.bf16.msra.mxu0 %v1031
  %1383 = vmatpush.bf16.msra.mxu0 %v1030
  %1384 = vmatpush.bf16.msra.mxu0 %v1029
  %1385 = vmatpush.bf16.msra.mxu0 %v1028
  %1386 = vmatpush.bf16.msra.mxu0 %v1027
  %1387 = vmatpush.bf16.msra.mxu0 %v1026
  %1388 = vmatpush.bf16.msra.mxu0 %v1025
  %1389 = vmatmul.bf16.gmra.mxu0 %v379
  %v1390 = vpop.f32.mrf.mxu0
  %v1391 = vadd.f32 %v1373, %v1390
  %v1392 = vpop.f32.mrf.mxu0
  %v1393 = vadd.f32 %v1375, %v1392
  %1394 = vmatmul.bf16.gmra.mxu0 %v395
  %v1395 = vpop.f32.mrf.mxu0
  %v1396 = vadd.f32 %v1378, %v1395
  %v1397 = vpop.f32.mrf.mxu0
  %1398 = vdwg.mxu0
  %1399 = vmatpush.bf16.msra.mxu0 %v1040
  %1400 = vmatpush.bf16.msra.mxu0 %v1039
  %1401 = vmatpush.bf16.msra.mxu0 %v1038
  %1402 = vmatpush.bf16.msra.mxu0 %v1037
  %1403 = vmatpush.bf16.msra.mxu0 %v1036
  %1404 = vmatpush.bf16.msra.mxu0 %v1035
  %1405 = vmatpush.bf16.msra.mxu0 %v1034
  %1406 = vmatpush.bf16.msra.mxu0 %v1033
  %1407 = vmatmul.bf16.gmra.mxu0 %v380
  %v1408 = vpop.f32.mrf.mxu0
  %v1409 = vadd.f32 %v1391, %v1408
  %v1410 = vpop.f32.mrf.mxu0
  %v1411 = vadd.f32 %v1393, %v1410
  %1412 = vmatmul.bf16.gmra.mxu0 %v396
  %v1413 = vpop.f32.mrf.mxu0
  %v1414 = vadd.f32 %v1396, %v1413
  %v1415 = vpop.f32.mrf.mxu0
  %1416 = vdwg.mxu0
  %1417 = vmatpush.bf16.msra.mxu0 %v1048
  %1418 = vmatpush.bf16.msra.mxu0 %v1047
  %1419 = vmatpush.bf16.msra.mxu0 %v1046
  %1420 = vmatpush.bf16.msra.mxu0 %v1045
  %1421 = vmatpush.bf16.msra.mxu0 %v1044
  %1422 = vmatpush.bf16.msra.mxu0 %v1043
  %1423 = vmatpush.bf16.msra.mxu0 %v1042
  %1424 = vmatpush.bf16.msra.mxu0 %v1041
  %1425 = vmatmul.bf16.gmra.mxu0 %v381
  %v1426 = vpop.f32.mrf.mxu0
  %v1427 = vadd.f32 %v1409, %v1426
  %v1428 = vpop.f32.mrf.mxu0
  %v1429 = vadd.f32 %v1411, %v1428
  %1430 = vmatmul.bf16.gmra.mxu0 %v397
  %v1431 = vpop.f32.mrf.mxu0
  %v1432 = vadd.f32 %v1414, %v1431
  %v1433 = vpop.f32.mrf.mxu0
  %1434 = vdwg.mxu0
  %1435 = vmatpush.bf16.msra.mxu0 %v1056
  %1436 = vmatpush.bf16.msra.mxu0 %v1055
  %1437 = vmatpush.bf16.msra.mxu0 %v1054
  %1438 = vmatpush.bf16.msra.mxu0 %v1053
  %1439 = vmatpush.bf16.msra.mxu0 %v1052
  %1440 = vmatpush.bf16.msra.mxu0 %v1051
  %1441 = vmatpush.bf16.msra.mxu0 %v1050
  %1442 = vmatpush.bf16.msra.mxu0 %v1049
  %1443 = vmatmul.bf16.gmra.mxu0 %v382
  %v1444 = vpop.f32.mrf.mxu0
  %v1445 = vadd.f32 %v1427, %v1444
  %v1446 = vpop.f32.mrf.mxu0
  %v1447 = vadd.f32 %v1429, %v1446
  %1448 = vmatmul.bf16.gmra.mxu0 %v398
  %v1449 = vpop.f32.mrf.mxu0
  %v1450 = vadd.f32 %v1432, %v1449
  %v1451 = vpop.f32.mrf.mxu0
  %1452 = vdwg.mxu0
  %1453 = vmatpush.bf16.msra.mxu0 %v1064
  %1454 = vmatpush.bf16.msra.mxu0 %v1063
  %1455 = vmatpush.bf16.msra.mxu0 %v1062
  %1456 = vmatpush.bf16.msra.mxu0 %v1061
  %1457 = vmatpush.bf16.msra.mxu0 %v1060
  %1458 = vmatpush.bf16.msra.mxu0 %v1059
  %1459 = vmatpush.bf16.msra.mxu0 %v1058
  %1460 = vmatpush.bf16.msra.mxu0 %v1057
  %1461 = vmatmul.bf16.gmra.mxu0 %v383
  %v1462 = vpop.f32.mrf.mxu0
  %v1463 = vadd.f32 %v1445, %v1462
  %v1464 = vpop.f32.mrf.mxu0
  %v1465 = vadd.f32 %v1447, %v1464
  %1466 = vmatmul.bf16.gmra.mxu0 %v399
  %v1467 = vpop.f32.mrf.mxu0
  %v1468 = vadd.f32 %v1450, %v1467
  %v1469 = vpop.f32.mrf.mxu0
  %1470 = vdwg.mxu0
  %1471 = vmatpush.bf16.msra.mxu0 %v1072
  %1472 = vmatpush.bf16.msra.mxu0 %v1071
  %1473 = vmatpush.bf16.msra.mxu0 %v1070
  %1474 = vmatpush.bf16.msra.mxu0 %v1069
  %1475 = vmatpush.bf16.msra.mxu0 %v1068
  %1476 = vmatpush.bf16.msra.mxu0 %v1067
  %1477 = vmatpush.bf16.msra.mxu0 %v1066
  %1478 = vmatpush.bf16.msra.mxu0 %v1065
  %1479 = vmatmul.bf16.gmra.mxu0 %v384
  %v1480 = vpop.f32.mrf.mxu0
  %v1481 = vadd.f32 %v1463, %v1480
  %v1482 = vpop.f32.mrf.mxu0
  %v1483 = vadd.f32 %v1465, %v1482
  %1484 = vmatmul.bf16.gmra.mxu0 %v400
  %v1485 = vpop.f32.mrf.mxu0
  %v1486 = vadd.f32 %v1468, %v1485
  %v1487 = vpop.f32.mrf.mxu0
  %1488 = vdwg.mxu0
  %v1489 = vadd.f32 %v1481, %v1483
  %vm1490 = vcmask 1041408
  %v1491 = vsel %vm1490, %v1486, 0.0
  %v1492 = vadd.f32 %v1489, %v1491
  %v1493 = vrot.slane %v1492, 4
  %v1494 = vadd.f32 %v1492, %v1493
  %v1495 = vrot.slane %v1494, 2
  %v1496 = vadd.f32 %v1494, %v1495
  %v1497 = vrot.slane %v1496, 1
  %v1498 = vadd.f32 %v1496, %v1497
  %v1499 = vmul.f32 %v1498, 0.055555556
  %v1500 = vsub.f32 %v1481, %v1499
  %v1501 = vsub.f32 %v1483, %v1499
  %v1502 = vsub.f32 %v1486, %v1499
  %v1503 = vmul.f32 %v1500, %v1500
  %v1504 = vmul.f32 %v1501, %v1501
  %v1505 = vmul.f32 %v1502, %v1502
  %v1506 = vadd.f32 %v1503, %v1504
  %v1507 = vsel %vm1490, %v1505, 0.0
  %v1508 = vadd.f32 %v1506, %v1507
  %v1509 = vrot.slane %v1508, 4
  %v1510 = vadd.f32 %v1508, %v1509
  %v1511 = vrot.slane %v1510, 2
  %v1512 = vadd.f32 %v1510, %v1511
  %v1513 = vrot.slane %v1512, 1
  %v1514 = vadd.f32 %v1512, %v1513
  %v1515 = vmul.f32 %v1514, 0.055555556
  %v1516 = vadd.f32 %v1515, 1e-05
  %v1517 = vrsqrt.pop %v1516
  %v1518 = vmul.f32 %v1517, %v1516
  %v1519 = vmul.f32 %v1518, %v1517
  %v1520 = vmul.f32 0.5, %v1519
  %v1521 = vsub.f32 1.5, %v1520
  %v1522 = vmul.f32 %v1517, %v1521
  %vm1523 = vweird.f32 %v1516
  %vm1524 = vweird.f32 %v1517
  %vm1525 = vmor %vm1523, %vm1524
  %v1526 = vsel %vm1525, %v1517, %v1522
  %v1527 = vld [vmem:[%s2] sm:$0x1]
  %v1528 = vmul.f32 %v1526, %v1527
  %v1529 = vperm.slane %v1528, 0
  %v1530 = vmul.f32 %v1500, %v1529
  %v1531 = vmul.f32 %v1501, %v1529
  %v1532 = vmul.f32 %v1502, %v1529
  %v1533 = vld [vmem:[%s3] sm:$0x1]
  %v1535 = vperm.slane %v1533, 0
  %v1537 = vadd.f32 %v1530, %v1535
  %v1538 = vadd.f32 %v1531, %v1535
  %v1539 = vadd.f32 %v1532, %v1535
  %v1540 = vmul.f32 %v1537, 0.2
  %v1541 = vmul.f32 %v1538, 0.2
  %v1542 = vmul.f32 %v1539, 0.2
  %v1543 = vmax.f32 %v1537, %v1540
  %v1544 = vmax.f32 %v1538, %v1541
  %v1545 = vmax.f32 %v1539, %v1542
  %v1546 = vpack.c.bf16 %v1543, %v1543
  %v1547 = vpack.c.bf16 %v1544, %v1544
  %v1548 = vpack.c.bf16 %v1545, %v1545
  %1549 = vst [vmem:[%s4] sm:$0xf] %v1546
  %1550 = vst [vmem:[%s4 + $0x4] sm:$0xf] %v1547
  %1551 = vst [vmem:[%s4 + $0x8] sm:$0x1] %v1548
  // Predicated region
  $region18: #{_lambda_.8} parent=0 // pred_check
    _
  $region19: #{_lambda_.8} parent=0 // pred_check_branch
    %1553 = sbr.rel (0) target = $region21
  $region20: #{_lambda_.8} parent=0 // pred_region
    _
  $region21: #{_lambda_.8} parent=0 // pred_fallthru
    _
  // Predicated region
  $region22: #{_lambda_.8} parent=0 // pred_check
    _
  $region23: #{_lambda_.8} parent=0 // pred_check_branch
    %1555 = sbr.rel (0) target = $region25
  $region24: #{_lambda_.8} parent=0 // pred_region
    _
  $region25: #{_lambda_.8} parent=0 // pred_fallthru
    _

// kernel: _lambda_.9
$region0: #{_lambda_.9}
  #allocation0 [shape = 'u32[]', space=smem, size = 0x4, offset = 0x4, fixed_abs, tag = 'smem constant byte address 0x4 - core index']
  #allocation1 [shape = 'u32[72,128]{1,0:T(1,128)}', space=vmem, size = 0x9000, scoped, tag = 'internal scratch']
  %s0 = inlined_call_operand.vmem [shape: bf16[8,2048], index: 0, kind: input, shape index: {}]
  %s1 = inlined_call_operand.vmem [shape: bf16[2048,128], index: 1, kind: input, shape index: {}]
  %s2 = inlined_call_operand.vmem [shape: f32[1,128], index: 2, kind: input, shape index: {}]
  %s3 = inlined_call_operand.vmem [shape: f32[8,128], index: 3, kind: output, shape index: {}]
  %s4 = sld [smem:[#allocation0]]
  $region22: #{_lambda_.9} parent=0
    _
  %s6 = ssub.s32 1, %s4
  %s7 = scalar_select 0, %s6, %s4
  // Predicated region
  $region2: #{_lambda_.9} parent=0 // pred_check
    _
  $region3: #{_lambda_.9} parent=0 // pred_check_branch
    %9 = sbr.rel (0) target = $region5
  $region4: #{_lambda_.9} parent=0 // pred_region
    _
  $region5: #{_lambda_.9} parent=0 // pred_fallthru
    _
  // Predicated region
  $region6: #{_lambda_.9} parent=0 // pred_check
    _
  $region7: #{_lambda_.9} parent=0 // pred_check_branch
    %11 = sbr.rel (0) target = $region9
  $region8: #{_lambda_.9} parent=0 // pred_region
    _
  $region9: #{_lambda_.9} parent=0 // pred_fallthru
    _
  // Predicated region
  $region10: #{_lambda_.9} parent=0 // pred_check
    _
  $region11: #{_lambda_.9} parent=0 // pred_check_branch
    %13 = sbr.rel (0) target = $region13
  $region12: #{_lambda_.9} parent=0 // pred_region
    _
  $region13: #{_lambda_.9} parent=0 // pred_fallthru
    _
  %v14 = vld [vmem:[%s0] sm:$0xff]
  %v15 = vld [vmem:[%s0 + $0x8] sm:$0xff]
  %v16 = vld [vmem:[%s0 + $0x10] sm:$0xff]
  %v17 = vld [vmem:[%s0 + $0x18] sm:$0xff]
  %v18 = vld [vmem:[%s0 + $0x20] sm:$0xff]
  %v19 = vld [vmem:[%s0 + $0x28] sm:$0xff]
  %v20 = vld [vmem:[%s0 + $0x30] sm:$0xff]
  %v21 = vld [vmem:[%s0 + $0x38] sm:$0xff]
  %v22 = vld [vmem:[%s1] sm:$0xf]
  %v23 = vld [vmem:[%s1 + $0x4] sm:$0xf]
  %v24 = vld [vmem:[%s1 + $0x8] sm:$0xf]
  %v25 = vld [vmem:[%s1 + $0xc] sm:$0xf]
  %v26 = vld [vmem:[%s1 + $0x10] sm:$0xf]
  %v27 = vld [vmem:[%s1 + $0x14] sm:$0xf]
  %v28 = vld [vmem:[%s1 + $0x18] sm:$0xf]
  %v29 = vld [vmem:[%s1 + $0x1c] sm:$0xf]
  %v30 = vld [vmem:[%s1 + $0x20] sm:$0xf]
  %v31 = vld [vmem:[%s1 + $0x24] sm:$0xf]
  %v32 = vld [vmem:[%s1 + $0x28] sm:$0xf]
  %v33 = vld [vmem:[%s1 + $0x2c] sm:$0xf]
  %v34 = vld [vmem:[%s1 + $0x30] sm:$0xf]
  %v35 = vld [vmem:[%s1 + $0x34] sm:$0xf]
  %v36 = vld [vmem:[%s1 + $0x38] sm:$0xf]
  %v37 = vld [vmem:[%s1 + $0x3c] sm:$0xf]
  %v38 = vld [vmem:[%s1 + $0x40] sm:$0xf]
  %v39 = vld [vmem:[%s1 + $0x44] sm:$0xf]
  %v40 = vld [vmem:[%s1 + $0x48] sm:$0xf]
  %v41 = vld [vmem:[%s1 + $0x4c] sm:$0xf]
  %v42 = vld [vmem:[%s1 + $0x50] sm:$0xf]
  %v43 = vld [vmem:[%s1 + $0x54] sm:$0xf]
  %v44 = vld [vmem:[%s1 + $0x58] sm:$0xf]
  %v45 = vld [vmem:[%s1 + $0x5c] sm:$0xf]
  %v46 = vld [vmem:[%s1 + $0x60] sm:$0xf]
  %v47 = vld [vmem:[%s1 + $0x64] sm:$0xf]
  %v48 = vld [vmem:[%s1 + $0x68] sm:$0xf]
  %v49 = vld [vmem:[%s1 + $0x6c] sm:$0xf]
  %v50 = vld [vmem:[%s1 + $0x70] sm:$0xf]
  %v51 = vld [vmem:[%s1 + $0x74] sm:$0xf]
  %v52 = vld [vmem:[%s1 + $0x78] sm:$0xf]
  %v53 = vld [vmem:[%s1 + $0x7c] sm:$0xf]
  %v54 = vld [vmem:[%s1 + $0x80] sm:$0xf]
  %v55 = vld [vmem:[%s1 + $0x84] sm:$0xf]
  %v56 = vld [vmem:[%s1 + $0x88] sm:$0xf]
  %v57 = vld [vmem:[%s1 + $0x8c] sm:$0xf]
  %v58 = vld [vmem:[%s1 + $0x90] sm:$0xf]
  %v59 = vld [vmem:[%s1 + $0x94] sm:$0xf]
  %v60 = vld [vmem:[%s1 + $0x98] sm:$0xf]
  %v61 = vld [vmem:[%s1 + $0x9c] sm:$0xf]
  %v62 = vld [vmem:[%s1 + $0xa0] sm:$0xf]
  %v63 = vld [vmem:[%s1 + $0xa4] sm:$0xf]
  %v64 = vld [vmem:[%s1 + $0xa8] sm:$0xf]
  %v65 = vld [vmem:[%s1 + $0xac] sm:$0xf]
  %v66 = vld [vmem:[%s1 + $0xb0] sm:$0xf]
  %v67 = vld [vmem:[%s1 + $0xb4] sm:$0xf]
  %v68 = vld [vmem:[%s1 + $0xb8] sm:$0xf]
  %v69 = vld [vmem:[%s1 + $0xbc] sm:$0xf]
  %v70 = vld [vmem:[%s1 + $0xc0] sm:$0xf]
  %v71 = vld [vmem:[%s1 + $0xc4] sm:$0xf]
  %v72 = vld [vmem:[%s1 + $0xc8] sm:$0xf]
  %v73 = vld [vmem:[%s1 + $0xcc] sm:$0xf]
  %v74 = vld [vmem:[%s1 + $0xd0] sm:$0xf]
  %v75 = vld [vmem:[%s1 + $0xd4] sm:$0xf]
  %v76 = vld [vmem:[%s1 + $0xd8] sm:$0xf]
  %v77 = vld [vmem:[%s1 + $0xdc] sm:$0xf]
  %v78 = vld [vmem:[%s1 + $0xe0] sm:$0xf]
  %v79 = vld [vmem:[%s1 + $0xe4] sm:$0xf]
  %v80 = vld [vmem:[%s1 + $0xe8] sm:$0xf]
  %v81 = vld [vmem:[%s1 + $0xec] sm:$0xf]
  %v82 = vld [vmem:[%s1 + $0xf0] sm:$0xf]
  %v83 = vld [vmem:[%s1 + $0xf4] sm:$0xf]
  %v84 = vld [vmem:[%s1 + $0xf8] sm:$0xf]
  %v85 = vld [vmem:[%s1 + $0xfc] sm:$0xf]
  %v86 = vld [vmem:[%s1 + $0x100] sm:$0xf]
  %v87 = vld [vmem:[%s1 + $0x104] sm:$0xf]
  %v88 = vld [vmem:[%s1 + $0x108] sm:$0xf]
  %v89 = vld [vmem:[%s1 + $0x10c] sm:$0xf]
  %v90 = vld [vmem:[%s1 + $0x110] sm:$0xf]
  %v91 = vld [vmem:[%s1 + $0x114] sm:$0xf]
  %v92 = vld [vmem:[%s1 + $0x118] sm:$0xf]
  %v93 = vld [vmem:[%s1 + $0x11c] sm:$0xf]
  %v94 = vld [vmem:[%s1 + $0x120] sm:$0xf]
  %v95 = vld [vmem:[%s1 + $0x124] sm:$0xf]
  %v96 = vld [vmem:[%s1 + $0x128] sm:$0xf]
  %v97 = vld [vmem:[%s1 + $0x12c] sm:$0xf]
  %v98 = vld [vmem:[%s1 + $0x130] sm:$0xf]
  %v99 = vld [vmem:[%s1 + $0x134] sm:$0xf]
  %v100 = vld [vmem:[%s1 + $0x138] sm:$0xf]
  %v101 = vld [vmem:[%s1 + $0x13c] sm:$0xf]
  %v102 = vld [vmem:[%s1 + $0x140] sm:$0xf]
  %v103 = vld [vmem:[%s1 + $0x144] sm:$0xf]
  %v104 = vld [vmem:[%s1 + $0x148] sm:$0xf]
  %v105 = vld [vmem:[%s1 + $0x14c] sm:$0xf]
  %v106 = vld [vmem:[%s1 + $0x150] sm:$0xf]
  %v107 = vld [vmem:[%s1 + $0x154] sm:$0xf]
  %v108 = vld [vmem:[%s1 + $0x158] sm:$0xf]
  %v109 = vld [vmem:[%s1 + $0x15c] sm:$0xf]
  %v110 = vld [vmem:[%s1 + $0x160] sm:$0xf]
  %v111 = vld [vmem:[%s1 + $0x164] sm:$0xf]
  %v112 = vld [vmem:[%s1 + $0x168] sm:$0xf]
  %v113 = vld [vmem:[%s1 + $0x16c] sm:$0xf]
  %v114 = vld [vmem:[%s1 + $0x170] sm:$0xf]
  %v115 = vld [vmem:[%s1 + $0x174] sm:$0xf]
  %v116 = vld [vmem:[%s1 + $0x178] sm:$0xf]
  %v117 = vld [vmem:[%s1 + $0x17c] sm:$0xf]
  %v118 = vld [vmem:[%s1 + $0x180] sm:$0xf]
  %v119 = vld [vmem:[%s1 + $0x184] sm:$0xf]
  %v120 = vld [vmem:[%s1 + $0x188] sm:$0xf]
  %v121 = vld [vmem:[%s1 + $0x18c] sm:$0xf]
  %v122 = vld [vmem:[%s1 + $0x190] sm:$0xf]
  %v123 = vld [vmem:[%s1 + $0x194] sm:$0xf]
  %v124 = vld [vmem:[%s1 + $0x198] sm:$0xf]
  %v125 = vld [vmem:[%s1 + $0x19c] sm:$0xf]
  %v126 = vld [vmem:[%s1 + $0x1a0] sm:$0xf]
  %v127 = vld [vmem:[%s1 + $0x1a4] sm:$0xf]
  %v128 = vld [vmem:[%s1 + $0x1a8] sm:$0xf]
  %v129 = vld [vmem:[%s1 + $0x1ac] sm:$0xf]
  %v130 = vld [vmem:[%s1 + $0x1b0] sm:$0xf]
  %v131 = vld [vmem:[%s1 + $0x1b4] sm:$0xf]
  %v132 = vld [vmem:[%s1 + $0x1b8] sm:$0xf]
  %v133 = vld [vmem:[%s1 + $0x1bc] sm:$0xf]
  %v134 = vld [vmem:[%s1 + $0x1c0] sm:$0xf]
  %v135 = vld [vmem:[%s1 + $0x1c4] sm:$0xf]
  %v136 = vld [vmem:[%s1 + $0x1c8] sm:$0xf]
  %v137 = vld [vmem:[%s1 + $0x1cc] sm:$0xf]
  %v138 = vld [vmem:[%s1 + $0x1d0] sm:$0xf]
  %v139 = vld [vmem:[%s1 + $0x1d4] sm:$0xf]
  %v140 = vld [vmem:[%s1 + $0x1d8] sm:$0xf]
  %v141 = vld [vmem:[%s1 + $0x1dc] sm:$0xf]
  %v142 = vld [vmem:[%s1 + $0x1e0] sm:$0xf]
  %v143 = vld [vmem:[%s1 + $0x1e4] sm:$0xf]
  %v144 = vld [vmem:[%s1 + $0x1e8] sm:$0xf]
  %v145 = vld [vmem:[%s1 + $0x1ec] sm:$0xf]
  %v146 = vld [vmem:[%s1 + $0x1f0] sm:$0xf]
  %v147 = vld [vmem:[%s1 + $0x1f4] sm:$0xf]
  %v148 = vld [vmem:[%s1 + $0x1f8] sm:$0xf]
  %v149 = vld [vmem:[%s1 + $0x1fc] sm:$0xf]
  %v150 = vld [vmem:[%s1 + $0x200] sm:$0xf]
  %v151 = vld [vmem:[%s1 + $0x204] sm:$0xf]
  %v152 = vld [vmem:[%s1 + $0x208] sm:$0xf]
  %v153 = vld [vmem:[%s1 + $0x20c] sm:$0xf]
  %v154 = vld [vmem:[%s1 + $0x210] sm:$0xf]
  %v155 = vld [vmem:[%s1 + $0x214] sm:$0xf]
  %v156 = vld [vmem:[%s1 + $0x218] sm:$0xf]
  %v157 = vld [vmem:[%s1 + $0x21c] sm:$0xf]
  %v158 = vld [vmem:[%s1 + $0x220] sm:$0xf]
  %v159 = vld [vmem:[%s1 + $0x224] sm:$0xf]
  %v160 = vld [vmem:[%s1 + $0x228] sm:$0xf]
  %v161 = vld [vmem:[%s1 + $0x22c] sm:$0xf]
  %v162 = vld [vmem:[%s1 + $0x230] sm:$0xf]
  %v163 = vld [vmem:[%s1 + $0x234] sm:$0xf]
  %v164 = vld [vmem:[%s1 + $0x238] sm:$0xf]
  %v165 = vld [vmem:[%s1 + $0x23c] sm:$0xf]
  %v166 = vld [vmem:[%s1 + $0x240] sm:$0xf]
  %v167 = vld [vmem:[%s1 + $0x244] sm:$0xf]
  %v168 = vld [vmem:[%s1 + $0x248] sm:$0xf]
  %v169 = vld [vmem:[%s1 + $0x24c] sm:$0xf]
  %v170 = vld [vmem:[%s1 + $0x250] sm:$0xf]
  %v171 = vld [vmem:[%s1 + $0x254] sm:$0xf]
  %v172 = vld [vmem:[%s1 + $0x258] sm:$0xf]
  %v173 = vld [vmem:[%s1 + $0x25c] sm:$0xf]
  %v174 = vld [vmem:[%s1 + $0x260] sm:$0xf]
  %v175 = vld [vmem:[%s1 + $0x264] sm:$0xf]
  %v176 = vld [vmem:[%s1 + $0x268] sm:$0xf]
  %v177 = vld [vmem:[%s1 + $0x26c] sm:$0xf]
  %v178 = vld [vmem:[%s1 + $0x270] sm:$0xf]
  %v179 = vld [vmem:[%s1 + $0x274] sm:$0xf]
  %v180 = vld [vmem:[%s1 + $0x278] sm:$0xf]
  %v181 = vld [vmem:[%s1 + $0x27c] sm:$0xf]
  %v182 = vld [vmem:[%s1 + $0x280] sm:$0xf]
  %v183 = vld [vmem:[%s1 + $0x284] sm:$0xf]
  %v184 = vld [vmem:[%s1 + $0x288] sm:$0xf]
  %v185 = vld [vmem:[%s1 + $0x28c] sm:$0xf]
  %v186 = vld [vmem:[%s1 + $0x290] sm:$0xf]
  %v187 = vld [vmem:[%s1 + $0x294] sm:$0xf]
  %v188 = vld [vmem:[%s1 + $0x298] sm:$0xf]
  %v189 = vld [vmem:[%s1 + $0x29c] sm:$0xf]
  %v190 = vld [vmem:[%s1 + $0x2a0] sm:$0xf]
  %v191 = vld [vmem:[%s1 + $0x2a4] sm:$0xf]
  %v192 = vld [vmem:[%s1 + $0x2a8] sm:$0xf]
  %v193 = vld [vmem:[%s1 + $0x2ac] sm:$0xf]
  %v194 = vld [vmem:[%s1 + $0x2b0] sm:$0xf]
  %v195 = vld [vmem:[%s1 + $0x2b4] sm:$0xf]
  %v196 = vld [vmem:[%s1 + $0x2b8] sm:$0xf]
  %v197 = vld [vmem:[%s1 + $0x2bc] sm:$0xf]
  %v198 = vld [vmem:[%s1 + $0x2c0] sm:$0xf]
  %v199 = vld [vmem:[%s1 + $0x2c4] sm:$0xf]
  %v200 = vld [vmem:[%s1 + $0x2c8] sm:$0xf]
  %v201 = vld [vmem:[%s1 + $0x2cc] sm:$0xf]
  %v202 = vld [vmem:[%s1 + $0x2d0] sm:$0xf]
  %v203 = vld [vmem:[%s1 + $0x2d4] sm:$0xf]
  %v204 = vld [vmem:[%s1 + $0x2d8] sm:$0xf]
  %v205 = vld [vmem:[%s1 + $0x2dc] sm:$0xf]
  %v206 = vld [vmem:[%s1 + $0x2e0] sm:$0xf]
  %v207 = vld [vmem:[%s1 + $0x2e4] sm:$0xf]
  %v208 = vld [vmem:[%s1 + $0x2e8] sm:$0xf]
  %v209 = vld [vmem:[%s1 + $0x2ec] sm:$0xf]
  %v210 = vld [vmem:[%s1 + $0x2f0] sm:$0xf]
  %v211 = vld [vmem:[%s1 + $0x2f4] sm:$0xf]
  %v212 = vld [vmem:[%s1 + $0x2f8] sm:$0xf]
  %v213 = vld [vmem:[%s1 + $0x2fc] sm:$0xf]
  %v214 = vld [vmem:[%s1 + $0x300] sm:$0xf]
  %v215 = vld [vmem:[%s1 + $0x304] sm:$0xf]
  %v216 = vld [vmem:[%s1 + $0x308] sm:$0xf]
  %v217 = vld [vmem:[%s1 + $0x30c] sm:$0xf]
  %v218 = vld [vmem:[%s1 + $0x310] sm:$0xf]
  %v219 = vld [vmem:[%s1 + $0x314] sm:$0xf]
  %v220 = vld [vmem:[%s1 + $0x318] sm:$0xf]
  %v221 = vld [vmem:[%s1 + $0x31c] sm:$0xf]
  %v222 = vld [vmem:[%s1 + $0x320] sm:$0xf]
  %v223 = vld [vmem:[%s1 + $0x324] sm:$0xf]
  %v224 = vld [vmem:[%s1 + $0x328] sm:$0xf]
  %v225 = vld [vmem:[%s1 + $0x32c] sm:$0xf]
  %v226 = vld [vmem:[%s1 + $0x330] sm:$0xf]
  %v227 = vld [vmem:[%s1 + $0x334] sm:$0xf]
  %v228 = vld [vmem:[%s1 + $0x338] sm:$0xf]
  %v229 = vld [vmem:[%s1 + $0x33c] sm:$0xf]
  %v230 = vld [vmem:[%s1 + $0x340] sm:$0xf]
  %v231 = vld [vmem:[%s1 + $0x344] sm:$0xf]
  %v232 = vld [vmem:[%s1 + $0x348] sm:$0xf]
  %v233 = vld [vmem:[%s1 + $0x34c] sm:$0xf]
  %v234 = vld [vmem:[%s1 + $0x350] sm:$0xf]
  %v235 = vld [vmem:[%s1 + $0x354] sm:$0xf]
  %v236 = vld [vmem:[%s1 + $0x358] sm:$0xf]
  %v237 = vld [vmem:[%s1 + $0x35c] sm:$0xf]
  %v238 = vld [vmem:[%s1 + $0x360] sm:$0xf]
  %v239 = vld [vmem:[%s1 + $0x364] sm:$0xf]
  %v240 = vld [vmem:[%s1 + $0x368] sm:$0xf]
  %v241 = vld [vmem:[%s1 + $0x36c] sm:$0xf]
  %v242 = vld [vmem:[%s1 + $0x370] sm:$0xf]
  %v243 = vld [vmem:[%s1 + $0x374] sm:$0xf]
  %v244 = vld [vmem:[%s1 + $0x378] sm:$0xf]
  %v245 = vld [vmem:[%s1 + $0x37c] sm:$0xf]
  %v246 = vld [vmem:[%s1 + $0x380] sm:$0xf]
  %v247 = vld [vmem:[%s1 + $0x384] sm:$0xf]
  %v248 = vld [vmem:[%s1 + $0x388] sm:$0xf]
  %v249 = vld [vmem:[%s1 + $0x38c] sm:$0xf]
  %v250 = vld [vmem:[%s1 + $0x390] sm:$0xf]
  %v251 = vld [vmem:[%s1 + $0x394] sm:$0xf]
  %v252 = vld [vmem:[%s1 + $0x398] sm:$0xf]
  %v253 = vld [vmem:[%s1 + $0x39c] sm:$0xf]
  %v254 = vld [vmem:[%s1 + $0x3a0] sm:$0xf]
  %v255 = vld [vmem:[%s1 + $0x3a4] sm:$0xf]
  %v256 = vld [vmem:[%s1 + $0x3a8] sm:$0xf]
  %v257 = vld [vmem:[%s1 + $0x3ac] sm:$0xf]
  %v258 = vld [vmem:[%s1 + $0x3b0] sm:$0xf]
  %v259 = vld [vmem:[%s1 + $0x3b4] sm:$0xf]
  %v260 = vld [vmem:[%s1 + $0x3b8] sm:$0xf]
  %v261 = vld [vmem:[%s1 + $0x3bc] sm:$0xf]
  %v262 = vld [vmem:[%s1 + $0x3c0] sm:$0xf]
  %v263 = vld [vmem:[%s1 + $0x3c4] sm:$0xf]
  %v264 = vld [vmem:[%s1 + $0x3c8] sm:$0xf]
  %v265 = vld [vmem:[%s1 + $0x3cc] sm:$0xf]
  %v266 = vld [vmem:[%s1 + $0x3d0] sm:$0xf]
  %v267 = vld [vmem:[%s1 + $0x3d4] sm:$0xf]
  %v268 = vld [vmem:[%s1 + $0x3d8] sm:$0xf]
  %v269 = vld [vmem:[%s1 + $0x3dc] sm:$0xf]
  %v270 = vld [vmem:[%s1 + $0x3e0] sm:$0xf]
  %v271 = vld [vmem:[%s1 + $0x3e4] sm:$0xf]
  %v272 = vld [vmem:[%s1 + $0x3e8] sm:$0xf]
  %v273 = vld [vmem:[%s1 + $0x3ec] sm:$0xf]
  %v274 = vld [vmem:[%s1 + $0x3f0] sm:$0xf]
  %v275 = vld [vmem:[%s1 + $0x3f4] sm:$0xf]
  %v276 = vld [vmem:[%s1 + $0x3f8] sm:$0xf]
  %v277 = vld [vmem:[%s1 + $0x3fc] sm:$0xf]
  %v278 = vld [vmem:[%s2] sm:$0x1]
  %v280 = vperm.slane %v278, 0
  %v290 = vunpack.c.l.b16 %v14
  %v291 = vunpack.c.h.b16 %v14
  %v292 = vunpack.c.l.b16 %v15
  %v293 = vunpack.c.h.b16 %v15
  %v294 = vunpack.c.l.b16 %v16
  %v295 = vunpack.c.h.b16 %v16
  %v296 = vunpack.c.l.b16 %v17
  %v297 = vunpack.c.h.b16 %v17
  %v298 = vunpack.c.l.b16 %v18
  %v299 = vunpack.c.h.b16 %v18
  %v300 = vunpack.c.l.b16 %v19
  %v301 = vunpack.c.h.b16 %v19
  %v302 = vunpack.c.l.b16 %v20
  %v303 = vunpack.c.h.b16 %v20
  %v304 = vunpack.c.l.b16 %v21
  %v305 = vunpack.c.h.b16 %v21
  %v306 = vpack.c.b16 %v290, %v290
  %v307 = vpack.c.b16 %v291, %v291
  %v308 = vpack.c.b16 %v292, %v292
  %v309 = vpack.c.b16 %v293, %v293
  %v310 = vpack.c.b16 %v294, %v294
  %v311 = vpack.c.b16 %v295, %v295
  %v312 = vpack.c.b16 %v296, %v296
  %v313 = vpack.c.b16 %v297, %v297
  %v314 = vpack.c.b16 %v298, %v298
  %v315 = vpack.c.b16 %v299, %v299
  %v316 = vpack.c.b16 %v300, %v300
  %v317 = vpack.c.b16 %v301, %v301
  %v318 = vpack.c.b16 %v302, %v302
  %v319 = vpack.c.b16 %v303, %v303
  %v320 = vpack.c.b16 %v304, %v304
  %v321 = vpack.c.b16 %v305, %v305
  %v594 = vunpack.c.l.b16 %v22
  %v595 = vunpack.c.l.b16 %v23
  %v596 = vunpack.c.l.b16 %v24
  %v597 = vunpack.c.l.b16 %v25
  %v598 = vunpack.c.l.b16 %v26
  %v599 = vunpack.c.l.b16 %v27
  %v600 = vunpack.c.l.b16 %v28
  %v601 = vunpack.c.l.b16 %v29
  %v602 = vunpack.c.l.b16 %v30
  %v603 = vunpack.c.l.b16 %v31
  %v604 = vunpack.c.l.b16 %v32
  %v605 = vunpack.c.l.b16 %v33
  %v606 = vunpack.c.l.b16 %v34
  %v607 = vunpack.c.l.b16 %v35
  %v608 = vunpack.c.l.b16 %v36
  %v609 = vunpack.c.l.b16 %v37
  %v610 = vunpack.c.l.b16 %v38
  %v611 = vunpack.c.l.b16 %v39
  %v612 = vunpack.c.l.b16 %v40
  %v613 = vunpack.c.l.b16 %v41
  %v614 = vunpack.c.l.b16 %v42
  %v615 = vunpack.c.l.b16 %v43
  %v616 = vunpack.c.l.b16 %v44
  %v617 = vunpack.c.l.b16 %v45
  %v618 = vunpack.c.l.b16 %v46
  %v619 = vunpack.c.l.b16 %v47
  %v620 = vunpack.c.l.b16 %v48
  %v621 = vunpack.c.l.b16 %v49
  %v622 = vunpack.c.l.b16 %v50
  %v623 = vunpack.c.l.b16 %v51
  %v624 = vunpack.c.l.b16 %v52
  %v625 = vunpack.c.l.b16 %v53
  %v626 = vunpack.c.l.b16 %v54
  %v627 = vunpack.c.l.b16 %v55
  %v628 = vunpack.c.l.b16 %v56
  %v629 = vunpack.c.l.b16 %v57
  %v630 = vunpack.c.l.b16 %v58
  %v631 = vunpack.c.l.b16 %v59
  %v632 = vunpack.c.l.b16 %v60
  %v633 = vunpack.c.l.b16 %v61
  %v634 = vunpack.c.l.b16 %v62
  %v635 = vunpack.c.l.b16 %v63
  %v636 = vunpack.c.l.b16 %v64
  %v637 = vunpack.c.l.b16 %v65
  %v638 = vunpack.c.l.b16 %v66
  %v639 = vunpack.c.l.b16 %v67
  %v640 = vunpack.c.l.b16 %v68
  %v641 = vunpack.c.l.b16 %v69
  %v642 = vunpack.c.l.b16 %v70
  %v643 = vunpack.c.l.b16 %v71
  %v644 = vunpack.c.l.b16 %v72
  %v645 = vunpack.c.l.b16 %v73
  %v646 = vunpack.c.l.b16 %v74
  %v647 = vunpack.c.l.b16 %v75
  %v648 = vunpack.c.l.b16 %v76
  %v649 = vunpack.c.l.b16 %v77
  %v650 = vunpack.c.l.b16 %v78
  %v651 = vunpack.c.l.b16 %v79
  %v652 = vunpack.c.l.b16 %v80
  %v653 = vunpack.c.l.b16 %v81
  %v654 = vunpack.c.l.b16 %v82
  %v655 = vunpack.c.l.b16 %v83
  %v656 = vunpack.c.l.b16 %v84
  %v657 = vunpack.c.l.b16 %v85
  %v658 = vunpack.c.l.b16 %v86
  %v659 = vunpack.c.l.b16 %v87
  %v660 = vunpack.c.l.b16 %v88
  %v661 = vunpack.c.l.b16 %v89
  %v662 = vunpack.c.l.b16 %v90
  %v663 = vunpack.c.l.b16 %v91
  %v664 = vunpack.c.l.b16 %v92
  %v665 = vunpack.c.l.b16 %v93
  %v666 = vunpack.c.l.b16 %v94
  %v667 = vunpack.c.l.b16 %v95
  %v668 = vunpack.c.l.b16 %v96
  %v669 = vunpack.c.l.b16 %v97
  %v670 = vunpack.c.l.b16 %v98
  %v671 = vunpack.c.l.b16 %v99
  %v672 = vunpack.c.l.b16 %v100
  %v673 = vunpack.c.l.b16 %v101
  %v674 = vunpack.c.l.b16 %v102
  %v675 = vunpack.c.l.b16 %v103
  %v676 = vunpack.c.l.b16 %v104
  %v677 = vunpack.c.l.b16 %v105
  %v678 = vunpack.c.l.b16 %v106
  %v679 = vunpack.c.l.b16 %v107
  %v680 = vunpack.c.l.b16 %v108
  %v681 = vunpack.c.l.b16 %v109
  %v682 = vunpack.c.l.b16 %v110
  %v683 = vunpack.c.l.b16 %v111
  %v684 = vunpack.c.l.b16 %v112
  %v685 = vunpack.c.l.b16 %v113
  %v686 = vunpack.c.l.b16 %v114
  %v687 = vunpack.c.l.b16 %v115
  %v688 = vunpack.c.l.b16 %v116
  %v689 = vunpack.c.l.b16 %v117
  %v690 = vunpack.c.l.b16 %v118
  %v691 = vunpack.c.l.b16 %v119
  %v692 = vunpack.c.l.b16 %v120
  %v693 = vunpack.c.l.b16 %v121
  %v694 = vunpack.c.l.b16 %v122
  %v695 = vunpack.c.l.b16 %v123
  %v696 = vunpack.c.l.b16 %v124
  %v697 = vunpack.c.l.b16 %v125
  %v698 = vunpack.c.l.b16 %v126
  %v699 = vunpack.c.l.b16 %v127
  %v700 = vunpack.c.l.b16 %v128
  %v701 = vunpack.c.l.b16 %v129
  %v702 = vunpack.c.l.b16 %v130
  %v703 = vunpack.c.l.b16 %v131
  %v704 = vunpack.c.l.b16 %v132
  %v705 = vunpack.c.l.b16 %v133
  %v706 = vunpack.c.l.b16 %v134
  %v707 = vunpack.c.l.b16 %v135
  %v708 = vunpack.c.l.b16 %v136
  %v709 = vunpack.c.l.b16 %v137
  %v710 = vunpack.c.l.b16 %v138
  %v711 = vunpack.c.l.b16 %v139
  %v712 = vunpack.c.l.b16 %v140
  %v713 = vunpack.c.l.b16 %v141
  %v714 = vunpack.c.l.b16 %v142
  %v715 = vunpack.c.l.b16 %v143
  %v716 = vunpack.c.l.b16 %v144
  %v717 = vunpack.c.l.b16 %v145
  %v718 = vunpack.c.l.b16 %v146
  %v719 = vunpack.c.l.b16 %v147
  %v720 = vunpack.c.l.b16 %v148
  %v721 = vunpack.c.l.b16 %v149
  %v722 = vunpack.c.l.b16 %v150
  %v723 = vunpack.c.l.b16 %v151
  %v724 = vunpack.c.l.b16 %v152
  %v725 = vunpack.c.l.b16 %v153
  %v726 = vunpack.c.l.b16 %v154
  %v727 = vunpack.c.l.b16 %v155
  %v728 = vunpack.c.l.b16 %v156
  %v729 = vunpack.c.l.b16 %v157
  %v730 = vunpack.c.l.b16 %v158
  %v731 = vunpack.c.l.b16 %v159
  %v732 = vunpack.c.l.b16 %v160
  %v733 = vunpack.c.l.b16 %v161
  %v734 = vunpack.c.l.b16 %v162
  %v735 = vunpack.c.l.b16 %v163
  %v736 = vunpack.c.l.b16 %v164
  %v737 = vunpack.c.l.b16 %v165
  %v738 = vunpack.c.l.b16 %v166
  %v739 = vunpack.c.l.b16 %v167
  %v740 = vunpack.c.l.b16 %v168
  %v741 = vunpack.c.l.b16 %v169
  %v742 = vunpack.c.l.b16 %v170
  %v743 = vunpack.c.l.b16 %v171
  %v744 = vunpack.c.l.b16 %v172
  %v745 = vunpack.c.l.b16 %v173
  %v746 = vunpack.c.l.b16 %v174
  %v747 = vunpack.c.l.b16 %v175
  %v748 = vunpack.c.l.b16 %v176
  %v749 = vunpack.c.l.b16 %v177
  %v750 = vunpack.c.l.b16 %v178
  %v751 = vunpack.c.l.b16 %v179
  %v752 = vunpack.c.l.b16 %v180
  %v753 = vunpack.c.l.b16 %v181
  %v754 = vunpack.c.l.b16 %v182
  %v755 = vunpack.c.l.b16 %v183
  %v756 = vunpack.c.l.b16 %v184
  %v757 = vunpack.c.l.b16 %v185
  %v758 = vunpack.c.l.b16 %v186
  %v759 = vunpack.c.l.b16 %v187
  %v760 = vunpack.c.l.b16 %v188
  %v761 = vunpack.c.l.b16 %v189
  %v762 = vunpack.c.l.b16 %v190
  %v763 = vunpack.c.l.b16 %v191
  %v764 = vunpack.c.l.b16 %v192
  %v765 = vunpack.c.l.b16 %v193
  %v766 = vunpack.c.l.b16 %v194
  %v767 = vunpack.c.l.b16 %v195
  %v768 = vunpack.c.l.b16 %v196
  %v769 = vunpack.c.l.b16 %v197
  %v770 = vunpack.c.l.b16 %v198
  %v771 = vunpack.c.l.b16 %v199
  %v772 = vunpack.c.l.b16 %v200
  %v773 = vunpack.c.l.b16 %v201
  %v774 = vunpack.c.l.b16 %v202
  %v775 = vunpack.c.l.b16 %v203
  %v776 = vunpack.c.l.b16 %v204
  %v777 = vunpack.c.l.b16 %v205
  %v778 = vunpack.c.l.b16 %v206
  %v779 = vunpack.c.l.b16 %v207
  %v780 = vunpack.c.l.b16 %v208
  %v781 = vunpack.c.l.b16 %v209
  %v782 = vunpack.c.l.b16 %v210
  %v783 = vunpack.c.l.b16 %v211
  %v784 = vunpack.c.l.b16 %v212
  %v785 = vunpack.c.l.b16 %v213
  %v786 = vunpack.c.l.b16 %v214
  %v787 = vunpack.c.l.b16 %v215
  %v788 = vunpack.c.l.b16 %v216
  %v789 = vunpack.c.l.b16 %v217
  %v790 = vunpack.c.l.b16 %v218
  %v791 = vunpack.c.l.b16 %v219
  %v792 = vunpack.c.l.b16 %v220
  %v793 = vunpack.c.l.b16 %v221
  %v794 = vunpack.c.l.b16 %v222
  %v795 = vunpack.c.l.b16 %v223
  %v796 = vunpack.c.l.b16 %v224
  %v797 = vunpack.c.l.b16 %v225
  %v798 = vunpack.c.l.b16 %v226
  %v799 = vunpack.c.l.b16 %v227
  %v800 = vunpack.c.l.b16 %v228
  %v801 = vunpack.c.l.b16 %v229
  %v802 = vunpack.c.l.b16 %v230
  %v803 = vunpack.c.l.b16 %v231
  %v804 = vunpack.c.l.b16 %v232
  %v805 = vunpack.c.l.b16 %v233
  %v806 = vunpack.c.l.b16 %v234
  %v807 = vunpack.c.l.b16 %v235
  %v808 = vunpack.c.l.b16 %v236
  %v809 = vunpack.c.l.b16 %v237
  %v810 = vunpack.c.l.b16 %v238
  %v811 = vunpack.c.l.b16 %v239
  %v812 = vunpack.c.l.b16 %v240
  %v813 = vunpack.c.l.b16 %v241
  %v814 = vunpack.c.l.b16 %v242
  %v815 = vunpack.c.l.b16 %v243
  %v816 = vunpack.c.l.b16 %v244
  %v817 = vunpack.c.l.b16 %v245
  %v818 = vunpack.c.l.b16 %v246
  %v819 = vunpack.c.l.b16 %v247
  %v820 = vunpack.c.l.b16 %v248
  %v821 = vunpack.c.l.b16 %v249
  %v822 = vunpack.c.l.b16 %v250
  %v823 = vunpack.c.l.b16 %v251
  %v824 = vunpack.c.l.b16 %v252
  %v825 = vunpack.c.l.b16 %v253
  %v826 = vunpack.c.l.b16 %v254
  %v827 = vunpack.c.l.b16 %v255
  %v828 = vunpack.c.l.b16 %v256
  %v829 = vunpack.c.l.b16 %v257
  %v830 = vunpack.c.l.b16 %v258
  %v831 = vunpack.c.l.b16 %v259
  %v832 = vunpack.c.l.b16 %v260
  %v833 = vunpack.c.l.b16 %v261
  %v834 = vunpack.c.l.b16 %v262
  %v835 = vunpack.c.l.b16 %v263
  %v836 = vunpack.c.l.b16 %v264
  %v837 = vunpack.c.l.b16 %v265
  %v838 = vunpack.c.l.b16 %v266
  %v839 = vunpack.c.l.b16 %v267
  %v840 = vunpack.c.l.b16 %v268
  %v841 = vunpack.c.l.b16 %v269
  %v842 = vunpack.c.l.b16 %v270
  %v843 = vunpack.c.l.b16 %v271
  %v844 = vunpack.c.l.b16 %v272
  %v845 = vunpack.c.l.b16 %v273
  %v846 = vunpack.c.l.b16 %v274
  %v847 = vunpack.c.l.b16 %v275
  %v848 = vunpack.c.l.b16 %v276
  %v849 = vunpack.c.l.b16 %v277
  %v850 = vpack.c.b16 %v595, %v594
  %v851 = vpack.c.b16 %v597, %v596
  %v852 = vpack.c.b16 %v599, %v598
  %v853 = vpack.c.b16 %v601, %v600
  %v854 = vpack.c.b16 %v603, %v602
  %v855 = vpack.c.b16 %v605, %v604
  %v856 = vpack.c.b16 %v607, %v606
  %v857 = vpack.c.b16 %v609, %v608
  %v858 = vpack.c.b16 %v611, %v610
  %v859 = vpack.c.b16 %v613, %v612
  %v860 = vpack.c.b16 %v615, %v614
  %v861 = vpack.c.b16 %v617, %v616
  %v862 = vpack.c.b16 %v619, %v618
  %v863 = vpack.c.b16 %v621, %v620
  %v864 = vpack.c.b16 %v623, %v622
  %v865 = vpack.c.b16 %v625, %v624
  %v866 = vpack.c.b16 %v627, %v626
  %v867 = vpack.c.b16 %v629, %v628
  %v868 = vpack.c.b16 %v631, %v630
  %v869 = vpack.c.b16 %v633, %v632
  %v870 = vpack.c.b16 %v635, %v634
  %v871 = vpack.c.b16 %v637, %v636
  %v872 = vpack.c.b16 %v639, %v638
  %v873 = vpack.c.b16 %v641, %v640
  %v874 = vpack.c.b16 %v643, %v642
  %v875 = vpack.c.b16 %v645, %v644
  %v876 = vpack.c.b16 %v647, %v646
  %v877 = vpack.c.b16 %v649, %v648
  %v878 = vpack.c.b16 %v651, %v650
  %v879 = vpack.c.b16 %v653, %v652
  %v880 = vpack.c.b16 %v655, %v654
  %v881 = vpack.c.b16 %v657, %v656
  %v882 = vpack.c.b16 %v659, %v658
  %v883 = vpack.c.b16 %v661, %v660
  %v884 = vpack.c.b16 %v663, %v662
  %v885 = vpack.c.b16 %v665, %v664
  %v886 = vpack.c.b16 %v667, %v666
  %v887 = vpack.c.b16 %v669, %v668
  %v888 = vpack.c.b16 %v671, %v670
  %v889 = vpack.c.b16 %v673, %v672
  %v890 = vpack.c.b16 %v675, %v674
  %v891 = vpack.c.b16 %v677, %v676
  %v892 = vpack.c.b16 %v679, %v678
  %v893 = vpack.c.b16 %v681, %v680
  %v894 = vpack.c.b16 %v683, %v682
  %v895 = vpack.c.b16 %v685, %v684
  %v896 = vpack.c.b16 %v687, %v686
  %v897 = vpack.c.b16 %v689, %v688
  %v898 = vpack.c.b16 %v691, %v690
  %v899 = vpack.c.b16 %v693, %v692
  %v900 = vpack.c.b16 %v695, %v694
  %v901 = vpack.c.b16 %v697, %v696
  %v902 = vpack.c.b16 %v699, %v698
  %v903 = vpack.c.b16 %v701, %v700
  %v904 = vpack.c.b16 %v703, %v702
  %v905 = vpack.c.b16 %v705, %v704
  %v906 = vpack.c.b16 %v707, %v706
  %v907 = vpack.c.b16 %v709, %v708
  %v908 = vpack.c.b16 %v711, %v710
  %v909 = vpack.c.b16 %v713, %v712
  %v910 = vpack.c.b16 %v715, %v714
  %v911 = vpack.c.b16 %v717, %v716
  %v912 = vpack.c.b16 %v719, %v718
  %v913 = vpack.c.b16 %v721, %v720
  %v914 = vpack.c.b16 %v723, %v722
  %v915 = vpack.c.b16 %v725, %v724
  %v916 = vpack.c.b16 %v727, %v726
  %v917 = vpack.c.b16 %v729, %v728
  %v918 = vpack.c.b16 %v731, %v730
  %v919 = vpack.c.b16 %v733, %v732
  %v920 = vpack.c.b16 %v735, %v734
  %v921 = vpack.c.b16 %v737, %v736
  %v922 = vpack.c.b16 %v739, %v738
  %v923 = vpack.c.b16 %v741, %v740
  %v924 = vpack.c.b16 %v743, %v742
  %v925 = vpack.c.b16 %v745, %v744
  %v926 = vpack.c.b16 %v747, %v746
  %v927 = vpack.c.b16 %v749, %v748
  %v928 = vpack.c.b16 %v751, %v750
  %v929 = vpack.c.b16 %v753, %v752
  %v930 = vpack.c.b16 %v755, %v754
  %v931 = vpack.c.b16 %v757, %v756
  %v932 = vpack.c.b16 %v759, %v758
  %v933 = vpack.c.b16 %v761, %v760
  %v934 = vpack.c.b16 %v763, %v762
  %v935 = vpack.c.b16 %v765, %v764
  %v936 = vpack.c.b16 %v767, %v766
  %v937 = vpack.c.b16 %v769, %v768
  %v938 = vpack.c.b16 %v771, %v770
  %v939 = vpack.c.b16 %v773, %v772
  %v940 = vpack.c.b16 %v775, %v774
  %v941 = vpack.c.b16 %v777, %v776
  %v942 = vpack.c.b16 %v779, %v778
  %v943 = vpack.c.b16 %v781, %v780
  %v944 = vpack.c.b16 %v783, %v782
  %v945 = vpack.c.b16 %v785, %v784
  %v946 = vpack.c.b16 %v787, %v786
  %v947 = vpack.c.b16 %v789, %v788
  %v948 = vpack.c.b16 %v791, %v790
  %v949 = vpack.c.b16 %v793, %v792
  %v950 = vpack.c.b16 %v795, %v794
  %v951 = vpack.c.b16 %v797, %v796
  %v952 = vpack.c.b16 %v799, %v798
  %v953 = vpack.c.b16 %v801, %v800
  %v954 = vpack.c.b16 %v803, %v802
  %v955 = vpack.c.b16 %v805, %v804
  %v956 = vpack.c.b16 %v807, %v806
  %v957 = vpack.c.b16 %v809, %v808
  %v958 = vpack.c.b16 %v811, %v810
  %v959 = vpack.c.b16 %v813, %v812
  %v960 = vpack.c.b16 %v815, %v814
  %v961 = vpack.c.b16 %v817, %v816
  %v962 = vpack.c.b16 %v819, %v818
  %v963 = vpack.c.b16 %v821, %v820
  %v964 = vpack.c.b16 %v823, %v822
  %v965 = vpack.c.b16 %v825, %v824
  %v966 = vpack.c.b16 %v827, %v826
  %v967 = vpack.c.b16 %v829, %v828
  %v968 = vpack.c.b16 %v831, %v830
  %v969 = vpack.c.b16 %v833, %v832
  %v970 = vpack.c.b16 %v835, %v834
  %v971 = vpack.c.b16 %v837, %v836
  %v972 = vpack.c.b16 %v839, %v838
  %v973 = vpack.c.b16 %v841, %v840
  %v974 = vpack.c.b16 %v843, %v842
  %v975 = vpack.c.b16 %v845, %v844
  %v976 = vpack.c.b16 %v847, %v846
  %v977 = vpack.c.b16 %v849, %v848
  %1106 = vmatpush.bf16.msra.mxu0 %v857
  %1107 = vmatpush.bf16.msra.mxu0 %v856
  %1108 = vmatpush.bf16.msra.mxu0 %v855
  %1109 = vmatpush.bf16.msra.mxu0 %v854
  %1110 = vmatpush.bf16.msra.mxu0 %v853
  %1111 = vmatpush.bf16.msra.mxu0 %v852
  %1112 = vmatpush.bf16.msra.mxu0 %v851
  %1113 = vmatpush.bf16.msra.mxu0 %v850
  %1114 = vmatmul.bf16.gmra.mxu0 %v306
  %v1115 = vpop.f32.mrf.mxu0
  %v1116 = vadd.f32 %v280, %v1115
  %v1117 = vpop.f32.mrf.mxu0
  %1118 = vdwg.mxu0
  %1119 = vmatpush.bf16.msra.mxu0 %v865
  %1120 = vmatpush.bf16.msra.mxu0 %v864
  %1121 = vmatpush.bf16.msra.mxu0 %v863
  %1122 = vmatpush.bf16.msra.mxu0 %v862
  %1123 = vmatpush.bf16.msra.mxu0 %v861
  %1124 = vmatpush.bf16.msra.mxu0 %v860
  %1125 = vmatpush.bf16.msra.mxu0 %v859
  %1126 = vmatpush.bf16.msra.mxu0 %v858
  %1127 = vmatmul.bf16.gmra.mxu0 %v307
  %v1128 = vpop.f32.mrf.mxu0
  %v1129 = vadd.f32 %v1116, %v1128
  %v1130 = vpop.f32.mrf.mxu0
  %1131 = vdwg.mxu0
  %1132 = vmatpush.bf16.msra.mxu0 %v873
  %1133 = vmatpush.bf16.msra.mxu0 %v872
  %1134 = vmatpush.bf16.msra.mxu0 %v871
  %1135 = vmatpush.bf16.msra.mxu0 %v870
  %1136 = vmatpush.bf16.msra.mxu0 %v869
  %1137 = vmatpush.bf16.msra.mxu0 %v868
  %1138 = vmatpush.bf16.msra.mxu0 %v867
  %1139 = vmatpush.bf16.msra.mxu0 %v866
  %1140 = vmatmul.bf16.gmra.mxu0 %v308
  %v1141 = vpop.f32.mrf.mxu0
  %v1142 = vadd.f32 %v1129, %v1141
  %v1143 = vpop.f32.mrf.mxu0
  %1144 = vdwg.mxu0
  %1145 = vmatpush.bf16.msra.mxu0 %v881
  %1146 = vmatpush.bf16.msra.mxu0 %v880
  %1147 = vmatpush.bf16.msra.mxu0 %v879
  %1148 = vmatpush.bf16.msra.mxu0 %v878
  %1149 = vmatpush.bf16.msra.mxu0 %v877
  %1150 = vmatpush.bf16.msra.mxu0 %v876
  %1151 = vmatpush.bf16.msra.mxu0 %v875
  %1152 = vmatpush.bf16.msra.mxu0 %v874
  %1153 = vmatmul.bf16.gmra.mxu0 %v309
  %v1154 = vpop.f32.mrf.mxu0
  %v1155 = vadd.f32 %v1142, %v1154
  %v1156 = vpop.f32.mrf.mxu0
  %1157 = vdwg.mxu0
  %1158 = vmatpush.bf16.msra.mxu0 %v889
  %1159 = vmatpush.bf16.msra.mxu0 %v888
  %1160 = vmatpush.bf16.msra.mxu0 %v887
  %1161 = vmatpush.bf16.msra.mxu0 %v886
  %1162 = vmatpush.bf16.msra.mxu0 %v885
  %1163 = vmatpush.bf16.msra.mxu0 %v884
  %1164 = vmatpush.bf16.msra.mxu0 %v883
  %1165 = vmatpush.bf16.msra.mxu0 %v882
  %1166 = vmatmul.bf16.gmra.mxu0 %v310
  %v1167 = vpop.f32.mrf.mxu0
  %v1168 = vadd.f32 %v1155, %v1167
  %v1169 = vpop.f32.mrf.mxu0
  %1170 = vdwg.mxu0
  %1171 = vmatpush.bf16.msra.mxu0 %v897
  %1172 = vmatpush.bf16.msra.mxu0 %v896
  %1173 = vmatpush.bf16.msra.mxu0 %v895
  %1174 = vmatpush.bf16.msra.mxu0 %v894
  %1175 = vmatpush.bf16.msra.mxu0 %v893
  %1176 = vmatpush.bf16.msra.mxu0 %v892
  %1177 = vmatpush.bf16.msra.mxu0 %v891
  %1178 = vmatpush.bf16.msra.mxu0 %v890
  %1179 = vmatmul.bf16.gmra.mxu0 %v311
  %v1180 = vpop.f32.mrf.mxu0
  %v1181 = vadd.f32 %v1168, %v1180
  %v1182 = vpop.f32.mrf.mxu0
  %1183 = vdwg.mxu0
  %1184 = vmatpush.bf16.msra.mxu0 %v905
  %1185 = vmatpush.bf16.msra.mxu0 %v904
  %1186 = vmatpush.bf16.msra.mxu0 %v903
  %1187 = vmatpush.bf16.msra.mxu0 %v902
  %1188 = vmatpush.bf16.msra.mxu0 %v901
  %1189 = vmatpush.bf16.msra.mxu0 %v900
  %1190 = vmatpush.bf16.msra.mxu0 %v899
  %1191 = vmatpush.bf16.msra.mxu0 %v898
  %1192 = vmatmul.bf16.gmra.mxu0 %v312
  %v1193 = vpop.f32.mrf.mxu0
  %v1194 = vadd.f32 %v1181, %v1193
  %v1195 = vpop.f32.mrf.mxu0
  %1196 = vdwg.mxu0
  %1197 = vmatpush.bf16.msra.mxu0 %v913
  %1198 = vmatpush.bf16.msra.mxu0 %v912
  %1199 = vmatpush.bf16.msra.mxu0 %v911
  %1200 = vmatpush.bf16.msra.mxu0 %v910
  %1201 = vmatpush.bf16.msra.mxu0 %v909
  %1202 = vmatpush.bf16.msra.mxu0 %v908
  %1203 = vmatpush.bf16.msra.mxu0 %v907
  %1204 = vmatpush.bf16.msra.mxu0 %v906
  %1205 = vmatmul.bf16.gmra.mxu0 %v313
  %v1206 = vpop.f32.mrf.mxu0
  %v1207 = vadd.f32 %v1194, %v1206
  %v1208 = vpop.f32.mrf.mxu0
  %1209 = vdwg.mxu0
  %1210 = vmatpush.bf16.msra.mxu0 %v921
  %1211 = vmatpush.bf16.msra.mxu0 %v920
  %1212 = vmatpush.bf16.msra.mxu0 %v919
  %1213 = vmatpush.bf16.msra.mxu0 %v918
  %1214 = vmatpush.bf16.msra.mxu0 %v917
  %1215 = vmatpush.bf16.msra.mxu0 %v916
  %1216 = vmatpush.bf16.msra.mxu0 %v915
  %1217 = vmatpush.bf16.msra.mxu0 %v914
  %1218 = vmatmul.bf16.gmra.mxu0 %v314
  %v1219 = vpop.f32.mrf.mxu0
  %v1220 = vadd.f32 %v1207, %v1219
  %v1221 = vpop.f32.mrf.mxu0
  %1222 = vdwg.mxu0
  %1223 = vmatpush.bf16.msra.mxu0 %v929
  %1224 = vmatpush.bf16.msra.mxu0 %v928
  %1225 = vmatpush.bf16.msra.mxu0 %v927
  %1226 = vmatpush.bf16.msra.mxu0 %v926
  %1227 = vmatpush.bf16.msra.mxu0 %v925
  %1228 = vmatpush.bf16.msra.mxu0 %v924
  %1229 = vmatpush.bf16.msra.mxu0 %v923
  %1230 = vmatpush.bf16.msra.mxu0 %v922
  %1231 = vmatmul.bf16.gmra.mxu0 %v315
  %v1232 = vpop.f32.mrf.mxu0
  %v1233 = vadd.f32 %v1220, %v1232
  %v1234 = vpop.f32.mrf.mxu0
  %1235 = vdwg.mxu0
  %1236 = vmatpush.bf16.msra.mxu0 %v937
  %1237 = vmatpush.bf16.msra.mxu0 %v936
  %1238 = vmatpush.bf16.msra.mxu0 %v935
  %1239 = vmatpush.bf16.msra.mxu0 %v934
  %1240 = vmatpush.bf16.msra.mxu0 %v933
  %1241 = vmatpush.bf16.msra.mxu0 %v932
  %1242 = vmatpush.bf16.msra.mxu0 %v931
  %1243 = vmatpush.bf16.msra.mxu0 %v930
  %1244 = vmatmul.bf16.gmra.mxu0 %v316
  %v1245 = vpop.f32.mrf.mxu0
  %v1246 = vadd.f32 %v1233, %v1245
  %v1247 = vpop.f32.mrf.mxu0
  %1248 = vdwg.mxu0
  %1249 = vmatpush.bf16.msra.mxu0 %v945
  %1250 = vmatpush.bf16.msra.mxu0 %v944
  %1251 = vmatpush.bf16.msra.mxu0 %v943
  %1252 = vmatpush.bf16.msra.mxu0 %v942
  %1253 = vmatpush.bf16.msra.mxu0 %v941
  %1254 = vmatpush.bf16.msra.mxu0 %v940
  %1255 = vmatpush.bf16.msra.mxu0 %v939
  %1256 = vmatpush.bf16.msra.mxu0 %v938
  %1257 = vmatmul.bf16.gmra.mxu0 %v317
  %v1258 = vpop.f32.mrf.mxu0
  %v1259 = vadd.f32 %v1246, %v1258
  %v1260 = vpop.f32.mrf.mxu0
  %1261 = vdwg.mxu0
  %1262 = vmatpush.bf16.msra.mxu0 %v953
  %1263 = vmatpush.bf16.msra.mxu0 %v952
  %1264 = vmatpush.bf16.msra.mxu0 %v951
  %1265 = vmatpush.bf16.msra.mxu0 %v950
  %1266 = vmatpush.bf16.msra.mxu0 %v949
  %1267 = vmatpush.bf16.msra.mxu0 %v948
  %1268 = vmatpush.bf16.msra.mxu0 %v947
  %1269 = vmatpush.bf16.msra.mxu0 %v946
  %1270 = vmatmul.bf16.gmra.mxu0 %v318
  %v1271 = vpop.f32.mrf.mxu0
  %v1272 = vadd.f32 %v1259, %v1271
  %v1273 = vpop.f32.mrf.mxu0
  %1274 = vdwg.mxu0
  %1275 = vmatpush.bf16.msra.mxu0 %v961
  %1276 = vmatpush.bf16.msra.mxu0 %v960
  %1277 = vmatpush.bf16.msra.mxu0 %v959
  %1278 = vmatpush.bf16.msra.mxu0 %v958
  %1279 = vmatpush.bf16.msra.mxu0 %v957
  %1280 = vmatpush.bf16.msra.mxu0 %v956
  %1281 = vmatpush.bf16.msra.mxu0 %v955
  %1282 = vmatpush.bf16.msra.mxu0 %v954
  %1283 = vmatmul.bf16.gmra.mxu0 %v319
  %v1284 = vpop.f32.mrf.mxu0
  %v1285 = vadd.f32 %v1272, %v1284
  %v1286 = vpop.f32.mrf.mxu0
  %1287 = vdwg.mxu0
  %1288 = vmatpush.bf16.msra.mxu0 %v969
  %1289 = vmatpush.bf16.msra.mxu0 %v968
  %1290 = vmatpush.bf16.msra.mxu0 %v967
  %1291 = vmatpush.bf16.msra.mxu0 %v966
  %1292 = vmatpush.bf16.msra.mxu0 %v965
  %1293 = vmatpush.bf16.msra.mxu0 %v964
  %1294 = vmatpush.bf16.msra.mxu0 %v963
  %1295 = vmatpush.bf16.msra.mxu0 %v962
  %1296 = vmatmul.bf16.gmra.mxu0 %v320
  %v1297 = vpop.f32.mrf.mxu0
  %v1298 = vadd.f32 %v1285, %v1297
  %v1299 = vpop.f32.mrf.mxu0
  %1300 = vdwg.mxu0
  %1301 = vmatpush.bf16.msra.mxu0 %v977
  %1302 = vmatpush.bf16.msra.mxu0 %v976
  %1303 = vmatpush.bf16.msra.mxu0 %v975
  %1304 = vmatpush.bf16.msra.mxu0 %v974
  %1305 = vmatpush.bf16.msra.mxu0 %v973
  %1306 = vmatpush.bf16.msra.mxu0 %v972
  %1307 = vmatpush.bf16.msra.mxu0 %v971
  %1308 = vmatpush.bf16.msra.mxu0 %v970
  %1309 = vmatmul.bf16.gmra.mxu0 %v321
  %v1310 = vpop.f32.mrf.mxu0
  %v1311 = vadd.f32 %v1298, %v1310
  %v1312 = vpop.f32.mrf.mxu0
  %1313 = vdwg.mxu0
  %1314 = vst [vmem:[%s3] sm:$0xff] %v1311
  // Predicated region
  $region14: #{_lambda_.9} parent=0 // pred_check
    _
  $region15: #{_lambda_.9} parent=0 // pred_check_branch
    %1316 = sbr.rel (0) target = $region17
  $region16: #{_lambda_.9} parent=0 // pred_region
    _
  $region17: #{_lambda_.9} parent=0 // pred_fallthru
    _
  // Predicated region
  $region18: #{_lambda_.9} parent=0 // pred_check
    _
  $region19: #{_lambda_.9} parent=0 // pred_check_branch
    %1318 = sbr.rel (0) target = $region21
  $region20: #{_lambda_.9} parent=0 // pred_region
    _
  $region21: #{_lambda_.9} parent=0 // pred_fallthru
    _

</llo_original>
